<compile_context>
chip_gen: v7x
topology: tpu7x:2x2x1
jax: 0.10.0
libtpu: 0.0.40
codegen_flags: <defaults>
</compile_context>

<pallas_src>
import functools

import jax
import jax.numpy as jnp
from jax.experimental import pallas as pl
from jax.experimental.pallas import tpu as pltpu


LEAKY_SLOPE = 0.2
BN_EPS = 1e-5
LANE = 128


def _round_up(x, m):
    return (x + m - 1) // m * m


@functools.lru_cache(maxsize=None)
def _compiler_params():
    # Generation-aware VMEM budget: ~45% of physical (v7x 64 MiB -> ~28 MiB,
    # v5e/v6e 128 MiB -> ~57 MiB).  Working sets here are << 1 MiB anyway.
    try:
        cap = int(pltpu.get_tpu_info().vmem_capacity_bytes)
    except Exception:  # pragma: no cover - conservative fallback
        cap = 64 * 1024 * 1024
    return pltpu.CompilerParams(
        vmem_limit_bytes=min(int(cap * 0.45), 96 * 1024 * 1024))


# ----------------------------------------------------------------------------
# Fused conv kernels (im2col built in VMEM from contiguous tap slices)
# ----------------------------------------------------------------------------
def _conv_acc(x_ref, w_ref, offs, m_rows):
    """sum_t  X[off_t : off_t + m_rows, :] @ W[t]   with f32 accumulation."""
    acc = None
    for t, off in enumerate(offs):                    # static unrolled taps
        part = jnp.dot(x_ref[off:off + m_rows, :], w_ref[t],
                       preferred_element_type=jnp.float32)
        acc = part if acc is None else acc + part
    return acc


def _conv_bias_act_kernel(x_ref, w_ref, b_ref, o_ref, *, offs, m_rows, act):
    z = _conv_acc(x_ref, w_ref, offs, m_rows) + b_ref[...]
    if act == "leaky":
        y = jnp.where(z >= 0.0, z, LEAKY_SLOPE * z)
    else:  # numerically-stable sigmoid; exp runs on the (otherwise idle) EUP
        ez = jnp.exp(-jnp.abs(z))
        y = jnp.where(z >= 0.0, 1.0 / (1.0 + ez), ez / (1.0 + ez))
    o_ref[...] = y.astype(o_ref.dtype)


def _conv_bn_lrelu_kernel(x_ref, w_ref, m_ref, g_ref, b_ref, o_ref, *,
                          offs, m_rows, inv_count):
    z = _conv_acc(x_ref, w_ref, offs, m_rows)         # (m_rows, Cp) f32
    mask = m_ref[...]                                  # (m_rows, 1) 1.0 = valid
    # Centered two-pass batch statistics (training-mode, biased variance).
    mean = jnp.sum(z * mask, axis=0, keepdims=True) * inv_count
    zc = z - mean
    var = jnp.sum(zc * zc * mask, axis=0, keepdims=True) * inv_count
    scale = g_ref[...] * jax.lax.rsqrt(var + BN_EPS)
    y = zc * scale + b_ref[...]
    y = jnp.where(y >= 0.0, y, LEAKY_SLOPE * y)
    o_ref[...] = y.astype(o_ref.dtype)


def conv_bias_act(xb, wp, bias, *, offs, m_rows, act, out_dtype):
    cp = wp.shape[-1]
    return pl.pallas_call(
        functools.partial(_conv_bias_act_kernel, offs=offs, m_rows=m_rows,
                          act=act),
        out_shape=jax.ShapeDtypeStruct((m_rows, cp), out_dtype),
        compiler_params=_compiler_params(),
    )(xb, wp, bias)


def conv_bn_lrelu(xb, wp, mask, gamma, beta, *, offs, m_rows, count, out_dtype):
    cp = wp.shape[-1]
    return pl.pallas_call(
        functools.partial(_conv_bn_lrelu_kernel, offs=offs, m_rows=m_rows,
                          inv_count=1.0 / float(count)),
        out_shape=jax.ShapeDtypeStruct((m_rows, cp), out_dtype),
        compiler_params=_compiler_params(),
    )(xb, wp, mask, gamma, beta)


# ----------------------------------------------------------------------------
# Layer wrapper: pad (+ space-to-depth for stride 2) + flatten, then one call
# ----------------------------------------------------------------------------
def conv_layer(x, pk, *, stride, cout, use_bn, act, out_dtype):
    """x: (N, H, W, Cin) NHWC.  4x4 conv, pad=1, given stride.  Returns NHWC."""
    n, h, w, c = x.shape
    k = 4
    if stride == 2:
        assert h % 2 == 0 and w % 2 == 0, "stride-2 layers need even H, W"
    kt = k // stride                       # taps per spatial dim after s2d
    hfl = (h + 2) // stride                # flattened (s2d) spatial extent
    wfl = (w + 2) // stride
    ho, wo = hfl - (kt - 1), wfl - (kt - 1)
    ce = c * stride * stride               # channels after space-to-depth
    cp = pk["w"].shape[-1]                 # lane-padded Cout

    # pad=1, then (stride 2) space-to-depth: 4x4/s2 conv == 2x2/s1 conv on 4C.
    xp = jnp.pad(x, ((0, 0), (1, 1), (1, 1), (0, 0)))
    if stride == 2:
        xp = xp.reshape(n, hfl, 2, wfl, 2, c)
        xp = xp.transpose(0, 1, 3, 2, 4, 5).reshape(n, hfl, wfl, ce)

    # Flatten (batch, spatial) so each kernel tap is ONE contiguous slice of
    # the flattened input inside the kernel (fused im2col, 1x HBM traffic).
    mtot = n * hfl * wfl
    m_rows = _round_up(mtot, 16)                        # native bf16 sublanes
    tail = _round_up((kt - 1) * (wfl + 1), 8)           # room for the last tap
    xb = xp.reshape(mtot, ce).astype(jnp.bfloat16)
    xb = jnp.pad(xb, ((0, m_rows - mtot + tail), (0, 0)))
    offs = tuple(a * wfl + b for a in range(kt) for b in range(kt))

    if use_bn:
        # Valid-row mask: excludes wrap-around garbage rows (oh>=ho or j>=wo)
        # and the row padding from the batch statistics.
        row_ok = (jnp.arange(hfl) < ho)[:, None] & (jnp.arange(wfl) < wo)[None, :]
        mask = jnp.broadcast_to(row_ok[None], (n, hfl, wfl)).reshape(mtot, 1)
        mask = jnp.pad(mask, ((0, m_rows - mtot), (0, 0))).astype(jnp.float32)
        out = conv_bn_lrelu(xb, pk["w"], mask, pk["gamma"], pk["beta"],
                            offs=offs, m_rows=m_rows, count=n * ho * wo,
                            out_dtype=out_dtype)
    else:
        out = conv_bias_act(xb, pk["w"], pk["bias"], offs=offs, m_rows=m_rows,
                            act=act, out_dtype=out_dtype)

    # Drop padded rows / garbage columns / padded channels.
    return out[:mtot].reshape(n, hfl, wfl, cp)[:, :ho, :wo, :cout]


# ----------------------------------------------------------------------------
# Static layer specs, synthetic params (PyTorch layouts) and one-time prepack
# ----------------------------------------------------------------------------
def layer_specs(input_channels, nf):
    return (
        dict(stride=2, cin=input_channels, cout=nf,     use_bn=False, act="leaky"),
        dict(stride=2, cin=nf,             cout=nf * 2, use_bn=True,  act="leaky"),
        dict(stride=2, cin=nf * 2,         cout=nf * 4, use_bn=True,  act="leaky"),
        dict(stride=1, cin=nf * 4,         cout=nf * 8, use_bn=True,  act="leaky"),
        dict(stride=1, cin=nf * 8,         cout=1,      use_bn=False, act="sigmoid"),
    )


def init_params(key, specs):
    params = []
    for kk, sp in zip(jax.random.split(key, len(specs)), specs):
        w = 0.02 * jax.random.normal(kk, (sp["cout"], sp["cin"], 4, 4), jnp.float32)
        p = dict(w=w, b=jnp.zeros((sp["cout"],), jnp.float32))
        if sp["use_bn"]:
            p["gamma"] = jnp.ones((sp["cout"],), jnp.float32)
            p["beta"] = jnp.zeros((sp["cout"],), jnp.float32)
        params.append(p)
    return params


def prepack_params(params, specs):
    """One-time repack outside the jitted forward:
    PyTorch (Cout,Cin,4,4) -> per-tap (kt*kt, s*s*Cin, Cp) bf16 (Cout padded to
    a lane multiple); bias/gamma/beta -> (1, Cp) f32."""
    packed = []
    for p, sp in zip(params, specs):
        w, s = p["w"], sp["stride"]
        cout, cin, k, _ = w.shape
        kt = k // s
        cp = _round_up(cout, LANE)
        wt = jnp.transpose(w, (2, 3, 1, 0)).reshape(kt, s, kt, s, cin, cout)
        wt = jnp.transpose(wt, (0, 2, 1, 3, 4, 5)).reshape(kt * kt, s * s * cin, cout)
        wt = jnp.pad(wt, ((0, 0), (0, 0), (0, cp - cout))).astype(jnp.bfloat16)
        pk = dict(w=wt)
        if sp["use_bn"]:
            # Conv bias is exactly cancelled by the BN mean subtraction
            # (training-mode batch statistics) -> dropped.
            pk["gamma"] = jnp.pad(p["gamma"], (0, cp - cout),
                                  constant_values=1.0).reshape(1, cp)
            pk["beta"] = jnp.pad(p["beta"], (0, cp - cout)).reshape(1, cp)
        else:
            pk["bias"] = jnp.pad(p["b"], (0, cp - cout)).reshape(1, cp)
        packed.append(pk)
    return packed


# ----------------------------------------------------------------------------
# Full forward pass (mirrors Discriminator.forward)
# ----------------------------------------------------------------------------
def build_forward(specs):
    @jax.jit
    def forward(x, y, packed):
        h = jnp.concatenate([x, y], axis=1)        # cat on channel dim (NCHW)
        h = jnp.transpose(h, (0, 2, 3, 1))         # NHWC once at the boundary
        h = h.astype(jnp.bfloat16)                 # bf16 activations end-to-end
        last = len(specs) - 1
        for i, (sp, pk) in enumerate(zip(specs, packed)):
            h = conv_layer(h, pk, stride=sp["stride"], cout=sp["cout"],
                           use_bn=sp["use_bn"], act=sp["act"],
                           out_dtype=jnp.float32 if i == last else jnp.bfloat16)
        return jnp.transpose(h, (0, 3, 1, 2))      # back to NCHW (f32)
    return forward


if __name__ == "__main__":
    key = jax.random.PRNGKey(0)
    kx, ky, kp = jax.random.split(key, 3)

    # Small shapes: x and y each (2, 2, 32, 32) -> concatenated channels = 4.
    N, Cx, Cy, S = 2, 2, 2, 32
    num_filters = 8

    specs = layer_specs(Cx + Cy, num_filters)
    x = jax.random.normal(kx, (N, Cx, S, S), jnp.float32)
    y = jax.random.normal(ky, (N, Cy, S, S), jnp.float32)
    params = init_params(kp, specs)
    packed = prepack_params(params, specs)          # one-time prepack, not jitted

    forward = build_forward(specs)
    out = jax.block_until_ready(forward(x, y, packed))

    # Spatial path: 32 -> 16 -> 8 -> 4 -> 3 -> 2, channels -> 1.
    assert out.shape == (N, 1, 2, 2), out.shape
    assert bool(jnp.all(jnp.isfinite(out)))
    assert bool(jnp.all((out >= 0.0) & (out <= 1.0)))
    print("KERNEL_OK")
</pallas_src>

<mosaic_0001>
module attributes {stable_mosaic.version = 11 : i64} {
  func.func @_conv_bias_act_kernel(%arg0: memref<616x16xbf16, #tpu.memory_space<vmem>>, %arg1: memref<4x16x128xbf16, #tpu.memory_space<vmem>>, %arg2: memref<1x128xf32, #tpu.memory_space<vmem>>, %arg3: memref<592x128xbf16, #tpu.memory_space<vmem>>) attributes {dimension_semantics = [], scalar_prefetch = 0 : i64, scratch_operands = 0 : i64, tpu.core_type = #tpu.core_type<tc>} {
    %c0 = arith.constant 0 : index
    %c0_0 = arith.constant 0 : index
    %0 = vector.load %arg0[%c0, %c0_0] : memref<616x16xbf16, #tpu.memory_space<vmem>>, vector<592x16xbf16>
    %c0_1 = arith.constant 0 : index
    %c0_2 = arith.constant 0 : index
    %c0_3 = arith.constant 0 : index
    %1 = vector.load %arg1[%c0_1, %c0_2, %c0_3] : memref<4x16x128xbf16, #tpu.memory_space<vmem>>, vector<1x16x128xbf16>
    %2 = vector.shape_cast %1 : vector<1x16x128xbf16> to vector<16x128xbf16>
    %cst = arith.constant dense<0.000000e+00> : vector<592x128xf32>
    %3 = tpu.matmul %0, %2, %cst {dimension_numbers = #tpu.dot_dimension_numbers<[1], [0], [0], [1], [0, 0, 1, 1], [], []>} : vector<592x16xbf16>, vector<16x128xbf16>, vector<592x128xf32> -> vector<592x128xf32>
    %c1 = arith.constant 1 : index
    %c0_4 = arith.constant 0 : index
    %4 = vector.load %arg0[%c1, %c0_4] : memref<616x16xbf16, #tpu.memory_space<vmem>>, vector<592x16xbf16>
    %c1_5 = arith.constant 1 : index
    %c0_6 = arith.constant 0 : index
    %c0_7 = arith.constant 0 : index
    %5 = vector.load %arg1[%c1_5, %c0_6, %c0_7] : memref<4x16x128xbf16, #tpu.memory_space<vmem>>, vector<1x16x128xbf16>
    %6 = vector.shape_cast %5 : vector<1x16x128xbf16> to vector<16x128xbf16>
    %cst_8 = arith.constant dense<0.000000e+00> : vector<592x128xf32>
    %7 = tpu.matmul %4, %6, %cst_8 {dimension_numbers = #tpu.dot_dimension_numbers<[1], [0], [0], [1], [0, 0, 1, 1], [], []>} : vector<592x16xbf16>, vector<16x128xbf16>, vector<592x128xf32> -> vector<592x128xf32>
    %8 = arith.addf %3, %7 : vector<592x128xf32>
    %c17 = arith.constant 17 : index
    %c0_9 = arith.constant 0 : index
    %9 = vector.load %arg0[%c17, %c0_9] : memref<616x16xbf16, #tpu.memory_space<vmem>>, vector<592x16xbf16>
    %c2 = arith.constant 2 : index
    %c0_10 = arith.constant 0 : index
    %c0_11 = arith.constant 0 : index
    %10 = vector.load %arg1[%c2, %c0_10, %c0_11] : memref<4x16x128xbf16, #tpu.memory_space<vmem>>, vector<1x16x128xbf16>
    %11 = vector.shape_cast %10 : vector<1x16x128xbf16> to vector<16x128xbf16>
    %cst_12 = arith.constant dense<0.000000e+00> : vector<592x128xf32>
    %12 = tpu.matmul %9, %11, %cst_12 {dimension_numbers = #tpu.dot_dimension_numbers<[1], [0], [0], [1], [0, 0, 1, 1], [], []>} : vector<592x16xbf16>, vector<16x128xbf16>, vector<592x128xf32> -> vector<592x128xf32>
    %13 = arith.addf %8, %12 : vector<592x128xf32>
    %c18 = arith.constant 18 : index
    %c0_13 = arith.constant 0 : index
    %14 = vector.load %arg0[%c18, %c0_13] : memref<616x16xbf16, #tpu.memory_space<vmem>>, vector<592x16xbf16>
    %c3 = arith.constant 3 : index
    %c0_14 = arith.constant 0 : index
    %c0_15 = arith.constant 0 : index
    %15 = vector.load %arg1[%c3, %c0_14, %c0_15] : memref<4x16x128xbf16, #tpu.memory_space<vmem>>, vector<1x16x128xbf16>
    %16 = vector.shape_cast %15 : vector<1x16x128xbf16> to vector<16x128xbf16>
    %cst_16 = arith.constant dense<0.000000e+00> : vector<592x128xf32>
    %17 = tpu.matmul %14, %16, %cst_16 {dimension_numbers = #tpu.dot_dimension_numbers<[1], [0], [0], [1], [0, 0, 1, 1], [], []>} : vector<592x16xbf16>, vector<16x128xbf16>, vector<592x128xf32> -> vector<592x128xf32>
    %18 = arith.addf %13, %17 : vector<592x128xf32>
    %c0_17 = arith.constant 0 : index
    %c0_18 = arith.constant 0 : index
    %19 = vector.load %arg2[%c0_17, %c0_18] : memref<1x128xf32, #tpu.memory_space<vmem>>, vector<1x128xf32>
    %20 = vector.broadcast %19 : vector<1x128xf32> to vector<592x128xf32>
    %21 = arith.addf %18, %20 : vector<592x128xf32>
    %cst_19 = arith.constant 0.000000e+00 : f32
    %22 = vector.broadcast %cst_19 : f32 to vector<592x128xf32>
    %23 = arith.cmpf oge, %21, %22 : vector<592x128xf32>
    %cst_20 = arith.constant 2.000000e-01 : f32
    %24 = vector.broadcast %cst_20 : f32 to vector<592x128xf32>
    %25 = arith.mulf %24, %21 : vector<592x128xf32>
    %26 = arith.select %23, %21, %25 : vector<592x128xi1>, vector<592x128xf32>
    %27 = arith.truncf %26 : vector<592x128xf32> to vector<592x128xbf16>
    %c0_21 = arith.constant 0 : index
    %c0_22 = arith.constant 0 : index
    %28 = vector.load %arg3[%c0_21, %c0_22] : memref<592x128xbf16, #tpu.memory_space<vmem>>, vector<592x128xbf16>
    tpu.vector_store %arg3[%c0_21, %c0_22], %27 {strides = array<i32>} : memref<592x128xbf16, #tpu.memory_space<vmem>>, vector<592x128xbf16>,
    return
  }
}

module attributes {stable_mosaic.version = 11 : i64} {
  func.func @_conv_bn_lrelu_kernel(%arg0: memref<192x32xbf16, #tpu.memory_space<vmem>>, %arg1: memref<4x32x128xbf16, #tpu.memory_space<vmem>>, %arg2: memref<176x1xf32, #tpu.memory_space<vmem>>, %arg3: memref<1x128xf32, #tpu.memory_space<vmem>>, %arg4: memref<1x128xf32, #tpu.memory_space<vmem>>, %arg5: memref<176x128xbf16, #tpu.memory_space<vmem>>) attributes {dimension_semantics = [], scalar_prefetch = 0 : i64, scratch_operands = 0 : i64, tpu.core_type = #tpu.core_type<tc>} {
    %c0 = arith.constant 0 : index
    %c0_0 = arith.constant 0 : index
    %0 = vector.load %arg0[%c0, %c0_0] : memref<192x32xbf16, #tpu.memory_space<vmem>>, vector<176x32xbf16>
    %c0_1 = arith.constant 0 : index
    %c0_2 = arith.constant 0 : index
    %c0_3 = arith.constant 0 : index
    %1 = vector.load %arg1[%c0_1, %c0_2, %c0_3] : memref<4x32x128xbf16, #tpu.memory_space<vmem>>, vector<1x32x128xbf16>
    %2 = vector.shape_cast %1 : vector<1x32x128xbf16> to vector<32x128xbf16>
    %cst = arith.constant dense<0.000000e+00> : vector<176x128xf32>
    %3 = tpu.matmul %0, %2, %cst {dimension_numbers = #tpu.dot_dimension_numbers<[1], [0], [0], [1], [0, 0, 1, 1], [], []>} : vector<176x32xbf16>, vector<32x128xbf16>, vector<176x128xf32> -> vector<176x128xf32>
    %c1 = arith.constant 1 : index
    %c0_4 = arith.constant 0 : index
    %4 = vector.load %arg0[%c1, %c0_4] : memref<192x32xbf16, #tpu.memory_space<vmem>>, vector<176x32xbf16>
    %c1_5 = arith.constant 1 : index
    %c0_6 = arith.constant 0 : index
    %c0_7 = arith.constant 0 : index
    %5 = vector.load %arg1[%c1_5, %c0_6, %c0_7] : memref<4x32x128xbf16, #tpu.memory_space<vmem>>, vector<1x32x128xbf16>
    %6 = vector.shape_cast %5 : vector<1x32x128xbf16> to vector<32x128xbf16>
    %cst_8 = arith.constant dense<0.000000e+00> : vector<176x128xf32>
    %7 = tpu.matmul %4, %6, %cst_8 {dimension_numbers = #tpu.dot_dimension_numbers<[1], [0], [0], [1], [0, 0, 1, 1], [], []>} : vector<176x32xbf16>, vector<32x128xbf16>, vector<176x128xf32> -> vector<176x128xf32>
    %8 = arith.addf %3, %7 : vector<176x128xf32>
    %c9 = arith.constant 9 : index
    %c0_9 = arith.constant 0 : index
    %9 = vector.load %arg0[%c9, %c0_9] : memref<192x32xbf16, #tpu.memory_space<vmem>>, vector<176x32xbf16>
    %c2 = arith.constant 2 : index
    %c0_10 = arith.constant 0 : index
    %c0_11 = arith.constant 0 : index
    %10 = vector.load %arg1[%c2, %c0_10, %c0_11] : memref<4x32x128xbf16, #tpu.memory_space<vmem>>, vector<1x32x128xbf16>
    %11 = vector.shape_cast %10 : vector<1x32x128xbf16> to vector<32x128xbf16>
    %cst_12 = arith.constant dense<0.000000e+00> : vector<176x128xf32>
    %12 = tpu.matmul %9, %11, %cst_12 {dimension_numbers = #tpu.dot_dimension_numbers<[1], [0], [0], [1], [0, 0, 1, 1], [], []>} : vector<176x32xbf16>, vector<32x128xbf16>, vector<176x128xf32> -> vector<176x128xf32>
    %13 = arith.addf %8, %12 : vector<176x128xf32>
    %c10 = arith.constant 10 : index
    %c0_13 = arith.constant 0 : index
    %14 = vector.load %arg0[%c10, %c0_13] : memref<192x32xbf16, #tpu.memory_space<vmem>>, vector<176x32xbf16>
    %c3 = arith.constant 3 : index
    %c0_14 = arith.constant 0 : index
    %c0_15 = arith.constant 0 : index
    %15 = vector.load %arg1[%c3, %c0_14, %c0_15] : memref<4x32x128xbf16, #tpu.memory_space<vmem>>, vector<1x32x128xbf16>
    %16 = vector.shape_cast %15 : vector<1x32x128xbf16> to vector<32x128xbf16>
    %cst_16 = arith.constant dense<0.000000e+00> : vector<176x128xf32>
    %17 = tpu.matmul %14, %16, %cst_16 {dimension_numbers = #tpu.dot_dimension_numbers<[1], [0], [0], [1], [0, 0, 1, 1], [], []>} : vector<176x32xbf16>, vector<32x128xbf16>, vector<176x128xf32> -> vector<176x128xf32>
    %18 = arith.addf %13, %17 : vector<176x128xf32>
    %c0_17 = arith.constant 0 : index
    %c0_18 = arith.constant 0 : index
    %19 = vector.load %arg2[%c0_17, %c0_18] : memref<176x1xf32, #tpu.memory_space<vmem>>, vector<176x1xf32>
    %20 = vector.broadcast %19 : vector<176x1xf32> to vector<176x128xf32>
    %21 = arith.mulf %18, %20 : vector<176x128xf32>
    %cst_19 = arith.constant dense<0.000000e+00> : vector<128xf32>
    %22 = vector.multi_reduction <add>, %21, %cst_19 [0] : vector<176x128xf32> to vector<128xf32>
    %23 = vector.shape_cast %22 : vector<128xf32> to vector<1x128xf32>
    %cst_20 = arith.constant 7.812500e-03 : f32
    %24 = vector.broadcast %cst_20 : f32 to vector<1x128xf32>
    %25 = arith.mulf %23, %24 : vector<1x128xf32>
    %26 = vector.broadcast %25 : vector<1x128xf32> to vector<176x128xf32>
    %27 = arith.subf %18, %26 : vector<176x128xf32>
    %28 = arith.mulf %27, %27 : vector<176x128xf32>
    %29 = vector.broadcast %19 : vector<176x1xf32> to vector<176x128xf32>
    %30 = arith.mulf %28, %29 : vector<176x128xf32>
    %cst_21 = arith.constant dense<0.000000e+00> : vector<128xf32>
    %31 = vector.multi_reduction <add>, %30, %cst_21 [0] : vector<176x128xf32> to vector<128xf32>
    %32 = vector.shape_cast %31 : vector<128xf32> to vector<1x128xf32>
    %cst_22 = arith.constant 7.812500e-03 : f32
    %33 = vector.broadcast %cst_22 : f32 to vector<1x128xf32>
    %34 = arith.mulf %32, %33 : vector<1x128xf32>
    %c0_23 = arith.constant 0 : index
    %c0_24 = arith.constant 0 : index
    %35 = vector.load %arg3[%c0_23, %c0_24] : memref<1x128xf32, #tpu.memory_space<vmem>>, vector<1x128xf32>
    %cst_25 = arith.constant 9.99999974E-6 : f32
    %36 = vector.broadcast %cst_25 : f32 to vector<1x128xf32>
    %37 = arith.addf %34, %36 : vector<1x128xf32>
    %38 = math.rsqrt %37 : vector<1x128xf32>
    %39 = arith.mulf %35, %38 : vector<1x128xf32>
    %40 = vector.broadcast %39 : vector<1x128xf32> to vector<176x128xf32>
    %41 = arith.mulf %27, %40 : vector<176x128xf32>
    %c0_26 = arith.constant 0 : index
    %c0_27 = arith.constant 0 : index
    %42 = vector.load %arg4[%c0_26, %c0_27] : memref<1x128xf32, #tpu.memory_space<vmem>>, vector<1x128xf32>
    %43 = vector.broadcast %42 : vector<1x128xf32> to vector<176x128xf32>
    %44 = arith.addf %41, %43 : vector<176x128xf32>
    %cst_28 = arith.constant 0.000000e+00 : f32
    %45 = vector.broadcast %cst_28 : f32 to vector<176x128xf32>
    %46 = arith.cmpf oge, %44, %45 : vector<176x128xf32>
    %cst_29 = arith.constant 2.000000e-01 : f32
    %47 = vector.broadcast %cst_29 : f32 to vector<176x128xf32>
    %48 = arith.mulf %47, %44 : vector<176x128xf32>
    %49 = arith.select %46, %44, %48 : vector<176x128xi1>, vector<176x128xf32>
    %50 = arith.truncf %49 : vector<176x128xf32> to vector<176x128xbf16>
    %c0_30 = arith.constant 0 : index
    %c0_31 = arith.constant 0 : index
    %51 = vector.load %arg5[%c0_30, %c0_31] : memref<176x128xbf16, #tpu.memory_space<vmem>>, vector<176x128xbf16>
    tpu.vector_store %arg5[%c0_30, %c0_31], %50 {strides = array<i32>} : memref<176x128xbf16, #tpu.memory_space<vmem>>, vector<176x128xbf16>,
    return
  }
}

module attributes {stable_mosaic.version = 11 : i64} {
  func.func @_conv_bn_lrelu_kernel(%arg0: memref<72x64xbf16, #tpu.memory_space<vmem>>, %arg1: memref<4x64x128xbf16, #tpu.memory_space<vmem>>, %arg2: memref<64x1xf32, #tpu.memory_space<vmem>>, %arg3: memref<1x128xf32, #tpu.memory_space<vmem>>, %arg4: memref<1x128xf32, #tpu.memory_space<vmem>>, %arg5: memref<64x128xbf16, #tpu.memory_space<vmem>>) attributes {dimension_semantics = [], scalar_prefetch = 0 : i64, scratch_operands = 0 : i64, tpu.core_type = #tpu.core_type<tc>} {
    %c0 = arith.constant 0 : index
    %c0_0 = arith.constant 0 : index
    %0 = vector.load %arg0[%c0, %c0_0] : memref<72x64xbf16, #tpu.memory_space<vmem>>, vector<64x64xbf16>
    %c0_1 = arith.constant 0 : index
    %c0_2 = arith.constant 0 : index
    %c0_3 = arith.constant 0 : index
    %1 = vector.load %arg1[%c0_1, %c0_2, %c0_3] : memref<4x64x128xbf16, #tpu.memory_space<vmem>>, vector<1x64x128xbf16>
    %2 = vector.shape_cast %1 : vector<1x64x128xbf16> to vector<64x128xbf16>
    %cst = arith.constant dense<0.000000e+00> : vector<64x128xf32>
    %3 = tpu.matmul %0, %2, %cst {dimension_numbers = #tpu.dot_dimension_numbers<[1], [0], [0], [1], [0, 0, 1, 1], [], []>} : vector<64x64xbf16>, vector<64x128xbf16>, vector<64x128xf32> -> vector<64x128xf32>
    %c1 = arith.constant 1 : index
    %c0_4 = arith.constant 0 : index
    %4 = vector.load %arg0[%c1, %c0_4] : memref<72x64xbf16, #tpu.memory_space<vmem>>, vector<64x64xbf16>
    %c1_5 = arith.constant 1 : index
    %c0_6 = arith.constant 0 : index
    %c0_7 = arith.constant 0 : index
    %5 = vector.load %arg1[%c1_5, %c0_6, %c0_7] : memref<4x64x128xbf16, #tpu.memory_space<vmem>>, vector<1x64x128xbf16>
    %6 = vector.shape_cast %5 : vector<1x64x128xbf16> to vector<64x128xbf16>
    %cst_8 = arith.constant dense<0.000000e+00> : vector<64x128xf32>
    %7 = tpu.matmul %4, %6, %cst_8 {dimension_numbers = #tpu.dot_dimension_numbers<[1], [0], [0], [1], [0, 0, 1, 1], [], []>} : vector<64x64xbf16>, vector<64x128xbf16>, vector<64x128xf32> -> vector<64x128xf32>
    %8 = arith.addf %3, %7 : vector<64x128xf32>
    %c5 = arith.constant 5 : index
    %c0_9 = arith.constant 0 : index
    %9 = vector.load %arg0[%c5, %c0_9] : memref<72x64xbf16, #tpu.memory_space<vmem>>, vector<64x64xbf16>
    %c2 = arith.constant 2 : index
    %c0_10 = arith.constant 0 : index
    %c0_11 = arith.constant 0 : index
    %10 = vector.load %arg1[%c2, %c0_10, %c0_11] : memref<4x64x128xbf16, #tpu.memory_space<vmem>>, vector<1x64x128xbf16>
    %11 = vector.shape_cast %10 : vector<1x64x128xbf16> to vector<64x128xbf16>
    %cst_12 = arith.constant dense<0.000000e+00> : vector<64x128xf32>
    %12 = tpu.matmul %9, %11, %cst_12 {dimension_numbers = #tpu.dot_dimension_numbers<[1], [0], [0], [1], [0, 0, 1, 1], [], []>} : vector<64x64xbf16>, vector<64x128xbf16>, vector<64x128xf32> -> vector<64x128xf32>
    %13 = arith.addf %8, %12 : vector<64x128xf32>
    %c6 = arith.constant 6 : index
    %c0_13 = arith.constant 0 : index
    %14 = vector.load %arg0[%c6, %c0_13] : memref<72x64xbf16, #tpu.memory_space<vmem>>, vector<64x64xbf16>
    %c3 = arith.constant 3 : index
    %c0_14 = arith.constant 0 : index
    %c0_15 = arith.constant 0 : index
    %15 = vector.load %arg1[%c3, %c0_14, %c0_15] : memref<4x64x128xbf16, #tpu.memory_space<vmem>>, vector<1x64x128xbf16>
    %16 = vector.shape_cast %15 : vector<1x64x128xbf16> to vector<64x128xbf16>
    %cst_16 = arith.constant dense<0.000000e+00> : vector<64x128xf32>
    %17 = tpu.matmul %14, %16, %cst_16 {dimension_numbers = #tpu.dot_dimension_numbers<[1], [0], [0], [1], [0, 0, 1, 1], [], []>} : vector<64x64xbf16>, vector<64x128xbf16>, vector<64x128xf32> -> vector<64x128xf32>
    %18 = arith.addf %13, %17 : vector<64x128xf32>
    %c0_17 = arith.constant 0 : index
    %c0_18 = arith.constant 0 : index
    %19 = vector.load %arg2[%c0_17, %c0_18] : memref<64x1xf32, #tpu.memory_space<vmem>>, vector<64x1xf32>
    %20 = vector.broadcast %19 : vector<64x1xf32> to vector<64x128xf32>
    %21 = arith.mulf %18, %20 : vector<64x128xf32>
    %cst_19 = arith.constant dense<0.000000e+00> : vector<128xf32>
    %22 = vector.multi_reduction <add>, %21, %cst_19 [0] : vector<64x128xf32> to vector<128xf32>
    %23 = vector.shape_cast %22 : vector<128xf32> to vector<1x128xf32>
    %cst_20 = arith.constant 3.125000e-02 : f32
    %24 = vector.broadcast %cst_20 : f32 to vector<1x128xf32>
    %25 = arith.mulf %23, %24 : vector<1x128xf32>
    %26 = vector.broadcast %25 : vector<1x128xf32> to vector<64x128xf32>
    %27 = arith.subf %18, %26 : vector<64x128xf32>
    %28 = arith.mulf %27, %27 : vector<64x128xf32>
    %29 = vector.broadcast %19 : vector<64x1xf32> to vector<64x128xf32>
    %30 = arith.mulf %28, %29 : vector<64x128xf32>
    %cst_21 = arith.constant dense<0.000000e+00> : vector<128xf32>
    %31 = vector.multi_reduction <add>, %30, %cst_21 [0] : vector<64x128xf32> to vector<128xf32>
    %32 = vector.shape_cast %31 : vector<128xf32> to vector<1x128xf32>
    %cst_22 = arith.constant 3.125000e-02 : f32
    %33 = vector.broadcast %cst_22 : f32 to vector<1x128xf32>
    %34 = arith.mulf %32, %33 : vector<1x128xf32>
    %c0_23 = arith.constant 0 : index
    %c0_24 = arith.constant 0 : index
    %35 = vector.load %arg3[%c0_23, %c0_24] : memref<1x128xf32, #tpu.memory_space<vmem>>, vector<1x128xf32>
    %cst_25 = arith.constant 9.99999974E-6 : f32
    %36 = vector.broadcast %cst_25 : f32 to vector<1x128xf32>
    %37 = arith.addf %34, %36 : vector<1x128xf32>
    %38 = math.rsqrt %37 : vector<1x128xf32>
    %39 = arith.mulf %35, %38 : vector<1x128xf32>
    %40 = vector.broadcast %39 : vector<1x128xf32> to vector<64x128xf32>
    %41 = arith.mulf %27, %40 : vector<64x128xf32>
    %c0_26 = arith.constant 0 : index
    %c0_27 = arith.constant 0 : index
    %42 = vector.load %arg4[%c0_26, %c0_27] : memref<1x128xf32, #tpu.memory_space<vmem>>, vector<1x128xf32>
    %43 = vector.broadcast %42 : vector<1x128xf32> to vector<64x128xf32>
    %44 = arith.addf %41, %43 : vector<64x128xf32>
    %cst_28 = arith.constant 0.000000e+00 : f32
    %45 = vector.broadcast %cst_28 : f32 to vector<64x128xf32>
    %46 = arith.cmpf oge, %44, %45 : vector<64x128xf32>
    %cst_29 = arith.constant 2.000000e-01 : f32
    %47 = vector.broadcast %cst_29 : f32 to vector<64x128xf32>
    %48 = arith.mulf %47, %44 : vector<64x128xf32>
    %49 = arith.select %46, %44, %48 : vector<64x128xi1>, vector<64x128xf32>
    %50 = arith.truncf %49 : vector<64x128xf32> to vector<64x128xbf16>
    %c0_30 = arith.constant 0 : index
    %c0_31 = arith.constant 0 : index
    %51 = vector.load %arg5[%c0_30, %c0_31] : memref<64x128xbf16, #tpu.memory_space<vmem>>, vector<64x128xbf16>
    tpu.vector_store %arg5[%c0_30, %c0_31], %50 {strides = array<i32>} : memref<64x128xbf16, #tpu.memory_space<vmem>>, vector<64x128xbf16>,
    return
  }
}

module attributes {stable_mosaic.version = 11 : i64} {
  func.func @_conv_bn_lrelu_kernel(%arg0: memref<104x32xbf16, #tpu.memory_space<vmem>>, %arg1: memref<16x32x128xbf16, #tpu.memory_space<vmem>>, %arg2: memref<80x1xf32, #tpu.memory_space<vmem>>, %arg3: memref<1x128xf32, #tpu.memory_space<vmem>>, %arg4: memref<1x128xf32, #tpu.memory_space<vmem>>, %arg5: memref<80x128xbf16, #tpu.memory_space<vmem>>) attributes {dimension_semantics = [], scalar_prefetch = 0 : i64, scratch_operands = 0 : i64, tpu.core_type = #tpu.core_type<tc>} {
    %c0 = arith.constant 0 : index
    %c0_0 = arith.constant 0 : index
    %0 = vector.load %arg0[%c0, %c0_0] : memref<104x32xbf16, #tpu.memory_space<vmem>>, vector<80x32xbf16>
    %c0_1 = arith.constant 0 : index
    %c0_2 = arith.constant 0 : index
    %c0_3 = arith.constant 0 : index
    %1 = vector.load %arg1[%c0_1, %c0_2, %c0_3] : memref<16x32x128xbf16, #tpu.memory_space<vmem>>, vector<1x32x128xbf16>
    %2 = vector.shape_cast %1 : vector<1x32x128xbf16> to vector<32x128xbf16>
    %cst = arith.constant dense<0.000000e+00> : vector<80x128xf32>
    %3 = tpu.matmul %0, %2, %cst {dimension_numbers = #tpu.dot_dimension_numbers<[1], [0], [0], [1], [0, 0, 1, 1], [], []>} : vector<80x32xbf16>, vector<32x128xbf16>, vector<80x128xf32> -> vector<80x128xf32>
    %c1 = arith.constant 1 : index
    %c0_4 = arith.constant 0 : index
    %4 = vector.load %arg0[%c1, %c0_4] : memref<104x32xbf16, #tpu.memory_space<vmem>>, vector<80x32xbf16>
    %c1_5 = arith.constant 1 : index
    %c0_6 = arith.constant 0 : index
    %c0_7 = arith.constant 0 : index
    %5 = vector.load %arg1[%c1_5, %c0_6, %c0_7] : memref<16x32x128xbf16, #tpu.memory_space<vmem>>, vector<1x32x128xbf16>
    %6 = vector.shape_cast %5 : vector<1x32x128xbf16> to vector<32x128xbf16>
    %cst_8 = arith.constant dense<0.000000e+00> : vector<80x128xf32>
    %7 = tpu.matmul %4, %6, %cst_8 {dimension_numbers = #tpu.dot_dimension_numbers<[1], [0], [0], [1], [0, 0, 1, 1], [], []>} : vector<80x32xbf16>, vector<32x128xbf16>, vector<80x128xf32> -> vector<80x128xf32>
    %8 = arith.addf %3, %7 : vector<80x128xf32>
    %c2 = arith.constant 2 : index
    %c0_9 = arith.constant 0 : index
    %9 = vector.load %arg0[%c2, %c0_9] : memref<104x32xbf16, #tpu.memory_space<vmem>>, vector<80x32xbf16>
    %c2_10 = arith.constant 2 : index
    %c0_11 = arith.constant 0 : index
    %c0_12 = arith.constant 0 : index
    %10 = vector.load %arg1[%c2_10, %c0_11, %c0_12] : memref<16x32x128xbf16, #tpu.memory_space<vmem>>, vector<1x32x128xbf16>
    %11 = vector.shape_cast %10 : vector<1x32x128xbf16> to vector<32x128xbf16>
    %cst_13 = arith.constant dense<0.000000e+00> : vector<80x128xf32>
    %12 = tpu.matmul %9, %11, %cst_13 {dimension_numbers = #tpu.dot_dimension_numbers<[1], [0], [0], [1], [0, 0, 1, 1], [], []>} : vector<80x32xbf16>, vector<32x128xbf16>, vector<80x128xf32> -> vector<80x128xf32>
    %13 = arith.addf %8, %12 : vector<80x128xf32>
    %c3 = arith.constant 3 : index
    %c0_14 = arith.constant 0 : index
    %14 = vector.load %arg0[%c3, %c0_14] : memref<104x32xbf16, #tpu.memory_space<vmem>>, vector<80x32xbf16>
    %c3_15 = arith.constant 3 : index
    %c0_16 = arith.constant 0 : index
    %c0_17 = arith.constant 0 : index
    %15 = vector.load %arg1[%c3_15, %c0_16, %c0_17] : memref<16x32x128xbf16, #tpu.memory_space<vmem>>, vector<1x32x128xbf16>
    %16 = vector.shape_cast %15 : vector<1x32x128xbf16> to vector<32x128xbf16>
    %cst_18 = arith.constant dense<0.000000e+00> : vector<80x128xf32>
    %17 = tpu.matmul %14, %16, %cst_18 {dimension_numbers = #tpu.dot_dimension_numbers<[1], [0], [0], [1], [0, 0, 1, 1], [], []>} : vector<80x32xbf16>, vector<32x128xbf16>, vector<80x128xf32> -> vector<80x128xf32>
    %18 = arith.addf %13, %17 : vector<80x128xf32>
    %c6 = arith.constant 6 : index
    %c0_19 = arith.constant 0 : index
    %19 = vector.load %arg0[%c6, %c0_19] : memref<104x32xbf16, #tpu.memory_space<vmem>>, vector<80x32xbf16>
    %c4 = arith.constant 4 : index
    %c0_20 = arith.constant 0 : index
    %c0_21 = arith.constant 0 : index
    %20 = vector.load %arg1[%c4, %c0_20, %c0_21] : memref<16x32x128xbf16, #tpu.memory_space<vmem>>, vector<1x32x128xbf16>
    %21 = vector.shape_cast %20 : vector<1x32x128xbf16> to vector<32x128xbf16>
    %cst_22 = arith.constant dense<0.000000e+00> : vector<80x128xf32>
    %22 = tpu.matmul %19, %21, %cst_22 {dimension_numbers = #tpu.dot_dimension_numbers<[1], [0], [0], [1], [0, 0, 1, 1], [], []>} : vector<80x32xbf16>, vector<32x128xbf16>, vector<80x128xf32> -> vector<80x128xf32>
    %23 = arith.addf %18, %22 : vector<80x128xf32>
    %c7 = arith.constant 7 : index
    %c0_23 = arith.constant 0 : index
    %24 = vector.load %arg0[%c7, %c0_23] : memref<104x32xbf16, #tpu.memory_space<vmem>>, vector<80x32xbf16>
    %c5 = arith.constant 5 : index
    %c0_24 = arith.constant 0 : index
    %c0_25 = arith.constant 0 : index
    %25 = vector.load %arg1[%c5, %c0_24, %c0_25] : memref<16x32x128xbf16, #tpu.memory_space<vmem>>, vector<1x32x128xbf16>
    %26 = vector.shape_cast %25 : vector<1x32x128xbf16> to vector<32x128xbf16>
    %cst_26 = arith.constant dense<0.000000e+00> : vector<80x128xf32>
    %27 = tpu.matmul %24, %26, %cst_26 {dimension_numbers = #tpu.dot_dimension_numbers<[1], [0], [0], [1], [0, 0, 1, 1], [], []>} : vector<80x32xbf16>, vector<32x128xbf16>, vector<80x128xf32> -> vector<80x128xf32>
    %28 = arith.addf %23, %27 : vector<80x128xf32>
    %c8 = arith.constant 8 : index
    %c0_27 = arith.constant 0 : index
    %29 = vector.load %arg0[%c8, %c0_27] : memref<104x32xbf16, #tpu.memory_space<vmem>>, vector<80x32xbf16>
    %c6_28 = arith.constant 6 : index
    %c0_29 = arith.constant 0 : index
    %c0_30 = arith.constant 0 : index
    %30 = vector.load %arg1[%c6_28, %c0_29, %c0_30] : memref<16x32x128xbf16, #tpu.memory_space<vmem>>, vector<1x32x128xbf16>
    %31 = vector.shape_cast %30 : vector<1x32x128xbf16> to vector<32x128xbf16>
    %cst_31 = arith.constant dense<0.000000e+00> : vector<80x128xf32>
    %32 = tpu.matmul %29, %31, %cst_31 {dimension_numbers = #tpu.dot_dimension_numbers<[1], [0], [0], [1], [0, 0, 1, 1], [], []>} : vector<80x32xbf16>, vector<32x128xbf16>, vector<80x128xf32> -> vector<80x128xf32>
    %33 = arith.addf %28, %32 : vector<80x128xf32>
    %c9 = arith.constant 9 : index
    %c0_32 = arith.constant 0 : index
    %34 = vector.load %arg0[%c9, %c0_32] : memref<104x32xbf16, #tpu.memory_space<vmem>>, vector<80x32xbf16>
    %c7_33 = arith.constant 7 : index
    %c0_34 = arith.constant 0 : index
    %c0_35 = arith.constant 0 : index
    %35 = vector.load %arg1[%c7_33, %c0_34, %c0_35] : memref<16x32x128xbf16, #tpu.memory_space<vmem>>, vector<1x32x128xbf16>
    %36 = vector.shape_cast %35 : vector<1x32x128xbf16> to vector<32x128xbf16>
    %cst_36 = arith.constant dense<0.000000e+00> : vector<80x128xf32>
    %37 = tpu.matmul %34, %36, %cst_36 {dimension_numbers = #tpu.dot_dimension_numbers<[1], [0], [0], [1], [0, 0, 1, 1], [], []>} : vector<80x32xbf16>, vector<32x128xbf16>, vector<80x128xf32> -> vector<80x128xf32>
    %38 = arith.addf %33, %37 : vector<80x128xf32>
    %c12 = arith.constant 12 : index
    %c0_37 = arith.constant 0 : index
    %39 = vector.load %arg0[%c12, %c0_37] : memref<104x32xbf16, #tpu.memory_space<vmem>>, vector<80x32xbf16>
    %c8_38 = arith.constant 8 : index
    %c0_39 = arith.constant 0 : index
    %c0_40 = arith.constant 0 : index
    %40 = vector.load %arg1[%c8_38, %c0_39, %c0_40] : memref<16x32x128xbf16, #tpu.memory_space<vmem>>, vector<1x32x128xbf16>
    %41 = vector.shape_cast %40 : vector<1x32x128xbf16> to vector<32x128xbf16>
    %cst_41 = arith.constant dense<0.000000e+00> : vector<80x128xf32>
    %42 = tpu.matmul %39, %41, %cst_41 {dimension_numbers = #tpu.dot_dimension_numbers<[1], [0], [0], [1], [0, 0, 1, 1], [], []>} : vector<80x32xbf16>, vector<32x128xbf16>, vector<80x128xf32> -> vector<80x128xf32>
    %43 = arith.addf %38, %42 : vector<80x128xf32>
    %c13 = arith.constant 13 : index
    %c0_42 = arith.constant 0 : index
    %44 = vector.load %arg0[%c13, %c0_42] : memref<104x32xbf16, #tpu.memory_space<vmem>>, vector<80x32xbf16>
    %c9_43 = arith.constant 9 : index
    %c0_44 = arith.constant 0 : index
    %c0_45 = arith.constant 0 : index
    %45 = vector.load %arg1[%c9_43, %c0_44, %c0_45] : memref<16x32x128xbf16, #tpu.memory_space<vmem>>, vector<1x32x128xbf16>
    %46 = vector.shape_cast %45 : vector<1x32x128xbf16> to vector<32x128xbf16>
    %cst_46 = arith.constant dense<0.000000e+00> : vector<80x128xf32>
    %47 = tpu.matmul %44, %46, %cst_46 {dimension_numbers = #tpu.dot_dimension_numbers<[1], [0], [0], [1], [0, 0, 1, 1], [], []>} : vector<80x32xbf16>, vector<32x128xbf16>, vector<80x128xf32> -> vector<80x128xf32>
    %48 = arith.addf %43, %47 : vector<80x128xf32>
    %c14 = arith.constant 14 : index
    %c0_47 = arith.constant 0 : index
    %49 = vector.load %arg0[%c14, %c0_47] : memref<104x32xbf16, #tpu.memory_space<vmem>>, vector<80x32xbf16>
    %c10 = arith.constant 10 : index
    %c0_48 = arith.constant 0 : index
    %c0_49 = arith.constant 0 : index
    %50 = vector.load %arg1[%c10, %c0_48, %c0_49] : memref<16x32x128xbf16, #tpu.memory_space<vmem>>, vector<1x32x128xbf16>
    %51 = vector.shape_cast %50 : vector<1x32x128xbf16> to vector<32x128xbf16>
    %cst_50 = arith.constant dense<0.000000e+00> : vector<80x128xf32>
    %52 = tpu.matmul %49, %51, %cst_50 {dimension_numbers = #tpu.dot_dimension_numbers<[1], [0], [0], [1], [0, 0, 1, 1], [], []>} : vector<80x32xbf16>, vector<32x128xbf16>, vector<80x128xf32> -> vector<80x128xf32>
    %53 = arith.addf %48, %52 : vector<80x128xf32>
    %c15 = arith.constant 15 : index
    %c0_51 = arith.constant 0 : index
    %54 = vector.load %arg0[%c15, %c0_51] : memref<104x32xbf16, #tpu.memory_space<vmem>>, vector<80x32xbf16>
    %c11 = arith.constant 11 : index
    %c0_52 = arith.constant 0 : index
    %c0_53 = arith.constant 0 : index
    %55 = vector.load %arg1[%c11, %c0_52, %c0_53] : memref<16x32x128xbf16, #tpu.memory_space<vmem>>, vector<1x32x128xbf16>
    %56 = vector.shape_cast %55 : vector<1x32x128xbf16> to vector<32x128xbf16>
    %cst_54 = arith.constant dense<0.000000e+00> : vector<80x128xf32>
    %57 = tpu.matmul %54, %56, %cst_54 {dimension_numbers = #tpu.dot_dimension_numbers<[1], [0], [0], [1], [0, 0, 1, 1], [], []>} : vector<80x32xbf16>, vector<32x128xbf16>, vector<80x128xf32> -> vector<80x128xf32>
    %58 = arith.addf %53, %57 : vector<80x128xf32>
    %c18 = arith.constant 18 : index
    %c0_55 = arith.constant 0 : index
    %59 = vector.load %arg0[%c18, %c0_55] : memref<104x32xbf16, #tpu.memory_space<vmem>>, vector<80x32xbf16>
    %c12_56 = arith.constant 12 : index
    %c0_57 = arith.constant 0 : index
    %c0_58 = arith.constant 0 : index
    %60 = vector.load %arg1[%c12_56, %c0_57, %c0_58] : memref<16x32x128xbf16, #tpu.memory_space<vmem>>, vector<1x32x128xbf16>
    %61 = vector.shape_cast %60 : vector<1x32x128xbf16> to vector<32x128xbf16>
    %cst_59 = arith.constant dense<0.000000e+00> : vector<80x128xf32>
    %62 = tpu.matmul %59, %61, %cst_59 {dimension_numbers = #tpu.dot_dimension_numbers<[1], [0], [0], [1], [0, 0, 1, 1], [], []>} : vector<80x32xbf16>, vector<32x128xbf16>, vector<80x128xf32> -> vector<80x128xf32>
    %63 = arith.addf %58, %62 : vector<80x128xf32>
    %c19 = arith.constant 19 : index
    %c0_60 = arith.constant 0 : index
    %64 = vector.load %arg0[%c19, %c0_60] : memref<104x32xbf16, #tpu.memory_space<vmem>>, vector<80x32xbf16>
    %c13_61 = arith.constant 13 : index
    %c0_62 = arith.constant 0 : index
    %c0_63 = arith.constant 0 : index
    %65 = vector.load %arg1[%c13_61, %c0_62, %c0_63] : memref<16x32x128xbf16, #tpu.memory_space<vmem>>, vector<1x32x128xbf16>
    %66 = vector.shape_cast %65 : vector<1x32x128xbf16> to vector<32x128xbf16>
    %cst_64 = arith.constant dense<0.000000e+00> : vector<80x128xf32>
    %67 = tpu.matmul %64, %66, %cst_64 {dimension_numbers = #tpu.dot_dimension_numbers<[1], [0], [0], [1], [0, 0, 1, 1], [], []>} : vector<80x32xbf16>, vector<32x128xbf16>, vector<80x128xf32> -> vector<80x128xf32>
    %68 = arith.addf %63, %67 : vector<80x128xf32>
    %c20 = arith.constant 20 : index
    %c0_65 = arith.constant 0 : index
    %69 = vector.load %arg0[%c20, %c0_65] : memref<104x32xbf16, #tpu.memory_space<vmem>>, vector<80x32xbf16>
    %c14_66 = arith.constant 14 : index
    %c0_67 = arith.constant 0 : index
    %c0_68 = arith.constant 0 : index
    %70 = vector.load %arg1[%c14_66, %c0_67, %c0_68] : memref<16x32x128xbf16, #tpu.memory_space<vmem>>, vector<1x32x128xbf16>
    %71 = vector.shape_cast %70 : vector<1x32x128xbf16> to vector<32x128xbf16>
    %cst_69 = arith.constant dense<0.000000e+00> : vector<80x128xf32>
    %72 = tpu.matmul %69, %71, %cst_69 {dimension_numbers = #tpu.dot_dimension_numbers<[1], [0], [0], [1], [0, 0, 1, 1], [], []>} : vector<80x32xbf16>, vector<32x128xbf16>, vector<80x128xf32> -> vector<80x128xf32>
    %73 = arith.addf %68, %72 : vector<80x128xf32>
    %c21 = arith.constant 21 : index
    %c0_70 = arith.constant 0 : index
    %74 = vector.load %arg0[%c21, %c0_70] : memref<104x32xbf16, #tpu.memory_space<vmem>>, vector<80x32xbf16>
    %c15_71 = arith.constant 15 : index
    %c0_72 = arith.constant 0 : index
    %c0_73 = arith.constant 0 : index
    %75 = vector.load %arg1[%c15_71, %c0_72, %c0_73] : memref<16x32x128xbf16, #tpu.memory_space<vmem>>, vector<1x32x128xbf16>
    %76 = vector.shape_cast %75 : vector<1x32x128xbf16> to vector<32x128xbf16>
    %cst_74 = arith.constant dense<0.000000e+00> : vector<80x128xf32>
    %77 = tpu.matmul %74, %76, %cst_74 {dimension_numbers = #tpu.dot_dimension_numbers<[1], [0], [0], [1], [0, 0, 1, 1], [], []>} : vector<80x32xbf16>, vector<32x128xbf16>, vector<80x128xf32> -> vector<80x128xf32>
    %78 = arith.addf %73, %77 : vector<80x128xf32>
    %c0_75 = arith.constant 0 : index
    %c0_76 = arith.constant 0 : index
    %79 = vector.load %arg2[%c0_75, %c0_76] : memref<80x1xf32, #tpu.memory_space<vmem>>, vector<80x1xf32>
    %80 = vector.broadcast %79 : vector<80x1xf32> to vector<80x128xf32>
    %81 = arith.mulf %78, %80 : vector<80x128xf32>
    %cst_77 = arith.constant dense<0.000000e+00> : vector<128xf32>
    %82 = vector.multi_reduction <add>, %81, %cst_77 [0] : vector<80x128xf32> to vector<128xf32>
    %83 = vector.shape_cast %82 : vector<128xf32> to vector<1x128xf32>
    %cst_78 = arith.constant 0.055555556 : f32
    %84 = vector.broadcast %cst_78 : f32 to vector<1x128xf32>
    %85 = arith.mulf %83, %84 : vector<1x128xf32>
    %86 = vector.broadcast %85 : vector<1x128xf32> to vector<80x128xf32>
    %87 = arith.subf %78, %86 : vector<80x128xf32>
    %88 = arith.mulf %87, %87 : vector<80x128xf32>
    %89 = vector.broadcast %79 : vector<80x1xf32> to vector<80x128xf32>
    %90 = arith.mulf %88, %89 : vector<80x128xf32>
    %cst_79 = arith.constant dense<0.000000e+00> : vector<128xf32>
    %91 = vector.multi_reduction <add>, %90, %cst_79 [0] : vector<80x128xf32> to vector<128xf32>
    %92 = vector.shape_cast %91 : vector<128xf32> to vector<1x128xf32>
    %cst_80 = arith.constant 0.055555556 : f32
    %93 = vector.broadcast %cst_80 : f32 to vector<1x128xf32>
    %94 = arith.mulf %92, %93 : vector<1x128xf32>
    %c0_81 = arith.constant 0 : index
    %c0_82 = arith.constant 0 : index
    %95 = vector.load %arg3[%c0_81, %c0_82] : memref<1x128xf32, #tpu.memory_space<vmem>>, vector<1x128xf32>
    %cst_83 = arith.constant 9.99999974E-6 : f32
    %96 = vector.broadcast %cst_83 : f32 to vector<1x128xf32>
    %97 = arith.addf %94, %96 : vector<1x128xf32>
    %98 = math.rsqrt %97 : vector<1x128xf32>
    %99 = arith.mulf %95, %98 : vector<1x128xf32>
    %100 = vector.broadcast %99 : vector<1x128xf32> to vector<80x128xf32>
    %101 = arith.mulf %87, %100 : vector<80x128xf32>
    %c0_84 = arith.constant 0 : index
    %c0_85 = arith.constant 0 : index
    %102 = vector.load %arg4[%c0_84, %c0_85] : memref<1x128xf32, #tpu.memory_space<vmem>>, vector<1x128xf32>
    %103 = vector.broadcast %102 : vector<1x128xf32> to vector<80x128xf32>
    %104 = arith.addf %101, %103 : vector<80x128xf32>
    %cst_86 = arith.constant 0.000000e+00 : f32
    %105 = vector.broadcast %cst_86 : f32 to vector<80x128xf32>
    %106 = arith.cmpf oge, %104, %105 : vector<80x128xf32>
    %cst_87 = arith.constant 2.000000e-01 : f32
    %107 = vector.broadcast %cst_87 : f32 to vector<80x128xf32>
    %108 = arith.mulf %107, %104 : vector<80x128xf32>
    %109 = arith.select %106, %104, %108 : vector<80x128xi1>, vector<80x128xf32>
    %110 = arith.truncf %109 : vector<80x128xf32> to vector<80x128xbf16>
    %c0_88 = arith.constant 0 : index
    %c0_89 = arith.constant 0 : index
    %111 = vector.load %arg5[%c0_88, %c0_89] : memref<80x128xbf16, #tpu.memory_space<vmem>>, vector<80x128xbf16>
    tpu.vector_store %arg5[%c0_88, %c0_89], %110 {strides = array<i32>} : memref<80x128xbf16, #tpu.memory_space<vmem>>, vector<80x128xbf16>,
    return
  }
}

module attributes {stable_mosaic.version = 11 : i64} {
  func.func @_conv_bias_act_kernel(%arg0: memref<88x64xbf16, #tpu.memory_space<vmem>>, %arg1: memref<16x64x128xbf16, #tpu.memory_space<vmem>>, %arg2: memref<1x128xf32, #tpu.memory_space<vmem>>, %arg3: memref<64x128xf32, #tpu.memory_space<vmem>>) attributes {dimension_semantics = [], scalar_prefetch = 0 : i64, scratch_operands = 0 : i64, tpu.core_type = #tpu.core_type<tc>} {
    %c0 = arith.constant 0 : index
    %c0_0 = arith.constant 0 : index
    %0 = vector.load %arg0[%c0, %c0_0] : memref<88x64xbf16, #tpu.memory_space<vmem>>, vector<64x64xbf16>
    %c0_1 = arith.constant 0 : index
    %c0_2 = arith.constant 0 : index
    %c0_3 = arith.constant 0 : index
    %1 = vector.load %arg1[%c0_1, %c0_2, %c0_3] : memref<16x64x128xbf16, #tpu.memory_space<vmem>>, vector<1x64x128xbf16>
    %2 = vector.shape_cast %1 : vector<1x64x128xbf16> to vector<64x128xbf16>
    %cst = arith.constant dense<0.000000e+00> : vector<64x128xf32>
    %3 = tpu.matmul %0, %2, %cst {dimension_numbers = #tpu.dot_dimension_numbers<[1], [0], [0], [1], [0, 0, 1, 1], [], []>} : vector<64x64xbf16>, vector<64x128xbf16>, vector<64x128xf32> -> vector<64x128xf32>
    %c1 = arith.constant 1 : index
    %c0_4 = arith.constant 0 : index
    %4 = vector.load %arg0[%c1, %c0_4] : memref<88x64xbf16, #tpu.memory_space<vmem>>, vector<64x64xbf16>
    %c1_5 = arith.constant 1 : index
    %c0_6 = arith.constant 0 : index
    %c0_7 = arith.constant 0 : index
    %5 = vector.load %arg1[%c1_5, %c0_6, %c0_7] : memref<16x64x128xbf16, #tpu.memory_space<vmem>>, vector<1x64x128xbf16>
    %6 = vector.shape_cast %5 : vector<1x64x128xbf16> to vector<64x128xbf16>
    %cst_8 = arith.constant dense<0.000000e+00> : vector<64x128xf32>
    %7 = tpu.matmul %4, %6, %cst_8 {dimension_numbers = #tpu.dot_dimension_numbers<[1], [0], [0], [1], [0, 0, 1, 1], [], []>} : vector<64x64xbf16>, vector<64x128xbf16>, vector<64x128xf32> -> vector<64x128xf32>
    %8 = arith.addf %3, %7 : vector<64x128xf32>
    %c2 = arith.constant 2 : index
    %c0_9 = arith.constant 0 : index
    %9 = vector.load %arg0[%c2, %c0_9] : memref<88x64xbf16, #tpu.memory_space<vmem>>, vector<64x64xbf16>
    %c2_10 = arith.constant 2 : index
    %c0_11 = arith.constant 0 : index
    %c0_12 = arith.constant 0 : index
    %10 = vector.load %arg1[%c2_10, %c0_11, %c0_12] : memref<16x64x128xbf16, #tpu.memory_space<vmem>>, vector<1x64x128xbf16>
    %11 = vector.shape_cast %10 : vector<1x64x128xbf16> to vector<64x128xbf16>
    %cst_13 = arith.constant dense<0.000000e+00> : vector<64x128xf32>
    %12 = tpu.matmul %9, %11, %cst_13 {dimension_numbers = #tpu.dot_dimension_numbers<[1], [0], [0], [1], [0, 0, 1, 1], [], []>} : vector<64x64xbf16>, vector<64x128xbf16>, vector<64x128xf32> -> vector<64x128xf32>
    %13 = arith.addf %8, %12 : vector<64x128xf32>
    %c3 = arith.constant 3 : index
    %c0_14 = arith.constant 0 : index
    %14 = vector.load %arg0[%c3, %c0_14] : memref<88x64xbf16, #tpu.memory_space<vmem>>, vector<64x64xbf16>
    %c3_15 = arith.constant 3 : index
    %c0_16 = arith.constant 0 : index
    %c0_17 = arith.constant 0 : index
    %15 = vector.load %arg1[%c3_15, %c0_16, %c0_17] : memref<16x64x128xbf16, #tpu.memory_space<vmem>>, vector<1x64x128xbf16>
    %16 = vector.shape_cast %15 : vector<1x64x128xbf16> to vector<64x128xbf16>
    %cst_18 = arith.constant dense<0.000000e+00> : vector<64x128xf32>
    %17 = tpu.matmul %14, %16, %cst_18 {dimension_numbers = #tpu.dot_dimension_numbers<[1], [0], [0], [1], [0, 0, 1, 1], [], []>} : vector<64x64xbf16>, vector<64x128xbf16>, vector<64x128xf32> -> vector<64x128xf32>
    %18 = arith.addf %13, %17 : vector<64x128xf32>
    %c5 = arith.constant 5 : index
    %c0_19 = arith.constant 0 : index
    %19 = vector.load %arg0[%c5, %c0_19] : memref<88x64xbf16, #tpu.memory_space<vmem>>, vector<64x64xbf16>
    %c4 = arith.constant 4 : index
    %c0_20 = arith.constant 0 : index
    %c0_21 = arith.constant 0 : index
    %20 = vector.load %arg1[%c4, %c0_20, %c0_21] : memref<16x64x128xbf16, #tpu.memory_space<vmem>>, vector<1x64x128xbf16>
    %21 = vector.shape_cast %20 : vector<1x64x128xbf16> to vector<64x128xbf16>
    %cst_22 = arith.constant dense<0.000000e+00> : vector<64x128xf32>
    %22 = tpu.matmul %19, %21, %cst_22 {dimension_numbers = #tpu.dot_dimension_numbers<[1], [0], [0], [1], [0, 0, 1, 1], [], []>} : vector<64x64xbf16>, vector<64x128xbf16>, vector<64x128xf32> -> vector<64x128xf32>
    %23 = arith.addf %18, %22 : vector<64x128xf32>
    %c6 = arith.constant 6 : index
    %c0_23 = arith.constant 0 : index
    %24 = vector.load %arg0[%c6, %c0_23] : memref<88x64xbf16, #tpu.memory_space<vmem>>, vector<64x64xbf16>
    %c5_24 = arith.constant 5 : index
    %c0_25 = arith.constant 0 : index
    %c0_26 = arith.constant 0 : index
    %25 = vector.load %arg1[%c5_24, %c0_25, %c0_26] : memref<16x64x128xbf16, #tpu.memory_space<vmem>>, vector<1x64x128xbf16>
    %26 = vector.shape_cast %25 : vector<1x64x128xbf16> to vector<64x128xbf16>
    %cst_27 = arith.constant dense<0.000000e+00> : vector<64x128xf32>
    %27 = tpu.matmul %24, %26, %cst_27 {dimension_numbers = #tpu.dot_dimension_numbers<[1], [0], [0], [1], [0, 0, 1, 1], [], []>} : vector<64x64xbf16>, vector<64x128xbf16>, vector<64x128xf32> -> vector<64x128xf32>
    %28 = arith.addf %23, %27 : vector<64x128xf32>
    %c7 = arith.constant 7 : index
    %c0_28 = arith.constant 0 : index
    %29 = vector.load %arg0[%c7, %c0_28] : memref<88x64xbf16, #tpu.memory_space<vmem>>, vector<64x64xbf16>
    %c6_29 = arith.constant 6 : index
    %c0_30 = arith.constant 0 : index
    %c0_31 = arith.constant 0 : index
    %30 = vector.load %arg1[%c6_29, %c0_30, %c0_31] : memref<16x64x128xbf16, #tpu.memory_space<vmem>>, vector<1x64x128xbf16>
    %31 = vector.shape_cast %30 : vector<1x64x128xbf16> to vector<64x128xbf16>
    %cst_32 = arith.constant dense<0.000000e+00> : vector<64x128xf32>
    %32 = tpu.matmul %29, %31, %cst_32 {dimension_numbers = #tpu.dot_dimension_numbers<[1], [0], [0], [1], [0, 0, 1, 1], [], []>} : vector<64x64xbf16>, vector<64x128xbf16>, vector<64x128xf32> -> vector<64x128xf32>
    %33 = arith.addf %28, %32 : vector<64x128xf32>
    %c8 = arith.constant 8 : index
    %c0_33 = arith.constant 0 : index
    %34 = vector.load %arg0[%c8, %c0_33] : memref<88x64xbf16, #tpu.memory_space<vmem>>, vector<64x64xbf16>
    %c7_34 = arith.constant 7 : index
    %c0_35 = arith.constant 0 : index
    %c0_36 = arith.constant 0 : index
    %35 = vector.load %arg1[%c7_34, %c0_35, %c0_36] : memref<16x64x128xbf16, #tpu.memory_space<vmem>>, vector<1x64x128xbf16>
    %36 = vector.shape_cast %35 : vector<1x64x128xbf16> to vector<64x128xbf16>
    %cst_37 = arith.constant dense<0.000000e+00> : vector<64x128xf32>
    %37 = tpu.matmul %34, %36, %cst_37 {dimension_numbers = #tpu.dot_dimension_numbers<[1], [0], [0], [1], [0, 0, 1, 1], [], []>} : vector<64x64xbf16>, vector<64x128xbf16>, vector<64x128xf32> -> vector<64x128xf32>
    %38 = arith.addf %33, %37 : vector<64x128xf32>
    %c10 = arith.constant 10 : index
    %c0_38 = arith.constant 0 : index
    %39 = vector.load %arg0[%c10, %c0_38] : memref<88x64xbf16, #tpu.memory_space<vmem>>, vector<64x64xbf16>
    %c8_39 = arith.constant 8 : index
    %c0_40 = arith.constant 0 : index
    %c0_41 = arith.constant 0 : index
    %40 = vector.load %arg1[%c8_39, %c0_40, %c0_41] : memref<16x64x128xbf16, #tpu.memory_space<vmem>>, vector<1x64x128xbf16>
    %41 = vector.shape_cast %40 : vector<1x64x128xbf16> to vector<64x128xbf16>
    %cst_42 = arith.constant dense<0.000000e+00> : vector<64x128xf32>
    %42 = tpu.matmul %39, %41, %cst_42 {dimension_numbers = #tpu.dot_dimension_numbers<[1], [0], [0], [1], [0, 0, 1, 1], [], []>} : vector<64x64xbf16>, vector<64x128xbf16>, vector<64x128xf32> -> vector<64x128xf32>
    %43 = arith.addf %38, %42 : vector<64x128xf32>
    %c11 = arith.constant 11 : index
    %c0_43 = arith.constant 0 : index
    %44 = vector.load %arg0[%c11, %c0_43] : memref<88x64xbf16, #tpu.memory_space<vmem>>, vector<64x64xbf16>
    %c9 = arith.constant 9 : index
    %c0_44 = arith.constant 0 : index
    %c0_45 = arith.constant 0 : index
    %45 = vector.load %arg1[%c9, %c0_44, %c0_45] : memref<16x64x128xbf16, #tpu.memory_space<vmem>>, vector<1x64x128xbf16>
    %46 = vector.shape_cast %45 : vector<1x64x128xbf16> to vector<64x128xbf16>
    %cst_46 = arith.constant dense<0.000000e+00> : vector<64x128xf32>
    %47 = tpu.matmul %44, %46, %cst_46 {dimension_numbers = #tpu.dot_dimension_numbers<[1], [0], [0], [1], [0, 0, 1, 1], [], []>} : vector<64x64xbf16>, vector<64x128xbf16>, vector<64x128xf32> -> vector<64x128xf32>
    %48 = arith.addf %43, %47 : vector<64x128xf32>
    %c12 = arith.constant 12 : index
    %c0_47 = arith.constant 0 : index
    %49 = vector.load %arg0[%c12, %c0_47] : memref<88x64xbf16, #tpu.memory_space<vmem>>, vector<64x64xbf16>
    %c10_48 = arith.constant 10 : index
    %c0_49 = arith.constant 0 : index
    %c0_50 = arith.constant 0 : index
    %50 = vector.load %arg1[%c10_48, %c0_49, %c0_50] : memref<16x64x128xbf16, #tpu.memory_space<vmem>>, vector<1x64x128xbf16>
    %51 = vector.shape_cast %50 : vector<1x64x128xbf16> to vector<64x128xbf16>
    %cst_51 = arith.constant dense<0.000000e+00> : vector<64x128xf32>
    %52 = tpu.matmul %49, %51, %cst_51 {dimension_numbers = #tpu.dot_dimension_numbers<[1], [0], [0], [1], [0, 0, 1, 1], [], []>} : vector<64x64xbf16>, vector<64x128xbf16>, vector<64x128xf32> -> vector<64x128xf32>
    %53 = arith.addf %48, %52 : vector<64x128xf32>
    %c13 = arith.constant 13 : index
    %c0_52 = arith.constant 0 : index
    %54 = vector.load %arg0[%c13, %c0_52] : memref<88x64xbf16, #tpu.memory_space<vmem>>, vector<64x64xbf16>
    %c11_53 = arith.constant 11 : index
    %c0_54 = arith.constant 0 : index
    %c0_55 = arith.constant 0 : index
    %55 = vector.load %arg1[%c11_53, %c0_54, %c0_55] : memref<16x64x128xbf16, #tpu.memory_space<vmem>>, vector<1x64x128xbf16>
    %56 = vector.shape_cast %55 : vector<1x64x128xbf16> to vector<64x128xbf16>
    %cst_56 = arith.constant dense<0.000000e+00> : vector<64x128xf32>
    %57 = tpu.matmul %54, %56, %cst_56 {dimension_numbers = #tpu.dot_dimension_numbers<[1], [0], [0], [1], [0, 0, 1, 1], [], []>} : vector<64x64xbf16>, vector<64x128xbf16>, vector<64x128xf32> -> vector<64x128xf32>
    %58 = arith.addf %53, %57 : vector<64x128xf32>
    %c15 = arith.constant 15 : index
    %c0_57 = arith.constant 0 : index
    %59 = vector.load %arg0[%c15, %c0_57] : memref<88x64xbf16, #tpu.memory_space<vmem>>, vector<64x64xbf16>
    %c12_58 = arith.constant 12 : index
    %c0_59 = arith.constant 0 : index
    %c0_60 = arith.constant 0 : index
    %60 = vector.load %arg1[%c12_58, %c0_59, %c0_60] : memref<16x64x128xbf16, #tpu.memory_space<vmem>>, vector<1x64x128xbf16>
    %61 = vector.shape_cast %60 : vector<1x64x128xbf16> to vector<64x128xbf16>
    %cst_61 = arith.constant dense<0.000000e+00> : vector<64x128xf32>
    %62 = tpu.matmul %59, %61, %cst_61 {dimension_numbers = #tpu.dot_dimension_numbers<[1], [0], [0], [1], [0, 0, 1, 1], [], []>} : vector<64x64xbf16>, vector<64x128xbf16>, vector<64x128xf32> -> vector<64x128xf32>
    %63 = arith.addf %58, %62 : vector<64x128xf32>
    %c16 = arith.constant 16 : index
    %c0_62 = arith.constant 0 : index
    %64 = vector.load %arg0[%c16, %c0_62] : memref<88x64xbf16, #tpu.memory_space<vmem>>, vector<64x64xbf16>
    %c13_63 = arith.constant 13 : index
    %c0_64 = arith.constant 0 : index
    %c0_65 = arith.constant 0 : index
    %65 = vector.load %arg1[%c13_63, %c0_64, %c0_65] : memref<16x64x128xbf16, #tpu.memory_space<vmem>>, vector<1x64x128xbf16>
    %66 = vector.shape_cast %65 : vector<1x64x128xbf16> to vector<64x128xbf16>
    %cst_66 = arith.constant dense<0.000000e+00> : vector<64x128xf32>
    %67 = tpu.matmul %64, %66, %cst_66 {dimension_numbers = #tpu.dot_dimension_numbers<[1], [0], [0], [1], [0, 0, 1, 1], [], []>} : vector<64x64xbf16>, vector<64x128xbf16>, vector<64x128xf32> -> vector<64x128xf32>
    %68 = arith.addf %63, %67 : vector<64x128xf32>
    %c17 = arith.constant 17 : index
    %c0_67 = arith.constant 0 : index
    %69 = vector.load %arg0[%c17, %c0_67] : memref<88x64xbf16, #tpu.memory_space<vmem>>, vector<64x64xbf16>
    %c14 = arith.constant 14 : index
    %c0_68 = arith.constant 0 : index
    %c0_69 = arith.constant 0 : index
    %70 = vector.load %arg1[%c14, %c0_68, %c0_69] : memref<16x64x128xbf16, #tpu.memory_space<vmem>>, vector<1x64x128xbf16>
    %71 = vector.shape_cast %70 : vector<1x64x128xbf16> to vector<64x128xbf16>
    %cst_70 = arith.constant dense<0.000000e+00> : vector<64x128xf32>
    %72 = tpu.matmul %69, %71, %cst_70 {dimension_numbers = #tpu.dot_dimension_numbers<[1], [0], [0], [1], [0, 0, 1, 1], [], []>} : vector<64x64xbf16>, vector<64x128xbf16>, vector<64x128xf32> -> vector<64x128xf32>
    %73 = arith.addf %68, %72 : vector<64x128xf32>
    %c18 = arith.constant 18 : index
    %c0_71 = arith.constant 0 : index
    %74 = vector.load %arg0[%c18, %c0_71] : memref<88x64xbf16, #tpu.memory_space<vmem>>, vector<64x64xbf16>
    %c15_72 = arith.constant 15 : index
    %c0_73 = arith.constant 0 : index
    %c0_74 = arith.constant 0 : index
    %75 = vector.load %arg1[%c15_72, %c0_73, %c0_74] : memref<16x64x128xbf16, #tpu.memory_space<vmem>>, vector<1x64x128xbf16>
    %76 = vector.shape_cast %75 : vector<1x64x128xbf16> to vector<64x128xbf16>
    %cst_75 = arith.constant dense<0.000000e+00> : vector<64x128xf32>
    %77 = tpu.matmul %74, %76, %cst_75 {dimension_numbers = #tpu.dot_dimension_numbers<[1], [0], [0], [1], [0, 0, 1, 1], [], []>} : vector<64x64xbf16>, vector<64x128xbf16>, vector<64x128xf32> -> vector<64x128xf32>
    %78 = arith.addf %73, %77 : vector<64x128xf32>
    %c0_76 = arith.constant 0 : index
    %c0_77 = arith.constant 0 : index
    %79 = vector.load %arg2[%c0_76, %c0_77] : memref<1x128xf32, #tpu.memory_space<vmem>>, vector<1x128xf32>
    %80 = vector.broadcast %79 : vector<1x128xf32> to vector<64x128xf32>
    %81 = arith.addf %78, %80 : vector<64x128xf32>
    %82 = math.absf %81 : vector<64x128xf32>
    %cst_78 = arith.constant 0.000000e+00 : f32
    %83 = vector.broadcast %cst_78 : f32 to vector<64x128xf32>
    %84 = arith.subf %83, %82 : vector<64x128xf32>
    %85 = math.exp %84 : vector<64x128xf32>
    %cst_79 = arith.constant 0.000000e+00 : f32
    %86 = vector.broadcast %cst_79 : f32 to vector<64x128xf32>
    %87 = arith.cmpf oge, %81, %86 : vector<64x128xf32>
    %cst_80 = arith.constant 1.000000e+00 : f32
    %88 = vector.broadcast %cst_80 : f32 to vector<64x128xf32>
    %89 = arith.addf %88, %85 : vector<64x128xf32>
    %cst_81 = arith.constant 1.000000e+00 : f32
    %90 = vector.broadcast %cst_81 : f32 to vector<64x128xf32>
    %91 = arith.divf %90, %89 : vector<64x128xf32>
    %cst_82 = arith.constant 1.000000e+00 : f32
    %92 = vector.broadcast %cst_82 : f32 to vector<64x128xf32>
    %93 = arith.addf %92, %85 : vector<64x128xf32>
    %94 = arith.divf %85, %93 : vector<64x128xf32>
    %95 = arith.select %87, %91, %94 : vector<64x128xi1>, vector<64x128xf32>
    %c0_83 = arith.constant 0 : index
    %c0_84 = arith.constant 0 : index
    %96 = vector.load %arg3[%c0_83, %c0_84] : memref<64x128xf32, #tpu.memory_space<vmem>>, vector<64x128xf32>
    tpu.vector_store %arg3[%c0_83, %c0_84], %95 {strides = array<i32>} : memref<64x128xf32, #tpu.memory_space<vmem>>, vector<64x128xf32>,
    return
  }
}

</mosaic_0001>

<llo_original>
// kernel: forward.5
$region0: #{forward.5}
  #allocation0 [shape = 'u32[]', space=smem, size = 0x4, offset = 0x4, fixed_abs, tag = 'smem constant byte address 0x4 - core index']
  #allocation1 [shape = 'u32[144,128]{1,0:T(1,128)}', space=vmem, size = 0x12000, scoped, tag = 'internal scratch']
  %s0 = inlined_call_operand.vmem [shape: bf16[616,16], index: 0, kind: input, shape index: {}]
  %s1 = inlined_call_operand.vmem [shape: bf16[4,16,128], index: 1, kind: input, shape index: {}]
  %s2 = inlined_call_operand.vmem [shape: f32[1,128], index: 2, kind: input, shape index: {}]
  %s3 = inlined_call_operand.vmem [shape: bf16[592,128], index: 3, kind: output, shape index: {}]
  %s4 = sld [smem:[#allocation0]]
  $region22: #{forward.5} parent=0
    _
  %s6 = ssub.s32 1, %s4
  %s7 = scalar_select 0, %s6, %s4
  // Predicated region
  $region2: #{forward.5} parent=0 // pred_check
    _
  $region3: #{forward.5} parent=0 // pred_check_branch
    %9 = sbr.rel (0) target = $region5
  $region4: #{forward.5} parent=0 // pred_region
    _
  $region5: #{forward.5} parent=0 // pred_fallthru
    _
  // Predicated region
  $region6: #{forward.5} parent=0 // pred_check
    _
  $region7: #{forward.5} parent=0 // pred_check_branch
    %11 = sbr.rel (0) target = $region9
  $region8: #{forward.5} parent=0 // pred_region
    _
  $region9: #{forward.5} parent=0 // pred_fallthru
    _
  // Predicated region
  $region10: #{forward.5} parent=0 // pred_check
    _
  $region11: #{forward.5} parent=0 // pred_check_branch
    %13 = sbr.rel (0) target = $region13
  $region12: #{forward.5} parent=0 // pred_region
    _
  $region13: #{forward.5} parent=0 // pred_fallthru
    _
  %v15 = vld [vmem:[%s0] sm:$0xf]
  %v16 = vld [vmem:[%s0 + $0x4] sm:$0xf]
  %v17 = vld [vmem:[%s0 + $0x8] sm:$0xf]
  %v18 = vld [vmem:[%s0 + $0xc] sm:$0xf]
  %v19 = vld [vmem:[%s0 + $0x10] sm:$0xf]
  %v20 = vld [vmem:[%s0 + $0x14] sm:$0xf]
  %v21 = vld [vmem:[%s0 + $0x18] sm:$0xf]
  %v22 = vld [vmem:[%s0 + $0x1c] sm:$0xf]
  %v23 = vld [vmem:[%s0 + $0x20] sm:$0xf]
  %v24 = vld [vmem:[%s0 + $0x24] sm:$0xf]
  %v25 = vld [vmem:[%s0 + $0x28] sm:$0xf]
  %v26 = vld [vmem:[%s0 + $0x2c] sm:$0xf]
  %v27 = vld [vmem:[%s0 + $0x30] sm:$0xf]
  %v28 = vld [vmem:[%s0 + $0x34] sm:$0xf]
  %v29 = vld [vmem:[%s0 + $0x38] sm:$0xf]
  %v30 = vld [vmem:[%s0 + $0x3c] sm:$0xf]
  %v31 = vld [vmem:[%s0 + $0x40] sm:$0xf]
  %v32 = vld [vmem:[%s0 + $0x44] sm:$0xf]
  %v33 = vld [vmem:[%s0 + $0x48] sm:$0xf]
  %v34 = vld [vmem:[%s0 + $0x4c] sm:$0xf]
  %v35 = vld [vmem:[%s0 + $0x50] sm:$0xf]
  %v36 = vld [vmem:[%s0 + $0x54] sm:$0xf]
  %v37 = vld [vmem:[%s0 + $0x58] sm:$0xf]
  %v38 = vld [vmem:[%s0 + $0x5c] sm:$0xf]
  %v39 = vld [vmem:[%s0 + $0x60] sm:$0xf]
  %v40 = vld [vmem:[%s0 + $0x64] sm:$0xf]
  %v41 = vld [vmem:[%s0 + $0x68] sm:$0xf]
  %v42 = vld [vmem:[%s0 + $0x6c] sm:$0xf]
  %v43 = vld [vmem:[%s0 + $0x70] sm:$0xf]
  %v44 = vld [vmem:[%s0 + $0x74] sm:$0xf]
  %v45 = vld [vmem:[%s0 + $0x78] sm:$0xf]
  %v46 = vld [vmem:[%s0 + $0x7c] sm:$0xf]
  %v47 = vld [vmem:[%s0 + $0x80] sm:$0xf]
  %v48 = vld [vmem:[%s0 + $0x84] sm:$0xf]
  %v49 = vld [vmem:[%s0 + $0x88] sm:$0xf]
  %v50 = vld [vmem:[%s0 + $0x8c] sm:$0xf]
  %v51 = vld [vmem:[%s0 + $0x90] sm:$0xf]
  %v52 = vld [vmem:[%s0 + $0x94] sm:$0xf]
  %v53 = vld [vmem:[%s0 + $0x98] sm:$0xf]
  %v54 = vld [vmem:[%s0 + $0x9c] sm:$0xf]
  %v55 = vld [vmem:[%s0 + $0xa0] sm:$0xf]
  %v56 = vld [vmem:[%s0 + $0xa4] sm:$0xf]
  %v57 = vld [vmem:[%s0 + $0xa8] sm:$0xf]
  %v58 = vld [vmem:[%s0 + $0xac] sm:$0xf]
  %v59 = vld [vmem:[%s0 + $0xb0] sm:$0xf]
  %v60 = vld [vmem:[%s0 + $0xb4] sm:$0xf]
  %v61 = vld [vmem:[%s0 + $0xb8] sm:$0xf]
  %v62 = vld [vmem:[%s0 + $0xbc] sm:$0xf]
  %v63 = vld [vmem:[%s0 + $0xc0] sm:$0xf]
  %v64 = vld [vmem:[%s0 + $0xc4] sm:$0xf]
  %v65 = vld [vmem:[%s0 + $0xc8] sm:$0xf]
  %v66 = vld [vmem:[%s0 + $0xcc] sm:$0xf]
  %v67 = vld [vmem:[%s0 + $0xd0] sm:$0xf]
  %v68 = vld [vmem:[%s0 + $0xd4] sm:$0xf]
  %v69 = vld [vmem:[%s0 + $0xd8] sm:$0xf]
  %v70 = vld [vmem:[%s0 + $0xdc] sm:$0xf]
  %v71 = vld [vmem:[%s0 + $0xe0] sm:$0xf]
  %v72 = vld [vmem:[%s0 + $0xe4] sm:$0xf]
  %v73 = vld [vmem:[%s0 + $0xe8] sm:$0xf]
  %v74 = vld [vmem:[%s0 + $0xec] sm:$0xf]
  %v75 = vld [vmem:[%s0 + $0xf0] sm:$0xf]
  %v76 = vld [vmem:[%s0 + $0xf4] sm:$0xf]
  %v77 = vld [vmem:[%s0 + $0xf8] sm:$0xf]
  %v78 = vld [vmem:[%s0 + $0xfc] sm:$0xf]
  %v79 = vld [vmem:[%s0 + $0x100] sm:$0xf]
  %v80 = vld [vmem:[%s0 + $0x104] sm:$0xf]
  %v81 = vld [vmem:[%s0 + $0x108] sm:$0xf]
  %v82 = vld [vmem:[%s0 + $0x10c] sm:$0xf]
  %v83 = vld [vmem:[%s0 + $0x110] sm:$0xf]
  %v84 = vld [vmem:[%s0 + $0x114] sm:$0xf]
  %v85 = vld [vmem:[%s0 + $0x118] sm:$0xf]
  %v86 = vld [vmem:[%s0 + $0x11c] sm:$0xf]
  %v87 = vld [vmem:[%s0 + $0x120] sm:$0xf]
  %v88 = vld [vmem:[%s0 + $0x124] sm:$0xf]
  %v89 = vld [vmem:[%s1] sm:$0xf]
  %v90 = vld [vmem:[%s1 + $0x4] sm:$0xf]
  %v91 = vld [vmem:[%s0 + $0x128] sm:$0x1]
  %s92 = scalar_lea.vmem %s1, 8
  %v93 = vld [vmem:[%s92] sm:$0xf]
  %v94 = vld [vmem:[%s92 + $0x4] sm:$0xf]
  %v170 = vunpack.c.l.b16 %v15
  %v171 = vunpack.c.l.b16 %v16
  %v172 = vunpack.c.l.b16 %v17
  %v173 = vunpack.c.l.b16 %v18
  %v174 = vunpack.c.l.b16 %v19
  %v175 = vunpack.c.l.b16 %v20
  %v176 = vunpack.c.l.b16 %v21
  %v177 = vunpack.c.l.b16 %v22
  %v178 = vunpack.c.l.b16 %v23
  %v179 = vunpack.c.l.b16 %v24
  %v180 = vunpack.c.l.b16 %v25
  %v181 = vunpack.c.l.b16 %v26
  %v182 = vunpack.c.l.b16 %v27
  %v183 = vunpack.c.l.b16 %v28
  %v184 = vunpack.c.l.b16 %v29
  %v185 = vunpack.c.l.b16 %v30
  %v186 = vunpack.c.l.b16 %v31
  %v187 = vunpack.c.l.b16 %v32
  %v188 = vunpack.c.l.b16 %v33
  %v189 = vunpack.c.l.b16 %v34
  %v190 = vunpack.c.l.b16 %v35
  %v191 = vunpack.c.l.b16 %v36
  %v192 = vunpack.c.l.b16 %v37
  %v193 = vunpack.c.l.b16 %v38
  %v194 = vunpack.c.l.b16 %v39
  %v195 = vunpack.c.l.b16 %v40
  %v196 = vunpack.c.l.b16 %v41
  %v197 = vunpack.c.l.b16 %v42
  %v198 = vunpack.c.l.b16 %v43
  %v199 = vunpack.c.l.b16 %v44
  %v200 = vunpack.c.l.b16 %v45
  %v201 = vunpack.c.l.b16 %v46
  %v202 = vunpack.c.l.b16 %v47
  %v203 = vunpack.c.l.b16 %v48
  %v204 = vunpack.c.l.b16 %v49
  %v205 = vunpack.c.l.b16 %v50
  %v206 = vunpack.c.l.b16 %v51
  %v207 = vunpack.c.l.b16 %v52
  %v208 = vunpack.c.l.b16 %v53
  %v209 = vunpack.c.l.b16 %v54
  %v210 = vunpack.c.l.b16 %v55
  %v211 = vunpack.c.l.b16 %v56
  %v212 = vunpack.c.l.b16 %v57
  %v213 = vunpack.c.l.b16 %v58
  %v214 = vunpack.c.l.b16 %v59
  %v215 = vunpack.c.l.b16 %v60
  %v216 = vunpack.c.l.b16 %v61
  %v217 = vunpack.c.l.b16 %v62
  %v218 = vunpack.c.l.b16 %v63
  %v219 = vunpack.c.l.b16 %v64
  %v220 = vunpack.c.l.b16 %v65
  %v221 = vunpack.c.l.b16 %v66
  %v222 = vunpack.c.l.b16 %v67
  %v223 = vunpack.c.l.b16 %v68
  %v224 = vunpack.c.l.b16 %v69
  %v225 = vunpack.c.l.b16 %v70
  %v226 = vunpack.c.l.b16 %v71
  %v227 = vunpack.c.l.b16 %v72
  %v228 = vunpack.c.l.b16 %v73
  %v229 = vunpack.c.l.b16 %v74
  %v230 = vunpack.c.l.b16 %v75
  %v231 = vunpack.c.l.b16 %v76
  %v232 = vunpack.c.l.b16 %v77
  %v233 = vunpack.c.l.b16 %v78
  %v234 = vunpack.c.l.b16 %v79
  %v235 = vunpack.c.l.b16 %v80
  %v236 = vunpack.c.l.b16 %v81
  %v237 = vunpack.c.l.b16 %v82
  %v238 = vunpack.c.l.b16 %v83
  %v239 = vunpack.c.l.b16 %v84
  %v240 = vunpack.c.l.b16 %v85
  %v241 = vunpack.c.l.b16 %v86
  %v242 = vunpack.c.l.b16 %v87
  %v243 = vunpack.c.l.b16 %v88
  %v244 = vunpack.c.l.b16 %v91
  %v245 = vpack.c.b16 %v171, %v170
  %v246 = vpack.c.b16 %v173, %v172
  %v247 = vpack.c.b16 %v175, %v174
  %v248 = vpack.c.b16 %v177, %v176
  %v249 = vpack.c.b16 %v179, %v178
  %v250 = vpack.c.b16 %v181, %v180
  %v251 = vpack.c.b16 %v183, %v182
  %v252 = vpack.c.b16 %v185, %v184
  %v253 = vpack.c.b16 %v187, %v186
  %v254 = vpack.c.b16 %v189, %v188
  %v255 = vpack.c.b16 %v191, %v190
  %v256 = vpack.c.b16 %v193, %v192
  %v257 = vpack.c.b16 %v195, %v194
  %v258 = vpack.c.b16 %v197, %v196
  %v259 = vpack.c.b16 %v199, %v198
  %v260 = vpack.c.b16 %v201, %v200
  %v261 = vpack.c.b16 %v203, %v202
  %v262 = vpack.c.b16 %v205, %v204
  %v263 = vpack.c.b16 %v207, %v206
  %v264 = vpack.c.b16 %v209, %v208
  %v265 = vpack.c.b16 %v211, %v210
  %v266 = vpack.c.b16 %v213, %v212
  %v267 = vpack.c.b16 %v215, %v214
  %v268 = vpack.c.b16 %v217, %v216
  %v269 = vpack.c.b16 %v219, %v218
  %v270 = vpack.c.b16 %v221, %v220
  %v271 = vpack.c.b16 %v223, %v222
  %v272 = vpack.c.b16 %v225, %v224
  %v273 = vpack.c.b16 %v227, %v226
  %v274 = vpack.c.b16 %v229, %v228
  %v275 = vpack.c.b16 %v231, %v230
  %v276 = vpack.c.b16 %v233, %v232
  %v277 = vpack.c.b16 %v235, %v234
  %v278 = vpack.c.b16 %v237, %v236
  %v279 = vpack.c.b16 %v239, %v238
  %v280 = vpack.c.b16 %v241, %v240
  %v281 = vpack.c.b16 %v243, %v242
  %v282 = vpack.c.b16 %v244, %v244
  %vm283 = vsmask.f32 7424
  %v285 = vshrl.u32 %v245, 16
  %v287 = vshll.u32 %v245, 16
  %v289 = vrot.slane %v287, 1
  %v290 = vor.u32 %v285, %v289
  %v292 = vshll.u32 %v246, 16
  %v294 = vrot.slane %v292, 1
  %v295 = vsel %vm283, %v290, %v294
  %v296 = vshrl.u32 %v246, 16
  %v298 = vor.u32 %v296, %v294
  %v300 = vshll.u32 %v247, 16
  %v302 = vrot.slane %v300, 1
  %v303 = vsel %vm283, %v298, %v302
  %v304 = vshrl.u32 %v247, 16
  %v306 = vor.u32 %v304, %v302
  %v308 = vshll.u32 %v248, 16
  %v310 = vrot.slane %v308, 1
  %v311 = vsel %vm283, %v306, %v310
  %v312 = vshrl.u32 %v248, 16
  %v314 = vor.u32 %v312, %v310
  %v316 = vshll.u32 %v249, 16
  %v318 = vrot.slane %v316, 1
  %v319 = vsel %vm283, %v314, %v318
  %v320 = vshrl.u32 %v249, 16
  %v322 = vor.u32 %v320, %v318
  %v324 = vshll.u32 %v250, 16
  %v326 = vrot.slane %v324, 1
  %v327 = vsel %vm283, %v322, %v326
  %v328 = vshrl.u32 %v250, 16
  %v330 = vor.u32 %v328, %v326
  %v332 = vshll.u32 %v251, 16
  %v334 = vrot.slane %v332, 1
  %v335 = vsel %vm283, %v330, %v334
  %v336 = vshrl.u32 %v251, 16
  %v338 = vor.u32 %v336, %v334
  %v340 = vshll.u32 %v252, 16
  %v342 = vrot.slane %v340, 1
  %v343 = vsel %vm283, %v338, %v342
  %v344 = vshrl.u32 %v252, 16
  %v346 = vor.u32 %v344, %v342
  %v348 = vshll.u32 %v253, 16
  %v350 = vrot.slane %v348, 1
  %v351 = vsel %vm283, %v346, %v350
  %v352 = vshrl.u32 %v253, 16
  %v354 = vor.u32 %v352, %v350
  %v356 = vshll.u32 %v254, 16
  %v358 = vrot.slane %v356, 1
  %v359 = vsel %vm283, %v354, %v358
  %v360 = vshrl.u32 %v254, 16
  %v362 = vor.u32 %v360, %v358
  %v364 = vshll.u32 %v255, 16
  %v366 = vrot.slane %v364, 1
  %v367 = vsel %vm283, %v362, %v366
  %v368 = vshrl.u32 %v255, 16
  %v370 = vor.u32 %v368, %v366
  %v372 = vshll.u32 %v256, 16
  %v374 = vrot.slane %v372, 1
  %v375 = vsel %vm283, %v370, %v374
  %v376 = vshrl.u32 %v256, 16
  %v378 = vor.u32 %v376, %v374
  %v380 = vshll.u32 %v257, 16
  %v382 = vrot.slane %v380, 1
  %v383 = vsel %vm283, %v378, %v382
  %v384 = vshrl.u32 %v257, 16
  %v386 = vor.u32 %v384, %v382
  %v388 = vshll.u32 %v258, 16
  %v390 = vrot.slane %v388, 1
  %v391 = vsel %vm283, %v386, %v390
  %v392 = vshrl.u32 %v258, 16
  %v394 = vor.u32 %v392, %v390
  %v396 = vshll.u32 %v259, 16
  %v398 = vrot.slane %v396, 1
  %v399 = vsel %vm283, %v394, %v398
  %v400 = vshrl.u32 %v259, 16
  %v402 = vor.u32 %v400, %v398
  %v404 = vshll.u32 %v260, 16
  %v406 = vrot.slane %v404, 1
  %v407 = vsel %vm283, %v402, %v406
  %v408 = vshrl.u32 %v260, 16
  %v410 = vor.u32 %v408, %v406
  %v412 = vshll.u32 %v261, 16
  %v414 = vrot.slane %v412, 1
  %v415 = vsel %vm283, %v410, %v414
  %v416 = vshrl.u32 %v261, 16
  %v418 = vor.u32 %v416, %v414
  %v420 = vshll.u32 %v262, 16
  %v422 = vrot.slane %v420, 1
  %v423 = vsel %vm283, %v418, %v422
  %v424 = vshrl.u32 %v262, 16
  %v426 = vor.u32 %v424, %v422
  %v428 = vshll.u32 %v263, 16
  %v430 = vrot.slane %v428, 1
  %v431 = vsel %vm283, %v426, %v430
  %v432 = vshrl.u32 %v263, 16
  %v434 = vor.u32 %v432, %v430
  %v436 = vshll.u32 %v264, 16
  %v438 = vrot.slane %v436, 1
  %v439 = vsel %vm283, %v434, %v438
  %v440 = vshrl.u32 %v264, 16
  %v442 = vor.u32 %v440, %v438
  %v444 = vshll.u32 %v265, 16
  %v446 = vrot.slane %v444, 1
  %v447 = vsel %vm283, %v442, %v446
  %v448 = vshrl.u32 %v265, 16
  %v450 = vor.u32 %v448, %v446
  %v452 = vshll.u32 %v266, 16
  %v454 = vrot.slane %v452, 1
  %v455 = vsel %vm283, %v450, %v454
  %v456 = vshrl.u32 %v266, 16
  %v458 = vor.u32 %v456, %v454
  %v460 = vshll.u32 %v267, 16
  %v462 = vrot.slane %v460, 1
  %v463 = vsel %vm283, %v458, %v462
  %v464 = vshrl.u32 %v267, 16
  %v466 = vor.u32 %v464, %v462
  %v468 = vshll.u32 %v268, 16
  %v470 = vrot.slane %v468, 1
  %v471 = vsel %vm283, %v466, %v470
  %v472 = vshrl.u32 %v268, 16
  %v474 = vor.u32 %v472, %v470
  %v476 = vshll.u32 %v269, 16
  %v478 = vrot.slane %v476, 1
  %v479 = vsel %vm283, %v474, %v478
  %v480 = vshrl.u32 %v269, 16
  %v482 = vor.u32 %v480, %v478
  %v484 = vshll.u32 %v270, 16
  %v486 = vrot.slane %v484, 1
  %v487 = vsel %vm283, %v482, %v486
  %v488 = vshrl.u32 %v270, 16
  %v490 = vor.u32 %v488, %v486
  %v492 = vshll.u32 %v271, 16
  %v494 = vrot.slane %v492, 1
  %v495 = vsel %vm283, %v490, %v494
  %v496 = vshrl.u32 %v271, 16
  %v498 = vor.u32 %v496, %v494
  %v500 = vshll.u32 %v272, 16
  %v502 = vrot.slane %v500, 1
  %v503 = vsel %vm283, %v498, %v502
  %v504 = vshrl.u32 %v272, 16
  %v506 = vor.u32 %v504, %v502
  %v508 = vshll.u32 %v273, 16
  %v510 = vrot.slane %v508, 1
  %v511 = vsel %vm283, %v506, %v510
  %v512 = vshrl.u32 %v273, 16
  %v514 = vor.u32 %v512, %v510
  %v516 = vshll.u32 %v274, 16
  %v518 = vrot.slane %v516, 1
  %v519 = vsel %vm283, %v514, %v518
  %v520 = vshrl.u32 %v274, 16
  %v522 = vor.u32 %v520, %v518
  %v524 = vshll.u32 %v275, 16
  %v526 = vrot.slane %v524, 1
  %v527 = vsel %vm283, %v522, %v526
  %v528 = vshrl.u32 %v275, 16
  %v530 = vor.u32 %v528, %v526
  %v532 = vshll.u32 %v276, 16
  %v534 = vrot.slane %v532, 1
  %v535 = vsel %vm283, %v530, %v534
  %v536 = vshrl.u32 %v276, 16
  %v538 = vor.u32 %v536, %v534
  %v540 = vshll.u32 %v277, 16
  %v542 = vrot.slane %v540, 1
  %v543 = vsel %vm283, %v538, %v542
  %v544 = vshrl.u32 %v277, 16
  %v546 = vor.u32 %v544, %v542
  %v548 = vshll.u32 %v278, 16
  %v550 = vrot.slane %v548, 1
  %v551 = vsel %vm283, %v546, %v550
  %v552 = vshrl.u32 %v278, 16
  %v554 = vor.u32 %v552, %v550
  %v556 = vshll.u32 %v279, 16
  %v558 = vrot.slane %v556, 1
  %v559 = vsel %vm283, %v554, %v558
  %v560 = vshrl.u32 %v279, 16
  %v562 = vor.u32 %v560, %v558
  %v564 = vshll.u32 %v280, 16
  %v566 = vrot.slane %v564, 1
  %v567 = vsel %vm283, %v562, %v566
  %v568 = vshrl.u32 %v280, 16
  %v570 = vor.u32 %v568, %v566
  %v572 = vshll.u32 %v281, 16
  %v574 = vrot.slane %v572, 1
  %v575 = vsel %vm283, %v570, %v574
  %v576 = vshrl.u32 %v281, 16
  %v578 = vor.u32 %v576, %v574
  %v580 = vshll.u32 %v282, 16
  %v582 = vrot.slane %v580, 1
  %v583 = vsel %vm283, %v578, %v582
  %v586 = vunpack.c.l.b16 %v93
  %v587 = vunpack.c.l.b16 %v94
  %v588 = vpack.c.b16 %v587, %v586
  %vm590 = vcmask 130048
  %v592 = vsel %vm590, %v295, 0
  %v595 = vsel %vm590, %v303, 0
  %v598 = vsel %vm590, %v311, 0
  %v601 = vsel %vm590, %v319, 0
  %v604 = vsel %vm590, %v327, 0
  %v607 = vsel %vm590, %v335, 0
  %v610 = vsel %vm590, %v343, 0
  %v613 = vsel %vm590, %v351, 0
  %v616 = vsel %vm590, %v359, 0
  %v619 = vsel %vm590, %v367, 0
  %v622 = vsel %vm590, %v375, 0
  %v625 = vsel %vm590, %v383, 0
  %v628 = vsel %vm590, %v391, 0
  %v631 = vsel %vm590, %v399, 0
  %v634 = vsel %vm590, %v407, 0
  %v637 = vsel %vm590, %v415, 0
  %v640 = vsel %vm590, %v423, 0
  %v643 = vsel %vm590, %v431, 0
  %v646 = vsel %vm590, %v439, 0
  %v649 = vsel %vm590, %v447, 0
  %v652 = vsel %vm590, %v455, 0
  %v655 = vsel %vm590, %v463, 0
  %v658 = vsel %vm590, %v471, 0
  %v661 = vsel %vm590, %v479, 0
  %v664 = vsel %vm590, %v487, 0
  %v667 = vsel %vm590, %v495, 0
  %v670 = vsel %vm590, %v503, 0
  %v673 = vsel %vm590, %v511, 0
  %v676 = vsel %vm590, %v519, 0
  %v679 = vsel %vm590, %v527, 0
  %v682 = vsel %vm590, %v535, 0
  %v685 = vsel %vm590, %v543, 0
  %v688 = vsel %vm590, %v551, 0
  %v691 = vsel %vm590, %v559, 0
  %v694 = vsel %vm590, %v567, 0
  %v697 = vsel %vm590, %v575, 0
  %v700 = vsel %vm590, %v583, 0
  %702 = vmatprep.subr.bf16.mxu0 0
  %703 = vmatpush1.bf16.msra.mxu0 %v588
  %704 = vmatprep.subr.bf16.mxu0 0
  %705 = vmatpush1.bf16.msra.mxu0 0
  %706 = vmatprep.subr.bf16.mxu0 0
  %707 = vmatpush1.bf16.msra.mxu0 0
  %708 = vmatprep.subr.bf16.mxu0 0
  %709 = vmatpush1.bf16.msra.mxu0 0
  %710 = vmatprep.subr.bf16.mxu0 0
  %711 = vmatpush1.bf16.msra.mxu0 0
  %712 = vmatprep.subr.bf16.mxu0 0
  %713 = vmatpush1.bf16.msra.mxu0 0
  %714 = vmatprep.subr.bf16.mxu0 0
  %715 = vmatpush1.bf16.msra.mxu0 0
  %716 = vmatprep.subr.bf16.mxu0 0
  %717 = vmatpush1.bf16.msra.mxu0 0
  %718 = vmatprep.subr.bf16.mxu0 0
  %719 = vmatpush1.bf16.msra.mxu0 0
  %720 = vmatprep.subr.bf16.mxu0 0
  %721 = vmatpush1.bf16.msra.mxu0 0
  %722 = vmatprep.subr.bf16.mxu0 0
  %723 = vmatpush1.bf16.msra.mxu0 0
  %724 = vmatprep.subr.bf16.mxu0 0
  %725 = vmatpush1.bf16.msra.mxu0 0
  %726 = vmatprep.subr.bf16.mxu0 0
  %727 = vmatpush1.bf16.msra.mxu0 0
  %728 = vmatprep.subr.bf16.mxu0 0
  %729 = vmatpush1.bf16.msra.mxu0 0
  %730 = vmatprep.subr.bf16.mxu0 0
  %731 = vmatpush1.bf16.msra.mxu0 0
  %732 = vmatprep.subr.bf16.mxu0 0
  %733 = vmatpush1.bf16.msra.mxu0 0
  %734 = vmatprep.mubr.bf16.mxu0 0
  %735 = vmatmul.mubr.bf16.gmra.mrb[0].mxu0 %v592
  %v736 = vpop.f32.mrb[0].mxu0
  %v737 = vadd.f32 0.0, %v736
  %v738 = vpop.f32.mrb[0].mxu0
  %v739 = vpop.f32.mrb[0].mxu0
  %v740 = vadd.f32 0.0, %v739
  %v741 = vpop.f32.mrb[0].mxu0
  %742 = vmatprep.mubr.bf16.mxu0 0
  %743 = vmatmul.mubr.bf16.gmra.mrb[0].mxu0 %v595
  %v744 = vpop.f32.mrb[0].mxu0
  %v745 = vadd.f32 0.0, %v744
  %v746 = vpop.f32.mrb[0].mxu0
  %v747 = vpop.f32.mrb[0].mxu0
  %v748 = vadd.f32 0.0, %v747
  %v749 = vpop.f32.mrb[0].mxu0
  %750 = vmatprep.mubr.bf16.mxu0 0
  %751 = vmatmul.mubr.bf16.gmra.mrb[0].mxu0 %v598
  %v752 = vpop.f32.mrb[0].mxu0
  %v753 = vadd.f32 0.0, %v752
  %v754 = vpop.f32.mrb[0].mxu0
  %v755 = vpop.f32.mrb[0].mxu0
  %v756 = vadd.f32 0.0, %v755
  %v757 = vpop.f32.mrb[0].mxu0
  %758 = vmatprep.mubr.bf16.mxu0 0
  %759 = vmatmul.mubr.bf16.gmra.mrb[0].mxu0 %v601
  %v760 = vpop.f32.mrb[0].mxu0
  %v761 = vadd.f32 0.0, %v760
  %v762 = vpop.f32.mrb[0].mxu0
  %v763 = vpop.f32.mrb[0].mxu0
  %v764 = vadd.f32 0.0, %v763
  %v765 = vpop.f32.mrb[0].mxu0
  %766 = vmatprep.mubr.bf16.mxu0 0
  %767 = vmatmul.mubr.bf16.gmra.mrb[0].mxu0 %v604
  %v768 = vpop.f32.mrb[0].mxu0
  %v769 = vadd.f32 0.0, %v768
  %v770 = vpop.f32.mrb[0].mxu0
  %v771 = vpop.f32.mrb[0].mxu0
  %v772 = vadd.f32 0.0, %v771
  %v773 = vpop.f32.mrb[0].mxu0
  %774 = vmatprep.mubr.bf16.mxu0 0
  %775 = vmatmul.mubr.bf16.gmra.mrb[0].mxu0 %v607
  %v776 = vpop.f32.mrb[0].mxu0
  %v777 = vadd.f32 0.0, %v776
  %v778 = vpop.f32.mrb[0].mxu0
  %v779 = vpop.f32.mrb[0].mxu0
  %v780 = vadd.f32 0.0, %v779
  %v781 = vpop.f32.mrb[0].mxu0
  %782 = vmatprep.mubr.bf16.mxu0 0
  %783 = vmatmul.mubr.bf16.gmra.mrb[0].mxu0 %v610
  %v784 = vpop.f32.mrb[0].mxu0
  %v785 = vadd.f32 0.0, %v784
  %v786 = vpop.f32.mrb[0].mxu0
  %v787 = vpop.f32.mrb[0].mxu0
  %v788 = vadd.f32 0.0, %v787
  %v789 = vpop.f32.mrb[0].mxu0
  %790 = vmatprep.mubr.bf16.mxu0 0
  %791 = vmatmul.mubr.bf16.gmra.mrb[0].mxu0 %v613
  %v792 = vpop.f32.mrb[0].mxu0
  %v793 = vadd.f32 0.0, %v792
  %v794 = vpop.f32.mrb[0].mxu0
  %v795 = vpop.f32.mrb[0].mxu0
  %v796 = vadd.f32 0.0, %v795
  %v797 = vpop.f32.mrb[0].mxu0
  %798 = vmatprep.mubr.bf16.mxu0 0
  %799 = vmatmul.mubr.bf16.gmra.mrb[0].mxu0 %v616
  %v800 = vpop.f32.mrb[0].mxu0
  %v801 = vadd.f32 0.0, %v800
  %v802 = vpop.f32.mrb[0].mxu0
  %v803 = vpop.f32.mrb[0].mxu0
  %v804 = vadd.f32 0.0, %v803
  %v805 = vpop.f32.mrb[0].mxu0
  %806 = vmatprep.mubr.bf16.mxu0 0
  %807 = vmatmul.mubr.bf16.gmra.mrb[0].mxu0 %v619
  %v808 = vpop.f32.mrb[0].mxu0
  %v809 = vadd.f32 0.0, %v808
  %v810 = vpop.f32.mrb[0].mxu0
  %v811 = vpop.f32.mrb[0].mxu0
  %v812 = vadd.f32 0.0, %v811
  %v813 = vpop.f32.mrb[0].mxu0
  %814 = vmatprep.mubr.bf16.mxu0 0
  %815 = vmatmul.mubr.bf16.gmra.mrb[0].mxu0 %v622
  %v816 = vpop.f32.mrb[0].mxu0
  %v817 = vadd.f32 0.0, %v816
  %v818 = vpop.f32.mrb[0].mxu0
  %v819 = vpop.f32.mrb[0].mxu0
  %v820 = vadd.f32 0.0, %v819
  %v821 = vpop.f32.mrb[0].mxu0
  %822 = vmatprep.mubr.bf16.mxu0 0
  %823 = vmatmul.mubr.bf16.gmra.mrb[0].mxu0 %v625
  %v824 = vpop.f32.mrb[0].mxu0
  %v825 = vadd.f32 0.0, %v824
  %v826 = vpop.f32.mrb[0].mxu0
  %v827 = vpop.f32.mrb[0].mxu0
  %v828 = vadd.f32 0.0, %v827
  %v829 = vpop.f32.mrb[0].mxu0
  %830 = vmatprep.mubr.bf16.mxu0 0
  %831 = vmatmul.mubr.bf16.gmra.mrb[0].mxu0 %v628
  %v832 = vpop.f32.mrb[0].mxu0
  %v833 = vadd.f32 0.0, %v832
  %v834 = vpop.f32.mrb[0].mxu0
  %v835 = vpop.f32.mrb[0].mxu0
  %v836 = vadd.f32 0.0, %v835
  %v837 = vpop.f32.mrb[0].mxu0
  %838 = vmatprep.mubr.bf16.mxu0 0
  %839 = vmatmul.mubr.bf16.gmra.mrb[0].mxu0 %v631
  %v840 = vpop.f32.mrb[0].mxu0
  %v841 = vadd.f32 0.0, %v840
  %v842 = vpop.f32.mrb[0].mxu0
  %v843 = vpop.f32.mrb[0].mxu0
  %v844 = vadd.f32 0.0, %v843
  %v845 = vpop.f32.mrb[0].mxu0
  %846 = vmatprep.mubr.bf16.mxu0 0
  %847 = vmatmul.mubr.bf16.gmra.mrb[0].mxu0 %v634
  %v848 = vpop.f32.mrb[0].mxu0
  %v849 = vadd.f32 0.0, %v848
  %v850 = vpop.f32.mrb[0].mxu0
  %v851 = vpop.f32.mrb[0].mxu0
  %v852 = vadd.f32 0.0, %v851
  %v853 = vpop.f32.mrb[0].mxu0
  %854 = vmatprep.mubr.bf16.mxu0 0
  %855 = vmatmul.mubr.bf16.gmra.mrb[0].mxu0 %v637
  %v856 = vpop.f32.mrb[0].mxu0
  %v857 = vadd.f32 0.0, %v856
  %v858 = vpop.f32.mrb[0].mxu0
  %v859 = vpop.f32.mrb[0].mxu0
  %v860 = vadd.f32 0.0, %v859
  %v861 = vpop.f32.mrb[0].mxu0
  %862 = vmatprep.mubr.bf16.mxu0 0
  %863 = vmatmul.mubr.bf16.gmra.mrb[0].mxu0 %v640
  %v864 = vpop.f32.mrb[0].mxu0
  %v865 = vadd.f32 0.0, %v864
  %v866 = vpop.f32.mrb[0].mxu0
  %v867 = vpop.f32.mrb[0].mxu0
  %v868 = vadd.f32 0.0, %v867
  %v869 = vpop.f32.mrb[0].mxu0
  %870 = vmatprep.mubr.bf16.mxu0 0
  %871 = vmatmul.mubr.bf16.gmra.mrb[0].mxu0 %v643
  %v872 = vpop.f32.mrb[0].mxu0
  %v873 = vadd.f32 0.0, %v872
  %v874 = vpop.f32.mrb[0].mxu0
  %v875 = vpop.f32.mrb[0].mxu0
  %v876 = vadd.f32 0.0, %v875
  %v877 = vpop.f32.mrb[0].mxu0
  %878 = vmatprep.mubr.bf16.mxu0 0
  %879 = vmatmul.mubr.bf16.gmra.mrb[0].mxu0 %v646
  %v880 = vpop.f32.mrb[0].mxu0
  %v881 = vadd.f32 0.0, %v880
  %v882 = vpop.f32.mrb[0].mxu0
  %v883 = vpop.f32.mrb[0].mxu0
  %v884 = vadd.f32 0.0, %v883
  %v885 = vpop.f32.mrb[0].mxu0
  %886 = vmatprep.mubr.bf16.mxu0 0
  %887 = vmatmul.mubr.bf16.gmra.mrb[0].mxu0 %v649
  %v888 = vpop.f32.mrb[0].mxu0
  %v889 = vadd.f32 0.0, %v888
  %v890 = vpop.f32.mrb[0].mxu0
  %v891 = vpop.f32.mrb[0].mxu0
  %v892 = vadd.f32 0.0, %v891
  %v893 = vpop.f32.mrb[0].mxu0
  %894 = vmatprep.mubr.bf16.mxu0 0
  %895 = vmatmul.mubr.bf16.gmra.mrb[0].mxu0 %v652
  %v896 = vpop.f32.mrb[0].mxu0
  %v897 = vadd.f32 0.0, %v896
  %v898 = vpop.f32.mrb[0].mxu0
  %v899 = vpop.f32.mrb[0].mxu0
  %v900 = vadd.f32 0.0, %v899
  %v901 = vpop.f32.mrb[0].mxu0
  %902 = vmatprep.mubr.bf16.mxu0 0
  %903 = vmatmul.mubr.bf16.gmra.mrb[0].mxu0 %v655
  %v904 = vpop.f32.mrb[0].mxu0
  %v905 = vadd.f32 0.0, %v904
  %v906 = vpop.f32.mrb[0].mxu0
  %v907 = vpop.f32.mrb[0].mxu0
  %v908 = vadd.f32 0.0, %v907
  %v909 = vpop.f32.mrb[0].mxu0
  %910 = vmatprep.mubr.bf16.mxu0 0
  %911 = vmatmul.mubr.bf16.gmra.mrb[0].mxu0 %v658
  %v912 = vpop.f32.mrb[0].mxu0
  %v913 = vadd.f32 0.0, %v912
  %v914 = vpop.f32.mrb[0].mxu0
  %v915 = vpop.f32.mrb[0].mxu0
  %v916 = vadd.f32 0.0, %v915
  %v917 = vpop.f32.mrb[0].mxu0
  %918 = vmatprep.mubr.bf16.mxu0 0
  %919 = vmatmul.mubr.bf16.gmra.mrb[0].mxu0 %v661
  %v920 = vpop.f32.mrb[0].mxu0
  %v921 = vadd.f32 0.0, %v920
  %v922 = vpop.f32.mrb[0].mxu0
  %v923 = vpop.f32.mrb[0].mxu0
  %v924 = vadd.f32 0.0, %v923
  %v925 = vpop.f32.mrb[0].mxu0
  %926 = vmatprep.mubr.bf16.mxu0 0
  %927 = vmatmul.mubr.bf16.gmra.mrb[0].mxu0 %v664
  %v928 = vpop.f32.mrb[0].mxu0
  %v929 = vadd.f32 0.0, %v928
  %v930 = vpop.f32.mrb[0].mxu0
  %v931 = vpop.f32.mrb[0].mxu0
  %v932 = vadd.f32 0.0, %v931
  %v933 = vpop.f32.mrb[0].mxu0
  %934 = vmatprep.mubr.bf16.mxu0 0
  %935 = vmatmul.mubr.bf16.gmra.mrb[0].mxu0 %v667
  %v936 = vpop.f32.mrb[0].mxu0
  %v937 = vadd.f32 0.0, %v936
  %v938 = vpop.f32.mrb[0].mxu0
  %v939 = vpop.f32.mrb[0].mxu0
  %v940 = vadd.f32 0.0, %v939
  %v941 = vpop.f32.mrb[0].mxu0
  %942 = vmatprep.mubr.bf16.mxu0 0
  %943 = vmatmul.mubr.bf16.gmra.mrb[0].mxu0 %v670
  %v944 = vpop.f32.mrb[0].mxu0
  %v945 = vadd.f32 0.0, %v944
  %v946 = vpop.f32.mrb[0].mxu0
  %v947 = vpop.f32.mrb[0].mxu0
  %v948 = vadd.f32 0.0, %v947
  %v949 = vpop.f32.mrb[0].mxu0
  %950 = vmatprep.mubr.bf16.mxu0 0
  %951 = vmatmul.mubr.bf16.gmra.mrb[0].mxu0 %v673
  %v952 = vpop.f32.mrb[0].mxu0
  %v953 = vadd.f32 0.0, %v952
  %v954 = vpop.f32.mrb[0].mxu0
  %v955 = vpop.f32.mrb[0].mxu0
  %v956 = vadd.f32 0.0, %v955
  %v957 = vpop.f32.mrb[0].mxu0
  %958 = vmatprep.mubr.bf16.mxu0 0
  %959 = vmatmul.mubr.bf16.gmra.mrb[0].mxu0 %v676
  %v960 = vpop.f32.mrb[0].mxu0
  %v961 = vadd.f32 0.0, %v960
  %v962 = vpop.f32.mrb[0].mxu0
  %v963 = vpop.f32.mrb[0].mxu0
  %v964 = vadd.f32 0.0, %v963
  %v965 = vpop.f32.mrb[0].mxu0
  %966 = vmatprep.mubr.bf16.mxu0 0
  %967 = vmatmul.mubr.bf16.gmra.mrb[0].mxu0 %v679
  %v968 = vpop.f32.mrb[0].mxu0
  %v969 = vadd.f32 0.0, %v968
  %v970 = vpop.f32.mrb[0].mxu0
  %v971 = vpop.f32.mrb[0].mxu0
  %v972 = vadd.f32 0.0, %v971
  %v973 = vpop.f32.mrb[0].mxu0
  %974 = vmatprep.mubr.bf16.mxu0 0
  %975 = vmatmul.mubr.bf16.gmra.mrb[0].mxu0 %v682
  %v976 = vpop.f32.mrb[0].mxu0
  %v977 = vadd.f32 0.0, %v976
  %v978 = vpop.f32.mrb[0].mxu0
  %v979 = vpop.f32.mrb[0].mxu0
  %v980 = vadd.f32 0.0, %v979
  %v981 = vpop.f32.mrb[0].mxu0
  %982 = vmatprep.mubr.bf16.mxu0 0
  %983 = vmatmul.mubr.bf16.gmra.mrb[0].mxu0 %v685
  %v984 = vpop.f32.mrb[0].mxu0
  %v985 = vadd.f32 0.0, %v984
  %v986 = vpop.f32.mrb[0].mxu0
  %v987 = vpop.f32.mrb[0].mxu0
  %v988 = vadd.f32 0.0, %v987
  %v989 = vpop.f32.mrb[0].mxu0
  %990 = vmatprep.mubr.bf16.mxu0 0
  %991 = vmatmul.mubr.bf16.gmra.mrb[0].mxu0 %v688
  %v992 = vpop.f32.mrb[0].mxu0
  %v993 = vadd.f32 0.0, %v992
  %v994 = vpop.f32.mrb[0].mxu0
  %v995 = vpop.f32.mrb[0].mxu0
  %v996 = vadd.f32 0.0, %v995
  %v997 = vpop.f32.mrb[0].mxu0
  %998 = vmatprep.mubr.bf16.mxu0 0
  %999 = vmatmul.mubr.bf16.gmra.mrb[0].mxu0 %v691
  %v1000 = vpop.f32.mrb[0].mxu0
  %v1001 = vadd.f32 0.0, %v1000
  %v1002 = vpop.f32.mrb[0].mxu0
  %v1003 = vpop.f32.mrb[0].mxu0
  %v1004 = vadd.f32 0.0, %v1003
  %v1005 = vpop.f32.mrb[0].mxu0
  %1006 = vmatprep.mubr.bf16.mxu0 0
  %1007 = vmatmul.mubr.bf16.gmra.mrb[0].mxu0 %v694
  %v1008 = vpop.f32.mrb[0].mxu0
  %v1009 = vadd.f32 0.0, %v1008
  %v1010 = vpop.f32.mrb[0].mxu0
  %v1011 = vpop.f32.mrb[0].mxu0
  %v1012 = vadd.f32 0.0, %v1011
  %v1013 = vpop.f32.mrb[0].mxu0
  %1014 = vmatprep.mubr.bf16.mxu0 0
  %1015 = vmatmul.mubr.bf16.gmra.mrb[0].mxu0 %v697
  %v1016 = vpop.f32.mrb[0].mxu0
  %v1017 = vadd.f32 0.0, %v1016
  %v1018 = vpop.f32.mrb[0].mxu0
  %v1019 = vpop.f32.mrb[0].mxu0
  %v1020 = vadd.f32 0.0, %v1019
  %v1021 = vpop.f32.mrb[0].mxu0
  %1022 = vmatprep.mubr.bf16.mxu0 0
  %1023 = vmatmul.mubr.bf16.gmra.mrb[0].mxu0 %v700
  %v1024 = vpop.f32.mrb[0].mxu0
  %v1025 = vadd.f32 0.0, %v1024
  %v1026 = vpop.f32.mrb[0].mxu0
  %v1027 = vpop.f32.mrb[0].mxu0
  %v1028 = vadd.f32 0.0, %v1027
  %v1029 = vpop.f32.mrb[0].mxu0
  %1030 = vdwg.mxu0
  %v1033 = vunpack.c.l.b16 %v89
  %v1034 = vunpack.c.l.b16 %v90
  %v1035 = vpack.c.b16 %v1034, %v1033
  %v1037 = vsel %vm590, %v245, 0
  %v1039 = vsel %vm590, %v246, 0
  %v1041 = vsel %vm590, %v247, 0
  %v1043 = vsel %vm590, %v248, 0
  %v1045 = vsel %vm590, %v249, 0
  %v1047 = vsel %vm590, %v250, 0
  %v1049 = vsel %vm590, %v251, 0
  %v1051 = vsel %vm590, %v252, 0
  %v1053 = vsel %vm590, %v253, 0
  %v1055 = vsel %vm590, %v254, 0
  %v1057 = vsel %vm590, %v255, 0
  %v1059 = vsel %vm590, %v256, 0
  %v1061 = vsel %vm590, %v257, 0
  %v1063 = vsel %vm590, %v258, 0
  %v1065 = vsel %vm590, %v259, 0
  %v1067 = vsel %vm590, %v260, 0
  %v1069 = vsel %vm590, %v261, 0
  %v1071 = vsel %vm590, %v262, 0
  %v1073 = vsel %vm590, %v263, 0
  %v1075 = vsel %vm590, %v264, 0
  %v1077 = vsel %vm590, %v265, 0
  %v1079 = vsel %vm590, %v266, 0
  %v1081 = vsel %vm590, %v267, 0
  %v1083 = vsel %vm590, %v268, 0
  %v1085 = vsel %vm590, %v269, 0
  %v1087 = vsel %vm590, %v270, 0
  %v1089 = vsel %vm590, %v271, 0
  %v1091 = vsel %vm590, %v272, 0
  %v1093 = vsel %vm590, %v273, 0
  %v1095 = vsel %vm590, %v274, 0
  %v1097 = vsel %vm590, %v275, 0
  %v1099 = vsel %vm590, %v276, 0
  %v1101 = vsel %vm590, %v277, 0
  %v1103 = vsel %vm590, %v278, 0
  %v1105 = vsel %vm590, %v279, 0
  %v1107 = vsel %vm590, %v280, 0
  %v1109 = vsel %vm590, %v281, 0
  %1111 = vmatprep.subr.bf16.mxu0 0
  %1112 = vmatpush1.bf16.msra.mxu0 %v1035
  %1113 = vmatprep.subr.bf16.mxu0 0
  %1114 = vmatpush1.bf16.msra.mxu0 0
  %1115 = vmatprep.subr.bf16.mxu0 0
  %1116 = vmatpush1.bf16.msra.mxu0 0
  %1117 = vmatprep.subr.bf16.mxu0 0
  %1118 = vmatpush1.bf16.msra.mxu0 0
  %1119 = vmatprep.subr.bf16.mxu0 0
  %1120 = vmatpush1.bf16.msra.mxu0 0
  %1121 = vmatprep.subr.bf16.mxu0 0
  %1122 = vmatpush1.bf16.msra.mxu0 0
  %1123 = vmatprep.subr.bf16.mxu0 0
  %1124 = vmatpush1.bf16.msra.mxu0 0
  %1125 = vmatprep.subr.bf16.mxu0 0
  %1126 = vmatpush1.bf16.msra.mxu0 0
  %1127 = vmatprep.subr.bf16.mxu0 0
  %1128 = vmatpush1.bf16.msra.mxu0 0
  %1129 = vmatprep.subr.bf16.mxu0 0
  %1130 = vmatpush1.bf16.msra.mxu0 0
  %1131 = vmatprep.subr.bf16.mxu0 0
  %1132 = vmatpush1.bf16.msra.mxu0 0
  %1133 = vmatprep.subr.bf16.mxu0 0
  %1134 = vmatpush1.bf16.msra.mxu0 0
  %1135 = vmatprep.subr.bf16.mxu0 0
  %1136 = vmatpush1.bf16.msra.mxu0 0
  %1137 = vmatprep.subr.bf16.mxu0 0
  %1138 = vmatpush1.bf16.msra.mxu0 0
  %1139 = vmatprep.subr.bf16.mxu0 0
  %1140 = vmatpush1.bf16.msra.mxu0 0
  %1141 = vmatprep.subr.bf16.mxu0 0
  %1142 = vmatpush1.bf16.msra.mxu0 0
  %1143 = vmatprep.mubr.bf16.mxu0 0
  %1144 = vmatmul.mubr.bf16.gmra.mrb[0].mxu0 %v1037
  %v1145 = vpop.f32.mrb[0].mxu0
  %v1146 = vadd.f32 %v737, %v1145
  %v1147 = vpop.f32.mrb[0].mxu0
  %v1148 = vpop.f32.mrb[0].mxu0
  %v1149 = vadd.f32 %v740, %v1148
  %v1150 = vpop.f32.mrb[0].mxu0
  %1151 = vmatprep.mubr.bf16.mxu0 0
  %1152 = vmatmul.mubr.bf16.gmra.mrb[0].mxu0 %v1039
  %v1153 = vpop.f32.mrb[0].mxu0
  %v1154 = vadd.f32 %v745, %v1153
  %v1155 = vpop.f32.mrb[0].mxu0
  %v1156 = vpop.f32.mrb[0].mxu0
  %v1157 = vadd.f32 %v748, %v1156
  %v1158 = vpop.f32.mrb[0].mxu0
  %1159 = vmatprep.mubr.bf16.mxu0 0
  %1160 = vmatmul.mubr.bf16.gmra.mrb[0].mxu0 %v1041
  %v1161 = vpop.f32.mrb[0].mxu0
  %v1162 = vadd.f32 %v753, %v1161
  %v1163 = vpop.f32.mrb[0].mxu0
  %v1164 = vpop.f32.mrb[0].mxu0
  %v1165 = vadd.f32 %v756, %v1164
  %v1166 = vpop.f32.mrb[0].mxu0
  %1167 = vmatprep.mubr.bf16.mxu0 0
  %1168 = vmatmul.mubr.bf16.gmra.mrb[0].mxu0 %v1043
  %v1169 = vpop.f32.mrb[0].mxu0
  %v1170 = vadd.f32 %v761, %v1169
  %v1171 = vpop.f32.mrb[0].mxu0
  %v1172 = vpop.f32.mrb[0].mxu0
  %v1173 = vadd.f32 %v764, %v1172
  %v1174 = vpop.f32.mrb[0].mxu0
  %1175 = vmatprep.mubr.bf16.mxu0 0
  %1176 = vmatmul.mubr.bf16.gmra.mrb[0].mxu0 %v1045
  %v1177 = vpop.f32.mrb[0].mxu0
  %v1178 = vadd.f32 %v769, %v1177
  %v1179 = vpop.f32.mrb[0].mxu0
  %v1180 = vpop.f32.mrb[0].mxu0
  %v1181 = vadd.f32 %v772, %v1180
  %v1182 = vpop.f32.mrb[0].mxu0
  %1183 = vmatprep.mubr.bf16.mxu0 0
  %1184 = vmatmul.mubr.bf16.gmra.mrb[0].mxu0 %v1047
  %v1185 = vpop.f32.mrb[0].mxu0
  %v1186 = vadd.f32 %v777, %v1185
  %v1187 = vpop.f32.mrb[0].mxu0
  %v1188 = vpop.f32.mrb[0].mxu0
  %v1189 = vadd.f32 %v780, %v1188
  %v1190 = vpop.f32.mrb[0].mxu0
  %1191 = vmatprep.mubr.bf16.mxu0 0
  %1192 = vmatmul.mubr.bf16.gmra.mrb[0].mxu0 %v1049
  %v1193 = vpop.f32.mrb[0].mxu0
  %v1194 = vadd.f32 %v785, %v1193
  %v1195 = vpop.f32.mrb[0].mxu0
  %v1196 = vpop.f32.mrb[0].mxu0
  %v1197 = vadd.f32 %v788, %v1196
  %v1198 = vpop.f32.mrb[0].mxu0
  %1199 = vmatprep.mubr.bf16.mxu0 0
  %1200 = vmatmul.mubr.bf16.gmra.mrb[0].mxu0 %v1051
  %v1201 = vpop.f32.mrb[0].mxu0
  %v1202 = vadd.f32 %v793, %v1201
  %v1203 = vpop.f32.mrb[0].mxu0
  %v1204 = vpop.f32.mrb[0].mxu0
  %v1205 = vadd.f32 %v796, %v1204
  %v1206 = vpop.f32.mrb[0].mxu0
  %1207 = vmatprep.mubr.bf16.mxu0 0
  %1208 = vmatmul.mubr.bf16.gmra.mrb[0].mxu0 %v1053
  %v1209 = vpop.f32.mrb[0].mxu0
  %v1210 = vadd.f32 %v801, %v1209
  %v1211 = vpop.f32.mrb[0].mxu0
  %v1212 = vpop.f32.mrb[0].mxu0
  %v1213 = vadd.f32 %v804, %v1212
  %v1214 = vpop.f32.mrb[0].mxu0
  %1215 = vmatprep.mubr.bf16.mxu0 0
  %1216 = vmatmul.mubr.bf16.gmra.mrb[0].mxu0 %v1055
  %v1217 = vpop.f32.mrb[0].mxu0
  %v1218 = vadd.f32 %v809, %v1217
  %v1219 = vpop.f32.mrb[0].mxu0
  %v1220 = vpop.f32.mrb[0].mxu0
  %v1221 = vadd.f32 %v812, %v1220
  %v1222 = vpop.f32.mrb[0].mxu0
  %1223 = vmatprep.mubr.bf16.mxu0 0
  %1224 = vmatmul.mubr.bf16.gmra.mrb[0].mxu0 %v1057
  %v1225 = vpop.f32.mrb[0].mxu0
  %v1226 = vadd.f32 %v817, %v1225
  %v1227 = vpop.f32.mrb[0].mxu0
  %v1228 = vpop.f32.mrb[0].mxu0
  %v1229 = vadd.f32 %v820, %v1228
  %v1230 = vpop.f32.mrb[0].mxu0
  %1231 = vmatprep.mubr.bf16.mxu0 0
  %1232 = vmatmul.mubr.bf16.gmra.mrb[0].mxu0 %v1059
  %v1233 = vpop.f32.mrb[0].mxu0
  %v1234 = vadd.f32 %v825, %v1233
  %v1235 = vpop.f32.mrb[0].mxu0
  %v1236 = vpop.f32.mrb[0].mxu0
  %v1237 = vadd.f32 %v828, %v1236
  %v1238 = vpop.f32.mrb[0].mxu0
  %1239 = vmatprep.mubr.bf16.mxu0 0
  %1240 = vmatmul.mubr.bf16.gmra.mrb[0].mxu0 %v1061
  %v1241 = vpop.f32.mrb[0].mxu0
  %v1242 = vadd.f32 %v833, %v1241
  %v1243 = vpop.f32.mrb[0].mxu0
  %v1244 = vpop.f32.mrb[0].mxu0
  %v1245 = vadd.f32 %v836, %v1244
  %v1246 = vpop.f32.mrb[0].mxu0
  %1247 = vmatprep.mubr.bf16.mxu0 0
  %1248 = vmatmul.mubr.bf16.gmra.mrb[0].mxu0 %v1063
  %v1249 = vpop.f32.mrb[0].mxu0
  %v1250 = vadd.f32 %v841, %v1249
  %v1251 = vpop.f32.mrb[0].mxu0
  %v1252 = vpop.f32.mrb[0].mxu0
  %v1253 = vadd.f32 %v844, %v1252
  %v1254 = vpop.f32.mrb[0].mxu0
  %1255 = vmatprep.mubr.bf16.mxu0 0
  %1256 = vmatmul.mubr.bf16.gmra.mrb[0].mxu0 %v1065
  %v1257 = vpop.f32.mrb[0].mxu0
  %v1258 = vadd.f32 %v849, %v1257
  %v1259 = vpop.f32.mrb[0].mxu0
  %v1260 = vpop.f32.mrb[0].mxu0
  %v1261 = vadd.f32 %v852, %v1260
  %v1262 = vpop.f32.mrb[0].mxu0
  %1263 = vmatprep.mubr.bf16.mxu0 0
  %1264 = vmatmul.mubr.bf16.gmra.mrb[0].mxu0 %v1067
  %v1265 = vpop.f32.mrb[0].mxu0
  %v1266 = vadd.f32 %v857, %v1265
  %v1267 = vpop.f32.mrb[0].mxu0
  %v1268 = vpop.f32.mrb[0].mxu0
  %v1269 = vadd.f32 %v860, %v1268
  %v1270 = vpop.f32.mrb[0].mxu0
  %1271 = vmatprep.mubr.bf16.mxu0 0
  %1272 = vmatmul.mubr.bf16.gmra.mrb[0].mxu0 %v1069
  %v1273 = vpop.f32.mrb[0].mxu0
  %v1274 = vadd.f32 %v865, %v1273
  %v1275 = vpop.f32.mrb[0].mxu0
  %v1276 = vpop.f32.mrb[0].mxu0
  %v1277 = vadd.f32 %v868, %v1276
  %v1278 = vpop.f32.mrb[0].mxu0
  %1279 = vmatprep.mubr.bf16.mxu0 0
  %1280 = vmatmul.mubr.bf16.gmra.mrb[0].mxu0 %v1071
  %v1281 = vpop.f32.mrb[0].mxu0
  %v1282 = vadd.f32 %v873, %v1281
  %v1283 = vpop.f32.mrb[0].mxu0
  %v1284 = vpop.f32.mrb[0].mxu0
  %v1285 = vadd.f32 %v876, %v1284
  %v1286 = vpop.f32.mrb[0].mxu0
  %1287 = vmatprep.mubr.bf16.mxu0 0
  %1288 = vmatmul.mubr.bf16.gmra.mrb[0].mxu0 %v1073
  %v1289 = vpop.f32.mrb[0].mxu0
  %v1290 = vadd.f32 %v881, %v1289
  %v1291 = vpop.f32.mrb[0].mxu0
  %v1292 = vpop.f32.mrb[0].mxu0
  %v1293 = vadd.f32 %v884, %v1292
  %v1294 = vpop.f32.mrb[0].mxu0
  %1295 = vmatprep.mubr.bf16.mxu0 0
  %1296 = vmatmul.mubr.bf16.gmra.mrb[0].mxu0 %v1075
  %v1297 = vpop.f32.mrb[0].mxu0
  %v1298 = vadd.f32 %v889, %v1297
  %v1299 = vpop.f32.mrb[0].mxu0
  %v1300 = vpop.f32.mrb[0].mxu0
  %v1301 = vadd.f32 %v892, %v1300
  %v1302 = vpop.f32.mrb[0].mxu0
  %1303 = vmatprep.mubr.bf16.mxu0 0
  %1304 = vmatmul.mubr.bf16.gmra.mrb[0].mxu0 %v1077
  %v1305 = vpop.f32.mrb[0].mxu0
  %v1306 = vadd.f32 %v897, %v1305
  %v1307 = vpop.f32.mrb[0].mxu0
  %v1308 = vpop.f32.mrb[0].mxu0
  %v1309 = vadd.f32 %v900, %v1308
  %v1310 = vpop.f32.mrb[0].mxu0
  %1311 = vmatprep.mubr.bf16.mxu0 0
  %1312 = vmatmul.mubr.bf16.gmra.mrb[0].mxu0 %v1079
  %v1313 = vpop.f32.mrb[0].mxu0
  %v1314 = vadd.f32 %v905, %v1313
  %v1315 = vpop.f32.mrb[0].mxu0
  %v1316 = vpop.f32.mrb[0].mxu0
  %v1317 = vadd.f32 %v908, %v1316
  %v1318 = vpop.f32.mrb[0].mxu0
  %1319 = vmatprep.mubr.bf16.mxu0 0
  %1320 = vmatmul.mubr.bf16.gmra.mrb[0].mxu0 %v1081
  %v1321 = vpop.f32.mrb[0].mxu0
  %v1322 = vadd.f32 %v913, %v1321
  %v1323 = vpop.f32.mrb[0].mxu0
  %v1324 = vpop.f32.mrb[0].mxu0
  %v1325 = vadd.f32 %v916, %v1324
  %v1326 = vpop.f32.mrb[0].mxu0
  %1327 = vmatprep.mubr.bf16.mxu0 0
  %1328 = vmatmul.mubr.bf16.gmra.mrb[0].mxu0 %v1083
  %v1329 = vpop.f32.mrb[0].mxu0
  %v1330 = vadd.f32 %v921, %v1329
  %v1331 = vpop.f32.mrb[0].mxu0
  %v1332 = vpop.f32.mrb[0].mxu0
  %v1333 = vadd.f32 %v924, %v1332
  %v1334 = vpop.f32.mrb[0].mxu0
  %1335 = vmatprep.mubr.bf16.mxu0 0
  %1336 = vmatmul.mubr.bf16.gmra.mrb[0].mxu0 %v1085
  %v1337 = vpop.f32.mrb[0].mxu0
  %v1338 = vadd.f32 %v929, %v1337
  %v1339 = vpop.f32.mrb[0].mxu0
  %v1340 = vpop.f32.mrb[0].mxu0
  %v1341 = vadd.f32 %v932, %v1340
  %v1342 = vpop.f32.mrb[0].mxu0
  %1343 = vmatprep.mubr.bf16.mxu0 0
  %1344 = vmatmul.mubr.bf16.gmra.mrb[0].mxu0 %v1087
  %v1345 = vpop.f32.mrb[0].mxu0
  %v1346 = vadd.f32 %v937, %v1345
  %v1347 = vpop.f32.mrb[0].mxu0
  %v1348 = vpop.f32.mrb[0].mxu0
  %v1349 = vadd.f32 %v940, %v1348
  %v1350 = vpop.f32.mrb[0].mxu0
  %1351 = vmatprep.mubr.bf16.mxu0 0
  %1352 = vmatmul.mubr.bf16.gmra.mrb[0].mxu0 %v1089
  %v1353 = vpop.f32.mrb[0].mxu0
  %v1354 = vadd.f32 %v945, %v1353
  %v1355 = vpop.f32.mrb[0].mxu0
  %v1356 = vpop.f32.mrb[0].mxu0
  %v1357 = vadd.f32 %v948, %v1356
  %v1358 = vpop.f32.mrb[0].mxu0
  %1359 = vmatprep.mubr.bf16.mxu0 0
  %1360 = vmatmul.mubr.bf16.gmra.mrb[0].mxu0 %v1091
  %v1361 = vpop.f32.mrb[0].mxu0
  %v1362 = vadd.f32 %v953, %v1361
  %v1363 = vpop.f32.mrb[0].mxu0
  %v1364 = vpop.f32.mrb[0].mxu0
  %v1365 = vadd.f32 %v956, %v1364
  %v1366 = vpop.f32.mrb[0].mxu0
  %1367 = vmatprep.mubr.bf16.mxu0 0
  %1368 = vmatmul.mubr.bf16.gmra.mrb[0].mxu0 %v1093
  %v1369 = vpop.f32.mrb[0].mxu0
  %v1370 = vadd.f32 %v961, %v1369
  %v1371 = vpop.f32.mrb[0].mxu0
  %v1372 = vpop.f32.mrb[0].mxu0
  %v1373 = vadd.f32 %v964, %v1372
  %v1374 = vpop.f32.mrb[0].mxu0
  %1375 = vmatprep.mubr.bf16.mxu0 0
  %1376 = vmatmul.mubr.bf16.gmra.mrb[0].mxu0 %v1095
  %v1377 = vpop.f32.mrb[0].mxu0
  %v1378 = vadd.f32 %v969, %v1377
  %v1379 = vpop.f32.mrb[0].mxu0
  %v1380 = vpop.f32.mrb[0].mxu0
  %v1381 = vadd.f32 %v972, %v1380
  %v1382 = vpop.f32.mrb[0].mxu0
  %1383 = vmatprep.mubr.bf16.mxu0 0
  %1384 = vmatmul.mubr.bf16.gmra.mrb[0].mxu0 %v1097
  %v1385 = vpop.f32.mrb[0].mxu0
  %v1386 = vadd.f32 %v977, %v1385
  %v1387 = vpop.f32.mrb[0].mxu0
  %v1388 = vpop.f32.mrb[0].mxu0
  %v1389 = vadd.f32 %v980, %v1388
  %v1390 = vpop.f32.mrb[0].mxu0
  %1391 = vmatprep.mubr.bf16.mxu0 0
  %1392 = vmatmul.mubr.bf16.gmra.mrb[0].mxu0 %v1099
  %v1393 = vpop.f32.mrb[0].mxu0
  %v1394 = vadd.f32 %v985, %v1393
  %v1395 = vpop.f32.mrb[0].mxu0
  %v1396 = vpop.f32.mrb[0].mxu0
  %v1397 = vadd.f32 %v988, %v1396
  %v1398 = vpop.f32.mrb[0].mxu0
  %1399 = vmatprep.mubr.bf16.mxu0 0
  %1400 = vmatmul.mubr.bf16.gmra.mrb[0].mxu0 %v1101
  %v1401 = vpop.f32.mrb[0].mxu0
  %v1402 = vadd.f32 %v993, %v1401
  %v1403 = vpop.f32.mrb[0].mxu0
  %v1404 = vpop.f32.mrb[0].mxu0
  %v1405 = vadd.f32 %v996, %v1404
  %v1406 = vpop.f32.mrb[0].mxu0
  %1407 = vmatprep.mubr.bf16.mxu0 0
  %1408 = vmatmul.mubr.bf16.gmra.mrb[0].mxu0 %v1103
  %v1409 = vpop.f32.mrb[0].mxu0
  %v1410 = vadd.f32 %v1001, %v1409
  %v1411 = vpop.f32.mrb[0].mxu0
  %v1412 = vpop.f32.mrb[0].mxu0
  %v1413 = vadd.f32 %v1004, %v1412
  %v1414 = vpop.f32.mrb[0].mxu0
  %1415 = vmatprep.mubr.bf16.mxu0 0
  %1416 = vmatmul.mubr.bf16.gmra.mrb[0].mxu0 %v1105
  %v1417 = vpop.f32.mrb[0].mxu0
  %v1418 = vadd.f32 %v1009, %v1417
  %v1419 = vpop.f32.mrb[0].mxu0
  %v1420 = vpop.f32.mrb[0].mxu0
  %v1421 = vadd.f32 %v1012, %v1420
  %v1422 = vpop.f32.mrb[0].mxu0
  %1423 = vmatprep.mubr.bf16.mxu0 0
  %1424 = vmatmul.mubr.bf16.gmra.mrb[0].mxu0 %v1107
  %v1425 = vpop.f32.mrb[0].mxu0
  %v1426 = vadd.f32 %v1017, %v1425
  %v1427 = vpop.f32.mrb[0].mxu0
  %v1428 = vpop.f32.mrb[0].mxu0
  %v1429 = vadd.f32 %v1020, %v1428
  %v1430 = vpop.f32.mrb[0].mxu0
  %1431 = vmatprep.mubr.bf16.mxu0 0
  %1432 = vmatmul.mubr.bf16.gmra.mrb[0].mxu0 %v1109
  %v1433 = vpop.f32.mrb[0].mxu0
  %v1434 = vadd.f32 %v1025, %v1433
  %v1435 = vpop.f32.mrb[0].mxu0
  %v1436 = vpop.f32.mrb[0].mxu0
  %v1437 = vadd.f32 %v1028, %v1436
  %v1438 = vpop.f32.mrb[0].mxu0
  %1439 = vdwg.mxu0
  %v1440 = vld [vmem:[%s0 + $0x8] sm:$0xf]
  %v1441 = vld [vmem:[%s0 + $0xc] sm:$0xf]
  %v1442 = vld [vmem:[%s0 + $0x10] sm:$0xf]
  %v1443 = vld [vmem:[%s0 + $0x14] sm:$0xf]
  %v1444 = vld [vmem:[%s0 + $0x18] sm:$0xf]
  %v1445 = vld [vmem:[%s0 + $0x1c] sm:$0xf]
  %v1446 = vld [vmem:[%s0 + $0x20] sm:$0xf]
  %v1447 = vld [vmem:[%s0 + $0x24] sm:$0xf]
  %v1448 = vld [vmem:[%s0 + $0x28] sm:$0xf]
  %v1449 = vld [vmem:[%s0 + $0x2c] sm:$0xf]
  %v1450 = vld [vmem:[%s0 + $0x30] sm:$0xf]
  %v1451 = vld [vmem:[%s0 + $0x34] sm:$0xf]
  %v1452 = vld [vmem:[%s0 + $0x38] sm:$0xf]
  %v1453 = vld [vmem:[%s0 + $0x3c] sm:$0xf]
  %v1454 = vld [vmem:[%s0 + $0x40] sm:$0xf]
  %v1455 = vld [vmem:[%s0 + $0x44] sm:$0xf]
  %v1456 = vld [vmem:[%s0 + $0x48] sm:$0xf]
  %v1457 = vld [vmem:[%s0 + $0x4c] sm:$0xf]
  %v1458 = vld [vmem:[%s0 + $0x50] sm:$0xf]
  %v1459 = vld [vmem:[%s0 + $0x54] sm:$0xf]
  %v1460 = vld [vmem:[%s0 + $0x58] sm:$0xf]
  %v1461 = vld [vmem:[%s0 + $0x5c] sm:$0xf]
  %v1462 = vld [vmem:[%s0 + $0x60] sm:$0xf]
  %v1463 = vld [vmem:[%s0 + $0x64] sm:$0xf]
  %v1464 = vld [vmem:[%s0 + $0x68] sm:$0xf]
  %v1465 = vld [vmem:[%s0 + $0x6c] sm:$0xf]
  %v1466 = vld [vmem:[%s0 + $0x70] sm:$0xf]
  %v1467 = vld [vmem:[%s0 + $0x74] sm:$0xf]
  %v1468 = vld [vmem:[%s0 + $0x78] sm:$0xf]
  %v1469 = vld [vmem:[%s0 + $0x7c] sm:$0xf]
  %v1470 = vld [vmem:[%s0 + $0x80] sm:$0xf]
  %v1471 = vld [vmem:[%s0 + $0x84] sm:$0xf]
  %v1472 = vld [vmem:[%s0 + $0x88] sm:$0xf]
  %v1473 = vld [vmem:[%s0 + $0x8c] sm:$0xf]
  %v1474 = vld [vmem:[%s0 + $0x90] sm:$0xf]
  %v1475 = vld [vmem:[%s0 + $0x94] sm:$0xf]
  %v1476 = vld [vmem:[%s0 + $0x98] sm:$0xf]
  %v1477 = vld [vmem:[%s0 + $0x9c] sm:$0xf]
  %v1478 = vld [vmem:[%s0 + $0xa0] sm:$0xf]
  %v1479 = vld [vmem:[%s0 + $0xa4] sm:$0xf]
  %v1480 = vld [vmem:[%s0 + $0xa8] sm:$0xf]
  %v1481 = vld [vmem:[%s0 + $0xac] sm:$0xf]
  %v1482 = vld [vmem:[%s0 + $0xb0] sm:$0xf]
  %v1483 = vld [vmem:[%s0 + $0xb4] sm:$0xf]
  %v1484 = vld [vmem:[%s0 + $0xb8] sm:$0xf]
  %v1485 = vld [vmem:[%s0 + $0xbc] sm:$0xf]
  %v1486 = vld [vmem:[%s0 + $0xc0] sm:$0xf]
  %v1487 = vld [vmem:[%s0 + $0xc4] sm:$0xf]
  %v1488 = vld [vmem:[%s0 + $0xc8] sm:$0xf]
  %v1489 = vld [vmem:[%s0 + $0xcc] sm:$0xf]
  %v1490 = vld [vmem:[%s0 + $0xd0] sm:$0xf]
  %v1491 = vld [vmem:[%s0 + $0xd4] sm:$0xf]
  %v1492 = vld [vmem:[%s0 + $0xd8] sm:$0xf]
  %v1493 = vld [vmem:[%s0 + $0xdc] sm:$0xf]
  %v1494 = vld [vmem:[%s0 + $0xe0] sm:$0xf]
  %v1495 = vld [vmem:[%s0 + $0xe4] sm:$0xf]
  %v1496 = vld [vmem:[%s0 + $0xe8] sm:$0xf]
  %v1497 = vld [vmem:[%s0 + $0xec] sm:$0xf]
  %v1498 = vld [vmem:[%s0 + $0xf0] sm:$0xf]
  %v1499 = vld [vmem:[%s0 + $0xf4] sm:$0xf]
  %v1500 = vld [vmem:[%s0 + $0xf8] sm:$0xf]
  %v1501 = vld [vmem:[%s0 + $0xfc] sm:$0xf]
  %v1502 = vld [vmem:[%s0 + $0x100] sm:$0xf]
  %v1503 = vld [vmem:[%s0 + $0x104] sm:$0xf]
  %v1504 = vld [vmem:[%s0 + $0x108] sm:$0xf]
  %v1505 = vld [vmem:[%s0 + $0x10c] sm:$0xf]
  %v1506 = vld [vmem:[%s0 + $0x110] sm:$0xf]
  %v1507 = vld [vmem:[%s0 + $0x114] sm:$0xf]
  %v1508 = vld [vmem:[%s0 + $0x118] sm:$0xf]
  %v1509 = vld [vmem:[%s0 + $0x11c] sm:$0xf]
  %v1510 = vld [vmem:[%s0 + $0x120] sm:$0xf]
  %v1511 = vld [vmem:[%s0 + $0x124] sm:$0xf]
  %v1512 = vld [vmem:[%s0 + $0x128] sm:$0xf]
  %v1513 = vld [vmem:[%s0 + $0x12c] sm:$0xf]
  %v1514 = vld [vmem:[%s0 + $0x130] sm:$0x1]
  %s1515 = scalar_lea.vmem %s1, 16
  %v1516 = vld [vmem:[%s1515] sm:$0xf]
  %v1517 = vld [vmem:[%s1515 + $0x4] sm:$0xf]
  %v1593 = vunpack.c.l.b16 %v1440
  %v1594 = vunpack.c.l.b16 %v1441
  %v1595 = vunpack.c.l.b16 %v1442
  %v1596 = vunpack.c.l.b16 %v1443
  %v1597 = vunpack.c.l.b16 %v1444
  %v1598 = vunpack.c.l.b16 %v1445
  %v1599 = vunpack.c.l.b16 %v1446
  %v1600 = vunpack.c.l.b16 %v1447
  %v1601 = vunpack.c.l.b16 %v1448
  %v1602 = vunpack.c.l.b16 %v1449
  %v1603 = vunpack.c.l.b16 %v1450
  %v1604 = vunpack.c.l.b16 %v1451
  %v1605 = vunpack.c.l.b16 %v1452
  %v1606 = vunpack.c.l.b16 %v1453
  %v1607 = vunpack.c.l.b16 %v1454
  %v1608 = vunpack.c.l.b16 %v1455
  %v1609 = vunpack.c.l.b16 %v1456
  %v1610 = vunpack.c.l.b16 %v1457
  %v1611 = vunpack.c.l.b16 %v1458
  %v1612 = vunpack.c.l.b16 %v1459
  %v1613 = vunpack.c.l.b16 %v1460
  %v1614 = vunpack.c.l.b16 %v1461
  %v1615 = vunpack.c.l.b16 %v1462
  %v1616 = vunpack.c.l.b16 %v1463
  %v1617 = vunpack.c.l.b16 %v1464
  %v1618 = vunpack.c.l.b16 %v1465
  %v1619 = vunpack.c.l.b16 %v1466
  %v1620 = vunpack.c.l.b16 %v1467
  %v1621 = vunpack.c.l.b16 %v1468
  %v1622 = vunpack.c.l.b16 %v1469
  %v1623 = vunpack.c.l.b16 %v1470
  %v1624 = vunpack.c.l.b16 %v1471
  %v1625 = vunpack.c.l.b16 %v1472
  %v1626 = vunpack.c.l.b16 %v1473
  %v1627 = vunpack.c.l.b16 %v1474
  %v1628 = vunpack.c.l.b16 %v1475
  %v1629 = vunpack.c.l.b16 %v1476
  %v1630 = vunpack.c.l.b16 %v1477
  %v1631 = vunpack.c.l.b16 %v1478
  %v1632 = vunpack.c.l.b16 %v1479
  %v1633 = vunpack.c.l.b16 %v1480
  %v1634 = vunpack.c.l.b16 %v1481
  %v1635 = vunpack.c.l.b16 %v1482
  %v1636 = vunpack.c.l.b16 %v1483
  %v1637 = vunpack.c.l.b16 %v1484
  %v1638 = vunpack.c.l.b16 %v1485
  %v1639 = vunpack.c.l.b16 %v1486
  %v1640 = vunpack.c.l.b16 %v1487
  %v1641 = vunpack.c.l.b16 %v1488
  %v1642 = vunpack.c.l.b16 %v1489
  %v1643 = vunpack.c.l.b16 %v1490
  %v1644 = vunpack.c.l.b16 %v1491
  %v1645 = vunpack.c.l.b16 %v1492
  %v1646 = vunpack.c.l.b16 %v1493
  %v1647 = vunpack.c.l.b16 %v1494
  %v1648 = vunpack.c.l.b16 %v1495
  %v1649 = vunpack.c.l.b16 %v1496
  %v1650 = vunpack.c.l.b16 %v1497
  %v1651 = vunpack.c.l.b16 %v1498
  %v1652 = vunpack.c.l.b16 %v1499
  %v1653 = vunpack.c.l.b16 %v1500
  %v1654 = vunpack.c.l.b16 %v1501
  %v1655 = vunpack.c.l.b16 %v1502
  %v1656 = vunpack.c.l.b16 %v1503
  %v1657 = vunpack.c.l.b16 %v1504
  %v1658 = vunpack.c.l.b16 %v1505
  %v1659 = vunpack.c.l.b16 %v1506
  %v1660 = vunpack.c.l.b16 %v1507
  %v1661 = vunpack.c.l.b16 %v1508
  %v1662 = vunpack.c.l.b16 %v1509
  %v1663 = vunpack.c.l.b16 %v1510
  %v1664 = vunpack.c.l.b16 %v1511
  %v1665 = vunpack.c.l.b16 %v1512
  %v1666 = vunpack.c.l.b16 %v1513
  %v1667 = vunpack.c.l.b16 %v1514
  %v1668 = vpack.c.b16 %v1594, %v1593
  %v1669 = vpack.c.b16 %v1596, %v1595
  %v1670 = vpack.c.b16 %v1598, %v1597
  %v1671 = vpack.c.b16 %v1600, %v1599
  %v1672 = vpack.c.b16 %v1602, %v1601
  %v1673 = vpack.c.b16 %v1604, %v1603
  %v1674 = vpack.c.b16 %v1606, %v1605
  %v1675 = vpack.c.b16 %v1608, %v1607
  %v1676 = vpack.c.b16 %v1610, %v1609
  %v1677 = vpack.c.b16 %v1612, %v1611
  %v1678 = vpack.c.b16 %v1614, %v1613
  %v1679 = vpack.c.b16 %v1616, %v1615
  %v1680 = vpack.c.b16 %v1618, %v1617
  %v1681 = vpack.c.b16 %v1620, %v1619
  %v1682 = vpack.c.b16 %v1622, %v1621
  %v1683 = vpack.c.b16 %v1624, %v1623
  %v1684 = vpack.c.b16 %v1626, %v1625
  %v1685 = vpack.c.b16 %v1628, %v1627
  %v1686 = vpack.c.b16 %v1630, %v1629
  %v1687 = vpack.c.b16 %v1632, %v1631
  %v1688 = vpack.c.b16 %v1634, %v1633
  %v1689 = vpack.c.b16 %v1636, %v1635
  %v1690 = vpack.c.b16 %v1638, %v1637
  %v1691 = vpack.c.b16 %v1640, %v1639
  %v1692 = vpack.c.b16 %v1642, %v1641
  %v1693 = vpack.c.b16 %v1644, %v1643
  %v1694 = vpack.c.b16 %v1646, %v1645
  %v1695 = vpack.c.b16 %v1648, %v1647
  %v1696 = vpack.c.b16 %v1650, %v1649
  %v1697 = vpack.c.b16 %v1652, %v1651
  %v1698 = vpack.c.b16 %v1654, %v1653
  %v1699 = vpack.c.b16 %v1656, %v1655
  %v1700 = vpack.c.b16 %v1658, %v1657
  %v1701 = vpack.c.b16 %v1660, %v1659
  %v1702 = vpack.c.b16 %v1662, %v1661
  %v1703 = vpack.c.b16 %v1664, %v1663
  %v1704 = vpack.c.b16 %v1666, %v1665
  %v1705 = vpack.c.b16 %v1667, %v1667
  %v1707 = vshrl.u32 %v1668, 16
  %v1709 = vshll.u32 %v1668, 16
  %v1711 = vrot.slane %v1709, 1
  %v1712 = vor.u32 %v1707, %v1711
  %v1714 = vshll.u32 %v1669, 16
  %v1716 = vrot.slane %v1714, 1
  %v1717 = vsel %vm283, %v1712, %v1716
  %v1718 = vshrl.u32 %v1669, 16
  %v1720 = vor.u32 %v1718, %v1716
  %v1722 = vshll.u32 %v1670, 16
  %v1724 = vrot.slane %v1722, 1
  %v1725 = vsel %vm283, %v1720, %v1724
  %v1726 = vshrl.u32 %v1670, 16
  %v1728 = vor.u32 %v1726, %v1724
  %v1730 = vshll.u32 %v1671, 16
  %v1732 = vrot.slane %v1730, 1
  %v1733 = vsel %vm283, %v1728, %v1732
  %v1734 = vshrl.u32 %v1671, 16
  %v1736 = vor.u32 %v1734, %v1732
  %v1738 = vshll.u32 %v1672, 16
  %v1740 = vrot.slane %v1738, 1
  %v1741 = vsel %vm283, %v1736, %v1740
  %v1742 = vshrl.u32 %v1672, 16
  %v1744 = vor.u32 %v1742, %v1740
  %v1746 = vshll.u32 %v1673, 16
  %v1748 = vrot.slane %v1746, 1
  %v1749 = vsel %vm283, %v1744, %v1748
  %v1750 = vshrl.u32 %v1673, 16
  %v1752 = vor.u32 %v1750, %v1748
  %v1754 = vshll.u32 %v1674, 16
  %v1756 = vrot.slane %v1754, 1
  %v1757 = vsel %vm283, %v1752, %v1756
  %v1758 = vshrl.u32 %v1674, 16
  %v1760 = vor.u32 %v1758, %v1756
  %v1762 = vshll.u32 %v1675, 16
  %v1764 = vrot.slane %v1762, 1
  %v1765 = vsel %vm283, %v1760, %v1764
  %v1766 = vshrl.u32 %v1675, 16
  %v1768 = vor.u32 %v1766, %v1764
  %v1770 = vshll.u32 %v1676, 16
  %v1772 = vrot.slane %v1770, 1
  %v1773 = vsel %vm283, %v1768, %v1772
  %v1774 = vshrl.u32 %v1676, 16
  %v1776 = vor.u32 %v1774, %v1772
  %v1778 = vshll.u32 %v1677, 16
  %v1780 = vrot.slane %v1778, 1
  %v1781 = vsel %vm283, %v1776, %v1780
  %v1782 = vshrl.u32 %v1677, 16
  %v1784 = vor.u32 %v1782, %v1780
  %v1786 = vshll.u32 %v1678, 16
  %v1788 = vrot.slane %v1786, 1
  %v1789 = vsel %vm283, %v1784, %v1788
  %v1790 = vshrl.u32 %v1678, 16
  %v1792 = vor.u32 %v1790, %v1788
  %v1794 = vshll.u32 %v1679, 16
  %v1796 = vrot.slane %v1794, 1
  %v1797 = vsel %vm283, %v1792, %v1796
  %v1798 = vshrl.u32 %v1679, 16
  %v1800 = vor.u32 %v1798, %v1796
  %v1802 = vshll.u32 %v1680, 16
  %v1804 = vrot.slane %v1802, 1
  %v1805 = vsel %vm283, %v1800, %v1804
  %v1806 = vshrl.u32 %v1680, 16
  %v1808 = vor.u32 %v1806, %v1804
  %v1810 = vshll.u32 %v1681, 16
  %v1812 = vrot.slane %v1810, 1
  %v1813 = vsel %vm283, %v1808, %v1812
  %v1814 = vshrl.u32 %v1681, 16
  %v1816 = vor.u32 %v1814, %v1812
  %v1818 = vshll.u32 %v1682, 16
  %v1820 = vrot.slane %v1818, 1
  %v1821 = vsel %vm283, %v1816, %v1820
  %v1822 = vshrl.u32 %v1682, 16
  %v1824 = vor.u32 %v1822, %v1820
  %v1826 = vshll.u32 %v1683, 16
  %v1828 = vrot.slane %v1826, 1
  %v1829 = vsel %vm283, %v1824, %v1828
  %v1830 = vshrl.u32 %v1683, 16
  %v1832 = vor.u32 %v1830, %v1828
  %v1834 = vshll.u32 %v1684, 16
  %v1836 = vrot.slane %v1834, 1
  %v1837 = vsel %vm283, %v1832, %v1836
  %v1838 = vshrl.u32 %v1684, 16
  %v1840 = vor.u32 %v1838, %v1836
  %v1842 = vshll.u32 %v1685, 16
  %v1844 = vrot.slane %v1842, 1
  %v1845 = vsel %vm283, %v1840, %v1844
  %v1846 = vshrl.u32 %v1685, 16
  %v1848 = vor.u32 %v1846, %v1844
  %v1850 = vshll.u32 %v1686, 16
  %v1852 = vrot.slane %v1850, 1
  %v1853 = vsel %vm283, %v1848, %v1852
  %v1854 = vshrl.u32 %v1686, 16
  %v1856 = vor.u32 %v1854, %v1852
  %v1858 = vshll.u32 %v1687, 16
  %v1860 = vrot.slane %v1858, 1
  %v1861 = vsel %vm283, %v1856, %v1860
  %v1862 = vshrl.u32 %v1687, 16
  %v1864 = vor.u32 %v1862, %v1860
  %v1866 = vshll.u32 %v1688, 16
  %v1868 = vrot.slane %v1866, 1
  %v1869 = vsel %vm283, %v1864, %v1868
  %v1870 = vshrl.u32 %v1688, 16
  %v1872 = vor.u32 %v1870, %v1868
  %v1874 = vshll.u32 %v1689, 16
  %v1876 = vrot.slane %v1874, 1
  %v1877 = vsel %vm283, %v1872, %v1876
  %v1878 = vshrl.u32 %v1689, 16
  %v1880 = vor.u32 %v1878, %v1876
  %v1882 = vshll.u32 %v1690, 16
  %v1884 = vrot.slane %v1882, 1
  %v1885 = vsel %vm283, %v1880, %v1884
  %v1886 = vshrl.u32 %v1690, 16
  %v1888 = vor.u32 %v1886, %v1884
  %v1890 = vshll.u32 %v1691, 16
  %v1892 = vrot.slane %v1890, 1
  %v1893 = vsel %vm283, %v1888, %v1892
  %v1894 = vshrl.u32 %v1691, 16
  %v1896 = vor.u32 %v1894, %v1892
  %v1898 = vshll.u32 %v1692, 16
  %v1900 = vrot.slane %v1898, 1
  %v1901 = vsel %vm283, %v1896, %v1900
  %v1902 = vshrl.u32 %v1692, 16
  %v1904 = vor.u32 %v1902, %v1900
  %v1906 = vshll.u32 %v1693, 16
  %v1908 = vrot.slane %v1906, 1
  %v1909 = vsel %vm283, %v1904, %v1908
  %v1910 = vshrl.u32 %v1693, 16
  %v1912 = vor.u32 %v1910, %v1908
  %v1914 = vshll.u32 %v1694, 16
  %v1916 = vrot.slane %v1914, 1
  %v1917 = vsel %vm283, %v1912, %v1916
  %v1918 = vshrl.u32 %v1694, 16
  %v1920 = vor.u32 %v1918, %v1916
  %v1922 = vshll.u32 %v1695, 16
  %v1924 = vrot.slane %v1922, 1
  %v1925 = vsel %vm283, %v1920, %v1924
  %v1926 = vshrl.u32 %v1695, 16
  %v1928 = vor.u32 %v1926, %v1924
  %v1930 = vshll.u32 %v1696, 16
  %v1932 = vrot.slane %v1930, 1
  %v1933 = vsel %vm283, %v1928, %v1932
  %v1934 = vshrl.u32 %v1696, 16
  %v1936 = vor.u32 %v1934, %v1932
  %v1938 = vshll.u32 %v1697, 16
  %v1940 = vrot.slane %v1938, 1
  %v1941 = vsel %vm283, %v1936, %v1940
  %v1942 = vshrl.u32 %v1697, 16
  %v1944 = vor.u32 %v1942, %v1940
  %v1946 = vshll.u32 %v1698, 16
  %v1948 = vrot.slane %v1946, 1
  %v1949 = vsel %vm283, %v1944, %v1948
  %v1950 = vshrl.u32 %v1698, 16
  %v1952 = vor.u32 %v1950, %v1948
  %v1954 = vshll.u32 %v1699, 16
  %v1956 = vrot.slane %v1954, 1
  %v1957 = vsel %vm283, %v1952, %v1956
  %v1958 = vshrl.u32 %v1699, 16
  %v1960 = vor.u32 %v1958, %v1956
  %v1962 = vshll.u32 %v1700, 16
  %v1964 = vrot.slane %v1962, 1
  %v1965 = vsel %vm283, %v1960, %v1964
  %v1966 = vshrl.u32 %v1700, 16
  %v1968 = vor.u32 %v1966, %v1964
  %v1970 = vshll.u32 %v1701, 16
  %v1972 = vrot.slane %v1970, 1
  %v1973 = vsel %vm283, %v1968, %v1972
  %v1974 = vshrl.u32 %v1701, 16
  %v1976 = vor.u32 %v1974, %v1972
  %v1978 = vshll.u32 %v1702, 16
  %v1980 = vrot.slane %v1978, 1
  %v1981 = vsel %vm283, %v1976, %v1980
  %v1982 = vshrl.u32 %v1702, 16
  %v1984 = vor.u32 %v1982, %v1980
  %v1986 = vshll.u32 %v1703, 16
  %v1988 = vrot.slane %v1986, 1
  %v1989 = vsel %vm283, %v1984, %v1988
  %v1990 = vshrl.u32 %v1703, 16
  %v1992 = vor.u32 %v1990, %v1988
  %v1994 = vshll.u32 %v1704, 16
  %v1996 = vrot.slane %v1994, 1
  %v1997 = vsel %vm283, %v1992, %v1996
  %v1998 = vshrl.u32 %v1704, 16
  %v2000 = vor.u32 %v1998, %v1996
  %v2002 = vshll.u32 %v1705, 16
  %v2004 = vrot.slane %v2002, 1
  %v2005 = vsel %vm283, %v2000, %v2004
  %v2008 = vunpack.c.l.b16 %v1516
  %v2009 = vunpack.c.l.b16 %v1517
  %v2010 = vpack.c.b16 %v2009, %v2008
  %v2013 = vsel %vm590, %v1717, 0
  %v2016 = vsel %vm590, %v1725, 0
  %v2019 = vsel %vm590, %v1733, 0
  %v2022 = vsel %vm590, %v1741, 0
  %v2025 = vsel %vm590, %v1749, 0
  %v2028 = vsel %vm590, %v1757, 0
  %v2031 = vsel %vm590, %v1765, 0
  %v2034 = vsel %vm590, %v1773, 0
  %v2037 = vsel %vm590, %v1781, 0
  %v2040 = vsel %vm590, %v1789, 0
  %v2043 = vsel %vm590, %v1797, 0
  %v2046 = vsel %vm590, %v1805, 0
  %v2049 = vsel %vm590, %v1813, 0
  %v2052 = vsel %vm590, %v1821, 0
  %v2055 = vsel %vm590, %v1829, 0
  %v2058 = vsel %vm590, %v1837, 0
  %v2061 = vsel %vm590, %v1845, 0
  %v2064 = vsel %vm590, %v1853, 0
  %v2067 = vsel %vm590, %v1861, 0
  %v2070 = vsel %vm590, %v1869, 0
  %v2073 = vsel %vm590, %v1877, 0
  %v2076 = vsel %vm590, %v1885, 0
  %v2079 = vsel %vm590, %v1893, 0
  %v2082 = vsel %vm590, %v1901, 0
  %v2085 = vsel %vm590, %v1909, 0
  %v2088 = vsel %vm590, %v1917, 0
  %v2091 = vsel %vm590, %v1925, 0
  %v2094 = vsel %vm590, %v1933, 0
  %v2097 = vsel %vm590, %v1941, 0
  %v2100 = vsel %vm590, %v1949, 0
  %v2103 = vsel %vm590, %v1957, 0
  %v2106 = vsel %vm590, %v1965, 0
  %v2109 = vsel %vm590, %v1973, 0
  %v2112 = vsel %vm590, %v1981, 0
  %v2115 = vsel %vm590, %v1989, 0
  %v2118 = vsel %vm590, %v1997, 0
  %v2121 = vsel %vm590, %v2005, 0
  %2123 = vmatprep.subr.bf16.mxu0 0
  %2124 = vmatpush1.bf16.msra.mxu0 %v2010
  %2125 = vmatprep.subr.bf16.mxu0 0
  %2126 = vmatpush1.bf16.msra.mxu0 0
  %2127 = vmatprep.subr.bf16.mxu0 0
  %2128 = vmatpush1.bf16.msra.mxu0 0
  %2129 = vmatprep.subr.bf16.mxu0 0
  %2130 = vmatpush1.bf16.msra.mxu0 0
  %2131 = vmatprep.subr.bf16.mxu0 0
  %2132 = vmatpush1.bf16.msra.mxu0 0
  %2133 = vmatprep.subr.bf16.mxu0 0
  %2134 = vmatpush1.bf16.msra.mxu0 0
  %2135 = vmatprep.subr.bf16.mxu0 0
  %2136 = vmatpush1.bf16.msra.mxu0 0
  %2137 = vmatprep.subr.bf16.mxu0 0
  %2138 = vmatpush1.bf16.msra.mxu0 0
  %2139 = vmatprep.subr.bf16.mxu0 0
  %2140 = vmatpush1.bf16.msra.mxu0 0
  %2141 = vmatprep.subr.bf16.mxu0 0
  %2142 = vmatpush1.bf16.msra.mxu0 0
  %2143 = vmatprep.subr.bf16.mxu0 0
  %2144 = vmatpush1.bf16.msra.mxu0 0
  %2145 = vmatprep.subr.bf16.mxu0 0
  %2146 = vmatpush1.bf16.msra.mxu0 0
  %2147 = vmatprep.subr.bf16.mxu0 0
  %2148 = vmatpush1.bf16.msra.mxu0 0
  %2149 = vmatprep.subr.bf16.mxu0 0
  %2150 = vmatpush1.bf16.msra.mxu0 0
  %2151 = vmatprep.subr.bf16.mxu0 0
  %2152 = vmatpush1.bf16.msra.mxu0 0
  %2153 = vmatprep.subr.bf16.mxu0 0
  %2154 = vmatpush1.bf16.msra.mxu0 0
  %2155 = vmatprep.mubr.bf16.mxu0 0
  %2156 = vmatmul.mubr.bf16.gmra.mrb[0].mxu0 %v2013
  %v2157 = vpop.f32.mrb[0].mxu0
  %v2158 = vadd.f32 0.0, %v2157
  %v2159 = vpop.f32.mrb[0].mxu0
  %v2160 = vpop.f32.mrb[0].mxu0
  %v2161 = vadd.f32 0.0, %v2160
  %v2162 = vpop.f32.mrb[0].mxu0
  %2163 = vmatprep.mubr.bf16.mxu0 0
  %2164 = vmatmul.mubr.bf16.gmra.mrb[0].mxu0 %v2016
  %v2165 = vpop.f32.mrb[0].mxu0
  %v2166 = vadd.f32 0.0, %v2165
  %v2167 = vpop.f32.mrb[0].mxu0
  %v2168 = vpop.f32.mrb[0].mxu0
  %v2169 = vadd.f32 0.0, %v2168
  %v2170 = vpop.f32.mrb[0].mxu0
  %2171 = vmatprep.mubr.bf16.mxu0 0
  %2172 = vmatmul.mubr.bf16.gmra.mrb[0].mxu0 %v2019
  %v2173 = vpop.f32.mrb[0].mxu0
  %v2174 = vadd.f32 0.0, %v2173
  %v2175 = vpop.f32.mrb[0].mxu0
  %v2176 = vpop.f32.mrb[0].mxu0
  %v2177 = vadd.f32 0.0, %v2176
  %v2178 = vpop.f32.mrb[0].mxu0
  %2179 = vmatprep.mubr.bf16.mxu0 0
  %2180 = vmatmul.mubr.bf16.gmra.mrb[0].mxu0 %v2022
  %v2181 = vpop.f32.mrb[0].mxu0
  %v2182 = vadd.f32 0.0, %v2181
  %v2183 = vpop.f32.mrb[0].mxu0
  %v2184 = vpop.f32.mrb[0].mxu0
  %v2185 = vadd.f32 0.0, %v2184
  %v2186 = vpop.f32.mrb[0].mxu0
  %2187 = vmatprep.mubr.bf16.mxu0 0
  %2188 = vmatmul.mubr.bf16.gmra.mrb[0].mxu0 %v2025
  %v2189 = vpop.f32.mrb[0].mxu0
  %v2190 = vadd.f32 0.0, %v2189
  %v2191 = vpop.f32.mrb[0].mxu0
  %v2192 = vpop.f32.mrb[0].mxu0
  %v2193 = vadd.f32 0.0, %v2192
  %v2194 = vpop.f32.mrb[0].mxu0
  %2195 = vmatprep.mubr.bf16.mxu0 0
  %2196 = vmatmul.mubr.bf16.gmra.mrb[0].mxu0 %v2028
  %v2197 = vpop.f32.mrb[0].mxu0
  %v2198 = vadd.f32 0.0, %v2197
  %v2199 = vpop.f32.mrb[0].mxu0
  %v2200 = vpop.f32.mrb[0].mxu0
  %v2201 = vadd.f32 0.0, %v2200
  %v2202 = vpop.f32.mrb[0].mxu0
  %2203 = vmatprep.mubr.bf16.mxu0 0
  %2204 = vmatmul.mubr.bf16.gmra.mrb[0].mxu0 %v2031
  %v2205 = vpop.f32.mrb[0].mxu0
  %v2206 = vadd.f32 0.0, %v2205
  %v2207 = vpop.f32.mrb[0].mxu0
  %v2208 = vpop.f32.mrb[0].mxu0
  %v2209 = vadd.f32 0.0, %v2208
  %v2210 = vpop.f32.mrb[0].mxu0
  %2211 = vmatprep.mubr.bf16.mxu0 0
  %2212 = vmatmul.mubr.bf16.gmra.mrb[0].mxu0 %v2034
  %v2213 = vpop.f32.mrb[0].mxu0
  %v2214 = vadd.f32 0.0, %v2213
  %v2215 = vpop.f32.mrb[0].mxu0
  %v2216 = vpop.f32.mrb[0].mxu0
  %v2217 = vadd.f32 0.0, %v2216
  %v2218 = vpop.f32.mrb[0].mxu0
  %2219 = vmatprep.mubr.bf16.mxu0 0
  %2220 = vmatmul.mubr.bf16.gmra.mrb[0].mxu0 %v2037
  %v2221 = vpop.f32.mrb[0].mxu0
  %v2222 = vadd.f32 0.0, %v2221
  %v2223 = vpop.f32.mrb[0].mxu0
  %v2224 = vpop.f32.mrb[0].mxu0
  %v2225 = vadd.f32 0.0, %v2224
  %v2226 = vpop.f32.mrb[0].mxu0
  %2227 = vmatprep.mubr.bf16.mxu0 0
  %2228 = vmatmul.mubr.bf16.gmra.mrb[0].mxu0 %v2040
  %v2229 = vpop.f32.mrb[0].mxu0
  %v2230 = vadd.f32 0.0, %v2229
  %v2231 = vpop.f32.mrb[0].mxu0
  %v2232 = vpop.f32.mrb[0].mxu0
  %v2233 = vadd.f32 0.0, %v2232
  %v2234 = vpop.f32.mrb[0].mxu0
  %2235 = vmatprep.mubr.bf16.mxu0 0
  %2236 = vmatmul.mubr.bf16.gmra.mrb[0].mxu0 %v2043
  %v2237 = vpop.f32.mrb[0].mxu0
  %v2238 = vadd.f32 0.0, %v2237
  %v2239 = vpop.f32.mrb[0].mxu0
  %v2240 = vpop.f32.mrb[0].mxu0
  %v2241 = vadd.f32 0.0, %v2240
  %v2242 = vpop.f32.mrb[0].mxu0
  %2243 = vmatprep.mubr.bf16.mxu0 0
  %2244 = vmatmul.mubr.bf16.gmra.mrb[0].mxu0 %v2046
  %v2245 = vpop.f32.mrb[0].mxu0
  %v2246 = vadd.f32 0.0, %v2245
  %v2247 = vpop.f32.mrb[0].mxu0
  %v2248 = vpop.f32.mrb[0].mxu0
  %v2249 = vadd.f32 0.0, %v2248
  %v2250 = vpop.f32.mrb[0].mxu0
  %2251 = vmatprep.mubr.bf16.mxu0 0
  %2252 = vmatmul.mubr.bf16.gmra.mrb[0].mxu0 %v2049
  %v2253 = vpop.f32.mrb[0].mxu0
  %v2254 = vadd.f32 0.0, %v2253
  %v2255 = vpop.f32.mrb[0].mxu0
  %v2256 = vpop.f32.mrb[0].mxu0
  %v2257 = vadd.f32 0.0, %v2256
  %v2258 = vpop.f32.mrb[0].mxu0
  %2259 = vmatprep.mubr.bf16.mxu0 0
  %2260 = vmatmul.mubr.bf16.gmra.mrb[0].mxu0 %v2052
  %v2261 = vpop.f32.mrb[0].mxu0
  %v2262 = vadd.f32 0.0, %v2261
  %v2263 = vpop.f32.mrb[0].mxu0
  %v2264 = vpop.f32.mrb[0].mxu0
  %v2265 = vadd.f32 0.0, %v2264
  %v2266 = vpop.f32.mrb[0].mxu0
  %2267 = vmatprep.mubr.bf16.mxu0 0
  %2268 = vmatmul.mubr.bf16.gmra.mrb[0].mxu0 %v2055
  %v2269 = vpop.f32.mrb[0].mxu0
  %v2270 = vadd.f32 0.0, %v2269
  %v2271 = vpop.f32.mrb[0].mxu0
  %v2272 = vpop.f32.mrb[0].mxu0
  %v2273 = vadd.f32 0.0, %v2272
  %v2274 = vpop.f32.mrb[0].mxu0
  %2275 = vmatprep.mubr.bf16.mxu0 0
  %2276 = vmatmul.mubr.bf16.gmra.mrb[0].mxu0 %v2058
  %v2277 = vpop.f32.mrb[0].mxu0
  %v2278 = vadd.f32 0.0, %v2277
  %v2279 = vpop.f32.mrb[0].mxu0
  %v2280 = vpop.f32.mrb[0].mxu0
  %v2281 = vadd.f32 0.0, %v2280
  %v2282 = vpop.f32.mrb[0].mxu0
  %2283 = vmatprep.mubr.bf16.mxu0 0
  %2284 = vmatmul.mubr.bf16.gmra.mrb[0].mxu0 %v2061
  %v2285 = vpop.f32.mrb[0].mxu0
  %v2286 = vadd.f32 0.0, %v2285
  %v2287 = vpop.f32.mrb[0].mxu0
  %v2288 = vpop.f32.mrb[0].mxu0
  %v2289 = vadd.f32 0.0, %v2288
  %v2290 = vpop.f32.mrb[0].mxu0
  %2291 = vmatprep.mubr.bf16.mxu0 0
  %2292 = vmatmul.mubr.bf16.gmra.mrb[0].mxu0 %v2064
  %v2293 = vpop.f32.mrb[0].mxu0
  %v2294 = vadd.f32 0.0, %v2293
  %v2295 = vpop.f32.mrb[0].mxu0
  %v2296 = vpop.f32.mrb[0].mxu0
  %v2297 = vadd.f32 0.0, %v2296
  %v2298 = vpop.f32.mrb[0].mxu0
  %2299 = vmatprep.mubr.bf16.mxu0 0
  %2300 = vmatmul.mubr.bf16.gmra.mrb[0].mxu0 %v2067
  %v2301 = vpop.f32.mrb[0].mxu0
  %v2302 = vadd.f32 0.0, %v2301
  %v2303 = vpop.f32.mrb[0].mxu0
  %v2304 = vpop.f32.mrb[0].mxu0
  %v2305 = vadd.f32 0.0, %v2304
  %v2306 = vpop.f32.mrb[0].mxu0
  %2307 = vmatprep.mubr.bf16.mxu0 0
  %2308 = vmatmul.mubr.bf16.gmra.mrb[0].mxu0 %v2070
  %v2309 = vpop.f32.mrb[0].mxu0
  %v2310 = vadd.f32 0.0, %v2309
  %v2311 = vpop.f32.mrb[0].mxu0
  %v2312 = vpop.f32.mrb[0].mxu0
  %v2313 = vadd.f32 0.0, %v2312
  %v2314 = vpop.f32.mrb[0].mxu0
  %2315 = vmatprep.mubr.bf16.mxu0 0
  %2316 = vmatmul.mubr.bf16.gmra.mrb[0].mxu0 %v2073
  %v2317 = vpop.f32.mrb[0].mxu0
  %v2318 = vadd.f32 0.0, %v2317
  %v2319 = vpop.f32.mrb[0].mxu0
  %v2320 = vpop.f32.mrb[0].mxu0
  %v2321 = vadd.f32 0.0, %v2320
  %v2322 = vpop.f32.mrb[0].mxu0
  %2323 = vmatprep.mubr.bf16.mxu0 0
  %2324 = vmatmul.mubr.bf16.gmra.mrb[0].mxu0 %v2076
  %v2325 = vpop.f32.mrb[0].mxu0
  %v2326 = vadd.f32 0.0, %v2325
  %v2327 = vpop.f32.mrb[0].mxu0
  %v2328 = vpop.f32.mrb[0].mxu0
  %v2329 = vadd.f32 0.0, %v2328
  %v2330 = vpop.f32.mrb[0].mxu0
  %2331 = vmatprep.mubr.bf16.mxu0 0
  %2332 = vmatmul.mubr.bf16.gmra.mrb[0].mxu0 %v2079
  %v2333 = vpop.f32.mrb[0].mxu0
  %v2334 = vadd.f32 0.0, %v2333
  %v2335 = vpop.f32.mrb[0].mxu0
  %v2336 = vpop.f32.mrb[0].mxu0
  %v2337 = vadd.f32 0.0, %v2336
  %v2338 = vpop.f32.mrb[0].mxu0
  %2339 = vmatprep.mubr.bf16.mxu0 0
  %2340 = vmatmul.mubr.bf16.gmra.mrb[0].mxu0 %v2082
  %v2341 = vpop.f32.mrb[0].mxu0
  %v2342 = vadd.f32 0.0, %v2341
  %v2343 = vpop.f32.mrb[0].mxu0
  %v2344 = vpop.f32.mrb[0].mxu0
  %v2345 = vadd.f32 0.0, %v2344
  %v2346 = vpop.f32.mrb[0].mxu0
  %2347 = vmatprep.mubr.bf16.mxu0 0
  %2348 = vmatmul.mubr.bf16.gmra.mrb[0].mxu0 %v2085
  %v2349 = vpop.f32.mrb[0].mxu0
  %v2350 = vadd.f32 0.0, %v2349
  %v2351 = vpop.f32.mrb[0].mxu0
  %v2352 = vpop.f32.mrb[0].mxu0
  %v2353 = vadd.f32 0.0, %v2352
  %v2354 = vpop.f32.mrb[0].mxu0
  %2355 = vmatprep.mubr.bf16.mxu0 0
  %2356 = vmatmul.mubr.bf16.gmra.mrb[0].mxu0 %v2088
  %v2357 = vpop.f32.mrb[0].mxu0
  %v2358 = vadd.f32 0.0, %v2357
  %v2359 = vpop.f32.mrb[0].mxu0
  %v2360 = vpop.f32.mrb[0].mxu0
  %v2361 = vadd.f32 0.0, %v2360
  %v2362 = vpop.f32.mrb[0].mxu0
  %2363 = vmatprep.mubr.bf16.mxu0 0
  %2364 = vmatmul.mubr.bf16.gmra.mrb[0].mxu0 %v2091
  %v2365 = vpop.f32.mrb[0].mxu0
  %v2366 = vadd.f32 0.0, %v2365
  %v2367 = vpop.f32.mrb[0].mxu0
  %v2368 = vpop.f32.mrb[0].mxu0
  %v2369 = vadd.f32 0.0, %v2368
  %v2370 = vpop.f32.mrb[0].mxu0
  %2371 = vmatprep.mubr.bf16.mxu0 0
  %2372 = vmatmul.mubr.bf16.gmra.mrb[0].mxu0 %v2094
  %v2373 = vpop.f32.mrb[0].mxu0
  %v2374 = vadd.f32 0.0, %v2373
  %v2375 = vpop.f32.mrb[0].mxu0
  %v2376 = vpop.f32.mrb[0].mxu0
  %v2377 = vadd.f32 0.0, %v2376
  %v2378 = vpop.f32.mrb[0].mxu0
  %2379 = vmatprep.mubr.bf16.mxu0 0
  %2380 = vmatmul.mubr.bf16.gmra.mrb[0].mxu0 %v2097
  %v2381 = vpop.f32.mrb[0].mxu0
  %v2382 = vadd.f32 0.0, %v2381
  %v2383 = vpop.f32.mrb[0].mxu0
  %v2384 = vpop.f32.mrb[0].mxu0
  %v2385 = vadd.f32 0.0, %v2384
  %v2386 = vpop.f32.mrb[0].mxu0
  %2387 = vmatprep.mubr.bf16.mxu0 0
  %2388 = vmatmul.mubr.bf16.gmra.mrb[0].mxu0 %v2100
  %v2389 = vpop.f32.mrb[0].mxu0
  %v2390 = vadd.f32 0.0, %v2389
  %v2391 = vpop.f32.mrb[0].mxu0
  %v2392 = vpop.f32.mrb[0].mxu0
  %v2393 = vadd.f32 0.0, %v2392
  %v2394 = vpop.f32.mrb[0].mxu0
  %2395 = vmatprep.mubr.bf16.mxu0 0
  %2396 = vmatmul.mubr.bf16.gmra.mrb[0].mxu0 %v2103
  %v2397 = vpop.f32.mrb[0].mxu0
  %v2398 = vadd.f32 0.0, %v2397
  %v2399 = vpop.f32.mrb[0].mxu0
  %v2400 = vpop.f32.mrb[0].mxu0
  %v2401 = vadd.f32 0.0, %v2400
  %v2402 = vpop.f32.mrb[0].mxu0
  %2403 = vmatprep.mubr.bf16.mxu0 0
  %2404 = vmatmul.mubr.bf16.gmra.mrb[0].mxu0 %v2106
  %v2405 = vpop.f32.mrb[0].mxu0
  %v2406 = vadd.f32 0.0, %v2405
  %v2407 = vpop.f32.mrb[0].mxu0
  %v2408 = vpop.f32.mrb[0].mxu0
  %v2409 = vadd.f32 0.0, %v2408
  %v2410 = vpop.f32.mrb[0].mxu0
  %2411 = vmatprep.mubr.bf16.mxu0 0
  %2412 = vmatmul.mubr.bf16.gmra.mrb[0].mxu0 %v2109
  %v2413 = vpop.f32.mrb[0].mxu0
  %v2414 = vadd.f32 0.0, %v2413
  %v2415 = vpop.f32.mrb[0].mxu0
  %v2416 = vpop.f32.mrb[0].mxu0
  %v2417 = vadd.f32 0.0, %v2416
  %v2418 = vpop.f32.mrb[0].mxu0
  %2419 = vmatprep.mubr.bf16.mxu0 0
  %2420 = vmatmul.mubr.bf16.gmra.mrb[0].mxu0 %v2112
  %v2421 = vpop.f32.mrb[0].mxu0
  %v2422 = vadd.f32 0.0, %v2421
  %v2423 = vpop.f32.mrb[0].mxu0
  %v2424 = vpop.f32.mrb[0].mxu0
  %v2425 = vadd.f32 0.0, %v2424
  %v2426 = vpop.f32.mrb[0].mxu0
  %2427 = vmatprep.mubr.bf16.mxu0 0
  %2428 = vmatmul.mubr.bf16.gmra.mrb[0].mxu0 %v2115
  %v2429 = vpop.f32.mrb[0].mxu0
  %v2430 = vadd.f32 0.0, %v2429
  %v2431 = vpop.f32.mrb[0].mxu0
  %v2432 = vpop.f32.mrb[0].mxu0
  %v2433 = vadd.f32 0.0, %v2432
  %v2434 = vpop.f32.mrb[0].mxu0
  %2435 = vmatprep.mubr.bf16.mxu0 0
  %2436 = vmatmul.mubr.bf16.gmra.mrb[0].mxu0 %v2118
  %v2437 = vpop.f32.mrb[0].mxu0
  %v2438 = vadd.f32 0.0, %v2437
  %v2439 = vpop.f32.mrb[0].mxu0
  %v2440 = vpop.f32.mrb[0].mxu0
  %v2441 = vadd.f32 0.0, %v2440
  %v2442 = vpop.f32.mrb[0].mxu0
  %2443 = vmatprep.mubr.bf16.mxu0 0
  %2444 = vmatmul.mubr.bf16.gmra.mrb[0].mxu0 %v2121
  %v2445 = vpop.f32.mrb[0].mxu0
  %v2446 = vadd.f32 0.0, %v2445
  %v2447 = vpop.f32.mrb[0].mxu0
  %v2448 = vpop.f32.mrb[0].mxu0
  %v2449 = vadd.f32 0.0, %v2448
  %v2450 = vpop.f32.mrb[0].mxu0
  %2451 = vdwg.mxu0
  %v2452 = vadd.f32 %v1146, %v2158
  %v2453 = vadd.f32 %v1149, %v2161
  %v2454 = vadd.f32 %v1154, %v2166
  %v2455 = vadd.f32 %v1157, %v2169
  %v2456 = vadd.f32 %v1162, %v2174
  %v2457 = vadd.f32 %v1165, %v2177
  %v2458 = vadd.f32 %v1170, %v2182
  %v2459 = vadd.f32 %v1173, %v2185
  %v2460 = vadd.f32 %v1178, %v2190
  %v2461 = vadd.f32 %v1181, %v2193
  %v2462 = vadd.f32 %v1186, %v2198
  %v2463 = vadd.f32 %v1189, %v2201
  %v2464 = vadd.f32 %v1194, %v2206
  %v2465 = vadd.f32 %v1197, %v2209
  %v2466 = vadd.f32 %v1202, %v2214
  %v2467 = vadd.f32 %v1205, %v2217
  %v2468 = vadd.f32 %v1210, %v2222
  %v2469 = vadd.f32 %v1213, %v2225
  %v2470 = vadd.f32 %v1218, %v2230
  %v2471 = vadd.f32 %v1221, %v2233
  %v2472 = vadd.f32 %v1226, %v2238
  %v2473 = vadd.f32 %v1229, %v2241
  %v2474 = vadd.f32 %v1234, %v2246
  %v2475 = vadd.f32 %v1237, %v2249
  %v2476 = vadd.f32 %v1242, %v2254
  %v2477 = vadd.f32 %v1245, %v2257
  %v2478 = vadd.f32 %v1250, %v2262
  %v2479 = vadd.f32 %v1253, %v2265
  %v2480 = vadd.f32 %v1258, %v2270
  %v2481 = vadd.f32 %v1261, %v2273
  %v2482 = vadd.f32 %v1266, %v2278
  %v2483 = vadd.f32 %v1269, %v2281
  %v2484 = vadd.f32 %v1274, %v2286
  %v2485 = vadd.f32 %v1277, %v2289
  %v2486 = vadd.f32 %v1282, %v2294
  %v2487 = vadd.f32 %v1285, %v2297
  %v2488 = vadd.f32 %v1290, %v2302
  %v2489 = vadd.f32 %v1293, %v2305
  %v2490 = vadd.f32 %v1298, %v2310
  %v2491 = vadd.f32 %v1301, %v2313
  %v2492 = vadd.f32 %v1306, %v2318
  %v2493 = vadd.f32 %v1309, %v2321
  %v2494 = vadd.f32 %v1314, %v2326
  %v2495 = vadd.f32 %v1317, %v2329
  %v2496 = vadd.f32 %v1322, %v2334
  %v2497 = vadd.f32 %v1325, %v2337
  %v2498 = vadd.f32 %v1330, %v2342
  %v2499 = vadd.f32 %v1333, %v2345
  %v2500 = vadd.f32 %v1338, %v2350
  %v2501 = vadd.f32 %v1341, %v2353
  %v2502 = vadd.f32 %v1346, %v2358
  %v2503 = vadd.f32 %v1349, %v2361
  %v2504 = vadd.f32 %v1354, %v2366
  %v2505 = vadd.f32 %v1357, %v2369
  %v2506 = vadd.f32 %v1362, %v2374
  %v2507 = vadd.f32 %v1365, %v2377
  %v2508 = vadd.f32 %v1370, %v2382
  %v2509 = vadd.f32 %v1373, %v2385
  %v2510 = vadd.f32 %v1378, %v2390
  %v2511 = vadd.f32 %v1381, %v2393
  %v2512 = vadd.f32 %v1386, %v2398
  %v2513 = vadd.f32 %v1389, %v2401
  %v2514 = vadd.f32 %v1394, %v2406
  %v2515 = vadd.f32 %v1397, %v2409
  %v2516 = vadd.f32 %v1402, %v2414
  %v2517 = vadd.f32 %v1405, %v2417
  %v2518 = vadd.f32 %v1410, %v2422
  %v2519 = vadd.f32 %v1413, %v2425
  %v2520 = vadd.f32 %v1418, %v2430
  %v2521 = vadd.f32 %v1421, %v2433
  %v2522 = vadd.f32 %v1426, %v2438
  %v2523 = vadd.f32 %v1429, %v2441
  %v2524 = vadd.f32 %v1434, %v2446
  %v2525 = vadd.f32 %v1437, %v2449
  %v2526 = vld [vmem:[%s0 + $0x8] sm:$0xe]
  %s2527 = scalar_lea.vmem %s1, 24
  %v2528 = vld [vmem:[%s2527] sm:$0xf]
  %v2529 = vld [vmem:[%s2527 + $0x4] sm:$0xf]
  %v2531 = vunpack.c.l.b16 %v2526
  %v2532 = vpack.c.b16 %v1594, %v2531
  %vm2533 = vcmask 1046528
  %v2534 = vrot.slane %v2532, 1
  %v2535 = vrot.slane %v1669, 1
  %v2536 = vsel %vm2533, %v2534, %v2535
  %v2537 = vrot.slane %v1670, 1
  %v2538 = vsel %vm2533, %v2535, %v2537
  %v2539 = vrot.slane %v1671, 1
  %v2540 = vsel %vm2533, %v2537, %v2539
  %v2541 = vrot.slane %v1672, 1
  %v2542 = vsel %vm2533, %v2539, %v2541
  %v2543 = vrot.slane %v1673, 1
  %v2544 = vsel %vm2533, %v2541, %v2543
  %v2545 = vrot.slane %v1674, 1
  %v2546 = vsel %vm2533, %v2543, %v2545
  %v2547 = vrot.slane %v1675, 1
  %v2548 = vsel %vm2533, %v2545, %v2547
  %v2549 = vrot.slane %v1676, 1
  %v2550 = vsel %vm2533, %v2547, %v2549
  %v2551 = vrot.slane %v1677, 1
  %v2552 = vsel %vm2533, %v2549, %v2551
  %v2553 = vrot.slane %v1678, 1
  %v2554 = vsel %vm2533, %v2551, %v2553
  %v2555 = vrot.slane %v1679, 1
  %v2556 = vsel %vm2533, %v2553, %v2555
  %v2557 = vrot.slane %v1680, 1
  %v2558 = vsel %vm2533, %v2555, %v2557
  %v2559 = vrot.slane %v1681, 1
  %v2560 = vsel %vm2533, %v2557, %v2559
  %v2561 = vrot.slane %v1682, 1
  %v2562 = vsel %vm2533, %v2559, %v2561
  %v2563 = vrot.slane %v1683, 1
  %v2564 = vsel %vm2533, %v2561, %v2563
  %v2565 = vrot.slane %v1684, 1
  %v2566 = vsel %vm2533, %v2563, %v2565
  %v2567 = vrot.slane %v1685, 1
  %v2568 = vsel %vm2533, %v2565, %v2567
  %v2569 = vrot.slane %v1686, 1
  %v2570 = vsel %vm2533, %v2567, %v2569
  %v2571 = vrot.slane %v1687, 1
  %v2572 = vsel %vm2533, %v2569, %v2571
  %v2573 = vrot.slane %v1688, 1
  %v2574 = vsel %vm2533, %v2571, %v2573
  %v2575 = vrot.slane %v1689, 1
  %v2576 = vsel %vm2533, %v2573, %v2575
  %v2577 = vrot.slane %v1690, 1
  %v2578 = vsel %vm2533, %v2575, %v2577
  %v2579 = vrot.slane %v1691, 1
  %v2580 = vsel %vm2533, %v2577, %v2579
  %v2581 = vrot.slane %v1692, 1
  %v2582 = vsel %vm2533, %v2579, %v2581
  %v2583 = vrot.slane %v1693, 1
  %v2584 = vsel %vm2533, %v2581, %v2583
  %v2585 = vrot.slane %v1694, 1
  %v2586 = vsel %vm2533, %v2583, %v2585
  %v2587 = vrot.slane %v1695, 1
  %v2588 = vsel %vm2533, %v2585, %v2587
  %v2589 = vrot.slane %v1696, 1
  %v2590 = vsel %vm2533, %v2587, %v2589
  %v2591 = vrot.slane %v1697, 1
  %v2592 = vsel %vm2533, %v2589, %v2591
  %v2593 = vrot.slane %v1698, 1
  %v2594 = vsel %vm2533, %v2591, %v2593
  %v2595 = vrot.slane %v1699, 1
  %v2596 = vsel %vm2533, %v2593, %v2595
  %v2597 = vrot.slane %v1700, 1
  %v2598 = vsel %vm2533, %v2595, %v2597
  %v2599 = vrot.slane %v1701, 1
  %v2600 = vsel %vm2533, %v2597, %v2599
  %v2601 = vrot.slane %v1702, 1
  %v2602 = vsel %vm2533, %v2599, %v2601
  %v2603 = vrot.slane %v1703, 1
  %v2604 = vsel %vm2533, %v2601, %v2603
  %v2605 = vrot.slane %v1704, 1
  %v2606 = vsel %vm2533, %v2603, %v2605
  %v2607 = vrot.slane %v1705, 1
  %v2608 = vsel %vm2533, %v2605, %v2607
  %v2611 = vunpack.c.l.b16 %v2528
  %v2612 = vunpack.c.l.b16 %v2529
  %v2613 = vpack.c.b16 %v2612, %v2611
  %v2616 = vsel %vm590, %v2536, 0
  %v2619 = vsel %vm590, %v2538, 0
  %v2622 = vsel %vm590, %v2540, 0
  %v2625 = vsel %vm590, %v2542, 0
  %v2628 = vsel %vm590, %v2544, 0
  %v2631 = vsel %vm590, %v2546, 0
  %v2634 = vsel %vm590, %v2548, 0
  %v2637 = vsel %vm590, %v2550, 0
  %v2640 = vsel %vm590, %v2552, 0
  %v2643 = vsel %vm590, %v2554, 0
  %v2646 = vsel %vm590, %v2556, 0
  %v2649 = vsel %vm590, %v2558, 0
  %v2652 = vsel %vm590, %v2560, 0
  %v2655 = vsel %vm590, %v2562, 0
  %v2658 = vsel %vm590, %v2564, 0
  %v2661 = vsel %vm590, %v2566, 0
  %v2664 = vsel %vm590, %v2568, 0
  %v2667 = vsel %vm590, %v2570, 0
  %v2670 = vsel %vm590, %v2572, 0
  %v2673 = vsel %vm590, %v2574, 0
  %v2676 = vsel %vm590, %v2576, 0
  %v2679 = vsel %vm590, %v2578, 0
  %v2682 = vsel %vm590, %v2580, 0
  %v2685 = vsel %vm590, %v2582, 0
  %v2688 = vsel %vm590, %v2584, 0
  %v2691 = vsel %vm590, %v2586, 0
  %v2694 = vsel %vm590, %v2588, 0
  %v2697 = vsel %vm590, %v2590, 0
  %v2700 = vsel %vm590, %v2592, 0
  %v2703 = vsel %vm590, %v2594, 0
  %v2706 = vsel %vm590, %v2596, 0
  %v2709 = vsel %vm590, %v2598, 0
  %v2712 = vsel %vm590, %v2600, 0
  %v2715 = vsel %vm590, %v2602, 0
  %v2718 = vsel %vm590, %v2604, 0
  %v2721 = vsel %vm590, %v2606, 0
  %v2724 = vsel %vm590, %v2608, 0
  %2726 = vmatprep.subr.bf16.mxu0 0
  %2727 = vmatpush1.bf16.msra.mxu0 %v2613
  %2728 = vmatprep.subr.bf16.mxu0 0
  %2729 = vmatpush1.bf16.msra.mxu0 0
  %2730 = vmatprep.subr.bf16.mxu0 0
  %2731 = vmatpush1.bf16.msra.mxu0 0
  %2732 = vmatprep.subr.bf16.mxu0 0
  %2733 = vmatpush1.bf16.msra.mxu0 0
  %2734 = vmatprep.subr.bf16.mxu0 0
  %2735 = vmatpush1.bf16.msra.mxu0 0
  %2736 = vmatprep.subr.bf16.mxu0 0
  %2737 = vmatpush1.bf16.msra.mxu0 0
  %2738 = vmatprep.subr.bf16.mxu0 0
  %2739 = vmatpush1.bf16.msra.mxu0 0
  %2740 = vmatprep.subr.bf16.mxu0 0
  %2741 = vmatpush1.bf16.msra.mxu0 0
  %2742 = vmatprep.subr.bf16.mxu0 0
  %2743 = vmatpush1.bf16.msra.mxu0 0
  %2744 = vmatprep.subr.bf16.mxu0 0
  %2745 = vmatpush1.bf16.msra.mxu0 0
  %2746 = vmatprep.subr.bf16.mxu0 0
  %2747 = vmatpush1.bf16.msra.mxu0 0
  %2748 = vmatprep.subr.bf16.mxu0 0
  %2749 = vmatpush1.bf16.msra.mxu0 0
  %2750 = vmatprep.subr.bf16.mxu0 0
  %2751 = vmatpush1.bf16.msra.mxu0 0
  %2752 = vmatprep.subr.bf16.mxu0 0
  %2753 = vmatpush1.bf16.msra.mxu0 0
  %2754 = vmatprep.subr.bf16.mxu0 0
  %2755 = vmatpush1.bf16.msra.mxu0 0
  %2756 = vmatprep.subr.bf16.mxu0 0
  %2757 = vmatpush1.bf16.msra.mxu0 0
  %2758 = vmatprep.mubr.bf16.mxu0 0
  %2759 = vmatmul.mubr.bf16.gmra.mrb[0].mxu0 %v2616
  %v2760 = vpop.f32.mrb[0].mxu0
  %v2761 = vadd.f32 0.0, %v2760
  %v2762 = vpop.f32.mrb[0].mxu0
  %v2763 = vpop.f32.mrb[0].mxu0
  %v2764 = vadd.f32 0.0, %v2763
  %v2765 = vpop.f32.mrb[0].mxu0
  %2766 = vmatprep.mubr.bf16.mxu0 0
  %2767 = vmatmul.mubr.bf16.gmra.mrb[0].mxu0 %v2619
  %v2768 = vpop.f32.mrb[0].mxu0
  %v2769 = vadd.f32 0.0, %v2768
  %v2770 = vpop.f32.mrb[0].mxu0
  %v2771 = vpop.f32.mrb[0].mxu0
  %v2772 = vadd.f32 0.0, %v2771
  %v2773 = vpop.f32.mrb[0].mxu0
  %2774 = vmatprep.mubr.bf16.mxu0 0
  %2775 = vmatmul.mubr.bf16.gmra.mrb[0].mxu0 %v2622
  %v2776 = vpop.f32.mrb[0].mxu0
  %v2777 = vadd.f32 0.0, %v2776
  %v2778 = vpop.f32.mrb[0].mxu0
  %v2779 = vpop.f32.mrb[0].mxu0
  %v2780 = vadd.f32 0.0, %v2779
  %v2781 = vpop.f32.mrb[0].mxu0
  %2782 = vmatprep.mubr.bf16.mxu0 0
  %2783 = vmatmul.mubr.bf16.gmra.mrb[0].mxu0 %v2625
  %v2784 = vpop.f32.mrb[0].mxu0
  %v2785 = vadd.f32 0.0, %v2784
  %v2786 = vpop.f32.mrb[0].mxu0
  %v2787 = vpop.f32.mrb[0].mxu0
  %v2788 = vadd.f32 0.0, %v2787
  %v2789 = vpop.f32.mrb[0].mxu0
  %2790 = vmatprep.mubr.bf16.mxu0 0
  %2791 = vmatmul.mubr.bf16.gmra.mrb[0].mxu0 %v2628
  %v2792 = vpop.f32.mrb[0].mxu0
  %v2793 = vadd.f32 0.0, %v2792
  %v2794 = vpop.f32.mrb[0].mxu0
  %v2795 = vpop.f32.mrb[0].mxu0
  %v2796 = vadd.f32 0.0, %v2795
  %v2797 = vpop.f32.mrb[0].mxu0
  %2798 = vmatprep.mubr.bf16.mxu0 0
  %2799 = vmatmul.mubr.bf16.gmra.mrb[0].mxu0 %v2631
  %v2800 = vpop.f32.mrb[0].mxu0
  %v2801 = vadd.f32 0.0, %v2800
  %v2802 = vpop.f32.mrb[0].mxu0
  %v2803 = vpop.f32.mrb[0].mxu0
  %v2804 = vadd.f32 0.0, %v2803
  %v2805 = vpop.f32.mrb[0].mxu0
  %2806 = vmatprep.mubr.bf16.mxu0 0
  %2807 = vmatmul.mubr.bf16.gmra.mrb[0].mxu0 %v2634
  %v2808 = vpop.f32.mrb[0].mxu0
  %v2809 = vadd.f32 0.0, %v2808
  %v2810 = vpop.f32.mrb[0].mxu0
  %v2811 = vpop.f32.mrb[0].mxu0
  %v2812 = vadd.f32 0.0, %v2811
  %v2813 = vpop.f32.mrb[0].mxu0
  %2814 = vmatprep.mubr.bf16.mxu0 0
  %2815 = vmatmul.mubr.bf16.gmra.mrb[0].mxu0 %v2637
  %v2816 = vpop.f32.mrb[0].mxu0
  %v2817 = vadd.f32 0.0, %v2816
  %v2818 = vpop.f32.mrb[0].mxu0
  %v2819 = vpop.f32.mrb[0].mxu0
  %v2820 = vadd.f32 0.0, %v2819
  %v2821 = vpop.f32.mrb[0].mxu0
  %2822 = vmatprep.mubr.bf16.mxu0 0
  %2823 = vmatmul.mubr.bf16.gmra.mrb[0].mxu0 %v2640
  %v2824 = vpop.f32.mrb[0].mxu0
  %v2825 = vadd.f32 0.0, %v2824
  %v2826 = vpop.f32.mrb[0].mxu0
  %v2827 = vpop.f32.mrb[0].mxu0
  %v2828 = vadd.f32 0.0, %v2827
  %v2829 = vpop.f32.mrb[0].mxu0
  %2830 = vmatprep.mubr.bf16.mxu0 0
  %2831 = vmatmul.mubr.bf16.gmra.mrb[0].mxu0 %v2643
  %v2832 = vpop.f32.mrb[0].mxu0
  %v2833 = vadd.f32 0.0, %v2832
  %v2834 = vpop.f32.mrb[0].mxu0
  %v2835 = vpop.f32.mrb[0].mxu0
  %v2836 = vadd.f32 0.0, %v2835
  %v2837 = vpop.f32.mrb[0].mxu0
  %2838 = vmatprep.mubr.bf16.mxu0 0
  %2839 = vmatmul.mubr.bf16.gmra.mrb[0].mxu0 %v2646
  %v2840 = vpop.f32.mrb[0].mxu0
  %v2841 = vadd.f32 0.0, %v2840
  %v2842 = vpop.f32.mrb[0].mxu0
  %v2843 = vpop.f32.mrb[0].mxu0
  %v2844 = vadd.f32 0.0, %v2843
  %v2845 = vpop.f32.mrb[0].mxu0
  %2846 = vmatprep.mubr.bf16.mxu0 0
  %2847 = vmatmul.mubr.bf16.gmra.mrb[0].mxu0 %v2649
  %v2848 = vpop.f32.mrb[0].mxu0
  %v2849 = vadd.f32 0.0, %v2848
  %v2850 = vpop.f32.mrb[0].mxu0
  %v2851 = vpop.f32.mrb[0].mxu0
  %v2852 = vadd.f32 0.0, %v2851
  %v2853 = vpop.f32.mrb[0].mxu0
  %2854 = vmatprep.mubr.bf16.mxu0 0
  %2855 = vmatmul.mubr.bf16.gmra.mrb[0].mxu0 %v2652
  %v2856 = vpop.f32.mrb[0].mxu0
  %v2857 = vadd.f32 0.0, %v2856
  %v2858 = vpop.f32.mrb[0].mxu0
  %v2859 = vpop.f32.mrb[0].mxu0
  %v2860 = vadd.f32 0.0, %v2859
  %v2861 = vpop.f32.mrb[0].mxu0
  %2862 = vmatprep.mubr.bf16.mxu0 0
  %2863 = vmatmul.mubr.bf16.gmra.mrb[0].mxu0 %v2655
  %v2864 = vpop.f32.mrb[0].mxu0
  %v2865 = vadd.f32 0.0, %v2864
  %v2866 = vpop.f32.mrb[0].mxu0
  %v2867 = vpop.f32.mrb[0].mxu0
  %v2868 = vadd.f32 0.0, %v2867
  %v2869 = vpop.f32.mrb[0].mxu0
  %2870 = vmatprep.mubr.bf16.mxu0 0
  %2871 = vmatmul.mubr.bf16.gmra.mrb[0].mxu0 %v2658
  %v2872 = vpop.f32.mrb[0].mxu0
  %v2873 = vadd.f32 0.0, %v2872
  %v2874 = vpop.f32.mrb[0].mxu0
  %v2875 = vpop.f32.mrb[0].mxu0
  %v2876 = vadd.f32 0.0, %v2875
  %v2877 = vpop.f32.mrb[0].mxu0
  %2878 = vmatprep.mubr.bf16.mxu0 0
  %2879 = vmatmul.mubr.bf16.gmra.mrb[0].mxu0 %v2661
  %v2880 = vpop.f32.mrb[0].mxu0
  %v2881 = vadd.f32 0.0, %v2880
  %v2882 = vpop.f32.mrb[0].mxu0
  %v2883 = vpop.f32.mrb[0].mxu0
  %v2884 = vadd.f32 0.0, %v2883
  %v2885 = vpop.f32.mrb[0].mxu0
  %2886 = vmatprep.mubr.bf16.mxu0 0
  %2887 = vmatmul.mubr.bf16.gmra.mrb[0].mxu0 %v2664
  %v2888 = vpop.f32.mrb[0].mxu0
  %v2889 = vadd.f32 0.0, %v2888
  %v2890 = vpop.f32.mrb[0].mxu0
  %v2891 = vpop.f32.mrb[0].mxu0
  %v2892 = vadd.f32 0.0, %v2891
  %v2893 = vpop.f32.mrb[0].mxu0
  %2894 = vmatprep.mubr.bf16.mxu0 0
  %2895 = vmatmul.mubr.bf16.gmra.mrb[0].mxu0 %v2667
  %v2896 = vpop.f32.mrb[0].mxu0
  %v2897 = vadd.f32 0.0, %v2896
  %v2898 = vpop.f32.mrb[0].mxu0
  %v2899 = vpop.f32.mrb[0].mxu0
  %v2900 = vadd.f32 0.0, %v2899
  %v2901 = vpop.f32.mrb[0].mxu0
  %2902 = vmatprep.mubr.bf16.mxu0 0
  %2903 = vmatmul.mubr.bf16.gmra.mrb[0].mxu0 %v2670
  %v2904 = vpop.f32.mrb[0].mxu0
  %v2905 = vadd.f32 0.0, %v2904
  %v2906 = vpop.f32.mrb[0].mxu0
  %v2907 = vpop.f32.mrb[0].mxu0
  %v2908 = vadd.f32 0.0, %v2907
  %v2909 = vpop.f32.mrb[0].mxu0
  %2910 = vmatprep.mubr.bf16.mxu0 0
  %2911 = vmatmul.mubr.bf16.gmra.mrb[0].mxu0 %v2673
  %v2912 = vpop.f32.mrb[0].mxu0
  %v2913 = vadd.f32 0.0, %v2912
  %v2914 = vpop.f32.mrb[0].mxu0
  %v2915 = vpop.f32.mrb[0].mxu0
  %v2916 = vadd.f32 0.0, %v2915
  %v2917 = vpop.f32.mrb[0].mxu0
  %2918 = vmatprep.mubr.bf16.mxu0 0
  %2919 = vmatmul.mubr.bf16.gmra.mrb[0].mxu0 %v2676
  %v2920 = vpop.f32.mrb[0].mxu0
  %v2921 = vadd.f32 0.0, %v2920
  %v2922 = vpop.f32.mrb[0].mxu0
  %v2923 = vpop.f32.mrb[0].mxu0
  %v2924 = vadd.f32 0.0, %v2923
  %v2925 = vpop.f32.mrb[0].mxu0
  %2926 = vmatprep.mubr.bf16.mxu0 0
  %2927 = vmatmul.mubr.bf16.gmra.mrb[0].mxu0 %v2679
  %v2928 = vpop.f32.mrb[0].mxu0
  %v2929 = vadd.f32 0.0, %v2928
  %v2930 = vpop.f32.mrb[0].mxu0
  %v2931 = vpop.f32.mrb[0].mxu0
  %v2932 = vadd.f32 0.0, %v2931
  %v2933 = vpop.f32.mrb[0].mxu0
  %2934 = vmatprep.mubr.bf16.mxu0 0
  %2935 = vmatmul.mubr.bf16.gmra.mrb[0].mxu0 %v2682
  %v2936 = vpop.f32.mrb[0].mxu0
  %v2937 = vadd.f32 0.0, %v2936
  %v2938 = vpop.f32.mrb[0].mxu0
  %v2939 = vpop.f32.mrb[0].mxu0
  %v2940 = vadd.f32 0.0, %v2939
  %v2941 = vpop.f32.mrb[0].mxu0
  %2942 = vmatprep.mubr.bf16.mxu0 0
  %2943 = vmatmul.mubr.bf16.gmra.mrb[0].mxu0 %v2685
  %v2944 = vpop.f32.mrb[0].mxu0
  %v2945 = vadd.f32 0.0, %v2944
  %v2946 = vpop.f32.mrb[0].mxu0
  %v2947 = vpop.f32.mrb[0].mxu0
  %v2948 = vadd.f32 0.0, %v2947
  %v2949 = vpop.f32.mrb[0].mxu0
  %2950 = vmatprep.mubr.bf16.mxu0 0
  %2951 = vmatmul.mubr.bf16.gmra.mrb[0].mxu0 %v2688
  %v2952 = vpop.f32.mrb[0].mxu0
  %v2953 = vadd.f32 0.0, %v2952
  %v2954 = vpop.f32.mrb[0].mxu0
  %v2955 = vpop.f32.mrb[0].mxu0
  %v2956 = vadd.f32 0.0, %v2955
  %v2957 = vpop.f32.mrb[0].mxu0
  %2958 = vmatprep.mubr.bf16.mxu0 0
  %2959 = vmatmul.mubr.bf16.gmra.mrb[0].mxu0 %v2691
  %v2960 = vpop.f32.mrb[0].mxu0
  %v2961 = vadd.f32 0.0, %v2960
  %v2962 = vpop.f32.mrb[0].mxu0
  %v2963 = vpop.f32.mrb[0].mxu0
  %v2964 = vadd.f32 0.0, %v2963
  %v2965 = vpop.f32.mrb[0].mxu0
  %2966 = vmatprep.mubr.bf16.mxu0 0
  %2967 = vmatmul.mubr.bf16.gmra.mrb[0].mxu0 %v2694
  %v2968 = vpop.f32.mrb[0].mxu0
  %v2969 = vadd.f32 0.0, %v2968
  %v2970 = vpop.f32.mrb[0].mxu0
  %v2971 = vpop.f32.mrb[0].mxu0
  %v2972 = vadd.f32 0.0, %v2971
  %v2973 = vpop.f32.mrb[0].mxu0
  %2974 = vmatprep.mubr.bf16.mxu0 0
  %2975 = vmatmul.mubr.bf16.gmra.mrb[0].mxu0 %v2697
  %v2976 = vpop.f32.mrb[0].mxu0
  %v2977 = vadd.f32 0.0, %v2976
  %v2978 = vpop.f32.mrb[0].mxu0
  %v2979 = vpop.f32.mrb[0].mxu0
  %v2980 = vadd.f32 0.0, %v2979
  %v2981 = vpop.f32.mrb[0].mxu0
  %2982 = vmatprep.mubr.bf16.mxu0 0
  %2983 = vmatmul.mubr.bf16.gmra.mrb[0].mxu0 %v2700
  %v2984 = vpop.f32.mrb[0].mxu0
  %v2985 = vadd.f32 0.0, %v2984
  %v2986 = vpop.f32.mrb[0].mxu0
  %v2987 = vpop.f32.mrb[0].mxu0
  %v2988 = vadd.f32 0.0, %v2987
  %v2989 = vpop.f32.mrb[0].mxu0
  %2990 = vmatprep.mubr.bf16.mxu0 0
  %2991 = vmatmul.mubr.bf16.gmra.mrb[0].mxu0 %v2703
  %v2992 = vpop.f32.mrb[0].mxu0
  %v2993 = vadd.f32 0.0, %v2992
  %v2994 = vpop.f32.mrb[0].mxu0
  %v2995 = vpop.f32.mrb[0].mxu0
  %v2996 = vadd.f32 0.0, %v2995
  %v2997 = vpop.f32.mrb[0].mxu0
  %2998 = vmatprep.mubr.bf16.mxu0 0
  %2999 = vmatmul.mubr.bf16.gmra.mrb[0].mxu0 %v2706
  %v3000 = vpop.f32.mrb[0].mxu0
  %v3001 = vadd.f32 0.0, %v3000
  %v3002 = vpop.f32.mrb[0].mxu0
  %v3003 = vpop.f32.mrb[0].mxu0
  %v3004 = vadd.f32 0.0, %v3003
  %v3005 = vpop.f32.mrb[0].mxu0
  %3006 = vmatprep.mubr.bf16.mxu0 0
  %3007 = vmatmul.mubr.bf16.gmra.mrb[0].mxu0 %v2709
  %v3008 = vpop.f32.mrb[0].mxu0
  %v3009 = vadd.f32 0.0, %v3008
  %v3010 = vpop.f32.mrb[0].mxu0
  %v3011 = vpop.f32.mrb[0].mxu0
  %v3012 = vadd.f32 0.0, %v3011
  %v3013 = vpop.f32.mrb[0].mxu0
  %3014 = vmatprep.mubr.bf16.mxu0 0
  %3015 = vmatmul.mubr.bf16.gmra.mrb[0].mxu0 %v2712
  %v3016 = vpop.f32.mrb[0].mxu0
  %v3017 = vadd.f32 0.0, %v3016
  %v3018 = vpop.f32.mrb[0].mxu0
  %v3019 = vpop.f32.mrb[0].mxu0
  %v3020 = vadd.f32 0.0, %v3019
  %v3021 = vpop.f32.mrb[0].mxu0
  %3022 = vmatprep.mubr.bf16.mxu0 0
  %3023 = vmatmul.mubr.bf16.gmra.mrb[0].mxu0 %v2715
  %v3024 = vpop.f32.mrb[0].mxu0
  %v3025 = vadd.f32 0.0, %v3024
  %v3026 = vpop.f32.mrb[0].mxu0
  %v3027 = vpop.f32.mrb[0].mxu0
  %v3028 = vadd.f32 0.0, %v3027
  %v3029 = vpop.f32.mrb[0].mxu0
  %3030 = vmatprep.mubr.bf16.mxu0 0
  %3031 = vmatmul.mubr.bf16.gmra.mrb[0].mxu0 %v2718
  %v3032 = vpop.f32.mrb[0].mxu0
  %v3033 = vadd.f32 0.0, %v3032
  %v3034 = vpop.f32.mrb[0].mxu0
  %v3035 = vpop.f32.mrb[0].mxu0
  %v3036 = vadd.f32 0.0, %v3035
  %v3037 = vpop.f32.mrb[0].mxu0
  %3038 = vmatprep.mubr.bf16.mxu0 0
  %3039 = vmatmul.mubr.bf16.gmra.mrb[0].mxu0 %v2721
  %v3040 = vpop.f32.mrb[0].mxu0
  %v3041 = vadd.f32 0.0, %v3040
  %v3042 = vpop.f32.mrb[0].mxu0
  %v3043 = vpop.f32.mrb[0].mxu0
  %v3044 = vadd.f32 0.0, %v3043
  %v3045 = vpop.f32.mrb[0].mxu0
  %3046 = vmatprep.mubr.bf16.mxu0 0
  %3047 = vmatmul.mubr.bf16.gmra.mrb[0].mxu0 %v2724
  %v3048 = vpop.f32.mrb[0].mxu0
  %v3049 = vadd.f32 0.0, %v3048
  %v3050 = vpop.f32.mrb[0].mxu0
  %v3051 = vpop.f32.mrb[0].mxu0
  %v3052 = vadd.f32 0.0, %v3051
  %v3053 = vpop.f32.mrb[0].mxu0
  %3054 = vdwg.mxu0
  %v3055 = vadd.f32 %v2452, %v2761
  %v3056 = vadd.f32 %v2453, %v2764
  %v3057 = vadd.f32 %v2454, %v2769
  %v3058 = vadd.f32 %v2455, %v2772
  %v3059 = vadd.f32 %v2456, %v2777
  %v3060 = vadd.f32 %v2457, %v2780
  %v3061 = vadd.f32 %v2458, %v2785
  %v3062 = vadd.f32 %v2459, %v2788
  %v3063 = vadd.f32 %v2460, %v2793
  %v3064 = vadd.f32 %v2461, %v2796
  %v3065 = vadd.f32 %v2462, %v2801
  %v3066 = vadd.f32 %v2463, %v2804
  %v3067 = vadd.f32 %v2464, %v2809
  %v3068 = vadd.f32 %v2465, %v2812
  %v3069 = vadd.f32 %v2466, %v2817
  %v3070 = vadd.f32 %v2467, %v2820
  %v3071 = vadd.f32 %v2468, %v2825
  %v3072 = vadd.f32 %v2469, %v2828
  %v3073 = vadd.f32 %v2470, %v2833
  %v3074 = vadd.f32 %v2471, %v2836
  %v3075 = vadd.f32 %v2472, %v2841
  %v3076 = vadd.f32 %v2473, %v2844
  %v3077 = vadd.f32 %v2474, %v2849
  %v3078 = vadd.f32 %v2475, %v2852
  %v3079 = vadd.f32 %v2476, %v2857
  %v3080 = vadd.f32 %v2477, %v2860
  %v3081 = vadd.f32 %v2478, %v2865
  %v3082 = vadd.f32 %v2479, %v2868
  %v3083 = vadd.f32 %v2480, %v2873
  %v3084 = vadd.f32 %v2481, %v2876
  %v3085 = vadd.f32 %v2482, %v2881
  %v3086 = vadd.f32 %v2483, %v2884
  %v3087 = vadd.f32 %v2484, %v2889
  %v3088 = vadd.f32 %v2485, %v2892
  %v3089 = vadd.f32 %v2486, %v2897
  %v3090 = vadd.f32 %v2487, %v2900
  %v3091 = vadd.f32 %v2488, %v2905
  %v3092 = vadd.f32 %v2489, %v2908
  %v3093 = vadd.f32 %v2490, %v2913
  %v3094 = vadd.f32 %v2491, %v2916
  %v3095 = vadd.f32 %v2492, %v2921
  %v3096 = vadd.f32 %v2493, %v2924
  %v3097 = vadd.f32 %v2494, %v2929
  %v3098 = vadd.f32 %v2495, %v2932
  %v3099 = vadd.f32 %v2496, %v2937
  %v3100 = vadd.f32 %v2497, %v2940
  %v3101 = vadd.f32 %v2498, %v2945
  %v3102 = vadd.f32 %v2499, %v2948
  %v3103 = vadd.f32 %v2500, %v2953
  %v3104 = vadd.f32 %v2501, %v2956
  %v3105 = vadd.f32 %v2502, %v2961
  %v3106 = vadd.f32 %v2503, %v2964
  %v3107 = vadd.f32 %v2504, %v2969
  %v3108 = vadd.f32 %v2505, %v2972
  %v3109 = vadd.f32 %v2506, %v2977
  %v3110 = vadd.f32 %v2507, %v2980
  %v3111 = vadd.f32 %v2508, %v2985
  %v3112 = vadd.f32 %v2509, %v2988
  %v3113 = vadd.f32 %v2510, %v2993
  %v3114 = vadd.f32 %v2511, %v2996
  %v3115 = vadd.f32 %v2512, %v3001
  %v3116 = vadd.f32 %v2513, %v3004
  %v3117 = vadd.f32 %v2514, %v3009
  %v3118 = vadd.f32 %v2515, %v3012
  %v3119 = vadd.f32 %v2516, %v3017
  %v3120 = vadd.f32 %v2517, %v3020
  %v3121 = vadd.f32 %v2518, %v3025
  %v3122 = vadd.f32 %v2519, %v3028
  %v3123 = vadd.f32 %v2520, %v3033
  %v3124 = vadd.f32 %v2521, %v3036
  %v3125 = vadd.f32 %v2522, %v3041
  %v3126 = vadd.f32 %v2523, %v3044
  %v3127 = vadd.f32 %v2524, %v3049
  %v3128 = vadd.f32 %v2525, %v3052
  %v3129 = vld [vmem:[%s2] sm:$0x1]
  %v3131 = vlaneseq
  %v3132 = vshrl.u32 %v3131, 7
  %v3133 = vsub.s32 0, %v3132
  %v3134 = vrot.slane %v3129, %v3133
  %v3136 = vadd.f32 %v3055, %v3134
  %v3137 = vadd.f32 %v3056, %v3134
  %v3138 = vadd.f32 %v3057, %v3134
  %v3139 = vadd.f32 %v3058, %v3134
  %v3140 = vadd.f32 %v3059, %v3134
  %v3141 = vadd.f32 %v3060, %v3134
  %v3142 = vadd.f32 %v3061, %v3134
  %v3143 = vadd.f32 %v3062, %v3134
  %v3144 = vadd.f32 %v3063, %v3134
  %v3145 = vadd.f32 %v3064, %v3134
  %v3146 = vadd.f32 %v3065, %v3134
  %v3147 = vadd.f32 %v3066, %v3134
  %v3148 = vadd.f32 %v3067, %v3134
  %v3149 = vadd.f32 %v3068, %v3134
  %v3150 = vadd.f32 %v3069, %v3134
  %v3151 = vadd.f32 %v3070, %v3134
  %v3152 = vadd.f32 %v3071, %v3134
  %v3153 = vadd.f32 %v3072, %v3134
  %v3154 = vadd.f32 %v3073, %v3134
  %v3155 = vadd.f32 %v3074, %v3134
  %v3156 = vadd.f32 %v3075, %v3134
  %v3157 = vadd.f32 %v3076, %v3134
  %v3158 = vadd.f32 %v3077, %v3134
  %v3159 = vadd.f32 %v3078, %v3134
  %v3160 = vadd.f32 %v3079, %v3134
  %v3161 = vadd.f32 %v3080, %v3134
  %v3162 = vadd.f32 %v3081, %v3134
  %v3163 = vadd.f32 %v3082, %v3134
  %v3164 = vadd.f32 %v3083, %v3134
  %v3165 = vadd.f32 %v3084, %v3134
  %v3166 = vadd.f32 %v3085, %v3134
  %v3167 = vadd.f32 %v3086, %v3134
  %v3168 = vadd.f32 %v3087, %v3134
  %v3169 = vadd.f32 %v3088, %v3134
  %v3170 = vadd.f32 %v3089, %v3134
  %v3171 = vadd.f32 %v3090, %v3134
  %v3172 = vadd.f32 %v3091, %v3134
  %v3173 = vadd.f32 %v3092, %v3134
  %v3174 = vadd.f32 %v3093, %v3134
  %v3175 = vadd.f32 %v3094, %v3134
  %v3176 = vadd.f32 %v3095, %v3134
  %v3177 = vadd.f32 %v3096, %v3134
  %v3178 = vadd.f32 %v3097, %v3134
  %v3179 = vadd.f32 %v3098, %v3134
  %v3180 = vadd.f32 %v3099, %v3134
  %v3181 = vadd.f32 %v3100, %v3134
  %v3182 = vadd.f32 %v3101, %v3134
  %v3183 = vadd.f32 %v3102, %v3134
  %v3184 = vadd.f32 %v3103, %v3134
  %v3185 = vadd.f32 %v3104, %v3134
  %v3186 = vadd.f32 %v3105, %v3134
  %v3187 = vadd.f32 %v3106, %v3134
  %v3188 = vadd.f32 %v3107, %v3134
  %v3189 = vadd.f32 %v3108, %v3134
  %v3190 = vadd.f32 %v3109, %v3134
  %v3191 = vadd.f32 %v3110, %v3134
  %v3192 = vadd.f32 %v3111, %v3134
  %v3193 = vadd.f32 %v3112, %v3134
  %v3194 = vadd.f32 %v3113, %v3134
  %v3195 = vadd.f32 %v3114, %v3134
  %v3196 = vadd.f32 %v3115, %v3134
  %v3197 = vadd.f32 %v3116, %v3134
  %v3198 = vadd.f32 %v3117, %v3134
  %v3199 = vadd.f32 %v3118, %v3134
  %v3200 = vadd.f32 %v3119, %v3134
  %v3201 = vadd.f32 %v3120, %v3134
  %v3202 = vadd.f32 %v3121, %v3134
  %v3203 = vadd.f32 %v3122, %v3134
  %v3204 = vadd.f32 %v3123, %v3134
  %v3205 = vadd.f32 %v3124, %v3134
  %v3206 = vadd.f32 %v3125, %v3134
  %v3207 = vadd.f32 %v3126, %v3134
  %v3208 = vadd.f32 %v3127, %v3134
  %v3209 = vadd.f32 %v3128, %v3134
  %vm3210 = vcmp.ge.f32.partialorder %v3136, 0.0
  %vm3211 = vcmp.ge.f32.partialorder %v3137, 0.0
  %vm3212 = vcmp.ge.f32.partialorder %v3138, 0.0
  %vm3213 = vcmp.ge.f32.partialorder %v3139, 0.0
  %vm3214 = vcmp.ge.f32.partialorder %v3140, 0.0
  %vm3215 = vcmp.ge.f32.partialorder %v3141, 0.0
  %vm3216 = vcmp.ge.f32.partialorder %v3142, 0.0
  %vm3217 = vcmp.ge.f32.partialorder %v3143, 0.0
  %vm3218 = vcmp.ge.f32.partialorder %v3144, 0.0
  %vm3219 = vcmp.ge.f32.partialorder %v3145, 0.0
  %vm3220 = vcmp.ge.f32.partialorder %v3146, 0.0
  %vm3221 = vcmp.ge.f32.partialorder %v3147, 0.0
  %vm3222 = vcmp.ge.f32.partialorder %v3148, 0.0
  %vm3223 = vcmp.ge.f32.partialorder %v3149, 0.0
  %vm3224 = vcmp.ge.f32.partialorder %v3150, 0.0
  %vm3225 = vcmp.ge.f32.partialorder %v3151, 0.0
  %vm3226 = vcmp.ge.f32.partialorder %v3152, 0.0
  %vm3227 = vcmp.ge.f32.partialorder %v3153, 0.0
  %vm3228 = vcmp.ge.f32.partialorder %v3154, 0.0
  %vm3229 = vcmp.ge.f32.partialorder %v3155, 0.0
  %vm3230 = vcmp.ge.f32.partialorder %v3156, 0.0
  %vm3231 = vcmp.ge.f32.partialorder %v3157, 0.0
  %vm3232 = vcmp.ge.f32.partialorder %v3158, 0.0
  %vm3233 = vcmp.ge.f32.partialorder %v3159, 0.0
  %vm3234 = vcmp.ge.f32.partialorder %v3160, 0.0
  %vm3235 = vcmp.ge.f32.partialorder %v3161, 0.0
  %vm3236 = vcmp.ge.f32.partialorder %v3162, 0.0
  %vm3237 = vcmp.ge.f32.partialorder %v3163, 0.0
  %vm3238 = vcmp.ge.f32.partialorder %v3164, 0.0
  %vm3239 = vcmp.ge.f32.partialorder %v3165, 0.0
  %vm3240 = vcmp.ge.f32.partialorder %v3166, 0.0
  %vm3241 = vcmp.ge.f32.partialorder %v3167, 0.0
  %vm3242 = vcmp.ge.f32.partialorder %v3168, 0.0
  %vm3243 = vcmp.ge.f32.partialorder %v3169, 0.0
  %vm3244 = vcmp.ge.f32.partialorder %v3170, 0.0
  %vm3245 = vcmp.ge.f32.partialorder %v3171, 0.0
  %vm3246 = vcmp.ge.f32.partialorder %v3172, 0.0
  %vm3247 = vcmp.ge.f32.partialorder %v3173, 0.0
  %vm3248 = vcmp.ge.f32.partialorder %v3174, 0.0
  %vm3249 = vcmp.ge.f32.partialorder %v3175, 0.0
  %vm3250 = vcmp.ge.f32.partialorder %v3176, 0.0
  %vm3251 = vcmp.ge.f32.partialorder %v3177, 0.0
  %vm3252 = vcmp.ge.f32.partialorder %v3178, 0.0
  %vm3253 = vcmp.ge.f32.partialorder %v3179, 0.0
  %vm3254 = vcmp.ge.f32.partialorder %v3180, 0.0
  %vm3255 = vcmp.ge.f32.partialorder %v3181, 0.0
  %vm3256 = vcmp.ge.f32.partialorder %v3182, 0.0
  %vm3257 = vcmp.ge.f32.partialorder %v3183, 0.0
  %vm3258 = vcmp.ge.f32.partialorder %v3184, 0.0
  %vm3259 = vcmp.ge.f32.partialorder %v3185, 0.0
  %vm3260 = vcmp.ge.f32.partialorder %v3186, 0.0
  %vm3261 = vcmp.ge.f32.partialorder %v3187, 0.0
  %vm3262 = vcmp.ge.f32.partialorder %v3188, 0.0
  %vm3263 = vcmp.ge.f32.partialorder %v3189, 0.0
  %vm3264 = vcmp.ge.f32.partialorder %v3190, 0.0
  %vm3265 = vcmp.ge.f32.partialorder %v3191, 0.0
  %vm3266 = vcmp.ge.f32.partialorder %v3192, 0.0
  %vm3267 = vcmp.ge.f32.partialorder %v3193, 0.0
  %vm3268 = vcmp.ge.f32.partialorder %v3194, 0.0
  %vm3269 = vcmp.ge.f32.partialorder %v3195, 0.0
  %vm3270 = vcmp.ge.f32.partialorder %v3196, 0.0
  %vm3271 = vcmp.ge.f32.partialorder %v3197, 0.0
  %vm3272 = vcmp.ge.f32.partialorder %v3198, 0.0
  %vm3273 = vcmp.ge.f32.partialorder %v3199, 0.0
  %vm3274 = vcmp.ge.f32.partialorder %v3200, 0.0
  %vm3275 = vcmp.ge.f32.partialorder %v3201, 0.0
  %vm3276 = vcmp.ge.f32.partialorder %v3202, 0.0
  %vm3277 = vcmp.ge.f32.partialorder %v3203, 0.0
  %vm3278 = vcmp.ge.f32.partialorder %v3204, 0.0
  %vm3279 = vcmp.ge.f32.partialorder %v3205, 0.0
  %vm3280 = vcmp.ge.f32.partialorder %v3206, 0.0
  %vm3281 = vcmp.ge.f32.partialorder %v3207, 0.0
  %vm3282 = vcmp.ge.f32.partialorder %v3208, 0.0
  %vm3283 = vcmp.ge.f32.partialorder %v3209, 0.0
  %v3284 = vmul.f32 %v3136, 0.2
  %v3285 = vmul.f32 %v3137, 0.2
  %v3286 = vmul.f32 %v3138, 0.2
  %v3287 = vmul.f32 %v3139, 0.2
  %v3288 = vmul.f32 %v3140, 0.2
  %v3289 = vmul.f32 %v3141, 0.2
  %v3290 = vmul.f32 %v3142, 0.2
  %v3291 = vmul.f32 %v3143, 0.2
  %v3292 = vmul.f32 %v3144, 0.2
  %v3293 = vmul.f32 %v3145, 0.2
  %v3294 = vmul.f32 %v3146, 0.2
  %v3295 = vmul.f32 %v3147, 0.2
  %v3296 = vmul.f32 %v3148, 0.2
  %v3297 = vmul.f32 %v3149, 0.2
  %v3298 = vmul.f32 %v3150, 0.2
  %v3299 = vmul.f32 %v3151, 0.2
  %v3300 = vmul.f32 %v3152, 0.2
  %v3301 = vmul.f32 %v3153, 0.2
  %v3302 = vmul.f32 %v3154, 0.2
  %v3303 = vmul.f32 %v3155, 0.2
  %v3304 = vmul.f32 %v3156, 0.2
  %v3305 = vmul.f32 %v3157, 0.2
  %v3306 = vmul.f32 %v3158, 0.2
  %v3307 = vmul.f32 %v3159, 0.2
  %v3308 = vmul.f32 %v3160, 0.2
  %v3309 = vmul.f32 %v3161, 0.2
  %v3310 = vmul.f32 %v3162, 0.2
  %v3311 = vmul.f32 %v3163, 0.2
  %v3312 = vmul.f32 %v3164, 0.2
  %v3313 = vmul.f32 %v3165, 0.2
  %v3314 = vmul.f32 %v3166, 0.2
  %v3315 = vmul.f32 %v3167, 0.2
  %v3316 = vmul.f32 %v3168, 0.2
  %v3317 = vmul.f32 %v3169, 0.2
  %v3318 = vmul.f32 %v3170, 0.2
  %v3319 = vmul.f32 %v3171, 0.2
  %v3320 = vmul.f32 %v3172, 0.2
  %v3321 = vmul.f32 %v3173, 0.2
  %v3322 = vmul.f32 %v3174, 0.2
  %v3323 = vmul.f32 %v3175, 0.2
  %v3324 = vmul.f32 %v3176, 0.2
  %v3325 = vmul.f32 %v3177, 0.2
  %v3326 = vmul.f32 %v3178, 0.2
  %v3327 = vmul.f32 %v3179, 0.2
  %v3328 = vmul.f32 %v3180, 0.2
  %v3329 = vmul.f32 %v3181, 0.2
  %v3330 = vmul.f32 %v3182, 0.2
  %v3331 = vmul.f32 %v3183, 0.2
  %v3332 = vmul.f32 %v3184, 0.2
  %v3333 = vmul.f32 %v3185, 0.2
  %v3334 = vmul.f32 %v3186, 0.2
  %v3335 = vmul.f32 %v3187, 0.2
  %v3336 = vmul.f32 %v3188, 0.2
  %v3337 = vmul.f32 %v3189, 0.2
  %v3338 = vmul.f32 %v3190, 0.2
  %v3339 = vmul.f32 %v3191, 0.2
  %v3340 = vmul.f32 %v3192, 0.2
  %v3341 = vmul.f32 %v3193, 0.2
  %v3342 = vmul.f32 %v3194, 0.2
  %v3343 = vmul.f32 %v3195, 0.2
  %v3344 = vmul.f32 %v3196, 0.2
  %v3345 = vmul.f32 %v3197, 0.2
  %v3346 = vmul.f32 %v3198, 0.2
  %v3347 = vmul.f32 %v3199, 0.2
  %v3348 = vmul.f32 %v3200, 0.2
  %v3349 = vmul.f32 %v3201, 0.2
  %v3350 = vmul.f32 %v3202, 0.2
  %v3351 = vmul.f32 %v3203, 0.2
  %v3352 = vmul.f32 %v3204, 0.2
  %v3353 = vmul.f32 %v3205, 0.2
  %v3354 = vmul.f32 %v3206, 0.2
  %v3355 = vmul.f32 %v3207, 0.2
  %v3356 = vmul.f32 %v3208, 0.2
  %v3357 = vmul.f32 %v3209, 0.2
  %v3358 = vsel %vm3210, %v3136, %v3284
  %v3359 = vsel %vm3211, %v3137, %v3285
  %v3360 = vsel %vm3212, %v3138, %v3286
  %v3361 = vsel %vm3213, %v3139, %v3287
  %v3362 = vsel %vm3214, %v3140, %v3288
  %v3363 = vsel %vm3215, %v3141, %v3289
  %v3364 = vsel %vm3216, %v3142, %v3290
  %v3365 = vsel %vm3217, %v3143, %v3291
  %v3366 = vsel %vm3218, %v3144, %v3292
  %v3367 = vsel %vm3219, %v3145, %v3293
  %v3368 = vsel %vm3220, %v3146, %v3294
  %v3369 = vsel %vm3221, %v3147, %v3295
  %v3370 = vsel %vm3222, %v3148, %v3296
  %v3371 = vsel %vm3223, %v3149, %v3297
  %v3372 = vsel %vm3224, %v3150, %v3298
  %v3373 = vsel %vm3225, %v3151, %v3299
  %v3374 = vsel %vm3226, %v3152, %v3300
  %v3375 = vsel %vm3227, %v3153, %v3301
  %v3376 = vsel %vm3228, %v3154, %v3302
  %v3377 = vsel %vm3229, %v3155, %v3303
  %v3378 = vsel %vm3230, %v3156, %v3304
  %v3379 = vsel %vm3231, %v3157, %v3305
  %v3380 = vsel %vm3232, %v3158, %v3306
  %v3381 = vsel %vm3233, %v3159, %v3307
  %v3382 = vsel %vm3234, %v3160, %v3308
  %v3383 = vsel %vm3235, %v3161, %v3309
  %v3384 = vsel %vm3236, %v3162, %v3310
  %v3385 = vsel %vm3237, %v3163, %v3311
  %v3386 = vsel %vm3238, %v3164, %v3312
  %v3387 = vsel %vm3239, %v3165, %v3313
  %v3388 = vsel %vm3240, %v3166, %v3314
  %v3389 = vsel %vm3241, %v3167, %v3315
  %v3390 = vsel %vm3242, %v3168, %v3316
  %v3391 = vsel %vm3243, %v3169, %v3317
  %v3392 = vsel %vm3244, %v3170, %v3318
  %v3393 = vsel %vm3245, %v3171, %v3319
  %v3394 = vsel %vm3246, %v3172, %v3320
  %v3395 = vsel %vm3247, %v3173, %v3321
  %v3396 = vsel %vm3248, %v3174, %v3322
  %v3397 = vsel %vm3249, %v3175, %v3323
  %v3398 = vsel %vm3250, %v3176, %v3324
  %v3399 = vsel %vm3251, %v3177, %v3325
  %v3400 = vsel %vm3252, %v3178, %v3326
  %v3401 = vsel %vm3253, %v3179, %v3327
  %v3402 = vsel %vm3254, %v3180, %v3328
  %v3403 = vsel %vm3255, %v3181, %v3329
  %v3404 = vsel %vm3256, %v3182, %v3330
  %v3405 = vsel %vm3257, %v3183, %v3331
  %v3406 = vsel %vm3258, %v3184, %v3332
  %v3407 = vsel %vm3259, %v3185, %v3333
  %v3408 = vsel %vm3260, %v3186, %v3334
  %v3409 = vsel %vm3261, %v3187, %v3335
  %v3410 = vsel %vm3262, %v3188, %v3336
  %v3411 = vsel %vm3263, %v3189, %v3337
  %v3412 = vsel %vm3264, %v3190, %v3338
  %v3413 = vsel %vm3265, %v3191, %v3339
  %v3414 = vsel %vm3266, %v3192, %v3340
  %v3415 = vsel %vm3267, %v3193, %v3341
  %v3416 = vsel %vm3268, %v3194, %v3342
  %v3417 = vsel %vm3269, %v3195, %v3343
  %v3418 = vsel %vm3270, %v3196, %v3344
  %v3419 = vsel %vm3271, %v3197, %v3345
  %v3420 = vsel %vm3272, %v3198, %v3346
  %v3421 = vsel %vm3273, %v3199, %v3347
  %v3422 = vsel %vm3274, %v3200, %v3348
  %v3423 = vsel %vm3275, %v3201, %v3349
  %v3424 = vsel %vm3276, %v3202, %v3350
  %v3425 = vsel %vm3277, %v3203, %v3351
  %v3426 = vsel %vm3278, %v3204, %v3352
  %v3427 = vsel %vm3279, %v3205, %v3353
  %v3428 = vsel %vm3280, %v3206, %v3354
  %v3429 = vsel %vm3281, %v3207, %v3355
  %v3430 = vsel %vm3282, %v3208, %v3356
  %v3431 = vsel %vm3283, %v3209, %v3357
  %v3432 = vpack.c.bf16 %v3359, %v3358
  %v3433 = vpack.c.bf16 %v3361, %v3360
  %v3434 = vpack.c.bf16 %v3363, %v3362
  %v3435 = vpack.c.bf16 %v3365, %v3364
  %v3436 = vpack.c.bf16 %v3367, %v3366
  %v3437 = vpack.c.bf16 %v3369, %v3368
  %v3438 = vpack.c.bf16 %v3371, %v3370
  %v3439 = vpack.c.bf16 %v3373, %v3372
  %v3440 = vpack.c.bf16 %v3375, %v3374
  %v3441 = vpack.c.bf16 %v3377, %v3376
  %v3442 = vpack.c.bf16 %v3379, %v3378
  %v3443 = vpack.c.bf16 %v3381, %v3380
  %v3444 = vpack.c.bf16 %v3383, %v3382
  %v3445 = vpack.c.bf16 %v3385, %v3384
  %v3446 = vpack.c.bf16 %v3387, %v3386
  %v3447 = vpack.c.bf16 %v3389, %v3388
  %v3448 = vpack.c.bf16 %v3391, %v3390
  %v3449 = vpack.c.bf16 %v3393, %v3392
  %v3450 = vpack.c.bf16 %v3395, %v3394
  %v3451 = vpack.c.bf16 %v3397, %v3396
  %v3452 = vpack.c.bf16 %v3399, %v3398
  %v3453 = vpack.c.bf16 %v3401, %v3400
  %v3454 = vpack.c.bf16 %v3403, %v3402
  %v3455 = vpack.c.bf16 %v3405, %v3404
  %v3456 = vpack.c.bf16 %v3407, %v3406
  %v3457 = vpack.c.bf16 %v3409, %v3408
  %v3458 = vpack.c.bf16 %v3411, %v3410
  %v3459 = vpack.c.bf16 %v3413, %v3412
  %v3460 = vpack.c.bf16 %v3415, %v3414
  %v3461 = vpack.c.bf16 %v3417, %v3416
  %v3462 = vpack.c.bf16 %v3419, %v3418
  %v3463 = vpack.c.bf16 %v3421, %v3420
  %v3464 = vpack.c.bf16 %v3423, %v3422
  %v3465 = vpack.c.bf16 %v3425, %v3424
  %v3466 = vpack.c.bf16 %v3427, %v3426
  %v3467 = vpack.c.bf16 %v3429, %v3428
  %v3468 = vpack.c.bf16 %v3431, %v3430
  %v3506 = vunpack.c.l.b16 %v3432
  %v3507 = vunpack.c.h.b16 %v3432
  %v3508 = vunpack.c.l.b16 %v3433
  %v3509 = vunpack.c.h.b16 %v3433
  %v3510 = vunpack.c.l.b16 %v3434
  %v3511 = vunpack.c.h.b16 %v3434
  %v3512 = vunpack.c.l.b16 %v3435
  %v3513 = vunpack.c.h.b16 %v3435
  %v3514 = vunpack.c.l.b16 %v3436
  %v3515 = vunpack.c.h.b16 %v3436
  %v3516 = vunpack.c.l.b16 %v3437
  %v3517 = vunpack.c.h.b16 %v3437
  %v3518 = vunpack.c.l.b16 %v3438
  %v3519 = vunpack.c.h.b16 %v3438
  %v3520 = vunpack.c.l.b16 %v3439
  %v3521 = vunpack.c.h.b16 %v3439
  %v3522 = vunpack.c.l.b16 %v3440
  %v3523 = vunpack.c.h.b16 %v3440
  %v3524 = vunpack.c.l.b16 %v3441
  %v3525 = vunpack.c.h.b16 %v3441
  %v3526 = vunpack.c.l.b16 %v3442
  %v3527 = vunpack.c.h.b16 %v3442
  %v3528 = vunpack.c.l.b16 %v3443
  %v3529 = vunpack.c.h.b16 %v3443
  %v3530 = vunpack.c.l.b16 %v3444
  %v3531 = vunpack.c.h.b16 %v3444
  %v3532 = vunpack.c.l.b16 %v3445
  %v3533 = vunpack.c.h.b16 %v3445
  %v3534 = vunpack.c.l.b16 %v3446
  %v3535 = vunpack.c.h.b16 %v3446
  %v3536 = vunpack.c.l.b16 %v3447
  %v3537 = vunpack.c.h.b16 %v3447
  %v3538 = vunpack.c.l.b16 %v3448
  %v3539 = vunpack.c.h.b16 %v3448
  %v3540 = vunpack.c.l.b16 %v3449
  %v3541 = vunpack.c.h.b16 %v3449
  %v3542 = vunpack.c.l.b16 %v3450
  %v3543 = vunpack.c.h.b16 %v3450
  %v3544 = vunpack.c.l.b16 %v3451
  %v3545 = vunpack.c.h.b16 %v3451
  %v3546 = vunpack.c.l.b16 %v3452
  %v3547 = vunpack.c.h.b16 %v3452
  %v3548 = vunpack.c.l.b16 %v3453
  %v3549 = vunpack.c.h.b16 %v3453
  %v3550 = vunpack.c.l.b16 %v3454
  %v3551 = vunpack.c.h.b16 %v3454
  %v3552 = vunpack.c.l.b16 %v3455
  %v3553 = vunpack.c.h.b16 %v3455
  %v3554 = vunpack.c.l.b16 %v3456
  %v3555 = vunpack.c.h.b16 %v3456
  %v3556 = vunpack.c.l.b16 %v3457
  %v3557 = vunpack.c.h.b16 %v3457
  %v3558 = vunpack.c.l.b16 %v3458
  %v3559 = vunpack.c.h.b16 %v3458
  %v3560 = vunpack.c.l.b16 %v3459
  %v3561 = vunpack.c.h.b16 %v3459
  %v3562 = vunpack.c.l.b16 %v3460
  %v3563 = vunpack.c.h.b16 %v3460
  %v3564 = vunpack.c.l.b16 %v3461
  %v3565 = vunpack.c.h.b16 %v3461
  %v3566 = vunpack.c.l.b16 %v3462
  %v3567 = vunpack.c.h.b16 %v3462
  %v3568 = vunpack.c.l.b16 %v3463
  %v3569 = vunpack.c.h.b16 %v3463
  %v3570 = vunpack.c.l.b16 %v3464
  %v3571 = vunpack.c.h.b16 %v3464
  %v3572 = vunpack.c.l.b16 %v3465
  %v3573 = vunpack.c.h.b16 %v3465
  %v3574 = vunpack.c.l.b16 %v3466
  %v3575 = vunpack.c.h.b16 %v3466
  %v3576 = vunpack.c.l.b16 %v3467
  %v3577 = vunpack.c.h.b16 %v3467
  %v3578 = vunpack.c.l.b16 %v3468
  %v3579 = vunpack.c.h.b16 %v3468
  %v3580 = vpack.c.b16 %v3506, %v3506
  %v3581 = vpack.c.b16 %v3507, %v3507
  %v3582 = vpack.c.b16 %v3508, %v3508
  %v3583 = vpack.c.b16 %v3509, %v3509
  %v3584 = vpack.c.b16 %v3510, %v3510
  %v3585 = vpack.c.b16 %v3511, %v3511
  %v3586 = vpack.c.b16 %v3512, %v3512
  %v3587 = vpack.c.b16 %v3513, %v3513
  %v3588 = vpack.c.b16 %v3514, %v3514
  %v3589 = vpack.c.b16 %v3515, %v3515
  %v3590 = vpack.c.b16 %v3516, %v3516
  %v3591 = vpack.c.b16 %v3517, %v3517
  %v3592 = vpack.c.b16 %v3518, %v3518
  %v3593 = vpack.c.b16 %v3519, %v3519
  %v3594 = vpack.c.b16 %v3520, %v3520
  %v3595 = vpack.c.b16 %v3521, %v3521
  %v3596 = vpack.c.b16 %v3522, %v3522
  %v3597 = vpack.c.b16 %v3523, %v3523
  %v3598 = vpack.c.b16 %v3524, %v3524
  %v3599 = vpack.c.b16 %v3525, %v3525
  %v3600 = vpack.c.b16 %v3526, %v3526
  %v3601 = vpack.c.b16 %v3527, %v3527
  %v3602 = vpack.c.b16 %v3528, %v3528
  %v3603 = vpack.c.b16 %v3529, %v3529
  %v3604 = vpack.c.b16 %v3530, %v3530
  %v3605 = vpack.c.b16 %v3531, %v3531
  %v3606 = vpack.c.b16 %v3532, %v3532
  %v3607 = vpack.c.b16 %v3533, %v3533
  %v3608 = vpack.c.b16 %v3534, %v3534
  %v3609 = vpack.c.b16 %v3535, %v3535
  %v3610 = vpack.c.b16 %v3536, %v3536
  %v3611 = vpack.c.b16 %v3537, %v3537
  %v3612 = vpack.c.b16 %v3538, %v3538
  %v3613 = vpack.c.b16 %v3539, %v3539
  %v3614 = vpack.c.b16 %v3540, %v3540
  %v3615 = vpack.c.b16 %v3541, %v3541
  %v3616 = vpack.c.b16 %v3542, %v3542
  %v3617 = vpack.c.b16 %v3543, %v3543
  %v3618 = vpack.c.b16 %v3544, %v3544
  %v3619 = vpack.c.b16 %v3545, %v3545
  %v3620 = vpack.c.b16 %v3546, %v3546
  %v3621 = vpack.c.b16 %v3547, %v3547
  %v3622 = vpack.c.b16 %v3548, %v3548
  %v3623 = vpack.c.b16 %v3549, %v3549
  %v3624 = vpack.c.b16 %v3550, %v3550
  %v3625 = vpack.c.b16 %v3551, %v3551
  %v3626 = vpack.c.b16 %v3552, %v3552
  %v3627 = vpack.c.b16 %v3553, %v3553
  %v3628 = vpack.c.b16 %v3554, %v3554
  %v3629 = vpack.c.b16 %v3555, %v3555
  %v3630 = vpack.c.b16 %v3556, %v3556
  %v3631 = vpack.c.b16 %v3557, %v3557
  %v3632 = vpack.c.b16 %v3558, %v3558
  %v3633 = vpack.c.b16 %v3559, %v3559
  %v3634 = vpack.c.b16 %v3560, %v3560
  %v3635 = vpack.c.b16 %v3561, %v3561
  %v3636 = vpack.c.b16 %v3562, %v3562
  %v3637 = vpack.c.b16 %v3563, %v3563
  %v3638 = vpack.c.b16 %v3564, %v3564
  %v3639 = vpack.c.b16 %v3565, %v3565
  %v3640 = vpack.c.b16 %v3566, %v3566
  %v3641 = vpack.c.b16 %v3567, %v3567
  %v3642 = vpack.c.b16 %v3568, %v3568
  %v3643 = vpack.c.b16 %v3569, %v3569
  %v3644 = vpack.c.b16 %v3570, %v3570
  %v3645 = vpack.c.b16 %v3571, %v3571
  %v3646 = vpack.c.b16 %v3572, %v3572
  %v3647 = vpack.c.b16 %v3573, %v3573
  %v3648 = vpack.c.b16 %v3574, %v3574
  %v3649 = vpack.c.b16 %v3575, %v3575
  %v3650 = vpack.c.b16 %v3576, %v3576
  %v3651 = vpack.c.b16 %v3577, %v3577
  %v3652 = vpack.c.b16 %v3578, %v3578
  %v3653 = vpack.c.b16 %v3579, %v3579
  %3728 = vst [vmem:[%s3] sm:$0xf] %v3580
  %3729 = vst [vmem:[%s3 + $0x4] sm:$0xf] %v3581
  %3730 = vst [vmem:[%s3 + $0x8] sm:$0xf] %v3582
  %3731 = vst [vmem:[%s3 + $0xc] sm:$0xf] %v3583
  %3732 = vst [vmem:[%s3 + $0x10] sm:$0xf] %v3584
  %3733 = vst [vmem:[%s3 + $0x14] sm:$0xf] %v3585
  %3734 = vst [vmem:[%s3 + $0x18] sm:$0xf] %v3586
  %3735 = vst [vmem:[%s3 + $0x1c] sm:$0xf] %v3587
  %3736 = vst [vmem:[%s3 + $0x20] sm:$0xf] %v3588
  %3737 = vst [vmem:[%s3 + $0x24] sm:$0xf] %v3589
  %3738 = vst [vmem:[%s3 + $0x28] sm:$0xf] %v3590
  %3739 = vst [vmem:[%s3 + $0x2c] sm:$0xf] %v3591
  %3740 = vst [vmem:[%s3 + $0x30] sm:$0xf] %v3592
  %3741 = vst [vmem:[%s3 + $0x34] sm:$0xf] %v3593
  %3742 = vst [vmem:[%s3 + $0x38] sm:$0xf] %v3594
  %3743 = vst [vmem:[%s3 + $0x3c] sm:$0xf] %v3595
  %3744 = vst [vmem:[%s3 + $0x40] sm:$0xf] %v3596
  %3745 = vst [vmem:[%s3 + $0x44] sm:$0xf] %v3597
  %3746 = vst [vmem:[%s3 + $0x48] sm:$0xf] %v3598
  %3747 = vst [vmem:[%s3 + $0x4c] sm:$0xf] %v3599
  %3748 = vst [vmem:[%s3 + $0x50] sm:$0xf] %v3600
  %3749 = vst [vmem:[%s3 + $0x54] sm:$0xf] %v3601
  %3750 = vst [vmem:[%s3 + $0x58] sm:$0xf] %v3602
  %3751 = vst [vmem:[%s3 + $0x5c] sm:$0xf] %v3603
  %3752 = vst [vmem:[%s3 + $0x60] sm:$0xf] %v3604
  %3753 = vst [vmem:[%s3 + $0x64] sm:$0xf] %v3605
  %3754 = vst [vmem:[%s3 + $0x68] sm:$0xf] %v3606
  %3755 = vst [vmem:[%s3 + $0x6c] sm:$0xf] %v3607
  %3756 = vst [vmem:[%s3 + $0x70] sm:$0xf] %v3608
  %3757 = vst [vmem:[%s3 + $0x74] sm:$0xf] %v3609
  %3758 = vst [vmem:[%s3 + $0x78] sm:$0xf] %v3610
  %3759 = vst [vmem:[%s3 + $0x7c] sm:$0xf] %v3611
  %3760 = vst [vmem:[%s3 + $0x80] sm:$0xf] %v3612
  %3761 = vst [vmem:[%s3 + $0x84] sm:$0xf] %v3613
  %3762 = vst [vmem:[%s3 + $0x88] sm:$0xf] %v3614
  %3763 = vst [vmem:[%s3 + $0x8c] sm:$0xf] %v3615
  %3764 = vst [vmem:[%s3 + $0x90] sm:$0xf] %v3616
  %3765 = vst [vmem:[%s3 + $0x94] sm:$0xf] %v3617
  %3766 = vst [vmem:[%s3 + $0x98] sm:$0xf] %v3618
  %3767 = vst [vmem:[%s3 + $0x9c] sm:$0xf] %v3619
  %3768 = vst [vmem:[%s3 + $0xa0] sm:$0xf] %v3620
  %3769 = vst [vmem:[%s3 + $0xa4] sm:$0xf] %v3621
  %3770 = vst [vmem:[%s3 + $0xa8] sm:$0xf] %v3622
  %3771 = vst [vmem:[%s3 + $0xac] sm:$0xf] %v3623
  %3772 = vst [vmem:[%s3 + $0xb0] sm:$0xf] %v3624
  %3773 = vst [vmem:[%s3 + $0xb4] sm:$0xf] %v3625
  %3774 = vst [vmem:[%s3 + $0xb8] sm:$0xf] %v3626
  %3775 = vst [vmem:[%s3 + $0xbc] sm:$0xf] %v3627
  %3776 = vst [vmem:[%s3 + $0xc0] sm:$0xf] %v3628
  %3777 = vst [vmem:[%s3 + $0xc4] sm:$0xf] %v3629
  %3778 = vst [vmem:[%s3 + $0xc8] sm:$0xf] %v3630
  %3779 = vst [vmem:[%s3 + $0xcc] sm:$0xf] %v3631
  %3780 = vst [vmem:[%s3 + $0xd0] sm:$0xf] %v3632
  %3781 = vst [vmem:[%s3 + $0xd4] sm:$0xf] %v3633
  %3782 = vst [vmem:[%s3 + $0xd8] sm:$0xf] %v3634
  %3783 = vst [vmem:[%s3 + $0xdc] sm:$0xf] %v3635
  %3784 = vst [vmem:[%s3 + $0xe0] sm:$0xf] %v3636
  %3785 = vst [vmem:[%s3 + $0xe4] sm:$0xf] %v3637
  %3786 = vst [vmem:[%s3 + $0xe8] sm:$0xf] %v3638
  %3787 = vst [vmem:[%s3 + $0xec] sm:$0xf] %v3639
  %3788 = vst [vmem:[%s3 + $0xf0] sm:$0xf] %v3640
  %3789 = vst [vmem:[%s3 + $0xf4] sm:$0xf] %v3641
  %3790 = vst [vmem:[%s3 + $0xf8] sm:$0xf] %v3642
  %3791 = vst [vmem:[%s3 + $0xfc] sm:$0xf] %v3643
  %3792 = vst [vmem:[%s3 + $0x100] sm:$0xf] %v3644
  %3793 = vst [vmem:[%s3 + $0x104] sm:$0xf] %v3645
  %3794 = vst [vmem:[%s3 + $0x108] sm:$0xf] %v3646
  %3795 = vst [vmem:[%s3 + $0x10c] sm:$0xf] %v3647
  %3796 = vst [vmem:[%s3 + $0x110] sm:$0xf] %v3648
  %3797 = vst [vmem:[%s3 + $0x114] sm:$0xf] %v3649
  %3798 = vst [vmem:[%s3 + $0x118] sm:$0xf] %v3650
  %3799 = vst [vmem:[%s3 + $0x11c] sm:$0xf] %v3651
  %3800 = vst [vmem:[%s3 + $0x120] sm:$0xf] %v3652
  %3801 = vst [vmem:[%s3 + $0x124] sm:$0xf] %v3653
  // Predicated region
  $region14: #{forward.5} parent=0 // pred_check
    _
  $region15: #{forward.5} parent=0 // pred_check_branch
    %3803 = sbr.rel (0) target = $region17
  $region16: #{forward.5} parent=0 // pred_region
    _
  $region17: #{forward.5} parent=0 // pred_fallthru
    _
  // Predicated region
  $region18: #{forward.5} parent=0 // pred_check
    _
  $region19: #{forward.5} parent=0 // pred_check_branch
    %3805 = sbr.rel (0) target = $region21
  $region20: #{forward.5} parent=0 // pred_region
    _
  $region21: #{forward.5} parent=0 // pred_fallthru
    _

// kernel: forward.6
$region0: #{forward.6}
  #allocation0 [shape = 'u32[]', space=smem, size = 0x4, offset = 0x4, fixed_abs, tag = 'smem constant byte address 0x4 - core index']
  #allocation1 [shape = 'u32[144,128]{1,0:T(1,128)}', space=vmem, size = 0x12000, scoped, tag = 'internal scratch']
  %s0 = inlined_call_operand.vmem [shape: bf16[192,32], index: 0, kind: input, shape index: {}]
  %s1 = inlined_call_operand.vmem [shape: bf16[4,32,128], index: 1, kind: input, shape index: {}]
  %s2 = inlined_call_operand.vmem [shape: f32[176,1], index: 2, kind: input, shape index: {}]
  %s3 = inlined_call_operand.vmem [shape: f32[1,128], index: 3, kind: input, shape index: {}]
  %s4 = inlined_call_operand.vmem [shape: f32[1,128], index: 4, kind: input, shape index: {}]
  %s5 = inlined_call_operand.vmem [shape: bf16[176,128], index: 5, kind: output, shape index: {}]
  %s6 = sld [smem:[#allocation0]]
  $region30: #{forward.6} parent=0
    _
  %s8 = ssub.s32 1, %s6
  %s9 = scalar_select 0, %s8, %s6
  // Predicated region
  $region2: #{forward.6} parent=0 // pred_check
    _
  $region3: #{forward.6} parent=0 // pred_check_branch
    %11 = sbr.rel (0) target = $region5
  $region4: #{forward.6} parent=0 // pred_region
    _
  $region5: #{forward.6} parent=0 // pred_fallthru
    _
  // Predicated region
  $region6: #{forward.6} parent=0 // pred_check
    _
  $region7: #{forward.6} parent=0 // pred_check_branch
    %13 = sbr.rel (0) target = $region9
  $region8: #{forward.6} parent=0 // pred_region
    _
  $region9: #{forward.6} parent=0 // pred_fallthru
    _
  // Predicated region
  $region10: #{forward.6} parent=0 // pred_check
    _
  $region11: #{forward.6} parent=0 // pred_check_branch
    %15 = sbr.rel (0) target = $region13
  $region12: #{forward.6} parent=0 // pred_region
    _
  $region13: #{forward.6} parent=0 // pred_fallthru
    _
  // Predicated region
  $region14: #{forward.6} parent=0 // pred_check
    _
  $region15: #{forward.6} parent=0 // pred_check_branch
    %17 = sbr.rel (0) target = $region17
  $region16: #{forward.6} parent=0 // pred_region
    _
  $region17: #{forward.6} parent=0 // pred_fallthru
    _
  // Predicated region
  $region18: #{forward.6} parent=0 // pred_check
    _
  $region19: #{forward.6} parent=0 // pred_check_branch
    %19 = sbr.rel (0) target = $region21
  $region20: #{forward.6} parent=0 // pred_region
    _
  $region21: #{forward.6} parent=0 // pred_fallthru
    _
  %v21 = vld [vmem:[%s0] sm:$0xf]
  %v22 = vld [vmem:[%s0 + $0x4] sm:$0xf]
  %v23 = vld [vmem:[%s0 + $0x8] sm:$0xf]
  %v24 = vld [vmem:[%s0 + $0xc] sm:$0xf]
  %v25 = vld [vmem:[%s0 + $0x10] sm:$0xf]
  %v26 = vld [vmem:[%s0 + $0x14] sm:$0xf]
  %v27 = vld [vmem:[%s0 + $0x18] sm:$0xf]
  %v28 = vld [vmem:[%s0 + $0x1c] sm:$0xf]
  %v29 = vld [vmem:[%s0 + $0x20] sm:$0xf]
  %v30 = vld [vmem:[%s0 + $0x24] sm:$0xf]
  %v31 = vld [vmem:[%s0 + $0x28] sm:$0xf]
  %v32 = vld [vmem:[%s0 + $0x2c] sm:$0xf]
  %v33 = vld [vmem:[%s0 + $0x30] sm:$0xf]
  %v34 = vld [vmem:[%s0 + $0x34] sm:$0xf]
  %v35 = vld [vmem:[%s0 + $0x38] sm:$0xf]
  %v36 = vld [vmem:[%s0 + $0x3c] sm:$0xf]
  %v37 = vld [vmem:[%s0 + $0x40] sm:$0xf]
  %v38 = vld [vmem:[%s0 + $0x44] sm:$0xf]
  %v39 = vld [vmem:[%s0 + $0x48] sm:$0xf]
  %v40 = vld [vmem:[%s0 + $0x4c] sm:$0xf]
  %v41 = vld [vmem:[%s0 + $0x50] sm:$0xf]
  %v42 = vld [vmem:[%s0 + $0x54] sm:$0xf]
  %v43 = vld [vmem:[%s1] sm:$0xf]
  %v44 = vld [vmem:[%s1 + $0x4] sm:$0xf]
  %v45 = vld [vmem:[%s1 + $0x8] sm:$0xf]
  %v46 = vld [vmem:[%s1 + $0xc] sm:$0xf]
  %v47 = vld [vmem:[%s0 + $0x58] sm:$0x1]
  %s48 = scalar_lea.vmem %s1, 16
  %v49 = vld [vmem:[%s48] sm:$0xf]
  %v50 = vld [vmem:[%s48 + $0x4] sm:$0xf]
  %v51 = vld [vmem:[%s48 + $0x8] sm:$0xf]
  %v52 = vld [vmem:[%s48 + $0xc] sm:$0xf]
  %v76 = vunpack.c.l.b16 %v21
  %v77 = vunpack.c.l.b16 %v22
  %v78 = vunpack.c.l.b16 %v23
  %v79 = vunpack.c.l.b16 %v24
  %v80 = vunpack.c.l.b16 %v25
  %v81 = vunpack.c.l.b16 %v26
  %v82 = vunpack.c.l.b16 %v27
  %v83 = vunpack.c.l.b16 %v28
  %v84 = vunpack.c.l.b16 %v29
  %v85 = vunpack.c.l.b16 %v30
  %v86 = vunpack.c.l.b16 %v31
  %v87 = vunpack.c.l.b16 %v32
  %v88 = vunpack.c.l.b16 %v33
  %v89 = vunpack.c.l.b16 %v34
  %v90 = vunpack.c.l.b16 %v35
  %v91 = vunpack.c.l.b16 %v36
  %v92 = vunpack.c.l.b16 %v37
  %v93 = vunpack.c.l.b16 %v38
  %v94 = vunpack.c.l.b16 %v39
  %v95 = vunpack.c.l.b16 %v40
  %v96 = vunpack.c.l.b16 %v41
  %v97 = vunpack.c.l.b16 %v42
  %v98 = vunpack.c.l.b16 %v47
  %v99 = vpack.c.b16 %v77, %v76
  %v100 = vpack.c.b16 %v79, %v78
  %v101 = vpack.c.b16 %v81, %v80
  %v102 = vpack.c.b16 %v83, %v82
  %v103 = vpack.c.b16 %v85, %v84
  %v104 = vpack.c.b16 %v87, %v86
  %v105 = vpack.c.b16 %v89, %v88
  %v106 = vpack.c.b16 %v91, %v90
  %v107 = vpack.c.b16 %v93, %v92
  %v108 = vpack.c.b16 %v95, %v94
  %v109 = vpack.c.b16 %v97, %v96
  %v110 = vpack.c.b16 %v98, %v98
  %vm111 = vsmask.f32 7424
  %v113 = vshrl.u32 %v99, 16
  %v115 = vshll.u32 %v99, 16
  %v117 = vrot.slane %v115, 1
  %v118 = vor.u32 %v113, %v117
  %v120 = vshll.u32 %v100, 16
  %v122 = vrot.slane %v120, 1
  %v123 = vsel %vm111, %v118, %v122
  %v124 = vshrl.u32 %v100, 16
  %v126 = vor.u32 %v124, %v122
  %v128 = vshll.u32 %v101, 16
  %v130 = vrot.slane %v128, 1
  %v131 = vsel %vm111, %v126, %v130
  %v132 = vshrl.u32 %v101, 16
  %v134 = vor.u32 %v132, %v130
  %v136 = vshll.u32 %v102, 16
  %v138 = vrot.slane %v136, 1
  %v139 = vsel %vm111, %v134, %v138
  %v140 = vshrl.u32 %v102, 16
  %v142 = vor.u32 %v140, %v138
  %v144 = vshll.u32 %v103, 16
  %v146 = vrot.slane %v144, 1
  %v147 = vsel %vm111, %v142, %v146
  %v148 = vshrl.u32 %v103, 16
  %v150 = vor.u32 %v148, %v146
  %v152 = vshll.u32 %v104, 16
  %v154 = vrot.slane %v152, 1
  %v155 = vsel %vm111, %v150, %v154
  %v156 = vshrl.u32 %v104, 16
  %v158 = vor.u32 %v156, %v154
  %v160 = vshll.u32 %v105, 16
  %v162 = vrot.slane %v160, 1
  %v163 = vsel %vm111, %v158, %v162
  %v164 = vshrl.u32 %v105, 16
  %v166 = vor.u32 %v164, %v162
  %v168 = vshll.u32 %v106, 16
  %v170 = vrot.slane %v168, 1
  %v171 = vsel %vm111, %v166, %v170
  %v172 = vshrl.u32 %v106, 16
  %v174 = vor.u32 %v172, %v170
  %v176 = vshll.u32 %v107, 16
  %v178 = vrot.slane %v176, 1
  %v179 = vsel %vm111, %v174, %v178
  %v180 = vshrl.u32 %v107, 16
  %v182 = vor.u32 %v180, %v178
  %v184 = vshll.u32 %v108, 16
  %v186 = vrot.slane %v184, 1
  %v187 = vsel %vm111, %v182, %v186
  %v188 = vshrl.u32 %v108, 16
  %v190 = vor.u32 %v188, %v186
  %v192 = vshll.u32 %v109, 16
  %v194 = vrot.slane %v192, 1
  %v195 = vsel %vm111, %v190, %v194
  %v196 = vshrl.u32 %v109, 16
  %v198 = vor.u32 %v196, %v194
  %v200 = vshll.u32 %v110, 16
  %v202 = vrot.slane %v200, 1
  %v203 = vsel %vm111, %v198, %v202
  %v208 = vunpack.c.l.b16 %v49
  %v209 = vunpack.c.l.b16 %v50
  %v210 = vunpack.c.l.b16 %v51
  %v211 = vunpack.c.l.b16 %v52
  %v212 = vpack.c.b16 %v209, %v208
  %v213 = vpack.c.b16 %v211, %v210
  %vm216 = vcmask 261120
  %v218 = vsel %vm216, %v123, 0
  %v221 = vsel %vm216, %v131, 0
  %v224 = vsel %vm216, %v139, 0
  %v227 = vsel %vm216, %v147, 0
  %v230 = vsel %vm216, %v155, 0
  %v233 = vsel %vm216, %v163, 0
  %v236 = vsel %vm216, %v171, 0
  %v239 = vsel %vm216, %v179, 0
  %v242 = vsel %vm216, %v187, 0
  %v245 = vsel %vm216, %v195, 0
  %v248 = vsel %vm216, %v203, 0
  %250 = vmatprep.subr.bf16.mxu0 0
  %251 = vmatpush1.bf16.msra.mxu0 %v212
  %252 = vmatprep.subr.bf16.mxu0 0
  %253 = vmatpush1.bf16.msra.mxu0 %v213
  %254 = vmatprep.subr.bf16.mxu0 0
  %255 = vmatpush1.bf16.msra.mxu0 0
  %256 = vmatprep.subr.bf16.mxu0 0
  %257 = vmatpush1.bf16.msra.mxu0 0
  %258 = vmatprep.subr.bf16.mxu0 0
  %259 = vmatpush1.bf16.msra.mxu0 0
  %260 = vmatprep.subr.bf16.mxu0 0
  %261 = vmatpush1.bf16.msra.mxu0 0
  %262 = vmatprep.subr.bf16.mxu0 0
  %263 = vmatpush1.bf16.msra.mxu0 0
  %264 = vmatprep.subr.bf16.mxu0 0
  %265 = vmatpush1.bf16.msra.mxu0 0
  %266 = vmatprep.subr.bf16.mxu0 0
  %267 = vmatpush1.bf16.msra.mxu0 0
  %268 = vmatprep.subr.bf16.mxu0 0
  %269 = vmatpush1.bf16.msra.mxu0 0
  %270 = vmatprep.subr.bf16.mxu0 0
  %271 = vmatpush1.bf16.msra.mxu0 0
  %272 = vmatprep.subr.bf16.mxu0 0
  %273 = vmatpush1.bf16.msra.mxu0 0
  %274 = vmatprep.subr.bf16.mxu0 0
  %275 = vmatpush1.bf16.msra.mxu0 0
  %276 = vmatprep.subr.bf16.mxu0 0
  %277 = vmatpush1.bf16.msra.mxu0 0
  %278 = vmatprep.subr.bf16.mxu0 0
  %279 = vmatpush1.bf16.msra.mxu0 0
  %280 = vmatprep.subr.bf16.mxu0 0
  %281 = vmatpush1.bf16.msra.mxu0 0
  %282 = vmatprep.mubr.bf16.mxu0 0
  %283 = vmatmul.mubr.bf16.gmra.mrb[0].mxu0 %v218
  %v284 = vpop.f32.mrb[0].mxu0
  %v285 = vadd.f32 0.0, %v284
  %v286 = vpop.f32.mrb[0].mxu0
  %v287 = vpop.f32.mrb[0].mxu0
  %v288 = vadd.f32 0.0, %v287
  %v289 = vpop.f32.mrb[0].mxu0
  %290 = vmatprep.mubr.bf16.mxu0 0
  %291 = vmatmul.mubr.bf16.gmra.mrb[0].mxu0 %v221
  %v292 = vpop.f32.mrb[0].mxu0
  %v293 = vadd.f32 0.0, %v292
  %v294 = vpop.f32.mrb[0].mxu0
  %v295 = vpop.f32.mrb[0].mxu0
  %v296 = vadd.f32 0.0, %v295
  %v297 = vpop.f32.mrb[0].mxu0
  %298 = vmatprep.mubr.bf16.mxu0 0
  %299 = vmatmul.mubr.bf16.gmra.mrb[0].mxu0 %v224
  %v300 = vpop.f32.mrb[0].mxu0
  %v301 = vadd.f32 0.0, %v300
  %v302 = vpop.f32.mrb[0].mxu0
  %v303 = vpop.f32.mrb[0].mxu0
  %v304 = vadd.f32 0.0, %v303
  %v305 = vpop.f32.mrb[0].mxu0
  %306 = vmatprep.mubr.bf16.mxu0 0
  %307 = vmatmul.mubr.bf16.gmra.mrb[0].mxu0 %v227
  %v308 = vpop.f32.mrb[0].mxu0
  %v309 = vadd.f32 0.0, %v308
  %v310 = vpop.f32.mrb[0].mxu0
  %v311 = vpop.f32.mrb[0].mxu0
  %v312 = vadd.f32 0.0, %v311
  %v313 = vpop.f32.mrb[0].mxu0
  %314 = vmatprep.mubr.bf16.mxu0 0
  %315 = vmatmul.mubr.bf16.gmra.mrb[0].mxu0 %v230
  %v316 = vpop.f32.mrb[0].mxu0
  %v317 = vadd.f32 0.0, %v316
  %v318 = vpop.f32.mrb[0].mxu0
  %v319 = vpop.f32.mrb[0].mxu0
  %v320 = vadd.f32 0.0, %v319
  %v321 = vpop.f32.mrb[0].mxu0
  %322 = vmatprep.mubr.bf16.mxu0 0
  %323 = vmatmul.mubr.bf16.gmra.mrb[0].mxu0 %v233
  %v324 = vpop.f32.mrb[0].mxu0
  %v325 = vadd.f32 0.0, %v324
  %v326 = vpop.f32.mrb[0].mxu0
  %v327 = vpop.f32.mrb[0].mxu0
  %v328 = vadd.f32 0.0, %v327
  %v329 = vpop.f32.mrb[0].mxu0
  %330 = vmatprep.mubr.bf16.mxu0 0
  %331 = vmatmul.mubr.bf16.gmra.mrb[0].mxu0 %v236
  %v332 = vpop.f32.mrb[0].mxu0
  %v333 = vadd.f32 0.0, %v332
  %v334 = vpop.f32.mrb[0].mxu0
  %v335 = vpop.f32.mrb[0].mxu0
  %v336 = vadd.f32 0.0, %v335
  %v337 = vpop.f32.mrb[0].mxu0
  %338 = vmatprep.mubr.bf16.mxu0 0
  %339 = vmatmul.mubr.bf16.gmra.mrb[0].mxu0 %v239
  %v340 = vpop.f32.mrb[0].mxu0
  %v341 = vadd.f32 0.0, %v340
  %v342 = vpop.f32.mrb[0].mxu0
  %v343 = vpop.f32.mrb[0].mxu0
  %v344 = vadd.f32 0.0, %v343
  %v345 = vpop.f32.mrb[0].mxu0
  %346 = vmatprep.mubr.bf16.mxu0 0
  %347 = vmatmul.mubr.bf16.gmra.mrb[0].mxu0 %v242
  %v348 = vpop.f32.mrb[0].mxu0
  %v349 = vadd.f32 0.0, %v348
  %v350 = vpop.f32.mrb[0].mxu0
  %v351 = vpop.f32.mrb[0].mxu0
  %v352 = vadd.f32 0.0, %v351
  %v353 = vpop.f32.mrb[0].mxu0
  %354 = vmatprep.mubr.bf16.mxu0 0
  %355 = vmatmul.mubr.bf16.gmra.mrb[0].mxu0 %v245
  %v356 = vpop.f32.mrb[0].mxu0
  %v357 = vadd.f32 0.0, %v356
  %v358 = vpop.f32.mrb[0].mxu0
  %v359 = vpop.f32.mrb[0].mxu0
  %v360 = vadd.f32 0.0, %v359
  %v361 = vpop.f32.mrb[0].mxu0
  %362 = vmatprep.mubr.bf16.mxu0 0
  %363 = vmatmul.mubr.bf16.gmra.mrb[0].mxu0 %v248
  %v364 = vpop.f32.mrb[0].mxu0
  %v365 = vadd.f32 0.0, %v364
  %v366 = vpop.f32.mrb[0].mxu0
  %v367 = vpop.f32.mrb[0].mxu0
  %v368 = vadd.f32 0.0, %v367
  %v369 = vpop.f32.mrb[0].mxu0
  %370 = vdwg.mxu0
  %v375 = vunpack.c.l.b16 %v43
  %v376 = vunpack.c.l.b16 %v44
  %v377 = vunpack.c.l.b16 %v45
  %v378 = vunpack.c.l.b16 %v46
  %v379 = vpack.c.b16 %v376, %v375
  %v380 = vpack.c.b16 %v378, %v377
  %v383 = vsel %vm216, %v99, 0
  %v385 = vsel %vm216, %v100, 0
  %v387 = vsel %vm216, %v101, 0
  %v389 = vsel %vm216, %v102, 0
  %v391 = vsel %vm216, %v103, 0
  %v393 = vsel %vm216, %v104, 0
  %v395 = vsel %vm216, %v105, 0
  %v397 = vsel %vm216, %v106, 0
  %v399 = vsel %vm216, %v107, 0
  %v401 = vsel %vm216, %v108, 0
  %v403 = vsel %vm216, %v109, 0
  %405 = vmatprep.subr.bf16.mxu0 0
  %406 = vmatpush1.bf16.msra.mxu0 %v379
  %407 = vmatprep.subr.bf16.mxu0 0
  %408 = vmatpush1.bf16.msra.mxu0 %v380
  %409 = vmatprep.subr.bf16.mxu0 0
  %410 = vmatpush1.bf16.msra.mxu0 0
  %411 = vmatprep.subr.bf16.mxu0 0
  %412 = vmatpush1.bf16.msra.mxu0 0
  %413 = vmatprep.subr.bf16.mxu0 0
  %414 = vmatpush1.bf16.msra.mxu0 0
  %415 = vmatprep.subr.bf16.mxu0 0
  %416 = vmatpush1.bf16.msra.mxu0 0
  %417 = vmatprep.subr.bf16.mxu0 0
  %418 = vmatpush1.bf16.msra.mxu0 0
  %419 = vmatprep.subr.bf16.mxu0 0
  %420 = vmatpush1.bf16.msra.mxu0 0
  %421 = vmatprep.subr.bf16.mxu0 0
  %422 = vmatpush1.bf16.msra.mxu0 0
  %423 = vmatprep.subr.bf16.mxu0 0
  %424 = vmatpush1.bf16.msra.mxu0 0
  %425 = vmatprep.subr.bf16.mxu0 0
  %426 = vmatpush1.bf16.msra.mxu0 0
  %427 = vmatprep.subr.bf16.mxu0 0
  %428 = vmatpush1.bf16.msra.mxu0 0
  %429 = vmatprep.subr.bf16.mxu0 0
  %430 = vmatpush1.bf16.msra.mxu0 0
  %431 = vmatprep.subr.bf16.mxu0 0
  %432 = vmatpush1.bf16.msra.mxu0 0
  %433 = vmatprep.subr.bf16.mxu0 0
  %434 = vmatpush1.bf16.msra.mxu0 0
  %435 = vmatprep.subr.bf16.mxu0 0
  %436 = vmatpush1.bf16.msra.mxu0 0
  %437 = vmatprep.mubr.bf16.mxu0 0
  %438 = vmatmul.mubr.bf16.gmra.mrb[0].mxu0 %v383
  %v439 = vpop.f32.mrb[0].mxu0
  %v440 = vadd.f32 %v285, %v439
  %v441 = vpop.f32.mrb[0].mxu0
  %v442 = vpop.f32.mrb[0].mxu0
  %v443 = vadd.f32 %v288, %v442
  %v444 = vpop.f32.mrb[0].mxu0
  %445 = vmatprep.mubr.bf16.mxu0 0
  %446 = vmatmul.mubr.bf16.gmra.mrb[0].mxu0 %v385
  %v447 = vpop.f32.mrb[0].mxu0
  %v448 = vadd.f32 %v293, %v447
  %v449 = vpop.f32.mrb[0].mxu0
  %v450 = vpop.f32.mrb[0].mxu0
  %v451 = vadd.f32 %v296, %v450
  %v452 = vpop.f32.mrb[0].mxu0
  %453 = vmatprep.mubr.bf16.mxu0 0
  %454 = vmatmul.mubr.bf16.gmra.mrb[0].mxu0 %v387
  %v455 = vpop.f32.mrb[0].mxu0
  %v456 = vadd.f32 %v301, %v455
  %v457 = vpop.f32.mrb[0].mxu0
  %v458 = vpop.f32.mrb[0].mxu0
  %v459 = vadd.f32 %v304, %v458
  %v460 = vpop.f32.mrb[0].mxu0
  %461 = vmatprep.mubr.bf16.mxu0 0
  %462 = vmatmul.mubr.bf16.gmra.mrb[0].mxu0 %v389
  %v463 = vpop.f32.mrb[0].mxu0
  %v464 = vadd.f32 %v309, %v463
  %v465 = vpop.f32.mrb[0].mxu0
  %v466 = vpop.f32.mrb[0].mxu0
  %v467 = vadd.f32 %v312, %v466
  %v468 = vpop.f32.mrb[0].mxu0
  %469 = vmatprep.mubr.bf16.mxu0 0
  %470 = vmatmul.mubr.bf16.gmra.mrb[0].mxu0 %v391
  %v471 = vpop.f32.mrb[0].mxu0
  %v472 = vadd.f32 %v317, %v471
  %v473 = vpop.f32.mrb[0].mxu0
  %v474 = vpop.f32.mrb[0].mxu0
  %v475 = vadd.f32 %v320, %v474
  %v476 = vpop.f32.mrb[0].mxu0
  %477 = vmatprep.mubr.bf16.mxu0 0
  %478 = vmatmul.mubr.bf16.gmra.mrb[0].mxu0 %v393
  %v479 = vpop.f32.mrb[0].mxu0
  %v480 = vadd.f32 %v325, %v479
  %v481 = vpop.f32.mrb[0].mxu0
  %v482 = vpop.f32.mrb[0].mxu0
  %v483 = vadd.f32 %v328, %v482
  %v484 = vpop.f32.mrb[0].mxu0
  %485 = vmatprep.mubr.bf16.mxu0 0
  %486 = vmatmul.mubr.bf16.gmra.mrb[0].mxu0 %v395
  %v487 = vpop.f32.mrb[0].mxu0
  %v488 = vadd.f32 %v333, %v487
  %v489 = vpop.f32.mrb[0].mxu0
  %v490 = vpop.f32.mrb[0].mxu0
  %v491 = vadd.f32 %v336, %v490
  %v492 = vpop.f32.mrb[0].mxu0
  %493 = vmatprep.mubr.bf16.mxu0 0
  %494 = vmatmul.mubr.bf16.gmra.mrb[0].mxu0 %v397
  %v495 = vpop.f32.mrb[0].mxu0
  %v496 = vadd.f32 %v341, %v495
  %v497 = vpop.f32.mrb[0].mxu0
  %v498 = vpop.f32.mrb[0].mxu0
  %v499 = vadd.f32 %v344, %v498
  %v500 = vpop.f32.mrb[0].mxu0
  %501 = vmatprep.mubr.bf16.mxu0 0
  %502 = vmatmul.mubr.bf16.gmra.mrb[0].mxu0 %v399
  %v503 = vpop.f32.mrb[0].mxu0
  %v504 = vadd.f32 %v349, %v503
  %v505 = vpop.f32.mrb[0].mxu0
  %v506 = vpop.f32.mrb[0].mxu0
  %v507 = vadd.f32 %v352, %v506
  %v508 = vpop.f32.mrb[0].mxu0
  %509 = vmatprep.mubr.bf16.mxu0 0
  %510 = vmatmul.mubr.bf16.gmra.mrb[0].mxu0 %v401
  %v511 = vpop.f32.mrb[0].mxu0
  %v512 = vadd.f32 %v357, %v511
  %v513 = vpop.f32.mrb[0].mxu0
  %v514 = vpop.f32.mrb[0].mxu0
  %v515 = vadd.f32 %v360, %v514
  %v516 = vpop.f32.mrb[0].mxu0
  %517 = vmatprep.mubr.bf16.mxu0 0
  %518 = vmatmul.mubr.bf16.gmra.mrb[0].mxu0 %v403
  %v519 = vpop.f32.mrb[0].mxu0
  %v520 = vadd.f32 %v365, %v519
  %v521 = vpop.f32.mrb[0].mxu0
  %v522 = vpop.f32.mrb[0].mxu0
  %v523 = vadd.f32 %v368, %v522
  %v524 = vpop.f32.mrb[0].mxu0
  %525 = vdwg.mxu0
  %v526 = vld [vmem:[%s0 + $0x4] sm:$0xf]
  %v527 = vld [vmem:[%s0 + $0x8] sm:$0xf]
  %v528 = vld [vmem:[%s0 + $0xc] sm:$0xf]
  %v529 = vld [vmem:[%s0 + $0x10] sm:$0xf]
  %v530 = vld [vmem:[%s0 + $0x14] sm:$0xf]
  %v531 = vld [vmem:[%s0 + $0x18] sm:$0xf]
  %v532 = vld [vmem:[%s0 + $0x1c] sm:$0xf]
  %v533 = vld [vmem:[%s0 + $0x20] sm:$0xf]
  %v534 = vld [vmem:[%s0 + $0x24] sm:$0xf]
  %v535 = vld [vmem:[%s0 + $0x28] sm:$0xf]
  %v536 = vld [vmem:[%s0 + $0x2c] sm:$0xf]
  %v537 = vld [vmem:[%s0 + $0x30] sm:$0xf]
  %v538 = vld [vmem:[%s0 + $0x34] sm:$0xf]
  %v539 = vld [vmem:[%s0 + $0x38] sm:$0xf]
  %v540 = vld [vmem:[%s0 + $0x3c] sm:$0xf]
  %v541 = vld [vmem:[%s0 + $0x40] sm:$0xf]
  %v542 = vld [vmem:[%s0 + $0x44] sm:$0xf]
  %v543 = vld [vmem:[%s0 + $0x48] sm:$0xf]
  %v544 = vld [vmem:[%s0 + $0x4c] sm:$0xf]
  %v545 = vld [vmem:[%s0 + $0x50] sm:$0xf]
  %v546 = vld [vmem:[%s0 + $0x54] sm:$0xf]
  %v547 = vld [vmem:[%s0 + $0x58] sm:$0xf]
  %v548 = vld [vmem:[%s0 + $0x5c] sm:$0x1]
  %s549 = scalar_lea.vmem %s1, 32
  %v550 = vld [vmem:[%s549] sm:$0xf]
  %v551 = vld [vmem:[%s549 + $0x4] sm:$0xf]
  %v552 = vld [vmem:[%s549 + $0x8] sm:$0xf]
  %v553 = vld [vmem:[%s549 + $0xc] sm:$0xf]
  %v577 = vunpack.c.l.b16 %v526
  %v578 = vunpack.c.l.b16 %v527
  %v579 = vunpack.c.l.b16 %v528
  %v580 = vunpack.c.l.b16 %v529
  %v581 = vunpack.c.l.b16 %v530
  %v582 = vunpack.c.l.b16 %v531
  %v583 = vunpack.c.l.b16 %v532
  %v584 = vunpack.c.l.b16 %v533
  %v585 = vunpack.c.l.b16 %v534
  %v586 = vunpack.c.l.b16 %v535
  %v587 = vunpack.c.l.b16 %v536
  %v588 = vunpack.c.l.b16 %v537
  %v589 = vunpack.c.l.b16 %v538
  %v590 = vunpack.c.l.b16 %v539
  %v591 = vunpack.c.l.b16 %v540
  %v592 = vunpack.c.l.b16 %v541
  %v593 = vunpack.c.l.b16 %v542
  %v594 = vunpack.c.l.b16 %v543
  %v595 = vunpack.c.l.b16 %v544
  %v596 = vunpack.c.l.b16 %v545
  %v597 = vunpack.c.l.b16 %v546
  %v598 = vunpack.c.l.b16 %v547
  %v599 = vunpack.c.l.b16 %v548
  %v600 = vpack.c.b16 %v578, %v577
  %v601 = vpack.c.b16 %v580, %v579
  %v602 = vpack.c.b16 %v582, %v581
  %v603 = vpack.c.b16 %v584, %v583
  %v604 = vpack.c.b16 %v586, %v585
  %v605 = vpack.c.b16 %v588, %v587
  %v606 = vpack.c.b16 %v590, %v589
  %v607 = vpack.c.b16 %v592, %v591
  %v608 = vpack.c.b16 %v594, %v593
  %v609 = vpack.c.b16 %v596, %v595
  %v610 = vpack.c.b16 %v598, %v597
  %v611 = vpack.c.b16 %v599, %v599
  %v613 = vshrl.u32 %v600, 16
  %v615 = vshll.u32 %v600, 16
  %v617 = vrot.slane %v615, 1
  %v618 = vor.u32 %v613, %v617
  %v620 = vshll.u32 %v601, 16
  %v622 = vrot.slane %v620, 1
  %v623 = vsel %vm111, %v618, %v622
  %v624 = vshrl.u32 %v601, 16
  %v626 = vor.u32 %v624, %v622
  %v628 = vshll.u32 %v602, 16
  %v630 = vrot.slane %v628, 1
  %v631 = vsel %vm111, %v626, %v630
  %v632 = vshrl.u32 %v602, 16
  %v634 = vor.u32 %v632, %v630
  %v636 = vshll.u32 %v603, 16
  %v638 = vrot.slane %v636, 1
  %v639 = vsel %vm111, %v634, %v638
  %v640 = vshrl.u32 %v603, 16
  %v642 = vor.u32 %v640, %v638
  %v644 = vshll.u32 %v604, 16
  %v646 = vrot.slane %v644, 1
  %v647 = vsel %vm111, %v642, %v646
  %v648 = vshrl.u32 %v604, 16
  %v650 = vor.u32 %v648, %v646
  %v652 = vshll.u32 %v605, 16
  %v654 = vrot.slane %v652, 1
  %v655 = vsel %vm111, %v650, %v654
  %v656 = vshrl.u32 %v605, 16
  %v658 = vor.u32 %v656, %v654
  %v660 = vshll.u32 %v606, 16
  %v662 = vrot.slane %v660, 1
  %v663 = vsel %vm111, %v658, %v662
  %v664 = vshrl.u32 %v606, 16
  %v666 = vor.u32 %v664, %v662
  %v668 = vshll.u32 %v607, 16
  %v670 = vrot.slane %v668, 1
  %v671 = vsel %vm111, %v666, %v670
  %v672 = vshrl.u32 %v607, 16
  %v674 = vor.u32 %v672, %v670
  %v676 = vshll.u32 %v608, 16
  %v678 = vrot.slane %v676, 1
  %v679 = vsel %vm111, %v674, %v678
  %v680 = vshrl.u32 %v608, 16
  %v682 = vor.u32 %v680, %v678
  %v684 = vshll.u32 %v609, 16
  %v686 = vrot.slane %v684, 1
  %v687 = vsel %vm111, %v682, %v686
  %v688 = vshrl.u32 %v609, 16
  %v690 = vor.u32 %v688, %v686
  %v692 = vshll.u32 %v610, 16
  %v694 = vrot.slane %v692, 1
  %v695 = vsel %vm111, %v690, %v694
  %v696 = vshrl.u32 %v610, 16
  %v698 = vor.u32 %v696, %v694
  %v700 = vshll.u32 %v611, 16
  %v702 = vrot.slane %v700, 1
  %v703 = vsel %vm111, %v698, %v702
  %v708 = vunpack.c.l.b16 %v550
  %v709 = vunpack.c.l.b16 %v551
  %v710 = vunpack.c.l.b16 %v552
  %v711 = vunpack.c.l.b16 %v553
  %v712 = vpack.c.b16 %v709, %v708
  %v713 = vpack.c.b16 %v711, %v710
  %v717 = vsel %vm216, %v623, 0
  %v720 = vsel %vm216, %v631, 0
  %v723 = vsel %vm216, %v639, 0
  %v726 = vsel %vm216, %v647, 0
  %v729 = vsel %vm216, %v655, 0
  %v732 = vsel %vm216, %v663, 0
  %v735 = vsel %vm216, %v671, 0
  %v738 = vsel %vm216, %v679, 0
  %v741 = vsel %vm216, %v687, 0
  %v744 = vsel %vm216, %v695, 0
  %v747 = vsel %vm216, %v703, 0
  %749 = vmatprep.subr.bf16.mxu0 0
  %750 = vmatpush1.bf16.msra.mxu0 %v712
  %751 = vmatprep.subr.bf16.mxu0 0
  %752 = vmatpush1.bf16.msra.mxu0 %v713
  %753 = vmatprep.subr.bf16.mxu0 0
  %754 = vmatpush1.bf16.msra.mxu0 0
  %755 = vmatprep.subr.bf16.mxu0 0
  %756 = vmatpush1.bf16.msra.mxu0 0
  %757 = vmatprep.subr.bf16.mxu0 0
  %758 = vmatpush1.bf16.msra.mxu0 0
  %759 = vmatprep.subr.bf16.mxu0 0
  %760 = vmatpush1.bf16.msra.mxu0 0
  %761 = vmatprep.subr.bf16.mxu0 0
  %762 = vmatpush1.bf16.msra.mxu0 0
  %763 = vmatprep.subr.bf16.mxu0 0
  %764 = vmatpush1.bf16.msra.mxu0 0
  %765 = vmatprep.subr.bf16.mxu0 0
  %766 = vmatpush1.bf16.msra.mxu0 0
  %767 = vmatprep.subr.bf16.mxu0 0
  %768 = vmatpush1.bf16.msra.mxu0 0
  %769 = vmatprep.subr.bf16.mxu0 0
  %770 = vmatpush1.bf16.msra.mxu0 0
  %771 = vmatprep.subr.bf16.mxu0 0
  %772 = vmatpush1.bf16.msra.mxu0 0
  %773 = vmatprep.subr.bf16.mxu0 0
  %774 = vmatpush1.bf16.msra.mxu0 0
  %775 = vmatprep.subr.bf16.mxu0 0
  %776 = vmatpush1.bf16.msra.mxu0 0
  %777 = vmatprep.subr.bf16.mxu0 0
  %778 = vmatpush1.bf16.msra.mxu0 0
  %779 = vmatprep.subr.bf16.mxu0 0
  %780 = vmatpush1.bf16.msra.mxu0 0
  %781 = vmatprep.mubr.bf16.mxu0 0
  %782 = vmatmul.mubr.bf16.gmra.mrb[0].mxu0 %v717
  %v783 = vpop.f32.mrb[0].mxu0
  %v784 = vadd.f32 0.0, %v783
  %v785 = vpop.f32.mrb[0].mxu0
  %v786 = vpop.f32.mrb[0].mxu0
  %v787 = vadd.f32 0.0, %v786
  %v788 = vpop.f32.mrb[0].mxu0
  %789 = vmatprep.mubr.bf16.mxu0 0
  %790 = vmatmul.mubr.bf16.gmra.mrb[0].mxu0 %v720
  %v791 = vpop.f32.mrb[0].mxu0
  %v792 = vadd.f32 0.0, %v791
  %v793 = vpop.f32.mrb[0].mxu0
  %v794 = vpop.f32.mrb[0].mxu0
  %v795 = vadd.f32 0.0, %v794
  %v796 = vpop.f32.mrb[0].mxu0
  %797 = vmatprep.mubr.bf16.mxu0 0
  %798 = vmatmul.mubr.bf16.gmra.mrb[0].mxu0 %v723
  %v799 = vpop.f32.mrb[0].mxu0
  %v800 = vadd.f32 0.0, %v799
  %v801 = vpop.f32.mrb[0].mxu0
  %v802 = vpop.f32.mrb[0].mxu0
  %v803 = vadd.f32 0.0, %v802
  %v804 = vpop.f32.mrb[0].mxu0
  %805 = vmatprep.mubr.bf16.mxu0 0
  %806 = vmatmul.mubr.bf16.gmra.mrb[0].mxu0 %v726
  %v807 = vpop.f32.mrb[0].mxu0
  %v808 = vadd.f32 0.0, %v807
  %v809 = vpop.f32.mrb[0].mxu0
  %v810 = vpop.f32.mrb[0].mxu0
  %v811 = vadd.f32 0.0, %v810
  %v812 = vpop.f32.mrb[0].mxu0
  %813 = vmatprep.mubr.bf16.mxu0 0
  %814 = vmatmul.mubr.bf16.gmra.mrb[0].mxu0 %v729
  %v815 = vpop.f32.mrb[0].mxu0
  %v816 = vadd.f32 0.0, %v815
  %v817 = vpop.f32.mrb[0].mxu0
  %v818 = vpop.f32.mrb[0].mxu0
  %v819 = vadd.f32 0.0, %v818
  %v820 = vpop.f32.mrb[0].mxu0
  %821 = vmatprep.mubr.bf16.mxu0 0
  %822 = vmatmul.mubr.bf16.gmra.mrb[0].mxu0 %v732
  %v823 = vpop.f32.mrb[0].mxu0
  %v824 = vadd.f32 0.0, %v823
  %v825 = vpop.f32.mrb[0].mxu0
  %v826 = vpop.f32.mrb[0].mxu0
  %v827 = vadd.f32 0.0, %v826
  %v828 = vpop.f32.mrb[0].mxu0
  %829 = vmatprep.mubr.bf16.mxu0 0
  %830 = vmatmul.mubr.bf16.gmra.mrb[0].mxu0 %v735
  %v831 = vpop.f32.mrb[0].mxu0
  %v832 = vadd.f32 0.0, %v831
  %v833 = vpop.f32.mrb[0].mxu0
  %v834 = vpop.f32.mrb[0].mxu0
  %v835 = vadd.f32 0.0, %v834
  %v836 = vpop.f32.mrb[0].mxu0
  %837 = vmatprep.mubr.bf16.mxu0 0
  %838 = vmatmul.mubr.bf16.gmra.mrb[0].mxu0 %v738
  %v839 = vpop.f32.mrb[0].mxu0
  %v840 = vadd.f32 0.0, %v839
  %v841 = vpop.f32.mrb[0].mxu0
  %v842 = vpop.f32.mrb[0].mxu0
  %v843 = vadd.f32 0.0, %v842
  %v844 = vpop.f32.mrb[0].mxu0
  %845 = vmatprep.mubr.bf16.mxu0 0
  %846 = vmatmul.mubr.bf16.gmra.mrb[0].mxu0 %v741
  %v847 = vpop.f32.mrb[0].mxu0
  %v848 = vadd.f32 0.0, %v847
  %v849 = vpop.f32.mrb[0].mxu0
  %v850 = vpop.f32.mrb[0].mxu0
  %v851 = vadd.f32 0.0, %v850
  %v852 = vpop.f32.mrb[0].mxu0
  %853 = vmatprep.mubr.bf16.mxu0 0
  %854 = vmatmul.mubr.bf16.gmra.mrb[0].mxu0 %v744
  %v855 = vpop.f32.mrb[0].mxu0
  %v856 = vadd.f32 0.0, %v855
  %v857 = vpop.f32.mrb[0].mxu0
  %v858 = vpop.f32.mrb[0].mxu0
  %v859 = vadd.f32 0.0, %v858
  %v860 = vpop.f32.mrb[0].mxu0
  %861 = vmatprep.mubr.bf16.mxu0 0
  %862 = vmatmul.mubr.bf16.gmra.mrb[0].mxu0 %v747
  %v863 = vpop.f32.mrb[0].mxu0
  %v864 = vadd.f32 0.0, %v863
  %v865 = vpop.f32.mrb[0].mxu0
  %v866 = vpop.f32.mrb[0].mxu0
  %v867 = vadd.f32 0.0, %v866
  %v868 = vpop.f32.mrb[0].mxu0
  %869 = vdwg.mxu0
  %v870 = vadd.f32 %v440, %v784
  %v871 = vadd.f32 %v443, %v787
  %v872 = vadd.f32 %v448, %v792
  %v873 = vadd.f32 %v451, %v795
  %v874 = vadd.f32 %v456, %v800
  %v875 = vadd.f32 %v459, %v803
  %v876 = vadd.f32 %v464, %v808
  %v877 = vadd.f32 %v467, %v811
  %v878 = vadd.f32 %v472, %v816
  %v879 = vadd.f32 %v475, %v819
  %v880 = vadd.f32 %v480, %v824
  %v881 = vadd.f32 %v483, %v827
  %v882 = vadd.f32 %v488, %v832
  %v883 = vadd.f32 %v491, %v835
  %v884 = vadd.f32 %v496, %v840
  %v885 = vadd.f32 %v499, %v843
  %v886 = vadd.f32 %v504, %v848
  %v887 = vadd.f32 %v507, %v851
  %v888 = vadd.f32 %v512, %v856
  %v889 = vadd.f32 %v515, %v859
  %v890 = vadd.f32 %v520, %v864
  %v891 = vadd.f32 %v523, %v867
  %v892 = vld [vmem:[%s0 + $0x4] sm:$0xe]
  %s893 = scalar_lea.vmem %s1, 48
  %v894 = vld [vmem:[%s893] sm:$0xf]
  %v895 = vld [vmem:[%s893 + $0x4] sm:$0xf]
  %v896 = vld [vmem:[%s893 + $0x8] sm:$0xf]
  %v897 = vld [vmem:[%s893 + $0xc] sm:$0xf]
  %v899 = vunpack.c.l.b16 %v892
  %v900 = vpack.c.b16 %v578, %v899
  %vm901 = vcmask 1046528
  %v902 = vrot.slane %v900, 1
  %v903 = vrot.slane %v601, 1
  %v904 = vsel %vm901, %v902, %v903
  %v905 = vrot.slane %v602, 1
  %v906 = vsel %vm901, %v903, %v905
  %v907 = vrot.slane %v603, 1
  %v908 = vsel %vm901, %v905, %v907
  %v909 = vrot.slane %v604, 1
  %v910 = vsel %vm901, %v907, %v909
  %v911 = vrot.slane %v605, 1
  %v912 = vsel %vm901, %v909, %v911
  %v913 = vrot.slane %v606, 1
  %v914 = vsel %vm901, %v911, %v913
  %v915 = vrot.slane %v607, 1
  %v916 = vsel %vm901, %v913, %v915
  %v917 = vrot.slane %v608, 1
  %v918 = vsel %vm901, %v915, %v917
  %v919 = vrot.slane %v609, 1
  %v920 = vsel %vm901, %v917, %v919
  %v921 = vrot.slane %v610, 1
  %v922 = vsel %vm901, %v919, %v921
  %v923 = vrot.slane %v611, 1
  %v924 = vsel %vm901, %v921, %v923
  %v929 = vunpack.c.l.b16 %v894
  %v930 = vunpack.c.l.b16 %v895
  %v931 = vunpack.c.l.b16 %v896
  %v932 = vunpack.c.l.b16 %v897
  %v933 = vpack.c.b16 %v930, %v929
  %v934 = vpack.c.b16 %v932, %v931
  %v938 = vsel %vm216, %v904, 0
  %v941 = vsel %vm216, %v906, 0
  %v944 = vsel %vm216, %v908, 0
  %v947 = vsel %vm216, %v910, 0
  %v950 = vsel %vm216, %v912, 0
  %v953 = vsel %vm216, %v914, 0
  %v956 = vsel %vm216, %v916, 0
  %v959 = vsel %vm216, %v918, 0
  %v962 = vsel %vm216, %v920, 0
  %v965 = vsel %vm216, %v922, 0
  %v968 = vsel %vm216, %v924, 0
  %970 = vmatprep.subr.bf16.mxu0 0
  %971 = vmatpush1.bf16.msra.mxu0 %v933
  %972 = vmatprep.subr.bf16.mxu0 0
  %973 = vmatpush1.bf16.msra.mxu0 %v934
  %974 = vmatprep.subr.bf16.mxu0 0
  %975 = vmatpush1.bf16.msra.mxu0 0
  %976 = vmatprep.subr.bf16.mxu0 0
  %977 = vmatpush1.bf16.msra.mxu0 0
  %978 = vmatprep.subr.bf16.mxu0 0
  %979 = vmatpush1.bf16.msra.mxu0 0
  %980 = vmatprep.subr.bf16.mxu0 0
  %981 = vmatpush1.bf16.msra.mxu0 0
  %982 = vmatprep.subr.bf16.mxu0 0
  %983 = vmatpush1.bf16.msra.mxu0 0
  %984 = vmatprep.subr.bf16.mxu0 0
  %985 = vmatpush1.bf16.msra.mxu0 0
  %986 = vmatprep.subr.bf16.mxu0 0
  %987 = vmatpush1.bf16.msra.mxu0 0
  %988 = vmatprep.subr.bf16.mxu0 0
  %989 = vmatpush1.bf16.msra.mxu0 0
  %990 = vmatprep.subr.bf16.mxu0 0
  %991 = vmatpush1.bf16.msra.mxu0 0
  %992 = vmatprep.subr.bf16.mxu0 0
  %993 = vmatpush1.bf16.msra.mxu0 0
  %994 = vmatprep.subr.bf16.mxu0 0
  %995 = vmatpush1.bf16.msra.mxu0 0
  %996 = vmatprep.subr.bf16.mxu0 0
  %997 = vmatpush1.bf16.msra.mxu0 0
  %998 = vmatprep.subr.bf16.mxu0 0
  %999 = vmatpush1.bf16.msra.mxu0 0
  %1000 = vmatprep.subr.bf16.mxu0 0
  %1001 = vmatpush1.bf16.msra.mxu0 0
  %1002 = vmatprep.mubr.bf16.mxu0 0
  %1003 = vmatmul.mubr.bf16.gmra.mrb[0].mxu0 %v938
  %v1004 = vpop.f32.mrb[0].mxu0
  %v1005 = vadd.f32 0.0, %v1004
  %v1006 = vpop.f32.mrb[0].mxu0
  %v1007 = vpop.f32.mrb[0].mxu0
  %v1008 = vadd.f32 0.0, %v1007
  %v1009 = vpop.f32.mrb[0].mxu0
  %1010 = vmatprep.mubr.bf16.mxu0 0
  %1011 = vmatmul.mubr.bf16.gmra.mrb[0].mxu0 %v941
  %v1012 = vpop.f32.mrb[0].mxu0
  %v1013 = vadd.f32 0.0, %v1012
  %v1014 = vpop.f32.mrb[0].mxu0
  %v1015 = vpop.f32.mrb[0].mxu0
  %v1016 = vadd.f32 0.0, %v1015
  %v1017 = vpop.f32.mrb[0].mxu0
  %1018 = vmatprep.mubr.bf16.mxu0 0
  %1019 = vmatmul.mubr.bf16.gmra.mrb[0].mxu0 %v944
  %v1020 = vpop.f32.mrb[0].mxu0
  %v1021 = vadd.f32 0.0, %v1020
  %v1022 = vpop.f32.mrb[0].mxu0
  %v1023 = vpop.f32.mrb[0].mxu0
  %v1024 = vadd.f32 0.0, %v1023
  %v1025 = vpop.f32.mrb[0].mxu0
  %1026 = vmatprep.mubr.bf16.mxu0 0
  %1027 = vmatmul.mubr.bf16.gmra.mrb[0].mxu0 %v947
  %v1028 = vpop.f32.mrb[0].mxu0
  %v1029 = vadd.f32 0.0, %v1028
  %v1030 = vpop.f32.mrb[0].mxu0
  %v1031 = vpop.f32.mrb[0].mxu0
  %v1032 = vadd.f32 0.0, %v1031
  %v1033 = vpop.f32.mrb[0].mxu0
  %1034 = vmatprep.mubr.bf16.mxu0 0
  %1035 = vmatmul.mubr.bf16.gmra.mrb[0].mxu0 %v950
  %v1036 = vpop.f32.mrb[0].mxu0
  %v1037 = vadd.f32 0.0, %v1036
  %v1038 = vpop.f32.mrb[0].mxu0
  %v1039 = vpop.f32.mrb[0].mxu0
  %v1040 = vadd.f32 0.0, %v1039
  %v1041 = vpop.f32.mrb[0].mxu0
  %1042 = vmatprep.mubr.bf16.mxu0 0
  %1043 = vmatmul.mubr.bf16.gmra.mrb[0].mxu0 %v953
  %v1044 = vpop.f32.mrb[0].mxu0
  %v1045 = vadd.f32 0.0, %v1044
  %v1046 = vpop.f32.mrb[0].mxu0
  %v1047 = vpop.f32.mrb[0].mxu0
  %v1048 = vadd.f32 0.0, %v1047
  %v1049 = vpop.f32.mrb[0].mxu0
  %1050 = vmatprep.mubr.bf16.mxu0 0
  %1051 = vmatmul.mubr.bf16.gmra.mrb[0].mxu0 %v956
  %v1052 = vpop.f32.mrb[0].mxu0
  %v1053 = vadd.f32 0.0, %v1052
  %v1054 = vpop.f32.mrb[0].mxu0
  %v1055 = vpop.f32.mrb[0].mxu0
  %v1056 = vadd.f32 0.0, %v1055
  %v1057 = vpop.f32.mrb[0].mxu0
  %1058 = vmatprep.mubr.bf16.mxu0 0
  %1059 = vmatmul.mubr.bf16.gmra.mrb[0].mxu0 %v959
  %v1060 = vpop.f32.mrb[0].mxu0
  %v1061 = vadd.f32 0.0, %v1060
  %v1062 = vpop.f32.mrb[0].mxu0
  %v1063 = vpop.f32.mrb[0].mxu0
  %v1064 = vadd.f32 0.0, %v1063
  %v1065 = vpop.f32.mrb[0].mxu0
  %1066 = vmatprep.mubr.bf16.mxu0 0
  %1067 = vmatmul.mubr.bf16.gmra.mrb[0].mxu0 %v962
  %v1068 = vpop.f32.mrb[0].mxu0
  %v1069 = vadd.f32 0.0, %v1068
  %v1070 = vpop.f32.mrb[0].mxu0
  %v1071 = vpop.f32.mrb[0].mxu0
  %v1072 = vadd.f32 0.0, %v1071
  %v1073 = vpop.f32.mrb[0].mxu0
  %1074 = vmatprep.mubr.bf16.mxu0 0
  %1075 = vmatmul.mubr.bf16.gmra.mrb[0].mxu0 %v965
  %v1076 = vpop.f32.mrb[0].mxu0
  %v1077 = vadd.f32 0.0, %v1076
  %v1078 = vpop.f32.mrb[0].mxu0
  %v1079 = vpop.f32.mrb[0].mxu0
  %v1080 = vadd.f32 0.0, %v1079
  %v1081 = vpop.f32.mrb[0].mxu0
  %1082 = vmatprep.mubr.bf16.mxu0 0
  %1083 = vmatmul.mubr.bf16.gmra.mrb[0].mxu0 %v968
  %v1084 = vpop.f32.mrb[0].mxu0
  %v1085 = vadd.f32 0.0, %v1084
  %v1086 = vpop.f32.mrb[0].mxu0
  %v1087 = vpop.f32.mrb[0].mxu0
  %v1088 = vadd.f32 0.0, %v1087
  %v1089 = vpop.f32.mrb[0].mxu0
  %1090 = vdwg.mxu0
  %v1091 = vadd.f32 %v870, %v1005
  %v1092 = vadd.f32 %v871, %v1008
  %v1093 = vadd.f32 %v872, %v1013
  %v1094 = vadd.f32 %v873, %v1016
  %v1095 = vadd.f32 %v874, %v1021
  %v1096 = vadd.f32 %v875, %v1024
  %v1097 = vadd.f32 %v876, %v1029
  %v1098 = vadd.f32 %v877, %v1032
  %v1099 = vadd.f32 %v878, %v1037
  %v1100 = vadd.f32 %v879, %v1040
  %v1101 = vadd.f32 %v880, %v1045
  %v1102 = vadd.f32 %v881, %v1048
  %v1103 = vadd.f32 %v882, %v1053
  %v1104 = vadd.f32 %v883, %v1056
  %v1105 = vadd.f32 %v884, %v1061
  %v1106 = vadd.f32 %v885, %v1064
  %v1107 = vadd.f32 %v886, %v1069
  %v1108 = vadd.f32 %v887, %v1072
  %v1109 = vadd.f32 %v888, %v1077
  %v1110 = vadd.f32 %v889, %v1080
  %v1111 = vadd.f32 %v890, %v1085
  %v1112 = vadd.f32 %v891, %v1088
  %v1113 = vld [vmem:[%s2] sm:$0xff]
  %v1114 = vld [vmem:[%s2 + $0x8] sm:$0xff]
  %v1115 = vld [vmem:[%s2 + $0x10] sm:$0xff]
  %v1116 = vld [vmem:[%s2 + $0x18] sm:$0xff]
  %v1117 = vld [vmem:[%s2 + $0x20] sm:$0xff]
  %v1118 = vld [vmem:[%s2 + $0x28] sm:$0xff]
  %v1119 = vld [vmem:[%s2 + $0x30] sm:$0xff]
  %v1120 = vld [vmem:[%s2 + $0x38] sm:$0xff]
  %v1121 = vld [vmem:[%s2 + $0x40] sm:$0xff]
  %v1122 = vld [vmem:[%s2 + $0x48] sm:$0xff]
  %v1123 = vld [vmem:[%s2 + $0x50] sm:$0xff]
  %v1124 = vld [vmem:[%s2 + $0x58] sm:$0xff]
  %v1125 = vld [vmem:[%s2 + $0x60] sm:$0xff]
  %v1126 = vld [vmem:[%s2 + $0x68] sm:$0xff]
  %v1127 = vld [vmem:[%s2 + $0x70] sm:$0xff]
  %v1128 = vld [vmem:[%s2 + $0x78] sm:$0xff]
  %v1129 = vld [vmem:[%s2 + $0x80] sm:$0xff]
  %v1130 = vld [vmem:[%s2 + $0x88] sm:$0xff]
  %v1131 = vld [vmem:[%s2 + $0x90] sm:$0xff]
  %v1132 = vld [vmem:[%s2 + $0x98] sm:$0xff]
  %v1133 = vld [vmem:[%s2 + $0xa0] sm:$0xff]
  %v1134 = vld [vmem:[%s2 + $0xa8] sm:$0xff]
  %1136 = vset.pattern.permute.xlu0 0
  %1137 = vperm.xlu0 %1136, %v1113
  %v1138 = vpop.permute.xlu0 %1137
  %1141 = vset.pattern.permute.xlu0 0
  %1142 = vperm.xlu0 %1141, %v1114
  %v1143 = vpop.permute.xlu0 %1142
  %1146 = vset.pattern.permute.xlu0 0
  %1147 = vperm.xlu0 %1146, %v1115
  %v1148 = vpop.permute.xlu0 %1147
  %1151 = vset.pattern.permute.xlu0 0
  %1152 = vperm.xlu0 %1151, %v1116
  %v1153 = vpop.permute.xlu0 %1152
  %1156 = vset.pattern.permute.xlu0 0
  %1157 = vperm.xlu0 %1156, %v1117
  %v1158 = vpop.permute.xlu0 %1157
  %1161 = vset.pattern.permute.xlu0 0
  %1162 = vperm.xlu0 %1161, %v1118
  %v1163 = vpop.permute.xlu0 %1162
  %1166 = vset.pattern.permute.xlu0 0
  %1167 = vperm.xlu0 %1166, %v1119
  %v1168 = vpop.permute.xlu0 %1167
  %1171 = vset.pattern.permute.xlu0 0
  %1172 = vperm.xlu0 %1171, %v1120
  %v1173 = vpop.permute.xlu0 %1172
  %1176 = vset.pattern.permute.xlu0 0
  %1177 = vperm.xlu0 %1176, %v1121
  %v1178 = vpop.permute.xlu0 %1177
  %1181 = vset.pattern.permute.xlu0 0
  %1182 = vperm.xlu0 %1181, %v1122
  %v1183 = vpop.permute.xlu0 %1182
  %1186 = vset.pattern.permute.xlu0 0
  %1187 = vperm.xlu0 %1186, %v1123
  %v1188 = vpop.permute.xlu0 %1187
  %1191 = vset.pattern.permute.xlu0 0
  %1192 = vperm.xlu0 %1191, %v1124
  %v1193 = vpop.permute.xlu0 %1192
  %1196 = vset.pattern.permute.xlu0 0
  %1197 = vperm.xlu0 %1196, %v1125
  %v1198 = vpop.permute.xlu0 %1197
  %1201 = vset.pattern.permute.xlu0 0
  %1202 = vperm.xlu0 %1201, %v1126
  %v1203 = vpop.permute.xlu0 %1202
  %1206 = vset.pattern.permute.xlu0 0
  %1207 = vperm.xlu0 %1206, %v1127
  %v1208 = vpop.permute.xlu0 %1207
  %1211 = vset.pattern.permute.xlu0 0
  %1212 = vperm.xlu0 %1211, %v1128
  %v1213 = vpop.permute.xlu0 %1212
  %1216 = vset.pattern.permute.xlu0 0
  %1217 = vperm.xlu0 %1216, %v1129
  %v1218 = vpop.permute.xlu0 %1217
  %1221 = vset.pattern.permute.xlu0 0
  %1222 = vperm.xlu0 %1221, %v1130
  %v1223 = vpop.permute.xlu0 %1222
  %1226 = vset.pattern.permute.xlu0 0
  %1227 = vperm.xlu0 %1226, %v1131
  %v1228 = vpop.permute.xlu0 %1227
  %1231 = vset.pattern.permute.xlu0 0
  %1232 = vperm.xlu0 %1231, %v1132
  %v1233 = vpop.permute.xlu0 %1232
  %1236 = vset.pattern.permute.xlu0 0
  %1237 = vperm.xlu0 %1236, %v1133
  %v1238 = vpop.permute.xlu0 %1237
  %1241 = vset.pattern.permute.xlu0 0
  %1242 = vperm.xlu0 %1241, %v1134
  %v1243 = vpop.permute.xlu0 %1242
  %v1245 = vmul.f32 %v1091, %v1138
  %v1246 = vmul.f32 %v1092, %v1143
  %v1247 = vmul.f32 %v1093, %v1148
  %v1248 = vmul.f32 %v1094, %v1153
  %v1249 = vmul.f32 %v1095, %v1158
  %v1250 = vmul.f32 %v1096, %v1163
  %v1251 = vmul.f32 %v1097, %v1168
  %v1252 = vmul.f32 %v1098, %v1173
  %v1253 = vmul.f32 %v1099, %v1178
  %v1254 = vmul.f32 %v1100, %v1183
  %v1255 = vmul.f32 %v1101, %v1188
  %v1256 = vmul.f32 %v1102, %v1193
  %v1257 = vmul.f32 %v1103, %v1198
  %v1258 = vmul.f32 %v1104, %v1203
  %v1259 = vmul.f32 %v1105, %v1208
  %v1260 = vmul.f32 %v1106, %v1213
  %v1261 = vmul.f32 %v1107, %v1218
  %v1262 = vmul.f32 %v1108, %v1223
  %v1263 = vmul.f32 %v1109, %v1228
  %v1264 = vmul.f32 %v1110, %v1233
  %v1265 = vmul.f32 %v1111, %v1238
  %v1266 = vmul.f32 %v1112, %v1243
  %v1267 = vadd.f32 %v1245, %v1246
  %v1268 = vadd.f32 %v1267, %v1247
  %v1269 = vadd.f32 %v1268, %v1248
  %v1270 = vadd.f32 %v1269, %v1249
  %v1271 = vadd.f32 %v1270, %v1250
  %v1272 = vadd.f32 %v1271, %v1251
  %v1273 = vadd.f32 %v1272, %v1252
  %v1274 = vadd.f32 %v1273, %v1253
  %v1275 = vadd.f32 %v1274, %v1254
  %v1276 = vadd.f32 %v1275, %v1255
  %v1277 = vadd.f32 %v1276, %v1256
  %v1278 = vadd.f32 %v1277, %v1257
  %v1279 = vadd.f32 %v1278, %v1258
  %v1280 = vadd.f32 %v1279, %v1259
  %v1281 = vadd.f32 %v1280, %v1260
  %v1282 = vadd.f32 %v1281, %v1261
  %v1283 = vadd.f32 %v1282, %v1262
  %v1284 = vadd.f32 %v1283, %v1263
  %v1285 = vadd.f32 %v1284, %v1264
  %v1286 = vadd.f32 %v1285, %v1265
  %v1287 = vadd.f32 %v1286, %v1266
  %v1288 = vrot.slane %v1287, 4
  %v1289 = vadd.f32 %v1287, %v1288
  %v1290 = vrot.slane %v1289, 2
  %v1291 = vadd.f32 %v1289, %v1290
  %v1292 = vrot.slane %v1291, 1
  %v1293 = vadd.f32 %v1291, %v1292
  %v1294 = vmul.f32 %v1293, 0.0078125
  %v1295 = vsub.f32 %v1091, %v1294
  %v1296 = vsub.f32 %v1092, %v1294
  %v1297 = vsub.f32 %v1093, %v1294
  %v1298 = vsub.f32 %v1094, %v1294
  %v1299 = vsub.f32 %v1095, %v1294
  %v1300 = vsub.f32 %v1096, %v1294
  %v1301 = vsub.f32 %v1097, %v1294
  %v1302 = vsub.f32 %v1098, %v1294
  %v1303 = vsub.f32 %v1099, %v1294
  %v1304 = vsub.f32 %v1100, %v1294
  %v1305 = vsub.f32 %v1101, %v1294
  %v1306 = vsub.f32 %v1102, %v1294
  %v1307 = vsub.f32 %v1103, %v1294
  %v1308 = vsub.f32 %v1104, %v1294
  %v1309 = vsub.f32 %v1105, %v1294
  %v1310 = vsub.f32 %v1106, %v1294
  %v1311 = vsub.f32 %v1107, %v1294
  %v1312 = vsub.f32 %v1108, %v1294
  %v1313 = vsub.f32 %v1109, %v1294
  %v1314 = vsub.f32 %v1110, %v1294
  %v1315 = vsub.f32 %v1111, %v1294
  %v1316 = vsub.f32 %v1112, %v1294
  %v1317 = vmul.f32 %v1295, %v1295
  %v1318 = vmul.f32 %v1296, %v1296
  %v1319 = vmul.f32 %v1297, %v1297
  %v1320 = vmul.f32 %v1298, %v1298
  %v1321 = vmul.f32 %v1299, %v1299
  %v1322 = vmul.f32 %v1300, %v1300
  %v1323 = vmul.f32 %v1301, %v1301
  %v1324 = vmul.f32 %v1302, %v1302
  %v1325 = vmul.f32 %v1303, %v1303
  %v1326 = vmul.f32 %v1304, %v1304
  %v1327 = vmul.f32 %v1305, %v1305
  %v1328 = vmul.f32 %v1306, %v1306
  %v1329 = vmul.f32 %v1307, %v1307
  %v1330 = vmul.f32 %v1308, %v1308
  %v1331 = vmul.f32 %v1309, %v1309
  %v1332 = vmul.f32 %v1310, %v1310
  %v1333 = vmul.f32 %v1311, %v1311
  %v1334 = vmul.f32 %v1312, %v1312
  %v1335 = vmul.f32 %v1313, %v1313
  %v1336 = vmul.f32 %v1314, %v1314
  %v1337 = vmul.f32 %v1315, %v1315
  %v1338 = vmul.f32 %v1316, %v1316
  %v1339 = vmul.f32 %v1317, %v1138
  %v1340 = vmul.f32 %v1318, %v1143
  %v1341 = vmul.f32 %v1319, %v1148
  %v1342 = vmul.f32 %v1320, %v1153
  %v1343 = vmul.f32 %v1321, %v1158
  %v1344 = vmul.f32 %v1322, %v1163
  %v1345 = vmul.f32 %v1323, %v1168
  %v1346 = vmul.f32 %v1324, %v1173
  %v1347 = vmul.f32 %v1325, %v1178
  %v1348 = vmul.f32 %v1326, %v1183
  %v1349 = vmul.f32 %v1327, %v1188
  %v1350 = vmul.f32 %v1328, %v1193
  %v1351 = vmul.f32 %v1329, %v1198
  %v1352 = vmul.f32 %v1330, %v1203
  %v1353 = vmul.f32 %v1331, %v1208
  %v1354 = vmul.f32 %v1332, %v1213
  %v1355 = vmul.f32 %v1333, %v1218
  %v1356 = vmul.f32 %v1334, %v1223
  %v1357 = vmul.f32 %v1335, %v1228
  %v1358 = vmul.f32 %v1336, %v1233
  %v1359 = vmul.f32 %v1337, %v1238
  %v1360 = vmul.f32 %v1338, %v1243
  %v1361 = vadd.f32 %v1339, %v1340
  %v1362 = vadd.f32 %v1361, %v1341
  %v1363 = vadd.f32 %v1362, %v1342
  %v1364 = vadd.f32 %v1363, %v1343
  %v1365 = vadd.f32 %v1364, %v1344
  %v1366 = vadd.f32 %v1365, %v1345
  %v1367 = vadd.f32 %v1366, %v1346
  %v1368 = vadd.f32 %v1367, %v1347
  %v1369 = vadd.f32 %v1368, %v1348
  %v1370 = vadd.f32 %v1369, %v1349
  %v1371 = vadd.f32 %v1370, %v1350
  %v1372 = vadd.f32 %v1371, %v1351
  %v1373 = vadd.f32 %v1372, %v1352
  %v1374 = vadd.f32 %v1373, %v1353
  %v1375 = vadd.f32 %v1374, %v1354
  %v1376 = vadd.f32 %v1375, %v1355
  %v1377 = vadd.f32 %v1376, %v1356
  %v1378 = vadd.f32 %v1377, %v1357
  %v1379 = vadd.f32 %v1378, %v1358
  %v1380 = vadd.f32 %v1379, %v1359
  %v1381 = vadd.f32 %v1380, %v1360
  %v1382 = vrot.slane %v1381, 4
  %v1383 = vadd.f32 %v1381, %v1382
  %v1384 = vrot.slane %v1383, 2
  %v1385 = vadd.f32 %v1383, %v1384
  %v1386 = vrot.slane %v1385, 1
  %v1387 = vadd.f32 %v1385, %v1386
  %v1388 = vmul.f32 %v1387, 0.0078125
  %v1389 = vld [vmem:[%s3] sm:$0x1]
  %v1390 = vadd.f32 %v1388, 1e-05
  %v1391 = vrsqrt.pop %v1390
  %v1392 = vmul.f32 %v1389, %v1391
  %v1394 = vlaneseq
  %v1395 = vshrl.u32 %v1394, 7
  %v1396 = vsub.s32 0, %v1395
  %v1397 = vrot.slane %v1392, %v1396
  %v1399 = vmul.f32 %v1295, %v1397
  %v1400 = vmul.f32 %v1296, %v1397
  %v1401 = vmul.f32 %v1297, %v1397
  %v1402 = vmul.f32 %v1298, %v1397
  %v1403 = vmul.f32 %v1299, %v1397
  %v1404 = vmul.f32 %v1300, %v1397
  %v1405 = vmul.f32 %v1301, %v1397
  %v1406 = vmul.f32 %v1302, %v1397
  %v1407 = vmul.f32 %v1303, %v1397
  %v1408 = vmul.f32 %v1304, %v1397
  %v1409 = vmul.f32 %v1305, %v1397
  %v1410 = vmul.f32 %v1306, %v1397
  %v1411 = vmul.f32 %v1307, %v1397
  %v1412 = vmul.f32 %v1308, %v1397
  %v1413 = vmul.f32 %v1309, %v1397
  %v1414 = vmul.f32 %v1310, %v1397
  %v1415 = vmul.f32 %v1311, %v1397
  %v1416 = vmul.f32 %v1312, %v1397
  %v1417 = vmul.f32 %v1313, %v1397
  %v1418 = vmul.f32 %v1314, %v1397
  %v1419 = vmul.f32 %v1315, %v1397
  %v1420 = vmul.f32 %v1316, %v1397
  %v1421 = vld [vmem:[%s4] sm:$0x1]
  %v1423 = vlaneseq
  %v1424 = vshrl.u32 %v1423, 7
  %v1425 = vsub.s32 0, %v1424
  %v1426 = vrot.slane %v1421, %v1425
  %v1428 = vadd.f32 %v1399, %v1426
  %v1429 = vadd.f32 %v1400, %v1426
  %v1430 = vadd.f32 %v1401, %v1426
  %v1431 = vadd.f32 %v1402, %v1426
  %v1432 = vadd.f32 %v1403, %v1426
  %v1433 = vadd.f32 %v1404, %v1426
  %v1434 = vadd.f32 %v1405, %v1426
  %v1435 = vadd.f32 %v1406, %v1426
  %v1436 = vadd.f32 %v1407, %v1426
  %v1437 = vadd.f32 %v1408, %v1426
  %v1438 = vadd.f32 %v1409, %v1426
  %v1439 = vadd.f32 %v1410, %v1426
  %v1440 = vadd.f32 %v1411, %v1426
  %v1441 = vadd.f32 %v1412, %v1426
  %v1442 = vadd.f32 %v1413, %v1426
  %v1443 = vadd.f32 %v1414, %v1426
  %v1444 = vadd.f32 %v1415, %v1426
  %v1445 = vadd.f32 %v1416, %v1426
  %v1446 = vadd.f32 %v1417, %v1426
  %v1447 = vadd.f32 %v1418, %v1426
  %v1448 = vadd.f32 %v1419, %v1426
  %v1449 = vadd.f32 %v1420, %v1426
  %vm1450 = vcmp.ge.f32.partialorder %v1428, 0.0
  %vm1451 = vcmp.ge.f32.partialorder %v1429, 0.0
  %vm1452 = vcmp.ge.f32.partialorder %v1430, 0.0
  %vm1453 = vcmp.ge.f32.partialorder %v1431, 0.0
  %vm1454 = vcmp.ge.f32.partialorder %v1432, 0.0
  %vm1455 = vcmp.ge.f32.partialorder %v1433, 0.0
  %vm1456 = vcmp.ge.f32.partialorder %v1434, 0.0
  %vm1457 = vcmp.ge.f32.partialorder %v1435, 0.0
  %vm1458 = vcmp.ge.f32.partialorder %v1436, 0.0
  %vm1459 = vcmp.ge.f32.partialorder %v1437, 0.0
  %vm1460 = vcmp.ge.f32.partialorder %v1438, 0.0
  %vm1461 = vcmp.ge.f32.partialorder %v1439, 0.0
  %vm1462 = vcmp.ge.f32.partialorder %v1440, 0.0
  %vm1463 = vcmp.ge.f32.partialorder %v1441, 0.0
  %vm1464 = vcmp.ge.f32.partialorder %v1442, 0.0
  %vm1465 = vcmp.ge.f32.partialorder %v1443, 0.0
  %vm1466 = vcmp.ge.f32.partialorder %v1444, 0.0
  %vm1467 = vcmp.ge.f32.partialorder %v1445, 0.0
  %vm1468 = vcmp.ge.f32.partialorder %v1446, 0.0
  %vm1469 = vcmp.ge.f32.partialorder %v1447, 0.0
  %vm1470 = vcmp.ge.f32.partialorder %v1448, 0.0
  %vm1471 = vcmp.ge.f32.partialorder %v1449, 0.0
  %v1472 = vmul.f32 %v1428, 0.2
  %v1473 = vmul.f32 %v1429, 0.2
  %v1474 = vmul.f32 %v1430, 0.2
  %v1475 = vmul.f32 %v1431, 0.2
  %v1476 = vmul.f32 %v1432, 0.2
  %v1477 = vmul.f32 %v1433, 0.2
  %v1478 = vmul.f32 %v1434, 0.2
  %v1479 = vmul.f32 %v1435, 0.2
  %v1480 = vmul.f32 %v1436, 0.2
  %v1481 = vmul.f32 %v1437, 0.2
  %v1482 = vmul.f32 %v1438, 0.2
  %v1483 = vmul.f32 %v1439, 0.2
  %v1484 = vmul.f32 %v1440, 0.2
  %v1485 = vmul.f32 %v1441, 0.2
  %v1486 = vmul.f32 %v1442, 0.2
  %v1487 = vmul.f32 %v1443, 0.2
  %v1488 = vmul.f32 %v1444, 0.2
  %v1489 = vmul.f32 %v1445, 0.2
  %v1490 = vmul.f32 %v1446, 0.2
  %v1491 = vmul.f32 %v1447, 0.2
  %v1492 = vmul.f32 %v1448, 0.2
  %v1493 = vmul.f32 %v1449, 0.2
  %v1494 = vsel %vm1450, %v1428, %v1472
  %v1495 = vsel %vm1451, %v1429, %v1473
  %v1496 = vsel %vm1452, %v1430, %v1474
  %v1497 = vsel %vm1453, %v1431, %v1475
  %v1498 = vsel %vm1454, %v1432, %v1476
  %v1499 = vsel %vm1455, %v1433, %v1477
  %v1500 = vsel %vm1456, %v1434, %v1478
  %v1501 = vsel %vm1457, %v1435, %v1479
  %v1502 = vsel %vm1458, %v1436, %v1480
  %v1503 = vsel %vm1459, %v1437, %v1481
  %v1504 = vsel %vm1460, %v1438, %v1482
  %v1505 = vsel %vm1461, %v1439, %v1483
  %v1506 = vsel %vm1462, %v1440, %v1484
  %v1507 = vsel %vm1463, %v1441, %v1485
  %v1508 = vsel %vm1464, %v1442, %v1486
  %v1509 = vsel %vm1465, %v1443, %v1487
  %v1510 = vsel %vm1466, %v1444, %v1488
  %v1511 = vsel %vm1467, %v1445, %v1489
  %v1512 = vsel %vm1468, %v1446, %v1490
  %v1513 = vsel %vm1469, %v1447, %v1491
  %v1514 = vsel %vm1470, %v1448, %v1492
  %v1515 = vsel %vm1471, %v1449, %v1493
  %v1516 = vpack.c.bf16 %v1495, %v1494
  %v1517 = vpack.c.bf16 %v1497, %v1496
  %v1518 = vpack.c.bf16 %v1499, %v1498
  %v1519 = vpack.c.bf16 %v1501, %v1500
  %v1520 = vpack.c.bf16 %v1503, %v1502
  %v1521 = vpack.c.bf16 %v1505, %v1504
  %v1522 = vpack.c.bf16 %v1507, %v1506
  %v1523 = vpack.c.bf16 %v1509, %v1508
  %v1524 = vpack.c.bf16 %v1511, %v1510
  %v1525 = vpack.c.bf16 %v1513, %v1512
  %v1526 = vpack.c.bf16 %v1515, %v1514
  %v1538 = vunpack.c.l.b16 %v1516
  %v1539 = vunpack.c.h.b16 %v1516
  %v1540 = vunpack.c.l.b16 %v1517
  %v1541 = vunpack.c.h.b16 %v1517
  %v1542 = vunpack.c.l.b16 %v1518
  %v1543 = vunpack.c.h.b16 %v1518
  %v1544 = vunpack.c.l.b16 %v1519
  %v1545 = vunpack.c.h.b16 %v1519
  %v1546 = vunpack.c.l.b16 %v1520
  %v1547 = vunpack.c.h.b16 %v1520
  %v1548 = vunpack.c.l.b16 %v1521
  %v1549 = vunpack.c.h.b16 %v1521
  %v1550 = vunpack.c.l.b16 %v1522
  %v1551 = vunpack.c.h.b16 %v1522
  %v1552 = vunpack.c.l.b16 %v1523
  %v1553 = vunpack.c.h.b16 %v1523
  %v1554 = vunpack.c.l.b16 %v1524
  %v1555 = vunpack.c.h.b16 %v1524
  %v1556 = vunpack.c.l.b16 %v1525
  %v1557 = vunpack.c.h.b16 %v1525
  %v1558 = vunpack.c.l.b16 %v1526
  %v1559 = vunpack.c.h.b16 %v1526
  %v1560 = vpack.c.b16 %v1538, %v1538
  %v1561 = vpack.c.b16 %v1539, %v1539
  %v1562 = vpack.c.b16 %v1540, %v1540
  %v1563 = vpack.c.b16 %v1541, %v1541
  %v1564 = vpack.c.b16 %v1542, %v1542
  %v1565 = vpack.c.b16 %v1543, %v1543
  %v1566 = vpack.c.b16 %v1544, %v1544
  %v1567 = vpack.c.b16 %v1545, %v1545
  %v1568 = vpack.c.b16 %v1546, %v1546
  %v1569 = vpack.c.b16 %v1547, %v1547
  %v1570 = vpack.c.b16 %v1548, %v1548
  %v1571 = vpack.c.b16 %v1549, %v1549
  %v1572 = vpack.c.b16 %v1550, %v1550
  %v1573 = vpack.c.b16 %v1551, %v1551
  %v1574 = vpack.c.b16 %v1552, %v1552
  %v1575 = vpack.c.b16 %v1553, %v1553
  %v1576 = vpack.c.b16 %v1554, %v1554
  %v1577 = vpack.c.b16 %v1555, %v1555
  %v1578 = vpack.c.b16 %v1556, %v1556
  %v1579 = vpack.c.b16 %v1557, %v1557
  %v1580 = vpack.c.b16 %v1558, %v1558
  %v1581 = vpack.c.b16 %v1559, %v1559
  %1604 = vst [vmem:[%s5] sm:$0xf] %v1560
  %1605 = vst [vmem:[%s5 + $0x4] sm:$0xf] %v1561
  %1606 = vst [vmem:[%s5 + $0x8] sm:$0xf] %v1562
  %1607 = vst [vmem:[%s5 + $0xc] sm:$0xf] %v1563
  %1608 = vst [vmem:[%s5 + $0x10] sm:$0xf] %v1564
  %1609 = vst [vmem:[%s5 + $0x14] sm:$0xf] %v1565
  %1610 = vst [vmem:[%s5 + $0x18] sm:$0xf] %v1566
  %1611 = vst [vmem:[%s5 + $0x1c] sm:$0xf] %v1567
  %1612 = vst [vmem:[%s5 + $0x20] sm:$0xf] %v1568
  %1613 = vst [vmem:[%s5 + $0x24] sm:$0xf] %v1569
  %1614 = vst [vmem:[%s5 + $0x28] sm:$0xf] %v1570
  %1615 = vst [vmem:[%s5 + $0x2c] sm:$0xf] %v1571
  %1616 = vst [vmem:[%s5 + $0x30] sm:$0xf] %v1572
  %1617 = vst [vmem:[%s5 + $0x34] sm:$0xf] %v1573
  %1618 = vst [vmem:[%s5 + $0x38] sm:$0xf] %v1574
  %1619 = vst [vmem:[%s5 + $0x3c] sm:$0xf] %v1575
  %1620 = vst [vmem:[%s5 + $0x40] sm:$0xf] %v1576
  %1621 = vst [vmem:[%s5 + $0x44] sm:$0xf] %v1577
  %1622 = vst [vmem:[%s5 + $0x48] sm:$0xf] %v1578
  %1623 = vst [vmem:[%s5 + $0x4c] sm:$0xf] %v1579
  %1624 = vst [vmem:[%s5 + $0x50] sm:$0xf] %v1580
  %1625 = vst [vmem:[%s5 + $0x54] sm:$0xf] %v1581
  // Predicated region
  $region22: #{forward.6} parent=0 // pred_check
    _
  $region23: #{forward.6} parent=0 // pred_check_branch
    %1627 = sbr.rel (0) target = $region25
  $region24: #{forward.6} parent=0 // pred_region
    _
  $region25: #{forward.6} parent=0 // pred_fallthru
    _
  // Predicated region
  $region26: #{forward.6} parent=0 // pred_check
    _
  $region27: #{forward.6} parent=0 // pred_check_branch
    %1629 = sbr.rel (0) target = $region29
  $region28: #{forward.6} parent=0 // pred_region
    _
  $region29: #{forward.6} parent=0 // pred_fallthru
    _

// kernel: forward.7
$region0: #{forward.7}
  #allocation0 [shape = 'u32[]', space=smem, size = 0x4, offset = 0x4, fixed_abs, tag = 'smem constant byte address 0x4 - core index']
  #allocation1 [shape = 'u32[144,128]{1,0:T(1,128)}', space=vmem, size = 0x12000, scoped, tag = 'internal scratch']
  %s0 = inlined_call_operand.vmem [shape: bf16[72,64], index: 0, kind: input, shape index: {}]
  %s1 = inlined_call_operand.vmem [shape: bf16[4,64,128], index: 1, kind: input, shape index: {}]
  %s2 = inlined_call_operand.vmem [shape: f32[64,1], index: 2, kind: input, shape index: {}]
  %s3 = inlined_call_operand.vmem [shape: f32[1,128], index: 3, kind: input, shape index: {}]
  %s4 = inlined_call_operand.vmem [shape: f32[1,128], index: 4, kind: input, shape index: {}]
  %s5 = inlined_call_operand.vmem [shape: bf16[64,128], index: 5, kind: output, shape index: {}]
  %s6 = sld [smem:[#allocation0]]
  $region30: #{forward.7} parent=0
    _
  %s8 = ssub.s32 1, %s6
  %s9 = scalar_select 0, %s8, %s6
  // Predicated region
  $region2: #{forward.7} parent=0 // pred_check
    _
  $region3: #{forward.7} parent=0 // pred_check_branch
    %11 = sbr.rel (0) target = $region5
  $region4: #{forward.7} parent=0 // pred_region
    _
  $region5: #{forward.7} parent=0 // pred_fallthru
    _
  // Predicated region
  $region6: #{forward.7} parent=0 // pred_check
    _
  $region7: #{forward.7} parent=0 // pred_check_branch
    %13 = sbr.rel (0) target = $region9
  $region8: #{forward.7} parent=0 // pred_region
    _
  $region9: #{forward.7} parent=0 // pred_fallthru
    _
  // Predicated region
  $region10: #{forward.7} parent=0 // pred_check
    _
  $region11: #{forward.7} parent=0 // pred_check_branch
    %15 = sbr.rel (0) target = $region13
  $region12: #{forward.7} parent=0 // pred_region
    _
  $region13: #{forward.7} parent=0 // pred_fallthru
    _
  // Predicated region
  $region14: #{forward.7} parent=0 // pred_check
    _
  $region15: #{forward.7} parent=0 // pred_check_branch
    %17 = sbr.rel (0) target = $region17
  $region16: #{forward.7} parent=0 // pred_region
    _
  $region17: #{forward.7} parent=0 // pred_fallthru
    _
  // Predicated region
  $region18: #{forward.7} parent=0 // pred_check
    _
  $region19: #{forward.7} parent=0 // pred_check_branch
    %19 = sbr.rel (0) target = $region21
  $region20: #{forward.7} parent=0 // pred_region
    _
  $region21: #{forward.7} parent=0 // pred_fallthru
    _
  %v21 = vld [vmem:[%s0] sm:$0xf]
  %v22 = vld [vmem:[%s0 + $0x4] sm:$0xf]
  %v23 = vld [vmem:[%s0 + $0x8] sm:$0xf]
  %v24 = vld [vmem:[%s0 + $0xc] sm:$0xf]
  %v25 = vld [vmem:[%s0 + $0x10] sm:$0xf]
  %v26 = vld [vmem:[%s0 + $0x14] sm:$0xf]
  %v27 = vld [vmem:[%s0 + $0x18] sm:$0xf]
  %v28 = vld [vmem:[%s0 + $0x1c] sm:$0xf]
  %v29 = vld [vmem:[%s1] sm:$0xf]
  %v30 = vld [vmem:[%s1 + $0x4] sm:$0xf]
  %v31 = vld [vmem:[%s1 + $0x8] sm:$0xf]
  %v32 = vld [vmem:[%s1 + $0xc] sm:$0xf]
  %v33 = vld [vmem:[%s1 + $0x10] sm:$0xf]
  %v34 = vld [vmem:[%s1 + $0x14] sm:$0xf]
  %v35 = vld [vmem:[%s1 + $0x18] sm:$0xf]
  %v36 = vld [vmem:[%s1 + $0x1c] sm:$0xf]
  %v37 = vld [vmem:[%s0 + $0x20] sm:$0x1]
  %s38 = scalar_lea.vmem %s1, 32
  %v39 = vld [vmem:[%s38] sm:$0xf]
  %v40 = vld [vmem:[%s38 + $0x4] sm:$0xf]
  %v41 = vld [vmem:[%s38 + $0x8] sm:$0xf]
  %v42 = vld [vmem:[%s38 + $0xc] sm:$0xf]
  %v43 = vld [vmem:[%s38 + $0x10] sm:$0xf]
  %v44 = vld [vmem:[%s38 + $0x14] sm:$0xf]
  %v45 = vld [vmem:[%s38 + $0x18] sm:$0xf]
  %v46 = vld [vmem:[%s38 + $0x1c] sm:$0xf]
  %v56 = vunpack.c.l.b16 %v21
  %v57 = vunpack.c.l.b16 %v22
  %v58 = vunpack.c.l.b16 %v23
  %v59 = vunpack.c.l.b16 %v24
  %v60 = vunpack.c.l.b16 %v25
  %v61 = vunpack.c.l.b16 %v26
  %v62 = vunpack.c.l.b16 %v27
  %v63 = vunpack.c.l.b16 %v28
  %v64 = vunpack.c.l.b16 %v37
  %v65 = vpack.c.b16 %v57, %v56
  %v66 = vpack.c.b16 %v59, %v58
  %v67 = vpack.c.b16 %v61, %v60
  %v68 = vpack.c.b16 %v63, %v62
  %v69 = vpack.c.b16 %v64, %v64
  %vm70 = vsmask.f32 7424
  %v72 = vshrl.u32 %v65, 16
  %v74 = vshll.u32 %v65, 16
  %v76 = vrot.slane %v74, 1
  %v77 = vor.u32 %v72, %v76
  %v79 = vshll.u32 %v66, 16
  %v81 = vrot.slane %v79, 1
  %v82 = vsel %vm70, %v77, %v81
  %v83 = vshrl.u32 %v66, 16
  %v85 = vor.u32 %v83, %v81
  %v87 = vshll.u32 %v67, 16
  %v89 = vrot.slane %v87, 1
  %v90 = vsel %vm70, %v85, %v89
  %v91 = vshrl.u32 %v67, 16
  %v93 = vor.u32 %v91, %v89
  %v95 = vshll.u32 %v68, 16
  %v97 = vrot.slane %v95, 1
  %v98 = vsel %vm70, %v93, %v97
  %v99 = vshrl.u32 %v68, 16
  %v101 = vor.u32 %v99, %v97
  %v103 = vshll.u32 %v69, 16
  %v105 = vrot.slane %v103, 1
  %v106 = vsel %vm70, %v101, %v105
  %v115 = vunpack.c.l.b16 %v39
  %v116 = vunpack.c.l.b16 %v40
  %v117 = vunpack.c.l.b16 %v41
  %v118 = vunpack.c.l.b16 %v42
  %v119 = vunpack.c.l.b16 %v43
  %v120 = vunpack.c.l.b16 %v44
  %v121 = vunpack.c.l.b16 %v45
  %v122 = vunpack.c.l.b16 %v46
  %v123 = vpack.c.b16 %v116, %v115
  %v124 = vpack.c.b16 %v118, %v117
  %v125 = vpack.c.b16 %v120, %v119
  %v126 = vpack.c.b16 %v122, %v121
  %vm131 = vcmask 523264
  %v133 = vsel %vm131, %v82, 0
  %v136 = vsel %vm131, %v90, 0
  %v139 = vsel %vm131, %v98, 0
  %v142 = vsel %vm131, %v106, 0
  %144 = vmatprep.subr.bf16.mxu0 0
  %145 = vmatpush1.bf16.msra.mxu0 %v123
  %146 = vmatprep.subr.bf16.mxu0 0
  %147 = vmatpush1.bf16.msra.mxu0 %v124
  %148 = vmatprep.subr.bf16.mxu0 0
  %149 = vmatpush1.bf16.msra.mxu0 %v125
  %150 = vmatprep.subr.bf16.mxu0 0
  %151 = vmatpush1.bf16.msra.mxu0 %v126
  %152 = vmatprep.subr.bf16.mxu0 0
  %153 = vmatpush1.bf16.msra.mxu0 0
  %154 = vmatprep.subr.bf16.mxu0 0
  %155 = vmatpush1.bf16.msra.mxu0 0
  %156 = vmatprep.subr.bf16.mxu0 0
  %157 = vmatpush1.bf16.msra.mxu0 0
  %158 = vmatprep.subr.bf16.mxu0 0
  %159 = vmatpush1.bf16.msra.mxu0 0
  %160 = vmatprep.subr.bf16.mxu0 0
  %161 = vmatpush1.bf16.msra.mxu0 0
  %162 = vmatprep.subr.bf16.mxu0 0
  %163 = vmatpush1.bf16.msra.mxu0 0
  %164 = vmatprep.subr.bf16.mxu0 0
  %165 = vmatpush1.bf16.msra.mxu0 0
  %166 = vmatprep.subr.bf16.mxu0 0
  %167 = vmatpush1.bf16.msra.mxu0 0
  %168 = vmatprep.subr.bf16.mxu0 0
  %169 = vmatpush1.bf16.msra.mxu0 0
  %170 = vmatprep.subr.bf16.mxu0 0
  %171 = vmatpush1.bf16.msra.mxu0 0
  %172 = vmatprep.subr.bf16.mxu0 0
  %173 = vmatpush1.bf16.msra.mxu0 0
  %174 = vmatprep.subr.bf16.mxu0 0
  %175 = vmatpush1.bf16.msra.mxu0 0
  %176 = vmatprep.mubr.bf16.mxu0 0
  %177 = vmatmul.mubr.bf16.gmra.mrb[0].mxu0 %v133
  %v178 = vpop.f32.mrb[0].mxu0
  %v179 = vadd.f32 0.0, %v178
  %v180 = vpop.f32.mrb[0].mxu0
  %v181 = vpop.f32.mrb[0].mxu0
  %v182 = vadd.f32 0.0, %v181
  %v183 = vpop.f32.mrb[0].mxu0
  %184 = vmatprep.mubr.bf16.mxu0 0
  %185 = vmatmul.mubr.bf16.gmra.mrb[0].mxu0 %v136
  %v186 = vpop.f32.mrb[0].mxu0
  %v187 = vadd.f32 0.0, %v186
  %v188 = vpop.f32.mrb[0].mxu0
  %v189 = vpop.f32.mrb[0].mxu0
  %v190 = vadd.f32 0.0, %v189
  %v191 = vpop.f32.mrb[0].mxu0
  %192 = vmatprep.mubr.bf16.mxu0 0
  %193 = vmatmul.mubr.bf16.gmra.mrb[0].mxu0 %v139
  %v194 = vpop.f32.mrb[0].mxu0
  %v195 = vadd.f32 0.0, %v194
  %v196 = vpop.f32.mrb[0].mxu0
  %v197 = vpop.f32.mrb[0].mxu0
  %v198 = vadd.f32 0.0, %v197
  %v199 = vpop.f32.mrb[0].mxu0
  %200 = vmatprep.mubr.bf16.mxu0 0
  %201 = vmatmul.mubr.bf16.gmra.mrb[0].mxu0 %v142
  %v202 = vpop.f32.mrb[0].mxu0
  %v203 = vadd.f32 0.0, %v202
  %v204 = vpop.f32.mrb[0].mxu0
  %v205 = vpop.f32.mrb[0].mxu0
  %v206 = vadd.f32 0.0, %v205
  %v207 = vpop.f32.mrb[0].mxu0
  %208 = vdwg.mxu0
  %v217 = vunpack.c.l.b16 %v29
  %v218 = vunpack.c.l.b16 %v30
  %v219 = vunpack.c.l.b16 %v31
  %v220 = vunpack.c.l.b16 %v32
  %v221 = vunpack.c.l.b16 %v33
  %v222 = vunpack.c.l.b16 %v34
  %v223 = vunpack.c.l.b16 %v35
  %v224 = vunpack.c.l.b16 %v36
  %v225 = vpack.c.b16 %v218, %v217
  %v226 = vpack.c.b16 %v220, %v219
  %v227 = vpack.c.b16 %v222, %v221
  %v228 = vpack.c.b16 %v224, %v223
  %v233 = vsel %vm131, %v65, 0
  %v235 = vsel %vm131, %v66, 0
  %v237 = vsel %vm131, %v67, 0
  %v239 = vsel %vm131, %v68, 0
  %241 = vmatprep.subr.bf16.mxu0 0
  %242 = vmatpush1.bf16.msra.mxu0 %v225
  %243 = vmatprep.subr.bf16.mxu0 0
  %244 = vmatpush1.bf16.msra.mxu0 %v226
  %245 = vmatprep.subr.bf16.mxu0 0
  %246 = vmatpush1.bf16.msra.mxu0 %v227
  %247 = vmatprep.subr.bf16.mxu0 0
  %248 = vmatpush1.bf16.msra.mxu0 %v228
  %249 = vmatprep.subr.bf16.mxu0 0
  %250 = vmatpush1.bf16.msra.mxu0 0
  %251 = vmatprep.subr.bf16.mxu0 0
  %252 = vmatpush1.bf16.msra.mxu0 0
  %253 = vmatprep.subr.bf16.mxu0 0
  %254 = vmatpush1.bf16.msra.mxu0 0
  %255 = vmatprep.subr.bf16.mxu0 0
  %256 = vmatpush1.bf16.msra.mxu0 0
  %257 = vmatprep.subr.bf16.mxu0 0
  %258 = vmatpush1.bf16.msra.mxu0 0
  %259 = vmatprep.subr.bf16.mxu0 0
  %260 = vmatpush1.bf16.msra.mxu0 0
  %261 = vmatprep.subr.bf16.mxu0 0
  %262 = vmatpush1.bf16.msra.mxu0 0
  %263 = vmatprep.subr.bf16.mxu0 0
  %264 = vmatpush1.bf16.msra.mxu0 0
  %265 = vmatprep.subr.bf16.mxu0 0
  %266 = vmatpush1.bf16.msra.mxu0 0
  %267 = vmatprep.subr.bf16.mxu0 0
  %268 = vmatpush1.bf16.msra.mxu0 0
  %269 = vmatprep.subr.bf16.mxu0 0
  %270 = vmatpush1.bf16.msra.mxu0 0
  %271 = vmatprep.subr.bf16.mxu0 0
  %272 = vmatpush1.bf16.msra.mxu0 0
  %273 = vmatprep.mubr.bf16.mxu0 0
  %274 = vmatmul.mubr.bf16.gmra.mrb[0].mxu0 %v233
  %v275 = vpop.f32.mrb[0].mxu0
  %v276 = vadd.f32 %v179, %v275
  %v277 = vpop.f32.mrb[0].mxu0
  %v278 = vpop.f32.mrb[0].mxu0
  %v279 = vadd.f32 %v182, %v278
  %v280 = vpop.f32.mrb[0].mxu0
  %281 = vmatprep.mubr.bf16.mxu0 0
  %282 = vmatmul.mubr.bf16.gmra.mrb[0].mxu0 %v235
  %v283 = vpop.f32.mrb[0].mxu0
  %v284 = vadd.f32 %v187, %v283
  %v285 = vpop.f32.mrb[0].mxu0
  %v286 = vpop.f32.mrb[0].mxu0
  %v287 = vadd.f32 %v190, %v286
  %v288 = vpop.f32.mrb[0].mxu0
  %289 = vmatprep.mubr.bf16.mxu0 0
  %290 = vmatmul.mubr.bf16.gmra.mrb[0].mxu0 %v237
  %v291 = vpop.f32.mrb[0].mxu0
  %v292 = vadd.f32 %v195, %v291
  %v293 = vpop.f32.mrb[0].mxu0
  %v294 = vpop.f32.mrb[0].mxu0
  %v295 = vadd.f32 %v198, %v294
  %v296 = vpop.f32.mrb[0].mxu0
  %297 = vmatprep.mubr.bf16.mxu0 0
  %298 = vmatmul.mubr.bf16.gmra.mrb[0].mxu0 %v239
  %v299 = vpop.f32.mrb[0].mxu0
  %v300 = vadd.f32 %v203, %v299
  %v301 = vpop.f32.mrb[0].mxu0
  %v302 = vpop.f32.mrb[0].mxu0
  %v303 = vadd.f32 %v206, %v302
  %v304 = vpop.f32.mrb[0].mxu0
  %305 = vdwg.mxu0
  %v306 = vld [vmem:[%s0] sm:$0xc]
  %v307 = vld [vmem:[%s0 + $0x20] sm:$0x7]
  %s308 = scalar_lea.vmem %s1, 64
  %v309 = vld [vmem:[%s308] sm:$0xf]
  %v310 = vld [vmem:[%s308 + $0x4] sm:$0xf]
  %v311 = vld [vmem:[%s308 + $0x8] sm:$0xf]
  %v312 = vld [vmem:[%s308 + $0xc] sm:$0xf]
  %v313 = vld [vmem:[%s308 + $0x10] sm:$0xf]
  %v314 = vld [vmem:[%s308 + $0x14] sm:$0xf]
  %v315 = vld [vmem:[%s308 + $0x18] sm:$0xf]
  %v316 = vld [vmem:[%s308 + $0x1c] sm:$0xf]
  %v319 = vunpack.c.l.b16 %v306
  %v320 = vunpack.c.l.b16 %v307
  %v321 = vpack.c.b16 %v57, %v319
  %v322 = vpack.c.b16 %v320, %v320
  %vm323 = vsmask.f32 5376
  %v325 = vshrl.u32 %v321, 16
  %v327 = vrot.slane %v325, 2
  %v328 = vshll.u32 %v321, 16
  %v330 = vrot.slane %v328, 3
  %v331 = vor.u32 %v327, %v330
  %v332 = vrot.slane %v83, 2
  %v333 = vrot.slane %v79, 3
  %v334 = vor.u32 %v332, %v333
  %v335 = vsel %vm323, %v331, %v334
  %v336 = vrot.slane %v91, 2
  %v337 = vrot.slane %v87, 3
  %v338 = vor.u32 %v336, %v337
  %v339 = vsel %vm323, %v334, %v338
  %v340 = vrot.slane %v99, 2
  %v341 = vrot.slane %v95, 3
  %v342 = vor.u32 %v340, %v341
  %v343 = vsel %vm323, %v338, %v342
  %v345 = vshrl.u32 %v322, 16
  %v347 = vrot.slane %v345, 2
  %v348 = vshll.u32 %v322, 16
  %v350 = vrot.slane %v348, 3
  %v351 = vor.u32 %v347, %v350
  %v352 = vsel %vm323, %v342, %v351
  %v361 = vunpack.c.l.b16 %v309
  %v362 = vunpack.c.l.b16 %v310
  %v363 = vunpack.c.l.b16 %v311
  %v364 = vunpack.c.l.b16 %v312
  %v365 = vunpack.c.l.b16 %v313
  %v366 = vunpack.c.l.b16 %v314
  %v367 = vunpack.c.l.b16 %v315
  %v368 = vunpack.c.l.b16 %v316
  %v369 = vpack.c.b16 %v362, %v361
  %v370 = vpack.c.b16 %v364, %v363
  %v371 = vpack.c.b16 %v366, %v365
  %v372 = vpack.c.b16 %v368, %v367
  %v378 = vsel %vm131, %v335, 0
  %v381 = vsel %vm131, %v339, 0
  %v384 = vsel %vm131, %v343, 0
  %v387 = vsel %vm131, %v352, 0
  %389 = vmatprep.subr.bf16.mxu0 0
  %390 = vmatpush1.bf16.msra.mxu0 %v369
  %391 = vmatprep.subr.bf16.mxu0 0
  %392 = vmatpush1.bf16.msra.mxu0 %v370
  %393 = vmatprep.subr.bf16.mxu0 0
  %394 = vmatpush1.bf16.msra.mxu0 %v371
  %395 = vmatprep.subr.bf16.mxu0 0
  %396 = vmatpush1.bf16.msra.mxu0 %v372
  %397 = vmatprep.subr.bf16.mxu0 0
  %398 = vmatpush1.bf16.msra.mxu0 0
  %399 = vmatprep.subr.bf16.mxu0 0
  %400 = vmatpush1.bf16.msra.mxu0 0
  %401 = vmatprep.subr.bf16.mxu0 0
  %402 = vmatpush1.bf16.msra.mxu0 0
  %403 = vmatprep.subr.bf16.mxu0 0
  %404 = vmatpush1.bf16.msra.mxu0 0
  %405 = vmatprep.subr.bf16.mxu0 0
  %406 = vmatpush1.bf16.msra.mxu0 0
  %407 = vmatprep.subr.bf16.mxu0 0
  %408 = vmatpush1.bf16.msra.mxu0 0
  %409 = vmatprep.subr.bf16.mxu0 0
  %410 = vmatpush1.bf16.msra.mxu0 0
  %411 = vmatprep.subr.bf16.mxu0 0
  %412 = vmatpush1.bf16.msra.mxu0 0
  %413 = vmatprep.subr.bf16.mxu0 0
  %414 = vmatpush1.bf16.msra.mxu0 0
  %415 = vmatprep.subr.bf16.mxu0 0
  %416 = vmatpush1.bf16.msra.mxu0 0
  %417 = vmatprep.subr.bf16.mxu0 0
  %418 = vmatpush1.bf16.msra.mxu0 0
  %419 = vmatprep.subr.bf16.mxu0 0
  %420 = vmatpush1.bf16.msra.mxu0 0
  %421 = vmatprep.mubr.bf16.mxu0 0
  %422 = vmatmul.mubr.bf16.gmra.mrb[0].mxu0 %v378
  %v423 = vpop.f32.mrb[0].mxu0
  %v424 = vadd.f32 0.0, %v423
  %v425 = vpop.f32.mrb[0].mxu0
  %v426 = vpop.f32.mrb[0].mxu0
  %v427 = vadd.f32 0.0, %v426
  %v428 = vpop.f32.mrb[0].mxu0
  %429 = vmatprep.mubr.bf16.mxu0 0
  %430 = vmatmul.mubr.bf16.gmra.mrb[0].mxu0 %v381
  %v431 = vpop.f32.mrb[0].mxu0
  %v432 = vadd.f32 0.0, %v431
  %v433 = vpop.f32.mrb[0].mxu0
  %v434 = vpop.f32.mrb[0].mxu0
  %v435 = vadd.f32 0.0, %v434
  %v436 = vpop.f32.mrb[0].mxu0
  %437 = vmatprep.mubr.bf16.mxu0 0
  %438 = vmatmul.mubr.bf16.gmra.mrb[0].mxu0 %v384
  %v439 = vpop.f32.mrb[0].mxu0
  %v440 = vadd.f32 0.0, %v439
  %v441 = vpop.f32.mrb[0].mxu0
  %v442 = vpop.f32.mrb[0].mxu0
  %v443 = vadd.f32 0.0, %v442
  %v444 = vpop.f32.mrb[0].mxu0
  %445 = vmatprep.mubr.bf16.mxu0 0
  %446 = vmatmul.mubr.bf16.gmra.mrb[0].mxu0 %v387
  %v447 = vpop.f32.mrb[0].mxu0
  %v448 = vadd.f32 0.0, %v447
  %v449 = vpop.f32.mrb[0].mxu0
  %v450 = vpop.f32.mrb[0].mxu0
  %v451 = vadd.f32 0.0, %v450
  %v452 = vpop.f32.mrb[0].mxu0
  %453 = vdwg.mxu0
  %v454 = vadd.f32 %v276, %v424
  %v455 = vadd.f32 %v279, %v427
  %v456 = vadd.f32 %v284, %v432
  %v457 = vadd.f32 %v287, %v435
  %v458 = vadd.f32 %v292, %v440
  %v459 = vadd.f32 %v295, %v443
  %v460 = vadd.f32 %v300, %v448
  %v461 = vadd.f32 %v303, %v451
  %v462 = vld [vmem:[%s0] sm:$0x8]
  %s463 = scalar_lea.vmem %s1, 96
  %v464 = vld [vmem:[%s463] sm:$0xf]
  %v465 = vld [vmem:[%s463 + $0x4] sm:$0xf]
  %v466 = vld [vmem:[%s463 + $0x8] sm:$0xf]
  %v467 = vld [vmem:[%s463 + $0xc] sm:$0xf]
  %v468 = vld [vmem:[%s463 + $0x10] sm:$0xf]
  %v469 = vld [vmem:[%s463 + $0x14] sm:$0xf]
  %v470 = vld [vmem:[%s463 + $0x18] sm:$0xf]
  %v471 = vld [vmem:[%s463 + $0x1c] sm:$0xf]
  %v473 = vunpack.c.l.b16 %v462
  %v474 = vpack.c.b16 %v57, %v473
  %vm475 = vcmask 1044480
  %v476 = vrot.slane %v474, 3
  %v477 = vrot.slane %v66, 3
  %v478 = vsel %vm475, %v476, %v477
  %v479 = vrot.slane %v67, 3
  %v480 = vsel %vm475, %v477, %v479
  %v481 = vrot.slane %v68, 3
  %v482 = vsel %vm475, %v479, %v481
  %v483 = vrot.slane %v322, 3
  %v484 = vsel %vm475, %v481, %v483
  %v493 = vunpack.c.l.b16 %v464
  %v494 = vunpack.c.l.b16 %v465
  %v495 = vunpack.c.l.b16 %v466
  %v496 = vunpack.c.l.b16 %v467
  %v497 = vunpack.c.l.b16 %v468
  %v498 = vunpack.c.l.b16 %v469
  %v499 = vunpack.c.l.b16 %v470
  %v500 = vunpack.c.l.b16 %v471
  %v501 = vpack.c.b16 %v494, %v493
  %v502 = vpack.c.b16 %v496, %v495
  %v503 = vpack.c.b16 %v498, %v497
  %v504 = vpack.c.b16 %v500, %v499
  %v510 = vsel %vm131, %v478, 0
  %v513 = vsel %vm131, %v480, 0
  %v516 = vsel %vm131, %v482, 0
  %v519 = vsel %vm131, %v484, 0
  %521 = vmatprep.subr.bf16.mxu0 0
  %522 = vmatpush1.bf16.msra.mxu0 %v501
  %523 = vmatprep.subr.bf16.mxu0 0
  %524 = vmatpush1.bf16.msra.mxu0 %v502
  %525 = vmatprep.subr.bf16.mxu0 0
  %526 = vmatpush1.bf16.msra.mxu0 %v503
  %527 = vmatprep.subr.bf16.mxu0 0
  %528 = vmatpush1.bf16.msra.mxu0 %v504
  %529 = vmatprep.subr.bf16.mxu0 0
  %530 = vmatpush1.bf16.msra.mxu0 0
  %531 = vmatprep.subr.bf16.mxu0 0
  %532 = vmatpush1.bf16.msra.mxu0 0
  %533 = vmatprep.subr.bf16.mxu0 0
  %534 = vmatpush1.bf16.msra.mxu0 0
  %535 = vmatprep.subr.bf16.mxu0 0
  %536 = vmatpush1.bf16.msra.mxu0 0
  %537 = vmatprep.subr.bf16.mxu0 0
  %538 = vmatpush1.bf16.msra.mxu0 0
  %539 = vmatprep.subr.bf16.mxu0 0
  %540 = vmatpush1.bf16.msra.mxu0 0
  %541 = vmatprep.subr.bf16.mxu0 0
  %542 = vmatpush1.bf16.msra.mxu0 0
  %543 = vmatprep.subr.bf16.mxu0 0
  %544 = vmatpush1.bf16.msra.mxu0 0
  %545 = vmatprep.subr.bf16.mxu0 0
  %546 = vmatpush1.bf16.msra.mxu0 0
  %547 = vmatprep.subr.bf16.mxu0 0
  %548 = vmatpush1.bf16.msra.mxu0 0
  %549 = vmatprep.subr.bf16.mxu0 0
  %550 = vmatpush1.bf16.msra.mxu0 0
  %551 = vmatprep.subr.bf16.mxu0 0
  %552 = vmatpush1.bf16.msra.mxu0 0
  %553 = vmatprep.mubr.bf16.mxu0 0
  %554 = vmatmul.mubr.bf16.gmra.mrb[0].mxu0 %v510
  %v555 = vpop.f32.mrb[0].mxu0
  %v556 = vadd.f32 0.0, %v555
  %v557 = vpop.f32.mrb[0].mxu0
  %v558 = vpop.f32.mrb[0].mxu0
  %v559 = vadd.f32 0.0, %v558
  %v560 = vpop.f32.mrb[0].mxu0
  %561 = vmatprep.mubr.bf16.mxu0 0
  %562 = vmatmul.mubr.bf16.gmra.mrb[0].mxu0 %v513
  %v563 = vpop.f32.mrb[0].mxu0
  %v564 = vadd.f32 0.0, %v563
  %v565 = vpop.f32.mrb[0].mxu0
  %v566 = vpop.f32.mrb[0].mxu0
  %v567 = vadd.f32 0.0, %v566
  %v568 = vpop.f32.mrb[0].mxu0
  %569 = vmatprep.mubr.bf16.mxu0 0
  %570 = vmatmul.mubr.bf16.gmra.mrb[0].mxu0 %v516
  %v571 = vpop.f32.mrb[0].mxu0
  %v572 = vadd.f32 0.0, %v571
  %v573 = vpop.f32.mrb[0].mxu0
  %v574 = vpop.f32.mrb[0].mxu0
  %v575 = vadd.f32 0.0, %v574
  %v576 = vpop.f32.mrb[0].mxu0
  %577 = vmatprep.mubr.bf16.mxu0 0
  %578 = vmatmul.mubr.bf16.gmra.mrb[0].mxu0 %v519
  %v579 = vpop.f32.mrb[0].mxu0
  %v580 = vadd.f32 0.0, %v579
  %v581 = vpop.f32.mrb[0].mxu0
  %v582 = vpop.f32.mrb[0].mxu0
  %v583 = vadd.f32 0.0, %v582
  %v584 = vpop.f32.mrb[0].mxu0
  %585 = vdwg.mxu0
  %v586 = vadd.f32 %v454, %v556
  %v587 = vadd.f32 %v455, %v559
  %v588 = vadd.f32 %v456, %v564
  %v589 = vadd.f32 %v457, %v567
  %v590 = vadd.f32 %v458, %v572
  %v591 = vadd.f32 %v459, %v575
  %v592 = vadd.f32 %v460, %v580
  %v593 = vadd.f32 %v461, %v583
  %v594 = vld [vmem:[%s2] sm:$0xff]
  %v595 = vld [vmem:[%s2 + $0x8] sm:$0xff]
  %v596 = vld [vmem:[%s2 + $0x10] sm:$0xff]
  %v597 = vld [vmem:[%s2 + $0x18] sm:$0xff]
  %v598 = vld [vmem:[%s2 + $0x20] sm:$0xff]
  %v599 = vld [vmem:[%s2 + $0x28] sm:$0xff]
  %v600 = vld [vmem:[%s2 + $0x30] sm:$0xff]
  %v601 = vld [vmem:[%s2 + $0x38] sm:$0xff]
  %603 = vset.pattern.permute.xlu0 0
  %604 = vperm.xlu0 %603, %v594
  %v605 = vpop.permute.xlu0 %604
  %608 = vset.pattern.permute.xlu0 0
  %609 = vperm.xlu0 %608, %v595
  %v610 = vpop.permute.xlu0 %609
  %613 = vset.pattern.permute.xlu0 0
  %614 = vperm.xlu0 %613, %v596
  %v615 = vpop.permute.xlu0 %614
  %618 = vset.pattern.permute.xlu0 0
  %619 = vperm.xlu0 %618, %v597
  %v620 = vpop.permute.xlu0 %619
  %623 = vset.pattern.permute.xlu0 0
  %624 = vperm.xlu0 %623, %v598
  %v625 = vpop.permute.xlu0 %624
  %628 = vset.pattern.permute.xlu0 0
  %629 = vperm.xlu0 %628, %v599
  %v630 = vpop.permute.xlu0 %629
  %633 = vset.pattern.permute.xlu0 0
  %634 = vperm.xlu0 %633, %v600
  %v635 = vpop.permute.xlu0 %634
  %638 = vset.pattern.permute.xlu0 0
  %639 = vperm.xlu0 %638, %v601
  %v640 = vpop.permute.xlu0 %639
  %v642 = vmul.f32 %v586, %v605
  %v643 = vmul.f32 %v587, %v610
  %v644 = vmul.f32 %v588, %v615
  %v645 = vmul.f32 %v589, %v620
  %v646 = vmul.f32 %v590, %v625
  %v647 = vmul.f32 %v591, %v630
  %v648 = vmul.f32 %v592, %v635
  %v649 = vmul.f32 %v593, %v640
  %v650 = vadd.f32 %v642, %v643
  %v651 = vadd.f32 %v650, %v644
  %v652 = vadd.f32 %v651, %v645
  %v653 = vadd.f32 %v652, %v646
  %v654 = vadd.f32 %v653, %v647
  %v655 = vadd.f32 %v654, %v648
  %v656 = vadd.f32 %v655, %v649
  %v657 = vrot.slane %v656, 4
  %v658 = vadd.f32 %v656, %v657
  %v659 = vrot.slane %v658, 2
  %v660 = vadd.f32 %v658, %v659
  %v661 = vrot.slane %v660, 1
  %v662 = vadd.f32 %v660, %v661
  %v663 = vmul.f32 %v662, 0.03125
  %v664 = vsub.f32 %v586, %v663
  %v665 = vsub.f32 %v587, %v663
  %v666 = vsub.f32 %v588, %v663
  %v667 = vsub.f32 %v589, %v663
  %v668 = vsub.f32 %v590, %v663
  %v669 = vsub.f32 %v591, %v663
  %v670 = vsub.f32 %v592, %v663
  %v671 = vsub.f32 %v593, %v663
  %v672 = vmul.f32 %v664, %v664
  %v673 = vmul.f32 %v665, %v665
  %v674 = vmul.f32 %v666, %v666
  %v675 = vmul.f32 %v667, %v667
  %v676 = vmul.f32 %v668, %v668
  %v677 = vmul.f32 %v669, %v669
  %v678 = vmul.f32 %v670, %v670
  %v679 = vmul.f32 %v671, %v671
  %v680 = vmul.f32 %v672, %v605
  %v681 = vmul.f32 %v673, %v610
  %v682 = vmul.f32 %v674, %v615
  %v683 = vmul.f32 %v675, %v620
  %v684 = vmul.f32 %v676, %v625
  %v685 = vmul.f32 %v677, %v630
  %v686 = vmul.f32 %v678, %v635
  %v687 = vmul.f32 %v679, %v640
  %v688 = vadd.f32 %v680, %v681
  %v689 = vadd.f32 %v688, %v682
  %v690 = vadd.f32 %v689, %v683
  %v691 = vadd.f32 %v690, %v684
  %v692 = vadd.f32 %v691, %v685
  %v693 = vadd.f32 %v692, %v686
  %v694 = vadd.f32 %v693, %v687
  %v695 = vrot.slane %v694, 4
  %v696 = vadd.f32 %v694, %v695
  %v697 = vrot.slane %v696, 2
  %v698 = vadd.f32 %v696, %v697
  %v699 = vrot.slane %v698, 1
  %v700 = vadd.f32 %v698, %v699
  %v701 = vmul.f32 %v700, 0.03125
  %v702 = vld [vmem:[%s3] sm:$0x1]
  %v703 = vadd.f32 %v701, 1e-05
  %v704 = vrsqrt.pop %v703
  %v705 = vmul.f32 %v702, %v704
  %v707 = vlaneseq
  %v708 = vshrl.u32 %v707, 7
  %v709 = vsub.s32 0, %v708
  %v710 = vrot.slane %v705, %v709
  %v712 = vmul.f32 %v664, %v710
  %v713 = vmul.f32 %v665, %v710
  %v714 = vmul.f32 %v666, %v710
  %v715 = vmul.f32 %v667, %v710
  %v716 = vmul.f32 %v668, %v710
  %v717 = vmul.f32 %v669, %v710
  %v718 = vmul.f32 %v670, %v710
  %v719 = vmul.f32 %v671, %v710
  %v720 = vld [vmem:[%s4] sm:$0x1]
  %v722 = vlaneseq
  %v723 = vshrl.u32 %v722, 7
  %v724 = vsub.s32 0, %v723
  %v725 = vrot.slane %v720, %v724
  %v727 = vadd.f32 %v712, %v725
  %v728 = vadd.f32 %v713, %v725
  %v729 = vadd.f32 %v714, %v725
  %v730 = vadd.f32 %v715, %v725
  %v731 = vadd.f32 %v716, %v725
  %v732 = vadd.f32 %v717, %v725
  %v733 = vadd.f32 %v718, %v725
  %v734 = vadd.f32 %v719, %v725
  %vm735 = vcmp.ge.f32.partialorder %v727, 0.0
  %vm736 = vcmp.ge.f32.partialorder %v728, 0.0
  %vm737 = vcmp.ge.f32.partialorder %v729, 0.0
  %vm738 = vcmp.ge.f32.partialorder %v730, 0.0
  %vm739 = vcmp.ge.f32.partialorder %v731, 0.0
  %vm740 = vcmp.ge.f32.partialorder %v732, 0.0
  %vm741 = vcmp.ge.f32.partialorder %v733, 0.0
  %vm742 = vcmp.ge.f32.partialorder %v734, 0.0
  %v743 = vmul.f32 %v727, 0.2
  %v744 = vmul.f32 %v728, 0.2
  %v745 = vmul.f32 %v729, 0.2
  %v746 = vmul.f32 %v730, 0.2
  %v747 = vmul.f32 %v731, 0.2
  %v748 = vmul.f32 %v732, 0.2
  %v749 = vmul.f32 %v733, 0.2
  %v750 = vmul.f32 %v734, 0.2
  %v751 = vsel %vm735, %v727, %v743
  %v752 = vsel %vm736, %v728, %v744
  %v753 = vsel %vm737, %v729, %v745
  %v754 = vsel %vm738, %v730, %v746
  %v755 = vsel %vm739, %v731, %v747
  %v756 = vsel %vm740, %v732, %v748
  %v757 = vsel %vm741, %v733, %v749
  %v758 = vsel %vm742, %v734, %v750
  %v759 = vpack.c.bf16 %v752, %v751
  %v760 = vpack.c.bf16 %v754, %v753
  %v761 = vpack.c.bf16 %v756, %v755
  %v762 = vpack.c.bf16 %v758, %v757
  %v767 = vunpack.c.l.b16 %v759
  %v768 = vunpack.c.h.b16 %v759
  %v769 = vunpack.c.l.b16 %v760
  %v770 = vunpack.c.h.b16 %v760
  %v771 = vunpack.c.l.b16 %v761
  %v772 = vunpack.c.h.b16 %v761
  %v773 = vunpack.c.l.b16 %v762
  %v774 = vunpack.c.h.b16 %v762
  %v775 = vpack.c.b16 %v767, %v767
  %v776 = vpack.c.b16 %v768, %v768
  %v777 = vpack.c.b16 %v769, %v769
  %v778 = vpack.c.b16 %v770, %v770
  %v779 = vpack.c.b16 %v771, %v771
  %v780 = vpack.c.b16 %v772, %v772
  %v781 = vpack.c.b16 %v773, %v773
  %v782 = vpack.c.b16 %v774, %v774
  %791 = vst [vmem:[%s5] sm:$0xf] %v775
  %792 = vst [vmem:[%s5 + $0x4] sm:$0xf] %v776
  %793 = vst [vmem:[%s5 + $0x8] sm:$0xf] %v777
  %794 = vst [vmem:[%s5 + $0xc] sm:$0xf] %v778
  %795 = vst [vmem:[%s5 + $0x10] sm:$0xf] %v779
  %796 = vst [vmem:[%s5 + $0x14] sm:$0xf] %v780
  %797 = vst [vmem:[%s5 + $0x18] sm:$0xf] %v781
  %798 = vst [vmem:[%s5 + $0x1c] sm:$0xf] %v782
  // Predicated region
  $region22: #{forward.7} parent=0 // pred_check
    _
  $region23: #{forward.7} parent=0 // pred_check_branch
    %800 = sbr.rel (0) target = $region25
  $region24: #{forward.7} parent=0 // pred_region
    _
  $region25: #{forward.7} parent=0 // pred_fallthru
    _
  // Predicated region
  $region26: #{forward.7} parent=0 // pred_check
    _
  $region27: #{forward.7} parent=0 // pred_check_branch
    %802 = sbr.rel (0) target = $region29
  $region28: #{forward.7} parent=0 // pred_region
    _
  $region29: #{forward.7} parent=0 // pred_fallthru
    _

// kernel: forward.8
$region0: #{forward.8}
  #allocation0 [shape = 'u32[]', space=smem, size = 0x4, offset = 0x4, fixed_abs, tag = 'smem constant byte address 0x4 - core index']
  #allocation1 [shape = 'u32[144,128]{1,0:T(1,128)}', space=vmem, size = 0x12000, scoped, tag = 'internal scratch']
  %s0 = inlined_call_operand.vmem [shape: bf16[104,32], index: 0, kind: input, shape index: {}]
  %s1 = inlined_call_operand.vmem [shape: bf16[16,32,128], index: 1, kind: input, shape index: {}]
  %s2 = inlined_call_operand.vmem [shape: f32[80,1], index: 2, kind: input, shape index: {}]
  %s3 = inlined_call_operand.vmem [shape: f32[1,128], index: 3, kind: input, shape index: {}]
  %s4 = inlined_call_operand.vmem [shape: f32[1,128], index: 4, kind: input, shape index: {}]
  %s5 = inlined_call_operand.vmem [shape: bf16[80,128], index: 5, kind: output, shape index: {}]
  %s6 = sld [smem:[#allocation0]]
  $region30: #{forward.8} parent=0
    _
  %s8 = ssub.s32 1, %s6
  %s9 = scalar_select 0, %s8, %s6
  // Predicated region
  $region2: #{forward.8} parent=0 // pred_check
    _
  $region3: #{forward.8} parent=0 // pred_check_branch
    %11 = sbr.rel (0) target = $region5
  $region4: #{forward.8} parent=0 // pred_region
    _
  $region5: #{forward.8} parent=0 // pred_fallthru
    _
  // Predicated region
  $region6: #{forward.8} parent=0 // pred_check
    _
  $region7: #{forward.8} parent=0 // pred_check_branch
    %13 = sbr.rel (0) target = $region9
  $region8: #{forward.8} parent=0 // pred_region
    _
  $region9: #{forward.8} parent=0 // pred_fallthru
    _
  // Predicated region
  $region10: #{forward.8} parent=0 // pred_check
    _
  $region11: #{forward.8} parent=0 // pred_check_branch
    %15 = sbr.rel (0) target = $region13
  $region12: #{forward.8} parent=0 // pred_region
    _
  $region13: #{forward.8} parent=0 // pred_fallthru
    _
  // Predicated region
  $region14: #{forward.8} parent=0 // pred_check
    _
  $region15: #{forward.8} parent=0 // pred_check_branch
    %17 = sbr.rel (0) target = $region17
  $region16: #{forward.8} parent=0 // pred_region
    _
  $region17: #{forward.8} parent=0 // pred_fallthru
    _
  // Predicated region
  $region18: #{forward.8} parent=0 // pred_check
    _
  $region19: #{forward.8} parent=0 // pred_check_branch
    %19 = sbr.rel (0) target = $region21
  $region20: #{forward.8} parent=0 // pred_region
    _
  $region21: #{forward.8} parent=0 // pred_fallthru
    _
  %v21 = vld [vmem:[%s0] sm:$0xf]
  %v22 = vld [vmem:[%s0 + $0x4] sm:$0xf]
  %v23 = vld [vmem:[%s0 + $0x8] sm:$0xf]
  %v24 = vld [vmem:[%s0 + $0xc] sm:$0xf]
  %v25 = vld [vmem:[%s0 + $0x10] sm:$0xf]
  %v26 = vld [vmem:[%s0 + $0x14] sm:$0xf]
  %v27 = vld [vmem:[%s0 + $0x18] sm:$0xf]
  %v28 = vld [vmem:[%s0 + $0x1c] sm:$0xf]
  %v29 = vld [vmem:[%s0 + $0x20] sm:$0xf]
  %v30 = vld [vmem:[%s0 + $0x24] sm:$0xf]
  %v31 = vld [vmem:[%s1] sm:$0xf]
  %v32 = vld [vmem:[%s1 + $0x4] sm:$0xf]
  %v33 = vld [vmem:[%s1 + $0x8] sm:$0xf]
  %v34 = vld [vmem:[%s1 + $0xc] sm:$0xf]
  %v35 = vld [vmem:[%s0 + $0x28] sm:$0x1]
  %s36 = scalar_lea.vmem %s1, 16
  %v37 = vld [vmem:[%s36] sm:$0xf]
  %v38 = vld [vmem:[%s36 + $0x4] sm:$0xf]
  %v39 = vld [vmem:[%s36 + $0x8] sm:$0xf]
  %v40 = vld [vmem:[%s36 + $0xc] sm:$0xf]
  %v52 = vunpack.c.l.b16 %v21
  %v53 = vunpack.c.l.b16 %v22
  %v54 = vunpack.c.l.b16 %v23
  %v55 = vunpack.c.l.b16 %v24
  %v56 = vunpack.c.l.b16 %v25
  %v57 = vunpack.c.l.b16 %v26
  %v58 = vunpack.c.l.b16 %v27
  %v59 = vunpack.c.l.b16 %v28
  %v60 = vunpack.c.l.b16 %v29
  %v61 = vunpack.c.l.b16 %v30
  %v62 = vunpack.c.l.b16 %v35
  %v63 = vpack.c.b16 %v53, %v52
  %v64 = vpack.c.b16 %v55, %v54
  %v65 = vpack.c.b16 %v57, %v56
  %v66 = vpack.c.b16 %v59, %v58
  %v67 = vpack.c.b16 %v61, %v60
  %v68 = vpack.c.b16 %v62, %v62
  %vm69 = vsmask.f32 7424
  %v71 = vshrl.u32 %v63, 16
  %v73 = vshll.u32 %v63, 16
  %v75 = vrot.slane %v73, 1
  %v76 = vor.u32 %v71, %v75
  %v78 = vshll.u32 %v64, 16
  %v80 = vrot.slane %v78, 1
  %v81 = vsel %vm69, %v76, %v80
  %v82 = vshrl.u32 %v64, 16
  %v84 = vor.u32 %v82, %v80
  %v86 = vshll.u32 %v65, 16
  %v88 = vrot.slane %v86, 1
  %v89 = vsel %vm69, %v84, %v88
  %v90 = vshrl.u32 %v65, 16
  %v92 = vor.u32 %v90, %v88
  %v94 = vshll.u32 %v66, 16
  %v96 = vrot.slane %v94, 1
  %v97 = vsel %vm69, %v92, %v96
  %v98 = vshrl.u32 %v66, 16
  %v100 = vor.u32 %v98, %v96
  %v102 = vshll.u32 %v67, 16
  %v104 = vrot.slane %v102, 1
  %v105 = vsel %vm69, %v100, %v104
  %v106 = vshrl.u32 %v67, 16
  %v108 = vor.u32 %v106, %v104
  %v110 = vshll.u32 %v68, 16
  %v112 = vrot.slane %v110, 1
  %v113 = vsel %vm69, %v108, %v112
  %v118 = vunpack.c.l.b16 %v37
  %v119 = vunpack.c.l.b16 %v38
  %v120 = vunpack.c.l.b16 %v39
  %v121 = vunpack.c.l.b16 %v40
  %v122 = vpack.c.b16 %v119, %v118
  %v123 = vpack.c.b16 %v121, %v120
  %vm126 = vcmask 261120
  %v128 = vsel %vm126, %v81, 0
  %v131 = vsel %vm126, %v89, 0
  %v134 = vsel %vm126, %v97, 0
  %v137 = vsel %vm126, %v105, 0
  %v140 = vsel %vm126, %v113, 0
  %142 = vmatprep.subr.bf16.mxu0 0
  %143 = vmatpush1.bf16.msra.mxu0 %v122
  %144 = vmatprep.subr.bf16.mxu0 0
  %145 = vmatpush1.bf16.msra.mxu0 %v123
  %146 = vmatprep.subr.bf16.mxu0 0
  %147 = vmatpush1.bf16.msra.mxu0 0
  %148 = vmatprep.subr.bf16.mxu0 0
  %149 = vmatpush1.bf16.msra.mxu0 0
  %150 = vmatprep.subr.bf16.mxu0 0
  %151 = vmatpush1.bf16.msra.mxu0 0
  %152 = vmatprep.subr.bf16.mxu0 0
  %153 = vmatpush1.bf16.msra.mxu0 0
  %154 = vmatprep.subr.bf16.mxu0 0
  %155 = vmatpush1.bf16.msra.mxu0 0
  %156 = vmatprep.subr.bf16.mxu0 0
  %157 = vmatpush1.bf16.msra.mxu0 0
  %158 = vmatprep.subr.bf16.mxu0 0
  %159 = vmatpush1.bf16.msra.mxu0 0
  %160 = vmatprep.subr.bf16.mxu0 0
  %161 = vmatpush1.bf16.msra.mxu0 0
  %162 = vmatprep.subr.bf16.mxu0 0
  %163 = vmatpush1.bf16.msra.mxu0 0
  %164 = vmatprep.subr.bf16.mxu0 0
  %165 = vmatpush1.bf16.msra.mxu0 0
  %166 = vmatprep.subr.bf16.mxu0 0
  %167 = vmatpush1.bf16.msra.mxu0 0
  %168 = vmatprep.subr.bf16.mxu0 0
  %169 = vmatpush1.bf16.msra.mxu0 0
  %170 = vmatprep.subr.bf16.mxu0 0
  %171 = vmatpush1.bf16.msra.mxu0 0
  %172 = vmatprep.subr.bf16.mxu0 0
  %173 = vmatpush1.bf16.msra.mxu0 0
  %174 = vmatprep.mubr.bf16.mxu0 0
  %175 = vmatmul.mubr.bf16.gmra.mrb[0].mxu0 %v128
  %v176 = vpop.f32.mrb[0].mxu0
  %v177 = vadd.f32 0.0, %v176
  %v178 = vpop.f32.mrb[0].mxu0
  %v179 = vpop.f32.mrb[0].mxu0
  %v180 = vadd.f32 0.0, %v179
  %v181 = vpop.f32.mrb[0].mxu0
  %182 = vmatprep.mubr.bf16.mxu0 0
  %183 = vmatmul.mubr.bf16.gmra.mrb[0].mxu0 %v131
  %v184 = vpop.f32.mrb[0].mxu0
  %v185 = vadd.f32 0.0, %v184
  %v186 = vpop.f32.mrb[0].mxu0
  %v187 = vpop.f32.mrb[0].mxu0
  %v188 = vadd.f32 0.0, %v187
  %v189 = vpop.f32.mrb[0].mxu0
  %190 = vmatprep.mubr.bf16.mxu0 0
  %191 = vmatmul.mubr.bf16.gmra.mrb[0].mxu0 %v134
  %v192 = vpop.f32.mrb[0].mxu0
  %v193 = vadd.f32 0.0, %v192
  %v194 = vpop.f32.mrb[0].mxu0
  %v195 = vpop.f32.mrb[0].mxu0
  %v196 = vadd.f32 0.0, %v195
  %v197 = vpop.f32.mrb[0].mxu0
  %198 = vmatprep.mubr.bf16.mxu0 0
  %199 = vmatmul.mubr.bf16.gmra.mrb[0].mxu0 %v137
  %v200 = vpop.f32.mrb[0].mxu0
  %v201 = vadd.f32 0.0, %v200
  %v202 = vpop.f32.mrb[0].mxu0
  %v203 = vpop.f32.mrb[0].mxu0
  %v204 = vadd.f32 0.0, %v203
  %v205 = vpop.f32.mrb[0].mxu0
  %206 = vmatprep.mubr.bf16.mxu0 0
  %207 = vmatmul.mubr.bf16.gmra.mrb[0].mxu0 %v140
  %v208 = vpop.f32.mrb[0].mxu0
  %v209 = vadd.f32 0.0, %v208
  %v210 = vpop.f32.mrb[0].mxu0
  %v211 = vpop.f32.mrb[0].mxu0
  %v212 = vadd.f32 0.0, %v211
  %v213 = vpop.f32.mrb[0].mxu0
  %214 = vdwg.mxu0
  %v219 = vunpack.c.l.b16 %v31
  %v220 = vunpack.c.l.b16 %v32
  %v221 = vunpack.c.l.b16 %v33
  %v222 = vunpack.c.l.b16 %v34
  %v223 = vpack.c.b16 %v220, %v219
  %v224 = vpack.c.b16 %v222, %v221
  %v227 = vsel %vm126, %v63, 0
  %v229 = vsel %vm126, %v64, 0
  %v231 = vsel %vm126, %v65, 0
  %v233 = vsel %vm126, %v66, 0
  %v235 = vsel %vm126, %v67, 0
  %237 = vmatprep.subr.bf16.mxu0 0
  %238 = vmatpush1.bf16.msra.mxu0 %v223
  %239 = vmatprep.subr.bf16.mxu0 0
  %240 = vmatpush1.bf16.msra.mxu0 %v224
  %241 = vmatprep.subr.bf16.mxu0 0
  %242 = vmatpush1.bf16.msra.mxu0 0
  %243 = vmatprep.subr.bf16.mxu0 0
  %244 = vmatpush1.bf16.msra.mxu0 0
  %245 = vmatprep.subr.bf16.mxu0 0
  %246 = vmatpush1.bf16.msra.mxu0 0
  %247 = vmatprep.subr.bf16.mxu0 0
  %248 = vmatpush1.bf16.msra.mxu0 0
  %249 = vmatprep.subr.bf16.mxu0 0
  %250 = vmatpush1.bf16.msra.mxu0 0
  %251 = vmatprep.subr.bf16.mxu0 0
  %252 = vmatpush1.bf16.msra.mxu0 0
  %253 = vmatprep.subr.bf16.mxu0 0
  %254 = vmatpush1.bf16.msra.mxu0 0
  %255 = vmatprep.subr.bf16.mxu0 0
  %256 = vmatpush1.bf16.msra.mxu0 0
  %257 = vmatprep.subr.bf16.mxu0 0
  %258 = vmatpush1.bf16.msra.mxu0 0
  %259 = vmatprep.subr.bf16.mxu0 0
  %260 = vmatpush1.bf16.msra.mxu0 0
  %261 = vmatprep.subr.bf16.mxu0 0
  %262 = vmatpush1.bf16.msra.mxu0 0
  %263 = vmatprep.subr.bf16.mxu0 0
  %264 = vmatpush1.bf16.msra.mxu0 0
  %265 = vmatprep.subr.bf16.mxu0 0
  %266 = vmatpush1.bf16.msra.mxu0 0
  %267 = vmatprep.subr.bf16.mxu0 0
  %268 = vmatpush1.bf16.msra.mxu0 0
  %269 = vmatprep.mubr.bf16.mxu0 0
  %270 = vmatmul.mubr.bf16.gmra.mrb[0].mxu0 %v227
  %v271 = vpop.f32.mrb[0].mxu0
  %v272 = vadd.f32 %v177, %v271
  %v273 = vpop.f32.mrb[0].mxu0
  %v274 = vpop.f32.mrb[0].mxu0
  %v275 = vadd.f32 %v180, %v274
  %v276 = vpop.f32.mrb[0].mxu0
  %277 = vmatprep.mubr.bf16.mxu0 0
  %278 = vmatmul.mubr.bf16.gmra.mrb[0].mxu0 %v229
  %v279 = vpop.f32.mrb[0].mxu0
  %v280 = vadd.f32 %v185, %v279
  %v281 = vpop.f32.mrb[0].mxu0
  %v282 = vpop.f32.mrb[0].mxu0
  %v283 = vadd.f32 %v188, %v282
  %v284 = vpop.f32.mrb[0].mxu0
  %285 = vmatprep.mubr.bf16.mxu0 0
  %286 = vmatmul.mubr.bf16.gmra.mrb[0].mxu0 %v231
  %v287 = vpop.f32.mrb[0].mxu0
  %v288 = vadd.f32 %v193, %v287
  %v289 = vpop.f32.mrb[0].mxu0
  %v290 = vpop.f32.mrb[0].mxu0
  %v291 = vadd.f32 %v196, %v290
  %v292 = vpop.f32.mrb[0].mxu0
  %293 = vmatprep.mubr.bf16.mxu0 0
  %294 = vmatmul.mubr.bf16.gmra.mrb[0].mxu0 %v233
  %v295 = vpop.f32.mrb[0].mxu0
  %v296 = vadd.f32 %v201, %v295
  %v297 = vpop.f32.mrb[0].mxu0
  %v298 = vpop.f32.mrb[0].mxu0
  %v299 = vadd.f32 %v204, %v298
  %v300 = vpop.f32.mrb[0].mxu0
  %301 = vmatprep.mubr.bf16.mxu0 0
  %302 = vmatmul.mubr.bf16.gmra.mrb[0].mxu0 %v235
  %v303 = vpop.f32.mrb[0].mxu0
  %v304 = vadd.f32 %v209, %v303
  %v305 = vpop.f32.mrb[0].mxu0
  %v306 = vpop.f32.mrb[0].mxu0
  %v307 = vadd.f32 %v212, %v306
  %v308 = vpop.f32.mrb[0].mxu0
  %309 = vdwg.mxu0
  %v310 = vld [vmem:[%s0] sm:$0xe]
  %s311 = scalar_lea.vmem %s1, 32
  %v312 = vld [vmem:[%s311] sm:$0xf]
  %v313 = vld [vmem:[%s311 + $0x4] sm:$0xf]
  %v314 = vld [vmem:[%s311 + $0x8] sm:$0xf]
  %v315 = vld [vmem:[%s311 + $0xc] sm:$0xf]
  %v317 = vunpack.c.l.b16 %v310
  %v318 = vpack.c.b16 %v53, %v317
  %vm319 = vcmask 1046528
  %v320 = vrot.slane %v318, 1
  %v321 = vrot.slane %v64, 1
  %v322 = vsel %vm319, %v320, %v321
  %v323 = vrot.slane %v65, 1
  %v324 = vsel %vm319, %v321, %v323
  %v325 = vrot.slane %v66, 1
  %v326 = vsel %vm319, %v323, %v325
  %v327 = vrot.slane %v67, 1
  %v328 = vsel %vm319, %v325, %v327
  %v329 = vrot.slane %v68, 1
  %v330 = vsel %vm319, %v327, %v329
  %v335 = vunpack.c.l.b16 %v312
  %v336 = vunpack.c.l.b16 %v313
  %v337 = vunpack.c.l.b16 %v314
  %v338 = vunpack.c.l.b16 %v315
  %v339 = vpack.c.b16 %v336, %v335
  %v340 = vpack.c.b16 %v338, %v337
  %v344 = vsel %vm126, %v322, 0
  %v347 = vsel %vm126, %v324, 0
  %v350 = vsel %vm126, %v326, 0
  %v353 = vsel %vm126, %v328, 0
  %v356 = vsel %vm126, %v330, 0
  %358 = vmatprep.subr.bf16.mxu0 0
  %359 = vmatpush1.bf16.msra.mxu0 %v339
  %360 = vmatprep.subr.bf16.mxu0 0
  %361 = vmatpush1.bf16.msra.mxu0 %v340
  %362 = vmatprep.subr.bf16.mxu0 0
  %363 = vmatpush1.bf16.msra.mxu0 0
  %364 = vmatprep.subr.bf16.mxu0 0
  %365 = vmatpush1.bf16.msra.mxu0 0
  %366 = vmatprep.subr.bf16.mxu0 0
  %367 = vmatpush1.bf16.msra.mxu0 0
  %368 = vmatprep.subr.bf16.mxu0 0
  %369 = vmatpush1.bf16.msra.mxu0 0
  %370 = vmatprep.subr.bf16.mxu0 0
  %371 = vmatpush1.bf16.msra.mxu0 0
  %372 = vmatprep.subr.bf16.mxu0 0
  %373 = vmatpush1.bf16.msra.mxu0 0
  %374 = vmatprep.subr.bf16.mxu0 0
  %375 = vmatpush1.bf16.msra.mxu0 0
  %376 = vmatprep.subr.bf16.mxu0 0
  %377 = vmatpush1.bf16.msra.mxu0 0
  %378 = vmatprep.subr.bf16.mxu0 0
  %379 = vmatpush1.bf16.msra.mxu0 0
  %380 = vmatprep.subr.bf16.mxu0 0
  %381 = vmatpush1.bf16.msra.mxu0 0
  %382 = vmatprep.subr.bf16.mxu0 0
  %383 = vmatpush1.bf16.msra.mxu0 0
  %384 = vmatprep.subr.bf16.mxu0 0
  %385 = vmatpush1.bf16.msra.mxu0 0
  %386 = vmatprep.subr.bf16.mxu0 0
  %387 = vmatpush1.bf16.msra.mxu0 0
  %388 = vmatprep.subr.bf16.mxu0 0
  %389 = vmatpush1.bf16.msra.mxu0 0
  %390 = vmatprep.mubr.bf16.mxu0 0
  %391 = vmatmul.mubr.bf16.gmra.mrb[0].mxu0 %v344
  %v392 = vpop.f32.mrb[0].mxu0
  %v393 = vadd.f32 0.0, %v392
  %v394 = vpop.f32.mrb[0].mxu0
  %v395 = vpop.f32.mrb[0].mxu0
  %v396 = vadd.f32 0.0, %v395
  %v397 = vpop.f32.mrb[0].mxu0
  %398 = vmatprep.mubr.bf16.mxu0 0
  %399 = vmatmul.mubr.bf16.gmra.mrb[0].mxu0 %v347
  %v400 = vpop.f32.mrb[0].mxu0
  %v401 = vadd.f32 0.0, %v400
  %v402 = vpop.f32.mrb[0].mxu0
  %v403 = vpop.f32.mrb[0].mxu0
  %v404 = vadd.f32 0.0, %v403
  %v405 = vpop.f32.mrb[0].mxu0
  %406 = vmatprep.mubr.bf16.mxu0 0
  %407 = vmatmul.mubr.bf16.gmra.mrb[0].mxu0 %v350
  %v408 = vpop.f32.mrb[0].mxu0
  %v409 = vadd.f32 0.0, %v408
  %v410 = vpop.f32.mrb[0].mxu0
  %v411 = vpop.f32.mrb[0].mxu0
  %v412 = vadd.f32 0.0, %v411
  %v413 = vpop.f32.mrb[0].mxu0
  %414 = vmatprep.mubr.bf16.mxu0 0
  %415 = vmatmul.mubr.bf16.gmra.mrb[0].mxu0 %v353
  %v416 = vpop.f32.mrb[0].mxu0
  %v417 = vadd.f32 0.0, %v416
  %v418 = vpop.f32.mrb[0].mxu0
  %v419 = vpop.f32.mrb[0].mxu0
  %v420 = vadd.f32 0.0, %v419
  %v421 = vpop.f32.mrb[0].mxu0
  %422 = vmatprep.mubr.bf16.mxu0 0
  %423 = vmatmul.mubr.bf16.gmra.mrb[0].mxu0 %v356
  %v424 = vpop.f32.mrb[0].mxu0
  %v425 = vadd.f32 0.0, %v424
  %v426 = vpop.f32.mrb[0].mxu0
  %v427 = vpop.f32.mrb[0].mxu0
  %v428 = vadd.f32 0.0, %v427
  %v429 = vpop.f32.mrb[0].mxu0
  %430 = vdwg.mxu0
  %v431 = vadd.f32 %v272, %v393
  %v432 = vadd.f32 %v275, %v396
  %v433 = vadd.f32 %v280, %v401
  %v434 = vadd.f32 %v283, %v404
  %v435 = vadd.f32 %v288, %v409
  %v436 = vadd.f32 %v291, %v412
  %v437 = vadd.f32 %v296, %v417
  %v438 = vadd.f32 %v299, %v420
  %v439 = vadd.f32 %v304, %v425
  %v440 = vadd.f32 %v307, %v428
  %v441 = vld [vmem:[%s0 + $0x28] sm:$0x3]
  %s442 = scalar_lea.vmem %s1, 48
  %v443 = vld [vmem:[%s442] sm:$0xf]
  %v444 = vld [vmem:[%s442 + $0x4] sm:$0xf]
  %v445 = vld [vmem:[%s442 + $0x8] sm:$0xf]
  %v446 = vld [vmem:[%s442 + $0xc] sm:$0xf]
  %v448 = vunpack.c.l.b16 %v441
  %v449 = vpack.c.b16 %v448, %v448
  %vm450 = vsmask.f32 6400
  %v452 = vshrl.u32 %v318, 16
  %v454 = vrot.slane %v452, 1
  %v455 = vshll.u32 %v318, 16
  %v457 = vrot.slane %v455, 2
  %v458 = vor.u32 %v454, %v457
  %v459 = vrot.slane %v82, 1
  %v460 = vrot.slane %v78, 2
  %v461 = vor.u32 %v459, %v460
  %v462 = vsel %vm450, %v458, %v461
  %v463 = vrot.slane %v90, 1
  %v464 = vrot.slane %v86, 2
  %v465 = vor.u32 %v463, %v464
  %v466 = vsel %vm450, %v461, %v465
  %v467 = vrot.slane %v98, 1
  %v468 = vrot.slane %v94, 2
  %v469 = vor.u32 %v467, %v468
  %v470 = vsel %vm450, %v465, %v469
  %v471 = vrot.slane %v106, 1
  %v472 = vrot.slane %v102, 2
  %v473 = vor.u32 %v471, %v472
  %v474 = vsel %vm450, %v469, %v473
  %v476 = vshrl.u32 %v449, 16
  %v478 = vrot.slane %v476, 1
  %v479 = vshll.u32 %v449, 16
  %v481 = vrot.slane %v479, 2
  %v482 = vor.u32 %v478, %v481
  %v483 = vsel %vm450, %v473, %v482
  %v488 = vunpack.c.l.b16 %v443
  %v489 = vunpack.c.l.b16 %v444
  %v490 = vunpack.c.l.b16 %v445
  %v491 = vunpack.c.l.b16 %v446
  %v492 = vpack.c.b16 %v489, %v488
  %v493 = vpack.c.b16 %v491, %v490
  %v497 = vsel %vm126, %v462, 0
  %v500 = vsel %vm126, %v466, 0
  %v503 = vsel %vm126, %v470, 0
  %v506 = vsel %vm126, %v474, 0
  %v509 = vsel %vm126, %v483, 0
  %511 = vmatprep.subr.bf16.mxu0 0
  %512 = vmatpush1.bf16.msra.mxu0 %v492
  %513 = vmatprep.subr.bf16.mxu0 0
  %514 = vmatpush1.bf16.msra.mxu0 %v493
  %515 = vmatprep.subr.bf16.mxu0 0
  %516 = vmatpush1.bf16.msra.mxu0 0
  %517 = vmatprep.subr.bf16.mxu0 0
  %518 = vmatpush1.bf16.msra.mxu0 0
  %519 = vmatprep.subr.bf16.mxu0 0
  %520 = vmatpush1.bf16.msra.mxu0 0
  %521 = vmatprep.subr.bf16.mxu0 0
  %522 = vmatpush1.bf16.msra.mxu0 0
  %523 = vmatprep.subr.bf16.mxu0 0
  %524 = vmatpush1.bf16.msra.mxu0 0
  %525 = vmatprep.subr.bf16.mxu0 0
  %526 = vmatpush1.bf16.msra.mxu0 0
  %527 = vmatprep.subr.bf16.mxu0 0
  %528 = vmatpush1.bf16.msra.mxu0 0
  %529 = vmatprep.subr.bf16.mxu0 0
  %530 = vmatpush1.bf16.msra.mxu0 0
  %531 = vmatprep.subr.bf16.mxu0 0
  %532 = vmatpush1.bf16.msra.mxu0 0
  %533 = vmatprep.subr.bf16.mxu0 0
  %534 = vmatpush1.bf16.msra.mxu0 0
  %535 = vmatprep.subr.bf16.mxu0 0
  %536 = vmatpush1.bf16.msra.mxu0 0
  %537 = vmatprep.subr.bf16.mxu0 0
  %538 = vmatpush1.bf16.msra.mxu0 0
  %539 = vmatprep.subr.bf16.mxu0 0
  %540 = vmatpush1.bf16.msra.mxu0 0
  %541 = vmatprep.subr.bf16.mxu0 0
  %542 = vmatpush1.bf16.msra.mxu0 0
  %543 = vmatprep.mubr.bf16.mxu0 0
  %544 = vmatmul.mubr.bf16.gmra.mrb[0].mxu0 %v497
  %v545 = vpop.f32.mrb[0].mxu0
  %v546 = vadd.f32 0.0, %v545
  %v547 = vpop.f32.mrb[0].mxu0
  %v548 = vpop.f32.mrb[0].mxu0
  %v549 = vadd.f32 0.0, %v548
  %v550 = vpop.f32.mrb[0].mxu0
  %551 = vmatprep.mubr.bf16.mxu0 0
  %552 = vmatmul.mubr.bf16.gmra.mrb[0].mxu0 %v500
  %v553 = vpop.f32.mrb[0].mxu0
  %v554 = vadd.f32 0.0, %v553
  %v555 = vpop.f32.mrb[0].mxu0
  %v556 = vpop.f32.mrb[0].mxu0
  %v557 = vadd.f32 0.0, %v556
  %v558 = vpop.f32.mrb[0].mxu0
  %559 = vmatprep.mubr.bf16.mxu0 0
  %560 = vmatmul.mubr.bf16.gmra.mrb[0].mxu0 %v503
  %v561 = vpop.f32.mrb[0].mxu0
  %v562 = vadd.f32 0.0, %v561
  %v563 = vpop.f32.mrb[0].mxu0
  %v564 = vpop.f32.mrb[0].mxu0
  %v565 = vadd.f32 0.0, %v564
  %v566 = vpop.f32.mrb[0].mxu0
  %567 = vmatprep.mubr.bf16.mxu0 0
  %568 = vmatmul.mubr.bf16.gmra.mrb[0].mxu0 %v506
  %v569 = vpop.f32.mrb[0].mxu0
  %v570 = vadd.f32 0.0, %v569
  %v571 = vpop.f32.mrb[0].mxu0
  %v572 = vpop.f32.mrb[0].mxu0
  %v573 = vadd.f32 0.0, %v572
  %v574 = vpop.f32.mrb[0].mxu0
  %575 = vmatprep.mubr.bf16.mxu0 0
  %576 = vmatmul.mubr.bf16.gmra.mrb[0].mxu0 %v509
  %v577 = vpop.f32.mrb[0].mxu0
  %v578 = vadd.f32 0.0, %v577
  %v579 = vpop.f32.mrb[0].mxu0
  %v580 = vpop.f32.mrb[0].mxu0
  %v581 = vadd.f32 0.0, %v580
  %v582 = vpop.f32.mrb[0].mxu0
  %583 = vdwg.mxu0
  %v584 = vadd.f32 %v431, %v546
  %v585 = vadd.f32 %v432, %v549
  %v586 = vadd.f32 %v433, %v554
  %v587 = vadd.f32 %v434, %v557
  %v588 = vadd.f32 %v435, %v562
  %v589 = vadd.f32 %v436, %v565
  %v590 = vadd.f32 %v437, %v570
  %v591 = vadd.f32 %v438, %v573
  %v592 = vadd.f32 %v439, %v578
  %v593 = vadd.f32 %v440, %v581
  %v594 = vld [vmem:[%s0] sm:$0x8]
  %v595 = vld [vmem:[%s0 + $0x28] sm:$0x7]
  %s596 = scalar_lea.vmem %s1, 64
  %v597 = vld [vmem:[%s596] sm:$0xf]
  %v598 = vld [vmem:[%s596 + $0x4] sm:$0xf]
  %v599 = vld [vmem:[%s596 + $0x8] sm:$0xf]
  %v600 = vld [vmem:[%s596 + $0xc] sm:$0xf]
  %v603 = vunpack.c.l.b16 %v594
  %v604 = vunpack.c.l.b16 %v595
  %v605 = vpack.c.b16 %v53, %v603
  %v606 = vpack.c.b16 %v604, %v604
  %vm607 = vcmask 1044480
  %v608 = vrot.slane %v605, 3
  %v609 = vrot.slane %v64, 3
  %v610 = vsel %vm607, %v608, %v609
  %v611 = vrot.slane %v65, 3
  %v612 = vsel %vm607, %v609, %v611
  %v613 = vrot.slane %v66, 3
  %v614 = vsel %vm607, %v611, %v613
  %v615 = vrot.slane %v67, 3
  %v616 = vsel %vm607, %v613, %v615
  %v617 = vrot.slane %v606, 3
  %v618 = vsel %vm607, %v615, %v617
  %v623 = vunpack.c.l.b16 %v597
  %v624 = vunpack.c.l.b16 %v598
  %v625 = vunpack.c.l.b16 %v599
  %v626 = vunpack.c.l.b16 %v600
  %v627 = vpack.c.b16 %v624, %v623
  %v628 = vpack.c.b16 %v626, %v625
  %v632 = vsel %vm126, %v610, 0
  %v635 = vsel %vm126, %v612, 0
  %v638 = vsel %vm126, %v614, 0
  %v641 = vsel %vm126, %v616, 0
  %v644 = vsel %vm126, %v618, 0
  %646 = vmatprep.subr.bf16.mxu0 0
  %647 = vmatpush1.bf16.msra.mxu0 %v627
  %648 = vmatprep.subr.bf16.mxu0 0
  %649 = vmatpush1.bf16.msra.mxu0 %v628
  %650 = vmatprep.subr.bf16.mxu0 0
  %651 = vmatpush1.bf16.msra.mxu0 0
  %652 = vmatprep.subr.bf16.mxu0 0
  %653 = vmatpush1.bf16.msra.mxu0 0
  %654 = vmatprep.subr.bf16.mxu0 0
  %655 = vmatpush1.bf16.msra.mxu0 0
  %656 = vmatprep.subr.bf16.mxu0 0
  %657 = vmatpush1.bf16.msra.mxu0 0
  %658 = vmatprep.subr.bf16.mxu0 0
  %659 = vmatpush1.bf16.msra.mxu0 0
  %660 = vmatprep.subr.bf16.mxu0 0
  %661 = vmatpush1.bf16.msra.mxu0 0
  %662 = vmatprep.subr.bf16.mxu0 0
  %663 = vmatpush1.bf16.msra.mxu0 0
  %664 = vmatprep.subr.bf16.mxu0 0
  %665 = vmatpush1.bf16.msra.mxu0 0
  %666 = vmatprep.subr.bf16.mxu0 0
  %667 = vmatpush1.bf16.msra.mxu0 0
  %668 = vmatprep.subr.bf16.mxu0 0
  %669 = vmatpush1.bf16.msra.mxu0 0
  %670 = vmatprep.subr.bf16.mxu0 0
  %671 = vmatpush1.bf16.msra.mxu0 0
  %672 = vmatprep.subr.bf16.mxu0 0
  %673 = vmatpush1.bf16.msra.mxu0 0
  %674 = vmatprep.subr.bf16.mxu0 0
  %675 = vmatpush1.bf16.msra.mxu0 0
  %676 = vmatprep.subr.bf16.mxu0 0
  %677 = vmatpush1.bf16.msra.mxu0 0
  %678 = vmatprep.mubr.bf16.mxu0 0
  %679 = vmatmul.mubr.bf16.gmra.mrb[0].mxu0 %v632
  %v680 = vpop.f32.mrb[0].mxu0
  %v681 = vadd.f32 0.0, %v680
  %v682 = vpop.f32.mrb[0].mxu0
  %v683 = vpop.f32.mrb[0].mxu0
  %v684 = vadd.f32 0.0, %v683
  %v685 = vpop.f32.mrb[0].mxu0
  %686 = vmatprep.mubr.bf16.mxu0 0
  %687 = vmatmul.mubr.bf16.gmra.mrb[0].mxu0 %v635
  %v688 = vpop.f32.mrb[0].mxu0
  %v689 = vadd.f32 0.0, %v688
  %v690 = vpop.f32.mrb[0].mxu0
  %v691 = vpop.f32.mrb[0].mxu0
  %v692 = vadd.f32 0.0, %v691
  %v693 = vpop.f32.mrb[0].mxu0
  %694 = vmatprep.mubr.bf16.mxu0 0
  %695 = vmatmul.mubr.bf16.gmra.mrb[0].mxu0 %v638
  %v696 = vpop.f32.mrb[0].mxu0
  %v697 = vadd.f32 0.0, %v696
  %v698 = vpop.f32.mrb[0].mxu0
  %v699 = vpop.f32.mrb[0].mxu0
  %v700 = vadd.f32 0.0, %v699
  %v701 = vpop.f32.mrb[0].mxu0
  %702 = vmatprep.mubr.bf16.mxu0 0
  %703 = vmatmul.mubr.bf16.gmra.mrb[0].mxu0 %v641
  %v704 = vpop.f32.mrb[0].mxu0
  %v705 = vadd.f32 0.0, %v704
  %v706 = vpop.f32.mrb[0].mxu0
  %v707 = vpop.f32.mrb[0].mxu0
  %v708 = vadd.f32 0.0, %v707
  %v709 = vpop.f32.mrb[0].mxu0
  %710 = vmatprep.mubr.bf16.mxu0 0
  %711 = vmatmul.mubr.bf16.gmra.mrb[0].mxu0 %v644
  %v712 = vpop.f32.mrb[0].mxu0
  %v713 = vadd.f32 0.0, %v712
  %v714 = vpop.f32.mrb[0].mxu0
  %v715 = vpop.f32.mrb[0].mxu0
  %v716 = vadd.f32 0.0, %v715
  %v717 = vpop.f32.mrb[0].mxu0
  %718 = vdwg.mxu0
  %v719 = vadd.f32 %v584, %v681
  %v720 = vadd.f32 %v585, %v684
  %v721 = vadd.f32 %v586, %v689
  %v722 = vadd.f32 %v587, %v692
  %v723 = vadd.f32 %v588, %v697
  %v724 = vadd.f32 %v589, %v700
  %v725 = vadd.f32 %v590, %v705
  %v726 = vadd.f32 %v591, %v708
  %v727 = vadd.f32 %v592, %v713
  %v728 = vadd.f32 %v593, %v716
  %v729 = vld [vmem:[%s0 + $0x28] sm:$0xf]
  %s730 = scalar_lea.vmem %s1, 80
  %v731 = vld [vmem:[%s730] sm:$0xf]
  %v732 = vld [vmem:[%s730 + $0x4] sm:$0xf]
  %v733 = vld [vmem:[%s730 + $0x8] sm:$0xf]
  %v734 = vld [vmem:[%s730 + $0xc] sm:$0xf]
  %v736 = vunpack.c.l.b16 %v729
  %v737 = vpack.c.b16 %v736, %v736
  %vm738 = vsmask.f32 4352
  %v740 = vshrl.u32 %v605, 16
  %v742 = vrot.slane %v740, 3
  %v743 = vshll.u32 %v605, 16
  %v745 = vrot.slane %v743, 4
  %v746 = vor.u32 %v742, %v745
  %v747 = vrot.slane %v82, 3
  %v748 = vrot.slane %v78, 4
  %v749 = vor.u32 %v747, %v748
  %v750 = vsel %vm738, %v746, %v749
  %v751 = vrot.slane %v90, 3
  %v752 = vrot.slane %v86, 4
  %v753 = vor.u32 %v751, %v752
  %v754 = vsel %vm738, %v749, %v753
  %v755 = vrot.slane %v98, 3
  %v756 = vrot.slane %v94, 4
  %v757 = vor.u32 %v755, %v756
  %v758 = vsel %vm738, %v753, %v757
  %v759 = vrot.slane %v106, 3
  %v760 = vrot.slane %v102, 4
  %v761 = vor.u32 %v759, %v760
  %v762 = vsel %vm738, %v757, %v761
  %v764 = vshrl.u32 %v737, 16
  %v766 = vrot.slane %v764, 3
  %v767 = vshll.u32 %v737, 16
  %v769 = vrot.slane %v767, 4
  %v770 = vor.u32 %v766, %v769
  %v771 = vsel %vm738, %v761, %v770
  %v776 = vunpack.c.l.b16 %v731
  %v777 = vunpack.c.l.b16 %v732
  %v778 = vunpack.c.l.b16 %v733
  %v779 = vunpack.c.l.b16 %v734
  %v780 = vpack.c.b16 %v777, %v776
  %v781 = vpack.c.b16 %v779, %v778
  %v785 = vsel %vm126, %v750, 0
  %v788 = vsel %vm126, %v754, 0
  %v791 = vsel %vm126, %v758, 0
  %v794 = vsel %vm126, %v762, 0
  %v797 = vsel %vm126, %v771, 0
  %799 = vmatprep.subr.bf16.mxu0 0
  %800 = vmatpush1.bf16.msra.mxu0 %v780
  %801 = vmatprep.subr.bf16.mxu0 0
  %802 = vmatpush1.bf16.msra.mxu0 %v781
  %803 = vmatprep.subr.bf16.mxu0 0
  %804 = vmatpush1.bf16.msra.mxu0 0
  %805 = vmatprep.subr.bf16.mxu0 0
  %806 = vmatpush1.bf16.msra.mxu0 0
  %807 = vmatprep.subr.bf16.mxu0 0
  %808 = vmatpush1.bf16.msra.mxu0 0
  %809 = vmatprep.subr.bf16.mxu0 0
  %810 = vmatpush1.bf16.msra.mxu0 0
  %811 = vmatprep.subr.bf16.mxu0 0
  %812 = vmatpush1.bf16.msra.mxu0 0
  %813 = vmatprep.subr.bf16.mxu0 0
  %814 = vmatpush1.bf16.msra.mxu0 0
  %815 = vmatprep.subr.bf16.mxu0 0
  %816 = vmatpush1.bf16.msra.mxu0 0
  %817 = vmatprep.subr.bf16.mxu0 0
  %818 = vmatpush1.bf16.msra.mxu0 0
  %819 = vmatprep.subr.bf16.mxu0 0
  %820 = vmatpush1.bf16.msra.mxu0 0
  %821 = vmatprep.subr.bf16.mxu0 0
  %822 = vmatpush1.bf16.msra.mxu0 0
  %823 = vmatprep.subr.bf16.mxu0 0
  %824 = vmatpush1.bf16.msra.mxu0 0
  %825 = vmatprep.subr.bf16.mxu0 0
  %826 = vmatpush1.bf16.msra.mxu0 0
  %827 = vmatprep.subr.bf16.mxu0 0
  %828 = vmatpush1.bf16.msra.mxu0 0
  %829 = vmatprep.subr.bf16.mxu0 0
  %830 = vmatpush1.bf16.msra.mxu0 0
  %831 = vmatprep.mubr.bf16.mxu0 0
  %832 = vmatmul.mubr.bf16.gmra.mrb[0].mxu0 %v785
  %v833 = vpop.f32.mrb[0].mxu0
  %v834 = vadd.f32 0.0, %v833
  %v835 = vpop.f32.mrb[0].mxu0
  %v836 = vpop.f32.mrb[0].mxu0
  %v837 = vadd.f32 0.0, %v836
  %v838 = vpop.f32.mrb[0].mxu0
  %839 = vmatprep.mubr.bf16.mxu0 0
  %840 = vmatmul.mubr.bf16.gmra.mrb[0].mxu0 %v788
  %v841 = vpop.f32.mrb[0].mxu0
  %v842 = vadd.f32 0.0, %v841
  %v843 = vpop.f32.mrb[0].mxu0
  %v844 = vpop.f32.mrb[0].mxu0
  %v845 = vadd.f32 0.0, %v844
  %v846 = vpop.f32.mrb[0].mxu0
  %847 = vmatprep.mubr.bf16.mxu0 0
  %848 = vmatmul.mubr.bf16.gmra.mrb[0].mxu0 %v791
  %v849 = vpop.f32.mrb[0].mxu0
  %v850 = vadd.f32 0.0, %v849
  %v851 = vpop.f32.mrb[0].mxu0
  %v852 = vpop.f32.mrb[0].mxu0
  %v853 = vadd.f32 0.0, %v852
  %v854 = vpop.f32.mrb[0].mxu0
  %855 = vmatprep.mubr.bf16.mxu0 0
  %856 = vmatmul.mubr.bf16.gmra.mrb[0].mxu0 %v794
  %v857 = vpop.f32.mrb[0].mxu0
  %v858 = vadd.f32 0.0, %v857
  %v859 = vpop.f32.mrb[0].mxu0
  %v860 = vpop.f32.mrb[0].mxu0
  %v861 = vadd.f32 0.0, %v860
  %v862 = vpop.f32.mrb[0].mxu0
  %863 = vmatprep.mubr.bf16.mxu0 0
  %864 = vmatmul.mubr.bf16.gmra.mrb[0].mxu0 %v797
  %v865 = vpop.f32.mrb[0].mxu0
  %v866 = vadd.f32 0.0, %v865
  %v867 = vpop.f32.mrb[0].mxu0
  %v868 = vpop.f32.mrb[0].mxu0
  %v869 = vadd.f32 0.0, %v868
  %v870 = vpop.f32.mrb[0].mxu0
  %871 = vdwg.mxu0
  %v872 = vadd.f32 %v719, %v834
  %v873 = vadd.f32 %v720, %v837
  %v874 = vadd.f32 %v721, %v842
  %v875 = vadd.f32 %v722, %v845
  %v876 = vadd.f32 %v723, %v850
  %v877 = vadd.f32 %v724, %v853
  %v878 = vadd.f32 %v725, %v858
  %v879 = vadd.f32 %v726, %v861
  %v880 = vadd.f32 %v727, %v866
  %v881 = vadd.f32 %v728, %v869
  %s882 = scalar_lea.vmem %s1, 96
  %v883 = vld [vmem:[%s882] sm:$0xf]
  %v884 = vld [vmem:[%s882 + $0x4] sm:$0xf]
  %v885 = vld [vmem:[%s882 + $0x8] sm:$0xf]
  %v886 = vld [vmem:[%s882 + $0xc] sm:$0xf]
  %v887 = vpack.c.b16 %v54, %v53
  %v888 = vpack.c.b16 %v56, %v55
  %v889 = vpack.c.b16 %v58, %v57
  %v890 = vpack.c.b16 %v60, %v59
  %v891 = vpack.c.b16 %v736, %v61
  %v896 = vunpack.c.l.b16 %v883
  %v897 = vunpack.c.l.b16 %v884
  %v898 = vunpack.c.l.b16 %v885
  %v899 = vunpack.c.l.b16 %v886
  %v900 = vpack.c.b16 %v897, %v896
  %v901 = vpack.c.b16 %v899, %v898
  %v905 = vsel %vm126, %v887, 0
  %v908 = vsel %vm126, %v888, 0
  %v911 = vsel %vm126, %v889, 0
  %v914 = vsel %vm126, %v890, 0
  %v917 = vsel %vm126, %v891, 0
  %919 = vmatprep.subr.bf16.mxu0 0
  %920 = vmatpush1.bf16.msra.mxu0 %v900
  %921 = vmatprep.subr.bf16.mxu0 0
  %922 = vmatpush1.bf16.msra.mxu0 %v901
  %923 = vmatprep.subr.bf16.mxu0 0
  %924 = vmatpush1.bf16.msra.mxu0 0
  %925 = vmatprep.subr.bf16.mxu0 0
  %926 = vmatpush1.bf16.msra.mxu0 0
  %927 = vmatprep.subr.bf16.mxu0 0
  %928 = vmatpush1.bf16.msra.mxu0 0
  %929 = vmatprep.subr.bf16.mxu0 0
  %930 = vmatpush1.bf16.msra.mxu0 0
  %931 = vmatprep.subr.bf16.mxu0 0
  %932 = vmatpush1.bf16.msra.mxu0 0
  %933 = vmatprep.subr.bf16.mxu0 0
  %934 = vmatpush1.bf16.msra.mxu0 0
  %935 = vmatprep.subr.bf16.mxu0 0
  %936 = vmatpush1.bf16.msra.mxu0 0
  %937 = vmatprep.subr.bf16.mxu0 0
  %938 = vmatpush1.bf16.msra.mxu0 0
  %939 = vmatprep.subr.bf16.mxu0 0
  %940 = vmatpush1.bf16.msra.mxu0 0
  %941 = vmatprep.subr.bf16.mxu0 0
  %942 = vmatpush1.bf16.msra.mxu0 0
  %943 = vmatprep.subr.bf16.mxu0 0
  %944 = vmatpush1.bf16.msra.mxu0 0
  %945 = vmatprep.subr.bf16.mxu0 0
  %946 = vmatpush1.bf16.msra.mxu0 0
  %947 = vmatprep.subr.bf16.mxu0 0
  %948 = vmatpush1.bf16.msra.mxu0 0
  %949 = vmatprep.subr.bf16.mxu0 0
  %950 = vmatpush1.bf16.msra.mxu0 0
  %951 = vmatprep.mubr.bf16.mxu0 0
  %952 = vmatmul.mubr.bf16.gmra.mrb[0].mxu0 %v905
  %v953 = vpop.f32.mrb[0].mxu0
  %v954 = vadd.f32 0.0, %v953
  %v955 = vpop.f32.mrb[0].mxu0
  %v956 = vpop.f32.mrb[0].mxu0
  %v957 = vadd.f32 0.0, %v956
  %v958 = vpop.f32.mrb[0].mxu0
  %959 = vmatprep.mubr.bf16.mxu0 0
  %960 = vmatmul.mubr.bf16.gmra.mrb[0].mxu0 %v908
  %v961 = vpop.f32.mrb[0].mxu0
  %v962 = vadd.f32 0.0, %v961
  %v963 = vpop.f32.mrb[0].mxu0
  %v964 = vpop.f32.mrb[0].mxu0
  %v965 = vadd.f32 0.0, %v964
  %v966 = vpop.f32.mrb[0].mxu0
  %967 = vmatprep.mubr.bf16.mxu0 0
  %968 = vmatmul.mubr.bf16.gmra.mrb[0].mxu0 %v911
  %v969 = vpop.f32.mrb[0].mxu0
  %v970 = vadd.f32 0.0, %v969
  %v971 = vpop.f32.mrb[0].mxu0
  %v972 = vpop.f32.mrb[0].mxu0
  %v973 = vadd.f32 0.0, %v972
  %v974 = vpop.f32.mrb[0].mxu0
  %975 = vmatprep.mubr.bf16.mxu0 0
  %976 = vmatmul.mubr.bf16.gmra.mrb[0].mxu0 %v914
  %v977 = vpop.f32.mrb[0].mxu0
  %v978 = vadd.f32 0.0, %v977
  %v979 = vpop.f32.mrb[0].mxu0
  %v980 = vpop.f32.mrb[0].mxu0
  %v981 = vadd.f32 0.0, %v980
  %v982 = vpop.f32.mrb[0].mxu0
  %983 = vmatprep.mubr.bf16.mxu0 0
  %984 = vmatmul.mubr.bf16.gmra.mrb[0].mxu0 %v917
  %v985 = vpop.f32.mrb[0].mxu0
  %v986 = vadd.f32 0.0, %v985
  %v987 = vpop.f32.mrb[0].mxu0
  %v988 = vpop.f32.mrb[0].mxu0
  %v989 = vadd.f32 0.0, %v988
  %v990 = vpop.f32.mrb[0].mxu0
  %991 = vdwg.mxu0
  %v992 = vadd.f32 %v872, %v954
  %v993 = vadd.f32 %v873, %v957
  %v994 = vadd.f32 %v874, %v962
  %v995 = vadd.f32 %v875, %v965
  %v996 = vadd.f32 %v876, %v970
  %v997 = vadd.f32 %v877, %v973
  %v998 = vadd.f32 %v878, %v978
  %v999 = vadd.f32 %v879, %v981
  %v1000 = vadd.f32 %v880, %v986
  %v1001 = vadd.f32 %v881, %v989
  %v1002 = vld [vmem:[%s0 + $0x4] sm:$0xf]
  %v1003 = vld [vmem:[%s0 + $0x8] sm:$0xf]
  %v1004 = vld [vmem:[%s0 + $0xc] sm:$0xf]
  %v1005 = vld [vmem:[%s0 + $0x10] sm:$0xf]
  %v1006 = vld [vmem:[%s0 + $0x14] sm:$0xf]
  %v1007 = vld [vmem:[%s0 + $0x18] sm:$0xf]
  %v1008 = vld [vmem:[%s0 + $0x1c] sm:$0xf]
  %v1009 = vld [vmem:[%s0 + $0x20] sm:$0xf]
  %v1010 = vld [vmem:[%s0 + $0x24] sm:$0xf]
  %v1011 = vld [vmem:[%s0 + $0x28] sm:$0xf]
  %v1012 = vld [vmem:[%s0 + $0x2c] sm:$0x1]
  %s1013 = scalar_lea.vmem %s1, 112
  %v1014 = vld [vmem:[%s1013] sm:$0xf]
  %v1015 = vld [vmem:[%s1013 + $0x4] sm:$0xf]
  %v1016 = vld [vmem:[%s1013 + $0x8] sm:$0xf]
  %v1017 = vld [vmem:[%s1013 + $0xc] sm:$0xf]
  %v1029 = vunpack.c.l.b16 %v1002
  %v1030 = vunpack.c.l.b16 %v1003
  %v1031 = vunpack.c.l.b16 %v1004
  %v1032 = vunpack.c.l.b16 %v1005
  %v1033 = vunpack.c.l.b16 %v1006
  %v1034 = vunpack.c.l.b16 %v1007
  %v1035 = vunpack.c.l.b16 %v1008
  %v1036 = vunpack.c.l.b16 %v1009
  %v1037 = vunpack.c.l.b16 %v1010
  %v1038 = vunpack.c.l.b16 %v1011
  %v1039 = vunpack.c.l.b16 %v1012
  %v1040 = vpack.c.b16 %v1030, %v1029
  %v1041 = vpack.c.b16 %v1032, %v1031
  %v1042 = vpack.c.b16 %v1034, %v1033
  %v1043 = vpack.c.b16 %v1036, %v1035
  %v1044 = vpack.c.b16 %v1038, %v1037
  %v1045 = vpack.c.b16 %v1039, %v1039
  %v1047 = vshrl.u32 %v1040, 16
  %v1049 = vshll.u32 %v1040, 16
  %v1051 = vrot.slane %v1049, 1
  %v1052 = vor.u32 %v1047, %v1051
  %v1054 = vshll.u32 %v1041, 16
  %v1056 = vrot.slane %v1054, 1
  %v1057 = vsel %vm69, %v1052, %v1056
  %v1058 = vshrl.u32 %v1041, 16
  %v1060 = vor.u32 %v1058, %v1056
  %v1062 = vshll.u32 %v1042, 16
  %v1064 = vrot.slane %v1062, 1
  %v1065 = vsel %vm69, %v1060, %v1064
  %v1066 = vshrl.u32 %v1042, 16
  %v1068 = vor.u32 %v1066, %v1064
  %v1070 = vshll.u32 %v1043, 16
  %v1072 = vrot.slane %v1070, 1
  %v1073 = vsel %vm69, %v1068, %v1072
  %v1074 = vshrl.u32 %v1043, 16
  %v1076 = vor.u32 %v1074, %v1072
  %v1078 = vshll.u32 %v1044, 16
  %v1080 = vrot.slane %v1078, 1
  %v1081 = vsel %vm69, %v1076, %v1080
  %v1082 = vshrl.u32 %v1044, 16
  %v1084 = vor.u32 %v1082, %v1080
  %v1086 = vshll.u32 %v1045, 16
  %v1088 = vrot.slane %v1086, 1
  %v1089 = vsel %vm69, %v1084, %v1088
  %v1094 = vunpack.c.l.b16 %v1014
  %v1095 = vunpack.c.l.b16 %v1015
  %v1096 = vunpack.c.l.b16 %v1016
  %v1097 = vunpack.c.l.b16 %v1017
  %v1098 = vpack.c.b16 %v1095, %v1094
  %v1099 = vpack.c.b16 %v1097, %v1096
  %v1103 = vsel %vm126, %v1057, 0
  %v1106 = vsel %vm126, %v1065, 0
  %v1109 = vsel %vm126, %v1073, 0
  %v1112 = vsel %vm126, %v1081, 0
  %v1115 = vsel %vm126, %v1089, 0
  %1117 = vmatprep.subr.bf16.mxu0 0
  %1118 = vmatpush1.bf16.msra.mxu0 %v1098
  %1119 = vmatprep.subr.bf16.mxu0 0
  %1120 = vmatpush1.bf16.msra.mxu0 %v1099
  %1121 = vmatprep.subr.bf16.mxu0 0
  %1122 = vmatpush1.bf16.msra.mxu0 0
  %1123 = vmatprep.subr.bf16.mxu0 0
  %1124 = vmatpush1.bf16.msra.mxu0 0
  %1125 = vmatprep.subr.bf16.mxu0 0
  %1126 = vmatpush1.bf16.msra.mxu0 0
  %1127 = vmatprep.subr.bf16.mxu0 0
  %1128 = vmatpush1.bf16.msra.mxu0 0
  %1129 = vmatprep.subr.bf16.mxu0 0
  %1130 = vmatpush1.bf16.msra.mxu0 0
  %1131 = vmatprep.subr.bf16.mxu0 0
  %1132 = vmatpush1.bf16.msra.mxu0 0
  %1133 = vmatprep.subr.bf16.mxu0 0
  %1134 = vmatpush1.bf16.msra.mxu0 0
  %1135 = vmatprep.subr.bf16.mxu0 0
  %1136 = vmatpush1.bf16.msra.mxu0 0
  %1137 = vmatprep.subr.bf16.mxu0 0
  %1138 = vmatpush1.bf16.msra.mxu0 0
  %1139 = vmatprep.subr.bf16.mxu0 0
  %1140 = vmatpush1.bf16.msra.mxu0 0
  %1141 = vmatprep.subr.bf16.mxu0 0
  %1142 = vmatpush1.bf16.msra.mxu0 0
  %1143 = vmatprep.subr.bf16.mxu0 0
  %1144 = vmatpush1.bf16.msra.mxu0 0
  %1145 = vmatprep.subr.bf16.mxu0 0
  %1146 = vmatpush1.bf16.msra.mxu0 0
  %1147 = vmatprep.subr.bf16.mxu0 0
  %1148 = vmatpush1.bf16.msra.mxu0 0
  %1149 = vmatprep.mubr.bf16.mxu0 0
  %1150 = vmatmul.mubr.bf16.gmra.mrb[0].mxu0 %v1103
  %v1151 = vpop.f32.mrb[0].mxu0
  %v1152 = vadd.f32 0.0, %v1151
  %v1153 = vpop.f32.mrb[0].mxu0
  %v1154 = vpop.f32.mrb[0].mxu0
  %v1155 = vadd.f32 0.0, %v1154
  %v1156 = vpop.f32.mrb[0].mxu0
  %1157 = vmatprep.mubr.bf16.mxu0 0
  %1158 = vmatmul.mubr.bf16.gmra.mrb[0].mxu0 %v1106
  %v1159 = vpop.f32.mrb[0].mxu0
  %v1160 = vadd.f32 0.0, %v1159
  %v1161 = vpop.f32.mrb[0].mxu0
  %v1162 = vpop.f32.mrb[0].mxu0
  %v1163 = vadd.f32 0.0, %v1162
  %v1164 = vpop.f32.mrb[0].mxu0
  %1165 = vmatprep.mubr.bf16.mxu0 0
  %1166 = vmatmul.mubr.bf16.gmra.mrb[0].mxu0 %v1109
  %v1167 = vpop.f32.mrb[0].mxu0
  %v1168 = vadd.f32 0.0, %v1167
  %v1169 = vpop.f32.mrb[0].mxu0
  %v1170 = vpop.f32.mrb[0].mxu0
  %v1171 = vadd.f32 0.0, %v1170
  %v1172 = vpop.f32.mrb[0].mxu0
  %1173 = vmatprep.mubr.bf16.mxu0 0
  %1174 = vmatmul.mubr.bf16.gmra.mrb[0].mxu0 %v1112
  %v1175 = vpop.f32.mrb[0].mxu0
  %v1176 = vadd.f32 0.0, %v1175
  %v1177 = vpop.f32.mrb[0].mxu0
  %v1178 = vpop.f32.mrb[0].mxu0
  %v1179 = vadd.f32 0.0, %v1178
  %v1180 = vpop.f32.mrb[0].mxu0
  %1181 = vmatprep.mubr.bf16.mxu0 0
  %1182 = vmatmul.mubr.bf16.gmra.mrb[0].mxu0 %v1115
  %v1183 = vpop.f32.mrb[0].mxu0
  %v1184 = vadd.f32 0.0, %v1183
  %v1185 = vpop.f32.mrb[0].mxu0
  %v1186 = vpop.f32.mrb[0].mxu0
  %v1187 = vadd.f32 0.0, %v1186
  %v1188 = vpop.f32.mrb[0].mxu0
  %1189 = vdwg.mxu0
  %v1190 = vadd.f32 %v992, %v1152
  %v1191 = vadd.f32 %v993, %v1155
  %v1192 = vadd.f32 %v994, %v1160
  %v1193 = vadd.f32 %v995, %v1163
  %v1194 = vadd.f32 %v996, %v1168
  %v1195 = vadd.f32 %v997, %v1171
  %v1196 = vadd.f32 %v998, %v1176
  %v1197 = vadd.f32 %v999, %v1179
  %v1198 = vadd.f32 %v1000, %v1184
  %v1199 = vadd.f32 %v1001, %v1187
  %v1200 = vld [vmem:[%s0 + $0x4] sm:$0xc]
  %v1201 = vld [vmem:[%s0 + $0x2c] sm:$0x3]
  %s1202 = scalar_lea.vmem %s1, 128
  %v1203 = vld [vmem:[%s1202] sm:$0xf]
  %v1204 = vld [vmem:[%s1202 + $0x4] sm:$0xf]
  %v1205 = vld [vmem:[%s1202 + $0x8] sm:$0xf]
  %v1206 = vld [vmem:[%s1202 + $0xc] sm:$0xf]
  %v1209 = vunpack.c.l.b16 %v1200
  %v1210 = vunpack.c.l.b16 %v1201
  %v1211 = vpack.c.b16 %v1030, %v1209
  %v1212 = vpack.c.b16 %v1210, %v1210
  %vm1213 = vcmask 1045504
  %v1214 = vrot.slane %v1211, 2
  %v1215 = vrot.slane %v1041, 2
  %v1216 = vsel %vm1213, %v1214, %v1215
  %v1217 = vrot.slane %v1042, 2
  %v1218 = vsel %vm1213, %v1215, %v1217
  %v1219 = vrot.slane %v1043, 2
  %v1220 = vsel %vm1213, %v1217, %v1219
  %v1221 = vrot.slane %v1044, 2
  %v1222 = vsel %vm1213, %v1219, %v1221
  %v1223 = vrot.slane %v1212, 2
  %v1224 = vsel %vm1213, %v1221, %v1223
  %v1229 = vunpack.c.l.b16 %v1203
  %v1230 = vunpack.c.l.b16 %v1204
  %v1231 = vunpack.c.l.b16 %v1205
  %v1232 = vunpack.c.l.b16 %v1206
  %v1233 = vpack.c.b16 %v1230, %v1229
  %v1234 = vpack.c.b16 %v1232, %v1231
  %v1238 = vsel %vm126, %v1216, 0
  %v1241 = vsel %vm126, %v1218, 0
  %v1244 = vsel %vm126, %v1220, 0
  %v1247 = vsel %vm126, %v1222, 0
  %v1250 = vsel %vm126, %v1224, 0
  %1252 = vmatprep.subr.bf16.mxu0 0
  %1253 = vmatpush1.bf16.msra.mxu0 %v1233
  %1254 = vmatprep.subr.bf16.mxu0 0
  %1255 = vmatpush1.bf16.msra.mxu0 %v1234
  %1256 = vmatprep.subr.bf16.mxu0 0
  %1257 = vmatpush1.bf16.msra.mxu0 0
  %1258 = vmatprep.subr.bf16.mxu0 0
  %1259 = vmatpush1.bf16.msra.mxu0 0
  %1260 = vmatprep.subr.bf16.mxu0 0
  %1261 = vmatpush1.bf16.msra.mxu0 0
  %1262 = vmatprep.subr.bf16.mxu0 0
  %1263 = vmatpush1.bf16.msra.mxu0 0
  %1264 = vmatprep.subr.bf16.mxu0 0
  %1265 = vmatpush1.bf16.msra.mxu0 0
  %1266 = vmatprep.subr.bf16.mxu0 0
  %1267 = vmatpush1.bf16.msra.mxu0 0
  %1268 = vmatprep.subr.bf16.mxu0 0
  %1269 = vmatpush1.bf16.msra.mxu0 0
  %1270 = vmatprep.subr.bf16.mxu0 0
  %1271 = vmatpush1.bf16.msra.mxu0 0
  %1272 = vmatprep.subr.bf16.mxu0 0
  %1273 = vmatpush1.bf16.msra.mxu0 0
  %1274 = vmatprep.subr.bf16.mxu0 0
  %1275 = vmatpush1.bf16.msra.mxu0 0
  %1276 = vmatprep.subr.bf16.mxu0 0
  %1277 = vmatpush1.bf16.msra.mxu0 0
  %1278 = vmatprep.subr.bf16.mxu0 0
  %1279 = vmatpush1.bf16.msra.mxu0 0
  %1280 = vmatprep.subr.bf16.mxu0 0
  %1281 = vmatpush1.bf16.msra.mxu0 0
  %1282 = vmatprep.subr.bf16.mxu0 0
  %1283 = vmatpush1.bf16.msra.mxu0 0
  %1284 = vmatprep.mubr.bf16.mxu0 0
  %1285 = vmatmul.mubr.bf16.gmra.mrb[0].mxu0 %v1238
  %v1286 = vpop.f32.mrb[0].mxu0
  %v1287 = vadd.f32 0.0, %v1286
  %v1288 = vpop.f32.mrb[0].mxu0
  %v1289 = vpop.f32.mrb[0].mxu0
  %v1290 = vadd.f32 0.0, %v1289
  %v1291 = vpop.f32.mrb[0].mxu0
  %1292 = vmatprep.mubr.bf16.mxu0 0
  %1293 = vmatmul.mubr.bf16.gmra.mrb[0].mxu0 %v1241
  %v1294 = vpop.f32.mrb[0].mxu0
  %v1295 = vadd.f32 0.0, %v1294
  %v1296 = vpop.f32.mrb[0].mxu0
  %v1297 = vpop.f32.mrb[0].mxu0
  %v1298 = vadd.f32 0.0, %v1297
  %v1299 = vpop.f32.mrb[0].mxu0
  %1300 = vmatprep.mubr.bf16.mxu0 0
  %1301 = vmatmul.mubr.bf16.gmra.mrb[0].mxu0 %v1244
  %v1302 = vpop.f32.mrb[0].mxu0
  %v1303 = vadd.f32 0.0, %v1302
  %v1304 = vpop.f32.mrb[0].mxu0
  %v1305 = vpop.f32.mrb[0].mxu0
  %v1306 = vadd.f32 0.0, %v1305
  %v1307 = vpop.f32.mrb[0].mxu0
  %1308 = vmatprep.mubr.bf16.mxu0 0
  %1309 = vmatmul.mubr.bf16.gmra.mrb[0].mxu0 %v1247
  %v1310 = vpop.f32.mrb[0].mxu0
  %v1311 = vadd.f32 0.0, %v1310
  %v1312 = vpop.f32.mrb[0].mxu0
  %v1313 = vpop.f32.mrb[0].mxu0
  %v1314 = vadd.f32 0.0, %v1313
  %v1315 = vpop.f32.mrb[0].mxu0
  %1316 = vmatprep.mubr.bf16.mxu0 0
  %1317 = vmatmul.mubr.bf16.gmra.mrb[0].mxu0 %v1250
  %v1318 = vpop.f32.mrb[0].mxu0
  %v1319 = vadd.f32 0.0, %v1318
  %v1320 = vpop.f32.mrb[0].mxu0
  %v1321 = vpop.f32.mrb[0].mxu0
  %v1322 = vadd.f32 0.0, %v1321
  %v1323 = vpop.f32.mrb[0].mxu0
  %1324 = vdwg.mxu0
  %v1325 = vadd.f32 %v1190, %v1287
  %v1326 = vadd.f32 %v1191, %v1290
  %v1327 = vadd.f32 %v1192, %v1295
  %v1328 = vadd.f32 %v1193, %v1298
  %v1329 = vadd.f32 %v1194, %v1303
  %v1330 = vadd.f32 %v1195, %v1306
  %v1331 = vadd.f32 %v1196, %v1311
  %v1332 = vadd.f32 %v1197, %v1314
  %v1333 = vadd.f32 %v1198, %v1319
  %v1334 = vadd.f32 %v1199, %v1322
  %v1335 = vld [vmem:[%s0 + $0x2c] sm:$0x7]
  %s1336 = scalar_lea.vmem %s1, 144
  %v1337 = vld [vmem:[%s1336] sm:$0xf]
  %v1338 = vld [vmem:[%s1336 + $0x4] sm:$0xf]
  %v1339 = vld [vmem:[%s1336 + $0x8] sm:$0xf]
  %v1340 = vld [vmem:[%s1336 + $0xc] sm:$0xf]
  %v1342 = vunpack.c.l.b16 %v1335
  %v1343 = vpack.c.b16 %v1342, %v1342
  %vm1344 = vsmask.f32 5376
  %v1346 = vshrl.u32 %v1211, 16
  %v1348 = vrot.slane %v1346, 2
  %v1349 = vshll.u32 %v1211, 16
  %v1351 = vrot.slane %v1349, 3
  %v1352 = vor.u32 %v1348, %v1351
  %v1353 = vrot.slane %v1058, 2
  %v1354 = vrot.slane %v1054, 3
  %v1355 = vor.u32 %v1353, %v1354
  %v1356 = vsel %vm1344, %v1352, %v1355
  %v1357 = vrot.slane %v1066, 2
  %v1358 = vrot.slane %v1062, 3
  %v1359 = vor.u32 %v1357, %v1358
  %v1360 = vsel %vm1344, %v1355, %v1359
  %v1361 = vrot.slane %v1074, 2
  %v1362 = vrot.slane %v1070, 3
  %v1363 = vor.u32 %v1361, %v1362
  %v1364 = vsel %vm1344, %v1359, %v1363
  %v1365 = vrot.slane %v1082, 2
  %v1366 = vrot.slane %v1078, 3
  %v1367 = vor.u32 %v1365, %v1366
  %v1368 = vsel %vm1344, %v1363, %v1367
  %v1370 = vshrl.u32 %v1343, 16
  %v1372 = vrot.slane %v1370, 2
  %v1373 = vshll.u32 %v1343, 16
  %v1375 = vrot.slane %v1373, 3
  %v1376 = vor.u32 %v1372, %v1375
  %v1377 = vsel %vm1344, %v1367, %v1376
  %v1382 = vunpack.c.l.b16 %v1337
  %v1383 = vunpack.c.l.b16 %v1338
  %v1384 = vunpack.c.l.b16 %v1339
  %v1385 = vunpack.c.l.b16 %v1340
  %v1386 = vpack.c.b16 %v1383, %v1382
  %v1387 = vpack.c.b16 %v1385, %v1384
  %v1391 = vsel %vm126, %v1356, 0
  %v1394 = vsel %vm126, %v1360, 0
  %v1397 = vsel %vm126, %v1364, 0
  %v1400 = vsel %vm126, %v1368, 0
  %v1403 = vsel %vm126, %v1377, 0
  %1405 = vmatprep.subr.bf16.mxu0 0
  %1406 = vmatpush1.bf16.msra.mxu0 %v1386
  %1407 = vmatprep.subr.bf16.mxu0 0
  %1408 = vmatpush1.bf16.msra.mxu0 %v1387
  %1409 = vmatprep.subr.bf16.mxu0 0
  %1410 = vmatpush1.bf16.msra.mxu0 0
  %1411 = vmatprep.subr.bf16.mxu0 0
  %1412 = vmatpush1.bf16.msra.mxu0 0
  %1413 = vmatprep.subr.bf16.mxu0 0
  %1414 = vmatpush1.bf16.msra.mxu0 0
  %1415 = vmatprep.subr.bf16.mxu0 0
  %1416 = vmatpush1.bf16.msra.mxu0 0
  %1417 = vmatprep.subr.bf16.mxu0 0
  %1418 = vmatpush1.bf16.msra.mxu0 0
  %1419 = vmatprep.subr.bf16.mxu0 0
  %1420 = vmatpush1.bf16.msra.mxu0 0
  %1421 = vmatprep.subr.bf16.mxu0 0
  %1422 = vmatpush1.bf16.msra.mxu0 0
  %1423 = vmatprep.subr.bf16.mxu0 0
  %1424 = vmatpush1.bf16.msra.mxu0 0
  %1425 = vmatprep.subr.bf16.mxu0 0
  %1426 = vmatpush1.bf16.msra.mxu0 0
  %1427 = vmatprep.subr.bf16.mxu0 0
  %1428 = vmatpush1.bf16.msra.mxu0 0
  %1429 = vmatprep.subr.bf16.mxu0 0
  %1430 = vmatpush1.bf16.msra.mxu0 0
  %1431 = vmatprep.subr.bf16.mxu0 0
  %1432 = vmatpush1.bf16.msra.mxu0 0
  %1433 = vmatprep.subr.bf16.mxu0 0
  %1434 = vmatpush1.bf16.msra.mxu0 0
  %1435 = vmatprep.subr.bf16.mxu0 0
  %1436 = vmatpush1.bf16.msra.mxu0 0
  %1437 = vmatprep.mubr.bf16.mxu0 0
  %1438 = vmatmul.mubr.bf16.gmra.mrb[0].mxu0 %v1391
  %v1439 = vpop.f32.mrb[0].mxu0
  %v1440 = vadd.f32 0.0, %v1439
  %v1441 = vpop.f32.mrb[0].mxu0
  %v1442 = vpop.f32.mrb[0].mxu0
  %v1443 = vadd.f32 0.0, %v1442
  %v1444 = vpop.f32.mrb[0].mxu0
  %1445 = vmatprep.mubr.bf16.mxu0 0
  %1446 = vmatmul.mubr.bf16.gmra.mrb[0].mxu0 %v1394
  %v1447 = vpop.f32.mrb[0].mxu0
  %v1448 = vadd.f32 0.0, %v1447
  %v1449 = vpop.f32.mrb[0].mxu0
  %v1450 = vpop.f32.mrb[0].mxu0
  %v1451 = vadd.f32 0.0, %v1450
  %v1452 = vpop.f32.mrb[0].mxu0
  %1453 = vmatprep.mubr.bf16.mxu0 0
  %1454 = vmatmul.mubr.bf16.gmra.mrb[0].mxu0 %v1397
  %v1455 = vpop.f32.mrb[0].mxu0
  %v1456 = vadd.f32 0.0, %v1455
  %v1457 = vpop.f32.mrb[0].mxu0
  %v1458 = vpop.f32.mrb[0].mxu0
  %v1459 = vadd.f32 0.0, %v1458
  %v1460 = vpop.f32.mrb[0].mxu0
  %1461 = vmatprep.mubr.bf16.mxu0 0
  %1462 = vmatmul.mubr.bf16.gmra.mrb[0].mxu0 %v1400
  %v1463 = vpop.f32.mrb[0].mxu0
  %v1464 = vadd.f32 0.0, %v1463
  %v1465 = vpop.f32.mrb[0].mxu0
  %v1466 = vpop.f32.mrb[0].mxu0
  %v1467 = vadd.f32 0.0, %v1466
  %v1468 = vpop.f32.mrb[0].mxu0
  %1469 = vmatprep.mubr.bf16.mxu0 0
  %1470 = vmatmul.mubr.bf16.gmra.mrb[0].mxu0 %v1403
  %v1471 = vpop.f32.mrb[0].mxu0
  %v1472 = vadd.f32 0.0, %v1471
  %v1473 = vpop.f32.mrb[0].mxu0
  %v1474 = vpop.f32.mrb[0].mxu0
  %v1475 = vadd.f32 0.0, %v1474
  %v1476 = vpop.f32.mrb[0].mxu0
  %1477 = vdwg.mxu0
  %v1478 = vadd.f32 %v1325, %v1440
  %v1479 = vadd.f32 %v1326, %v1443
  %v1480 = vadd.f32 %v1327, %v1448
  %v1481 = vadd.f32 %v1328, %v1451
  %v1482 = vadd.f32 %v1329, %v1456
  %v1483 = vadd.f32 %v1330, %v1459
  %v1484 = vadd.f32 %v1331, %v1464
  %v1485 = vadd.f32 %v1332, %v1467
  %v1486 = vadd.f32 %v1333, %v1472
  %v1487 = vadd.f32 %v1334, %v1475
  %v1488 = vld [vmem:[%s0 + $0x4] sm:$0x8]
  %s1489 = scalar_lea.vmem %s1, 160
  %v1490 = vld [vmem:[%s1489] sm:$0xf]
  %v1491 = vld [vmem:[%s1489 + $0x4] sm:$0xf]
  %v1492 = vld [vmem:[%s1489 + $0x8] sm:$0xf]
  %v1493 = vld [vmem:[%s1489 + $0xc] sm:$0xf]
  %v1495 = vunpack.c.l.b16 %v1488
  %v1496 = vpack.c.b16 %v1030, %v1495
  %v1497 = vrot.slane %v1496, 3
  %v1498 = vrot.slane %v1041, 3
  %v1499 = vsel %vm607, %v1497, %v1498
  %v1500 = vrot.slane %v1042, 3
  %v1501 = vsel %vm607, %v1498, %v1500
  %v1502 = vrot.slane %v1043, 3
  %v1503 = vsel %vm607, %v1500, %v1502
  %v1504 = vrot.slane %v1044, 3
  %v1505 = vsel %vm607, %v1502, %v1504
  %v1506 = vrot.slane %v1343, 3
  %v1507 = vsel %vm607, %v1504, %v1506
  %v1512 = vunpack.c.l.b16 %v1490
  %v1513 = vunpack.c.l.b16 %v1491
  %v1514 = vunpack.c.l.b16 %v1492
  %v1515 = vunpack.c.l.b16 %v1493
  %v1516 = vpack.c.b16 %v1513, %v1512
  %v1517 = vpack.c.b16 %v1515, %v1514
  %v1521 = vsel %vm126, %v1499, 0
  %v1524 = vsel %vm126, %v1501, 0
  %v1527 = vsel %vm126, %v1503, 0
  %v1530 = vsel %vm126, %v1505, 0
  %v1533 = vsel %vm126, %v1507, 0
  %1535 = vmatprep.subr.bf16.mxu0 0
  %1536 = vmatpush1.bf16.msra.mxu0 %v1516
  %1537 = vmatprep.subr.bf16.mxu0 0
  %1538 = vmatpush1.bf16.msra.mxu0 %v1517
  %1539 = vmatprep.subr.bf16.mxu0 0
  %1540 = vmatpush1.bf16.msra.mxu0 0
  %1541 = vmatprep.subr.bf16.mxu0 0
  %1542 = vmatpush1.bf16.msra.mxu0 0
  %1543 = vmatprep.subr.bf16.mxu0 0
  %1544 = vmatpush1.bf16.msra.mxu0 0
  %1545 = vmatprep.subr.bf16.mxu0 0
  %1546 = vmatpush1.bf16.msra.mxu0 0
  %1547 = vmatprep.subr.bf16.mxu0 0
  %1548 = vmatpush1.bf16.msra.mxu0 0
  %1549 = vmatprep.subr.bf16.mxu0 0
  %1550 = vmatpush1.bf16.msra.mxu0 0
  %1551 = vmatprep.subr.bf16.mxu0 0
  %1552 = vmatpush1.bf16.msra.mxu0 0
  %1553 = vmatprep.subr.bf16.mxu0 0
  %1554 = vmatpush1.bf16.msra.mxu0 0
  %1555 = vmatprep.subr.bf16.mxu0 0
  %1556 = vmatpush1.bf16.msra.mxu0 0
  %1557 = vmatprep.subr.bf16.mxu0 0
  %1558 = vmatpush1.bf16.msra.mxu0 0
  %1559 = vmatprep.subr.bf16.mxu0 0
  %1560 = vmatpush1.bf16.msra.mxu0 0
  %1561 = vmatprep.subr.bf16.mxu0 0
  %1562 = vmatpush1.bf16.msra.mxu0 0
  %1563 = vmatprep.subr.bf16.mxu0 0
  %1564 = vmatpush1.bf16.msra.mxu0 0
  %1565 = vmatprep.subr.bf16.mxu0 0
  %1566 = vmatpush1.bf16.msra.mxu0 0
  %1567 = vmatprep.mubr.bf16.mxu0 0
  %1568 = vmatmul.mubr.bf16.gmra.mrb[0].mxu0 %v1521
  %v1569 = vpop.f32.mrb[0].mxu0
  %v1570 = vadd.f32 0.0, %v1569
  %v1571 = vpop.f32.mrb[0].mxu0
  %v1572 = vpop.f32.mrb[0].mxu0
  %v1573 = vadd.f32 0.0, %v1572
  %v1574 = vpop.f32.mrb[0].mxu0
  %1575 = vmatprep.mubr.bf16.mxu0 0
  %1576 = vmatmul.mubr.bf16.gmra.mrb[0].mxu0 %v1524
  %v1577 = vpop.f32.mrb[0].mxu0
  %v1578 = vadd.f32 0.0, %v1577
  %v1579 = vpop.f32.mrb[0].mxu0
  %v1580 = vpop.f32.mrb[0].mxu0
  %v1581 = vadd.f32 0.0, %v1580
  %v1582 = vpop.f32.mrb[0].mxu0
  %1583 = vmatprep.mubr.bf16.mxu0 0
  %1584 = vmatmul.mubr.bf16.gmra.mrb[0].mxu0 %v1527
  %v1585 = vpop.f32.mrb[0].mxu0
  %v1586 = vadd.f32 0.0, %v1585
  %v1587 = vpop.f32.mrb[0].mxu0
  %v1588 = vpop.f32.mrb[0].mxu0
  %v1589 = vadd.f32 0.0, %v1588
  %v1590 = vpop.f32.mrb[0].mxu0
  %1591 = vmatprep.mubr.bf16.mxu0 0
  %1592 = vmatmul.mubr.bf16.gmra.mrb[0].mxu0 %v1530
  %v1593 = vpop.f32.mrb[0].mxu0
  %v1594 = vadd.f32 0.0, %v1593
  %v1595 = vpop.f32.mrb[0].mxu0
  %v1596 = vpop.f32.mrb[0].mxu0
  %v1597 = vadd.f32 0.0, %v1596
  %v1598 = vpop.f32.mrb[0].mxu0
  %1599 = vmatprep.mubr.bf16.mxu0 0
  %1600 = vmatmul.mubr.bf16.gmra.mrb[0].mxu0 %v1533
  %v1601 = vpop.f32.mrb[0].mxu0
  %v1602 = vadd.f32 0.0, %v1601
  %v1603 = vpop.f32.mrb[0].mxu0
  %v1604 = vpop.f32.mrb[0].mxu0
  %v1605 = vadd.f32 0.0, %v1604
  %v1606 = vpop.f32.mrb[0].mxu0
  %1607 = vdwg.mxu0
  %v1608 = vadd.f32 %v1478, %v1570
  %v1609 = vadd.f32 %v1479, %v1573
  %v1610 = vadd.f32 %v1480, %v1578
  %v1611 = vadd.f32 %v1481, %v1581
  %v1612 = vadd.f32 %v1482, %v1586
  %v1613 = vadd.f32 %v1483, %v1589
  %v1614 = vadd.f32 %v1484, %v1594
  %v1615 = vadd.f32 %v1485, %v1597
  %v1616 = vadd.f32 %v1486, %v1602
  %v1617 = vadd.f32 %v1487, %v1605
  %v1618 = vld [vmem:[%s0 + $0x2c] sm:$0xf]
  %s1619 = scalar_lea.vmem %s1, 176
  %v1620 = vld [vmem:[%s1619] sm:$0xf]
  %v1621 = vld [vmem:[%s1619 + $0x4] sm:$0xf]
  %v1622 = vld [vmem:[%s1619 + $0x8] sm:$0xf]
  %v1623 = vld [vmem:[%s1619 + $0xc] sm:$0xf]
  %v1625 = vunpack.c.l.b16 %v1618
  %v1626 = vpack.c.b16 %v1625, %v1625
  %v1628 = vshrl.u32 %v1496, 16
  %v1630 = vrot.slane %v1628, 3
  %v1631 = vshll.u32 %v1496, 16
  %v1633 = vrot.slane %v1631, 4
  %v1634 = vor.u32 %v1630, %v1633
  %v1635 = vrot.slane %v1058, 3
  %v1636 = vrot.slane %v1054, 4
  %v1637 = vor.u32 %v1635, %v1636
  %v1638 = vsel %vm738, %v1634, %v1637
  %v1639 = vrot.slane %v1066, 3
  %v1640 = vrot.slane %v1062, 4
  %v1641 = vor.u32 %v1639, %v1640
  %v1642 = vsel %vm738, %v1637, %v1641
  %v1643 = vrot.slane %v1074, 3
  %v1644 = vrot.slane %v1070, 4
  %v1645 = vor.u32 %v1643, %v1644
  %v1646 = vsel %vm738, %v1641, %v1645
  %v1647 = vrot.slane %v1082, 3
  %v1648 = vrot.slane %v1078, 4
  %v1649 = vor.u32 %v1647, %v1648
  %v1650 = vsel %vm738, %v1645, %v1649
  %v1652 = vshrl.u32 %v1626, 16
  %v1654 = vrot.slane %v1652, 3
  %v1655 = vshll.u32 %v1626, 16
  %v1657 = vrot.slane %v1655, 4
  %v1658 = vor.u32 %v1654, %v1657
  %v1659 = vsel %vm738, %v1649, %v1658
  %v1664 = vunpack.c.l.b16 %v1620
  %v1665 = vunpack.c.l.b16 %v1621
  %v1666 = vunpack.c.l.b16 %v1622
  %v1667 = vunpack.c.l.b16 %v1623
  %v1668 = vpack.c.b16 %v1665, %v1664
  %v1669 = vpack.c.b16 %v1667, %v1666
  %v1673 = vsel %vm126, %v1638, 0
  %v1676 = vsel %vm126, %v1642, 0
  %v1679 = vsel %vm126, %v1646, 0
  %v1682 = vsel %vm126, %v1650, 0
  %v1685 = vsel %vm126, %v1659, 0
  %1687 = vmatprep.subr.bf16.mxu0 0
  %1688 = vmatpush1.bf16.msra.mxu0 %v1668
  %1689 = vmatprep.subr.bf16.mxu0 0
  %1690 = vmatpush1.bf16.msra.mxu0 %v1669
  %1691 = vmatprep.subr.bf16.mxu0 0
  %1692 = vmatpush1.bf16.msra.mxu0 0
  %1693 = vmatprep.subr.bf16.mxu0 0
  %1694 = vmatpush1.bf16.msra.mxu0 0
  %1695 = vmatprep.subr.bf16.mxu0 0
  %1696 = vmatpush1.bf16.msra.mxu0 0
  %1697 = vmatprep.subr.bf16.mxu0 0
  %1698 = vmatpush1.bf16.msra.mxu0 0
  %1699 = vmatprep.subr.bf16.mxu0 0
  %1700 = vmatpush1.bf16.msra.mxu0 0
  %1701 = vmatprep.subr.bf16.mxu0 0
  %1702 = vmatpush1.bf16.msra.mxu0 0
  %1703 = vmatprep.subr.bf16.mxu0 0
  %1704 = vmatpush1.bf16.msra.mxu0 0
  %1705 = vmatprep.subr.bf16.mxu0 0
  %1706 = vmatpush1.bf16.msra.mxu0 0
  %1707 = vmatprep.subr.bf16.mxu0 0
  %1708 = vmatpush1.bf16.msra.mxu0 0
  %1709 = vmatprep.subr.bf16.mxu0 0
  %1710 = vmatpush1.bf16.msra.mxu0 0
  %1711 = vmatprep.subr.bf16.mxu0 0
  %1712 = vmatpush1.bf16.msra.mxu0 0
  %1713 = vmatprep.subr.bf16.mxu0 0
  %1714 = vmatpush1.bf16.msra.mxu0 0
  %1715 = vmatprep.subr.bf16.mxu0 0
  %1716 = vmatpush1.bf16.msra.mxu0 0
  %1717 = vmatprep.subr.bf16.mxu0 0
  %1718 = vmatpush1.bf16.msra.mxu0 0
  %1719 = vmatprep.mubr.bf16.mxu0 0
  %1720 = vmatmul.mubr.bf16.gmra.mrb[0].mxu0 %v1673
  %v1721 = vpop.f32.mrb[0].mxu0
  %v1722 = vadd.f32 0.0, %v1721
  %v1723 = vpop.f32.mrb[0].mxu0
  %v1724 = vpop.f32.mrb[0].mxu0
  %v1725 = vadd.f32 0.0, %v1724
  %v1726 = vpop.f32.mrb[0].mxu0
  %1727 = vmatprep.mubr.bf16.mxu0 0
  %1728 = vmatmul.mubr.bf16.gmra.mrb[0].mxu0 %v1676
  %v1729 = vpop.f32.mrb[0].mxu0
  %v1730 = vadd.f32 0.0, %v1729
  %v1731 = vpop.f32.mrb[0].mxu0
  %v1732 = vpop.f32.mrb[0].mxu0
  %v1733 = vadd.f32 0.0, %v1732
  %v1734 = vpop.f32.mrb[0].mxu0
  %1735 = vmatprep.mubr.bf16.mxu0 0
  %1736 = vmatmul.mubr.bf16.gmra.mrb[0].mxu0 %v1679
  %v1737 = vpop.f32.mrb[0].mxu0
  %v1738 = vadd.f32 0.0, %v1737
  %v1739 = vpop.f32.mrb[0].mxu0
  %v1740 = vpop.f32.mrb[0].mxu0
  %v1741 = vadd.f32 0.0, %v1740
  %v1742 = vpop.f32.mrb[0].mxu0
  %1743 = vmatprep.mubr.bf16.mxu0 0
  %1744 = vmatmul.mubr.bf16.gmra.mrb[0].mxu0 %v1682
  %v1745 = vpop.f32.mrb[0].mxu0
  %v1746 = vadd.f32 0.0, %v1745
  %v1747 = vpop.f32.mrb[0].mxu0
  %v1748 = vpop.f32.mrb[0].mxu0
  %v1749 = vadd.f32 0.0, %v1748
  %v1750 = vpop.f32.mrb[0].mxu0
  %1751 = vmatprep.mubr.bf16.mxu0 0
  %1752 = vmatmul.mubr.bf16.gmra.mrb[0].mxu0 %v1685
  %v1753 = vpop.f32.mrb[0].mxu0
  %v1754 = vadd.f32 0.0, %v1753
  %v1755 = vpop.f32.mrb[0].mxu0
  %v1756 = vpop.f32.mrb[0].mxu0
  %v1757 = vadd.f32 0.0, %v1756
  %v1758 = vpop.f32.mrb[0].mxu0
  %1759 = vdwg.mxu0
  %v1760 = vadd.f32 %v1608, %v1722
  %v1761 = vadd.f32 %v1609, %v1725
  %v1762 = vadd.f32 %v1610, %v1730
  %v1763 = vadd.f32 %v1611, %v1733
  %v1764 = vadd.f32 %v1612, %v1738
  %v1765 = vadd.f32 %v1613, %v1741
  %v1766 = vadd.f32 %v1614, %v1746
  %v1767 = vadd.f32 %v1615, %v1749
  %v1768 = vadd.f32 %v1616, %v1754
  %v1769 = vadd.f32 %v1617, %v1757
  %v1770 = vld [vmem:[%s0 + $0x8] sm:$0xe]
  %v1771 = vld [vmem:[%s0 + $0xc] sm:$0xf]
  %v1772 = vld [vmem:[%s0 + $0x10] sm:$0xf]
  %v1773 = vld [vmem:[%s0 + $0x14] sm:$0xf]
  %v1774 = vld [vmem:[%s0 + $0x18] sm:$0xf]
  %v1775 = vld [vmem:[%s0 + $0x1c] sm:$0xf]
  %v1776 = vld [vmem:[%s0 + $0x20] sm:$0xf]
  %v1777 = vld [vmem:[%s0 + $0x24] sm:$0xf]
  %v1778 = vld [vmem:[%s0 + $0x28] sm:$0xf]
  %v1779 = vld [vmem:[%s0 + $0x2c] sm:$0xf]
  %v1780 = vld [vmem:[%s0 + $0x30] sm:$0x1]
  %s1781 = scalar_lea.vmem %s1, 192
  %v1782 = vld [vmem:[%s1781] sm:$0xf]
  %v1783 = vld [vmem:[%s1781 + $0x4] sm:$0xf]
  %v1784 = vld [vmem:[%s1781 + $0x8] sm:$0xf]
  %v1785 = vld [vmem:[%s1781 + $0xc] sm:$0xf]
  %v1797 = vunpack.c.l.b16 %v1770
  %v1798 = vunpack.c.l.b16 %v1771
  %v1799 = vunpack.c.l.b16 %v1772
  %v1800 = vunpack.c.l.b16 %v1773
  %v1801 = vunpack.c.l.b16 %v1774
  %v1802 = vunpack.c.l.b16 %v1775
  %v1803 = vunpack.c.l.b16 %v1776
  %v1804 = vunpack.c.l.b16 %v1777
  %v1805 = vunpack.c.l.b16 %v1778
  %v1806 = vunpack.c.l.b16 %v1779
  %v1807 = vunpack.c.l.b16 %v1780
  %v1808 = vpack.c.b16 %v1798, %v1797
  %v1809 = vpack.c.b16 %v1800, %v1799
  %v1810 = vpack.c.b16 %v1802, %v1801
  %v1811 = vpack.c.b16 %v1804, %v1803
  %v1812 = vpack.c.b16 %v1806, %v1805
  %v1813 = vpack.c.b16 %v1807, %v1807
  %v1814 = vrot.slane %v1808, 1
  %v1815 = vrot.slane %v1809, 1
  %v1816 = vsel %vm319, %v1814, %v1815
  %v1817 = vrot.slane %v1810, 1
  %v1818 = vsel %vm319, %v1815, %v1817
  %v1819 = vrot.slane %v1811, 1
  %v1820 = vsel %vm319, %v1817, %v1819
  %v1821 = vrot.slane %v1812, 1
  %v1822 = vsel %vm319, %v1819, %v1821
  %v1823 = vrot.slane %v1813, 1
  %v1824 = vsel %vm319, %v1821, %v1823
  %v1829 = vunpack.c.l.b16 %v1782
  %v1830 = vunpack.c.l.b16 %v1783
  %v1831 = vunpack.c.l.b16 %v1784
  %v1832 = vunpack.c.l.b16 %v1785
  %v1833 = vpack.c.b16 %v1830, %v1829
  %v1834 = vpack.c.b16 %v1832, %v1831
  %v1838 = vsel %vm126, %v1816, 0
  %v1841 = vsel %vm126, %v1818, 0
  %v1844 = vsel %vm126, %v1820, 0
  %v1847 = vsel %vm126, %v1822, 0
  %v1850 = vsel %vm126, %v1824, 0
  %1852 = vmatprep.subr.bf16.mxu0 0
  %1853 = vmatpush1.bf16.msra.mxu0 %v1833
  %1854 = vmatprep.subr.bf16.mxu0 0
  %1855 = vmatpush1.bf16.msra.mxu0 %v1834
  %1856 = vmatprep.subr.bf16.mxu0 0
  %1857 = vmatpush1.bf16.msra.mxu0 0
  %1858 = vmatprep.subr.bf16.mxu0 0
  %1859 = vmatpush1.bf16.msra.mxu0 0
  %1860 = vmatprep.subr.bf16.mxu0 0
  %1861 = vmatpush1.bf16.msra.mxu0 0
  %1862 = vmatprep.subr.bf16.mxu0 0
  %1863 = vmatpush1.bf16.msra.mxu0 0
  %1864 = vmatprep.subr.bf16.mxu0 0
  %1865 = vmatpush1.bf16.msra.mxu0 0
  %1866 = vmatprep.subr.bf16.mxu0 0
  %1867 = vmatpush1.bf16.msra.mxu0 0
  %1868 = vmatprep.subr.bf16.mxu0 0
  %1869 = vmatpush1.bf16.msra.mxu0 0
  %1870 = vmatprep.subr.bf16.mxu0 0
  %1871 = vmatpush1.bf16.msra.mxu0 0
  %1872 = vmatprep.subr.bf16.mxu0 0
  %1873 = vmatpush1.bf16.msra.mxu0 0
  %1874 = vmatprep.subr.bf16.mxu0 0
  %1875 = vmatpush1.bf16.msra.mxu0 0
  %1876 = vmatprep.subr.bf16.mxu0 0
  %1877 = vmatpush1.bf16.msra.mxu0 0
  %1878 = vmatprep.subr.bf16.mxu0 0
  %1879 = vmatpush1.bf16.msra.mxu0 0
  %1880 = vmatprep.subr.bf16.mxu0 0
  %1881 = vmatpush1.bf16.msra.mxu0 0
  %1882 = vmatprep.subr.bf16.mxu0 0
  %1883 = vmatpush1.bf16.msra.mxu0 0
  %1884 = vmatprep.mubr.bf16.mxu0 0
  %1885 = vmatmul.mubr.bf16.gmra.mrb[0].mxu0 %v1838
  %v1886 = vpop.f32.mrb[0].mxu0
  %v1887 = vadd.f32 0.0, %v1886
  %v1888 = vpop.f32.mrb[0].mxu0
  %v1889 = vpop.f32.mrb[0].mxu0
  %v1890 = vadd.f32 0.0, %v1889
  %v1891 = vpop.f32.mrb[0].mxu0
  %1892 = vmatprep.mubr.bf16.mxu0 0
  %1893 = vmatmul.mubr.bf16.gmra.mrb[0].mxu0 %v1841
  %v1894 = vpop.f32.mrb[0].mxu0
  %v1895 = vadd.f32 0.0, %v1894
  %v1896 = vpop.f32.mrb[0].mxu0
  %v1897 = vpop.f32.mrb[0].mxu0
  %v1898 = vadd.f32 0.0, %v1897
  %v1899 = vpop.f32.mrb[0].mxu0
  %1900 = vmatprep.mubr.bf16.mxu0 0
  %1901 = vmatmul.mubr.bf16.gmra.mrb[0].mxu0 %v1844
  %v1902 = vpop.f32.mrb[0].mxu0
  %v1903 = vadd.f32 0.0, %v1902
  %v1904 = vpop.f32.mrb[0].mxu0
  %v1905 = vpop.f32.mrb[0].mxu0
  %v1906 = vadd.f32 0.0, %v1905
  %v1907 = vpop.f32.mrb[0].mxu0
  %1908 = vmatprep.mubr.bf16.mxu0 0
  %1909 = vmatmul.mubr.bf16.gmra.mrb[0].mxu0 %v1847
  %v1910 = vpop.f32.mrb[0].mxu0
  %v1911 = vadd.f32 0.0, %v1910
  %v1912 = vpop.f32.mrb[0].mxu0
  %v1913 = vpop.f32.mrb[0].mxu0
  %v1914 = vadd.f32 0.0, %v1913
  %v1915 = vpop.f32.mrb[0].mxu0
  %1916 = vmatprep.mubr.bf16.mxu0 0
  %1917 = vmatmul.mubr.bf16.gmra.mrb[0].mxu0 %v1850
  %v1918 = vpop.f32.mrb[0].mxu0
  %v1919 = vadd.f32 0.0, %v1918
  %v1920 = vpop.f32.mrb[0].mxu0
  %v1921 = vpop.f32.mrb[0].mxu0
  %v1922 = vadd.f32 0.0, %v1921
  %v1923 = vpop.f32.mrb[0].mxu0
  %1924 = vdwg.mxu0
  %v1925 = vadd.f32 %v1760, %v1887
  %v1926 = vadd.f32 %v1761, %v1890
  %v1927 = vadd.f32 %v1762, %v1895
  %v1928 = vadd.f32 %v1763, %v1898
  %v1929 = vadd.f32 %v1764, %v1903
  %v1930 = vadd.f32 %v1765, %v1906
  %v1931 = vadd.f32 %v1766, %v1911
  %v1932 = vadd.f32 %v1767, %v1914
  %v1933 = vadd.f32 %v1768, %v1919
  %v1934 = vadd.f32 %v1769, %v1922
  %v1935 = vld [vmem:[%s0 + $0x30] sm:$0x3]
  %s1936 = scalar_lea.vmem %s1, 208
  %v1937 = vld [vmem:[%s1936] sm:$0xf]
  %v1938 = vld [vmem:[%s1936 + $0x4] sm:$0xf]
  %v1939 = vld [vmem:[%s1936 + $0x8] sm:$0xf]
  %v1940 = vld [vmem:[%s1936 + $0xc] sm:$0xf]
  %v1942 = vunpack.c.l.b16 %v1935
  %v1943 = vpack.c.b16 %v1942, %v1942
  %v1945 = vshrl.u32 %v1808, 16
  %v1947 = vrot.slane %v1945, 1
  %v1948 = vshll.u32 %v1808, 16
  %v1950 = vrot.slane %v1948, 2
  %v1951 = vor.u32 %v1947, %v1950
  %v1953 = vshrl.u32 %v1809, 16
  %v1955 = vrot.slane %v1953, 1
  %v1956 = vshll.u32 %v1809, 16
  %v1958 = vrot.slane %v1956, 2
  %v1959 = vor.u32 %v1955, %v1958
  %v1960 = vsel %vm450, %v1951, %v1959
  %v1962 = vshrl.u32 %v1810, 16
  %v1964 = vrot.slane %v1962, 1
  %v1965 = vshll.u32 %v1810, 16
  %v1967 = vrot.slane %v1965, 2
  %v1968 = vor.u32 %v1964, %v1967
  %v1969 = vsel %vm450, %v1959, %v1968
  %v1971 = vshrl.u32 %v1811, 16
  %v1973 = vrot.slane %v1971, 1
  %v1974 = vshll.u32 %v1811, 16
  %v1976 = vrot.slane %v1974, 2
  %v1977 = vor.u32 %v1973, %v1976
  %v1978 = vsel %vm450, %v1968, %v1977
  %v1980 = vshrl.u32 %v1812, 16
  %v1982 = vrot.slane %v1980, 1
  %v1983 = vshll.u32 %v1812, 16
  %v1985 = vrot.slane %v1983, 2
  %v1986 = vor.u32 %v1982, %v1985
  %v1987 = vsel %vm450, %v1977, %v1986
  %v1989 = vshrl.u32 %v1943, 16
  %v1991 = vrot.slane %v1989, 1
  %v1992 = vshll.u32 %v1943, 16
  %v1994 = vrot.slane %v1992, 2
  %v1995 = vor.u32 %v1991, %v1994
  %v1996 = vsel %vm450, %v1986, %v1995
  %v2001 = vunpack.c.l.b16 %v1937
  %v2002 = vunpack.c.l.b16 %v1938
  %v2003 = vunpack.c.l.b16 %v1939
  %v2004 = vunpack.c.l.b16 %v1940
  %v2005 = vpack.c.b16 %v2002, %v2001
  %v2006 = vpack.c.b16 %v2004, %v2003
  %v2010 = vsel %vm126, %v1960, 0
  %v2013 = vsel %vm126, %v1969, 0
  %v2016 = vsel %vm126, %v1978, 0
  %v2019 = vsel %vm126, %v1987, 0
  %v2022 = vsel %vm126, %v1996, 0
  %2024 = vmatprep.subr.bf16.mxu0 0
  %2025 = vmatpush1.bf16.msra.mxu0 %v2005
  %2026 = vmatprep.subr.bf16.mxu0 0
  %2027 = vmatpush1.bf16.msra.mxu0 %v2006
  %2028 = vmatprep.subr.bf16.mxu0 0
  %2029 = vmatpush1.bf16.msra.mxu0 0
  %2030 = vmatprep.subr.bf16.mxu0 0
  %2031 = vmatpush1.bf16.msra.mxu0 0
  %2032 = vmatprep.subr.bf16.mxu0 0
  %2033 = vmatpush1.bf16.msra.mxu0 0
  %2034 = vmatprep.subr.bf16.mxu0 0
  %2035 = vmatpush1.bf16.msra.mxu0 0
  %2036 = vmatprep.subr.bf16.mxu0 0
  %2037 = vmatpush1.bf16.msra.mxu0 0
  %2038 = vmatprep.subr.bf16.mxu0 0
  %2039 = vmatpush1.bf16.msra.mxu0 0
  %2040 = vmatprep.subr.bf16.mxu0 0
  %2041 = vmatpush1.bf16.msra.mxu0 0
  %2042 = vmatprep.subr.bf16.mxu0 0
  %2043 = vmatpush1.bf16.msra.mxu0 0
  %2044 = vmatprep.subr.bf16.mxu0 0
  %2045 = vmatpush1.bf16.msra.mxu0 0
  %2046 = vmatprep.subr.bf16.mxu0 0
  %2047 = vmatpush1.bf16.msra.mxu0 0
  %2048 = vmatprep.subr.bf16.mxu0 0
  %2049 = vmatpush1.bf16.msra.mxu0 0
  %2050 = vmatprep.subr.bf16.mxu0 0
  %2051 = vmatpush1.bf16.msra.mxu0 0
  %2052 = vmatprep.subr.bf16.mxu0 0
  %2053 = vmatpush1.bf16.msra.mxu0 0
  %2054 = vmatprep.subr.bf16.mxu0 0
  %2055 = vmatpush1.bf16.msra.mxu0 0
  %2056 = vmatprep.mubr.bf16.mxu0 0
  %2057 = vmatmul.mubr.bf16.gmra.mrb[0].mxu0 %v2010
  %v2058 = vpop.f32.mrb[0].mxu0
  %v2059 = vadd.f32 0.0, %v2058
  %v2060 = vpop.f32.mrb[0].mxu0
  %v2061 = vpop.f32.mrb[0].mxu0
  %v2062 = vadd.f32 0.0, %v2061
  %v2063 = vpop.f32.mrb[0].mxu0
  %2064 = vmatprep.mubr.bf16.mxu0 0
  %2065 = vmatmul.mubr.bf16.gmra.mrb[0].mxu0 %v2013
  %v2066 = vpop.f32.mrb[0].mxu0
  %v2067 = vadd.f32 0.0, %v2066
  %v2068 = vpop.f32.mrb[0].mxu0
  %v2069 = vpop.f32.mrb[0].mxu0
  %v2070 = vadd.f32 0.0, %v2069
  %v2071 = vpop.f32.mrb[0].mxu0
  %2072 = vmatprep.mubr.bf16.mxu0 0
  %2073 = vmatmul.mubr.bf16.gmra.mrb[0].mxu0 %v2016
  %v2074 = vpop.f32.mrb[0].mxu0
  %v2075 = vadd.f32 0.0, %v2074
  %v2076 = vpop.f32.mrb[0].mxu0
  %v2077 = vpop.f32.mrb[0].mxu0
  %v2078 = vadd.f32 0.0, %v2077
  %v2079 = vpop.f32.mrb[0].mxu0
  %2080 = vmatprep.mubr.bf16.mxu0 0
  %2081 = vmatmul.mubr.bf16.gmra.mrb[0].mxu0 %v2019
  %v2082 = vpop.f32.mrb[0].mxu0
  %v2083 = vadd.f32 0.0, %v2082
  %v2084 = vpop.f32.mrb[0].mxu0
  %v2085 = vpop.f32.mrb[0].mxu0
  %v2086 = vadd.f32 0.0, %v2085
  %v2087 = vpop.f32.mrb[0].mxu0
  %2088 = vmatprep.mubr.bf16.mxu0 0
  %2089 = vmatmul.mubr.bf16.gmra.mrb[0].mxu0 %v2022
  %v2090 = vpop.f32.mrb[0].mxu0
  %v2091 = vadd.f32 0.0, %v2090
  %v2092 = vpop.f32.mrb[0].mxu0
  %v2093 = vpop.f32.mrb[0].mxu0
  %v2094 = vadd.f32 0.0, %v2093
  %v2095 = vpop.f32.mrb[0].mxu0
  %2096 = vdwg.mxu0
  %v2097 = vadd.f32 %v1925, %v2059
  %v2098 = vadd.f32 %v1926, %v2062
  %v2099 = vadd.f32 %v1927, %v2067
  %v2100 = vadd.f32 %v1928, %v2070
  %v2101 = vadd.f32 %v1929, %v2075
  %v2102 = vadd.f32 %v1930, %v2078
  %v2103 = vadd.f32 %v1931, %v2083
  %v2104 = vadd.f32 %v1932, %v2086
  %v2105 = vadd.f32 %v1933, %v2091
  %v2106 = vadd.f32 %v1934, %v2094
  %v2107 = vld [vmem:[%s0 + $0x8] sm:$0xc]
  %s2108 = scalar_lea.vmem %s1, 224
  %v2109 = vld [vmem:[%s2108] sm:$0xf]
  %v2110 = vld [vmem:[%s2108 + $0x4] sm:$0xf]
  %v2111 = vld [vmem:[%s2108 + $0x8] sm:$0xf]
  %v2112 = vld [vmem:[%s2108 + $0xc] sm:$0xf]
  %v2114 = vunpack.c.l.b16 %v2107
  %v2115 = vpack.c.b16 %v1798, %v2114
  %v2116 = vrot.slane %v2115, 2
  %v2117 = vrot.slane %v1809, 2
  %v2118 = vsel %vm1213, %v2116, %v2117
  %v2119 = vrot.slane %v1810, 2
  %v2120 = vsel %vm1213, %v2117, %v2119
  %v2121 = vrot.slane %v1811, 2
  %v2122 = vsel %vm1213, %v2119, %v2121
  %v2123 = vrot.slane %v1812, 2
  %v2124 = vsel %vm1213, %v2121, %v2123
  %v2125 = vrot.slane %v1943, 2
  %v2126 = vsel %vm1213, %v2123, %v2125
  %v2131 = vunpack.c.l.b16 %v2109
  %v2132 = vunpack.c.l.b16 %v2110
  %v2133 = vunpack.c.l.b16 %v2111
  %v2134 = vunpack.c.l.b16 %v2112
  %v2135 = vpack.c.b16 %v2132, %v2131
  %v2136 = vpack.c.b16 %v2134, %v2133
  %v2140 = vsel %vm126, %v2118, 0
  %v2143 = vsel %vm126, %v2120, 0
  %v2146 = vsel %vm126, %v2122, 0
  %v2149 = vsel %vm126, %v2124, 0
  %v2152 = vsel %vm126, %v2126, 0
  %2154 = vmatprep.subr.bf16.mxu0 0
  %2155 = vmatpush1.bf16.msra.mxu0 %v2135
  %2156 = vmatprep.subr.bf16.mxu0 0
  %2157 = vmatpush1.bf16.msra.mxu0 %v2136
  %2158 = vmatprep.subr.bf16.mxu0 0
  %2159 = vmatpush1.bf16.msra.mxu0 0
  %2160 = vmatprep.subr.bf16.mxu0 0
  %2161 = vmatpush1.bf16.msra.mxu0 0
  %2162 = vmatprep.subr.bf16.mxu0 0
  %2163 = vmatpush1.bf16.msra.mxu0 0
  %2164 = vmatprep.subr.bf16.mxu0 0
  %2165 = vmatpush1.bf16.msra.mxu0 0
  %2166 = vmatprep.subr.bf16.mxu0 0
  %2167 = vmatpush1.bf16.msra.mxu0 0
  %2168 = vmatprep.subr.bf16.mxu0 0
  %2169 = vmatpush1.bf16.msra.mxu0 0
  %2170 = vmatprep.subr.bf16.mxu0 0
  %2171 = vmatpush1.bf16.msra.mxu0 0
  %2172 = vmatprep.subr.bf16.mxu0 0
  %2173 = vmatpush1.bf16.msra.mxu0 0
  %2174 = vmatprep.subr.bf16.mxu0 0
  %2175 = vmatpush1.bf16.msra.mxu0 0
  %2176 = vmatprep.subr.bf16.mxu0 0
  %2177 = vmatpush1.bf16.msra.mxu0 0
  %2178 = vmatprep.subr.bf16.mxu0 0
  %2179 = vmatpush1.bf16.msra.mxu0 0
  %2180 = vmatprep.subr.bf16.mxu0 0
  %2181 = vmatpush1.bf16.msra.mxu0 0
  %2182 = vmatprep.subr.bf16.mxu0 0
  %2183 = vmatpush1.bf16.msra.mxu0 0
  %2184 = vmatprep.subr.bf16.mxu0 0
  %2185 = vmatpush1.bf16.msra.mxu0 0
  %2186 = vmatprep.mubr.bf16.mxu0 0
  %2187 = vmatmul.mubr.bf16.gmra.mrb[0].mxu0 %v2140
  %v2188 = vpop.f32.mrb[0].mxu0
  %v2189 = vadd.f32 0.0, %v2188
  %v2190 = vpop.f32.mrb[0].mxu0
  %v2191 = vpop.f32.mrb[0].mxu0
  %v2192 = vadd.f32 0.0, %v2191
  %v2193 = vpop.f32.mrb[0].mxu0
  %2194 = vmatprep.mubr.bf16.mxu0 0
  %2195 = vmatmul.mubr.bf16.gmra.mrb[0].mxu0 %v2143
  %v2196 = vpop.f32.mrb[0].mxu0
  %v2197 = vadd.f32 0.0, %v2196
  %v2198 = vpop.f32.mrb[0].mxu0
  %v2199 = vpop.f32.mrb[0].mxu0
  %v2200 = vadd.f32 0.0, %v2199
  %v2201 = vpop.f32.mrb[0].mxu0
  %2202 = vmatprep.mubr.bf16.mxu0 0
  %2203 = vmatmul.mubr.bf16.gmra.mrb[0].mxu0 %v2146
  %v2204 = vpop.f32.mrb[0].mxu0
  %v2205 = vadd.f32 0.0, %v2204
  %v2206 = vpop.f32.mrb[0].mxu0
  %v2207 = vpop.f32.mrb[0].mxu0
  %v2208 = vadd.f32 0.0, %v2207
  %v2209 = vpop.f32.mrb[0].mxu0
  %2210 = vmatprep.mubr.bf16.mxu0 0
  %2211 = vmatmul.mubr.bf16.gmra.mrb[0].mxu0 %v2149
  %v2212 = vpop.f32.mrb[0].mxu0
  %v2213 = vadd.f32 0.0, %v2212
  %v2214 = vpop.f32.mrb[0].mxu0
  %v2215 = vpop.f32.mrb[0].mxu0
  %v2216 = vadd.f32 0.0, %v2215
  %v2217 = vpop.f32.mrb[0].mxu0
  %2218 = vmatprep.mubr.bf16.mxu0 0
  %2219 = vmatmul.mubr.bf16.gmra.mrb[0].mxu0 %v2152
  %v2220 = vpop.f32.mrb[0].mxu0
  %v2221 = vadd.f32 0.0, %v2220
  %v2222 = vpop.f32.mrb[0].mxu0
  %v2223 = vpop.f32.mrb[0].mxu0
  %v2224 = vadd.f32 0.0, %v2223
  %v2225 = vpop.f32.mrb[0].mxu0
  %2226 = vdwg.mxu0
  %v2227 = vadd.f32 %v2097, %v2189
  %v2228 = vadd.f32 %v2098, %v2192
  %v2229 = vadd.f32 %v2099, %v2197
  %v2230 = vadd.f32 %v2100, %v2200
  %v2231 = vadd.f32 %v2101, %v2205
  %v2232 = vadd.f32 %v2102, %v2208
  %v2233 = vadd.f32 %v2103, %v2213
  %v2234 = vadd.f32 %v2104, %v2216
  %v2235 = vadd.f32 %v2105, %v2221
  %v2236 = vadd.f32 %v2106, %v2224
  %v2237 = vld [vmem:[%s0 + $0x30] sm:$0x7]
  %s2238 = scalar_lea.vmem %s1, 240
  %v2239 = vld [vmem:[%s2238] sm:$0xf]
  %v2240 = vld [vmem:[%s2238 + $0x4] sm:$0xf]
  %v2241 = vld [vmem:[%s2238 + $0x8] sm:$0xf]
  %v2242 = vld [vmem:[%s2238 + $0xc] sm:$0xf]
  %v2244 = vunpack.c.l.b16 %v2237
  %v2245 = vpack.c.b16 %v2244, %v2244
  %v2247 = vshrl.u32 %v2115, 16
  %v2249 = vrot.slane %v2247, 2
  %v2250 = vshll.u32 %v2115, 16
  %v2252 = vrot.slane %v2250, 3
  %v2253 = vor.u32 %v2249, %v2252
  %v2254 = vrot.slane %v1953, 2
  %v2255 = vrot.slane %v1956, 3
  %v2256 = vor.u32 %v2254, %v2255
  %v2257 = vsel %vm1344, %v2253, %v2256
  %v2258 = vrot.slane %v1962, 2
  %v2259 = vrot.slane %v1965, 3
  %v2260 = vor.u32 %v2258, %v2259
  %v2261 = vsel %vm1344, %v2256, %v2260
  %v2262 = vrot.slane %v1971, 2
  %v2263 = vrot.slane %v1974, 3
  %v2264 = vor.u32 %v2262, %v2263
  %v2265 = vsel %vm1344, %v2260, %v2264
  %v2266 = vrot.slane %v1980, 2
  %v2267 = vrot.slane %v1983, 3
  %v2268 = vor.u32 %v2266, %v2267
  %v2269 = vsel %vm1344, %v2264, %v2268
  %v2271 = vshrl.u32 %v2245, 16
  %v2273 = vrot.slane %v2271, 2
  %v2274 = vshll.u32 %v2245, 16
  %v2276 = vrot.slane %v2274, 3
  %v2277 = vor.u32 %v2273, %v2276
  %v2278 = vsel %vm1344, %v2268, %v2277
  %v2283 = vunpack.c.l.b16 %v2239
  %v2284 = vunpack.c.l.b16 %v2240
  %v2285 = vunpack.c.l.b16 %v2241
  %v2286 = vunpack.c.l.b16 %v2242
  %v2287 = vpack.c.b16 %v2284, %v2283
  %v2288 = vpack.c.b16 %v2286, %v2285
  %v2292 = vsel %vm126, %v2257, 0
  %v2295 = vsel %vm126, %v2261, 0
  %v2298 = vsel %vm126, %v2265, 0
  %v2301 = vsel %vm126, %v2269, 0
  %v2304 = vsel %vm126, %v2278, 0
  %2306 = vmatprep.subr.bf16.mxu0 0
  %2307 = vmatpush1.bf16.msra.mxu0 %v2287
  %2308 = vmatprep.subr.bf16.mxu0 0
  %2309 = vmatpush1.bf16.msra.mxu0 %v2288
  %2310 = vmatprep.subr.bf16.mxu0 0
  %2311 = vmatpush1.bf16.msra.mxu0 0
  %2312 = vmatprep.subr.bf16.mxu0 0
  %2313 = vmatpush1.bf16.msra.mxu0 0
  %2314 = vmatprep.subr.bf16.mxu0 0
  %2315 = vmatpush1.bf16.msra.mxu0 0
  %2316 = vmatprep.subr.bf16.mxu0 0
  %2317 = vmatpush1.bf16.msra.mxu0 0
  %2318 = vmatprep.subr.bf16.mxu0 0
  %2319 = vmatpush1.bf16.msra.mxu0 0
  %2320 = vmatprep.subr.bf16.mxu0 0
  %2321 = vmatpush1.bf16.msra.mxu0 0
  %2322 = vmatprep.subr.bf16.mxu0 0
  %2323 = vmatpush1.bf16.msra.mxu0 0
  %2324 = vmatprep.subr.bf16.mxu0 0
  %2325 = vmatpush1.bf16.msra.mxu0 0
  %2326 = vmatprep.subr.bf16.mxu0 0
  %2327 = vmatpush1.bf16.msra.mxu0 0
  %2328 = vmatprep.subr.bf16.mxu0 0
  %2329 = vmatpush1.bf16.msra.mxu0 0
  %2330 = vmatprep.subr.bf16.mxu0 0
  %2331 = vmatpush1.bf16.msra.mxu0 0
  %2332 = vmatprep.subr.bf16.mxu0 0
  %2333 = vmatpush1.bf16.msra.mxu0 0
  %2334 = vmatprep.subr.bf16.mxu0 0
  %2335 = vmatpush1.bf16.msra.mxu0 0
  %2336 = vmatprep.subr.bf16.mxu0 0
  %2337 = vmatpush1.bf16.msra.mxu0 0
  %2338 = vmatprep.mubr.bf16.mxu0 0
  %2339 = vmatmul.mubr.bf16.gmra.mrb[0].mxu0 %v2292
  %v2340 = vpop.f32.mrb[0].mxu0
  %v2341 = vadd.f32 0.0, %v2340
  %v2342 = vpop.f32.mrb[0].mxu0
  %v2343 = vpop.f32.mrb[0].mxu0
  %v2344 = vadd.f32 0.0, %v2343
  %v2345 = vpop.f32.mrb[0].mxu0
  %2346 = vmatprep.mubr.bf16.mxu0 0
  %2347 = vmatmul.mubr.bf16.gmra.mrb[0].mxu0 %v2295
  %v2348 = vpop.f32.mrb[0].mxu0
  %v2349 = vadd.f32 0.0, %v2348
  %v2350 = vpop.f32.mrb[0].mxu0
  %v2351 = vpop.f32.mrb[0].mxu0
  %v2352 = vadd.f32 0.0, %v2351
  %v2353 = vpop.f32.mrb[0].mxu0
  %2354 = vmatprep.mubr.bf16.mxu0 0
  %2355 = vmatmul.mubr.bf16.gmra.mrb[0].mxu0 %v2298
  %v2356 = vpop.f32.mrb[0].mxu0
  %v2357 = vadd.f32 0.0, %v2356
  %v2358 = vpop.f32.mrb[0].mxu0
  %v2359 = vpop.f32.mrb[0].mxu0
  %v2360 = vadd.f32 0.0, %v2359
  %v2361 = vpop.f32.mrb[0].mxu0
  %2362 = vmatprep.mubr.bf16.mxu0 0
  %2363 = vmatmul.mubr.bf16.gmra.mrb[0].mxu0 %v2301
  %v2364 = vpop.f32.mrb[0].mxu0
  %v2365 = vadd.f32 0.0, %v2364
  %v2366 = vpop.f32.mrb[0].mxu0
  %v2367 = vpop.f32.mrb[0].mxu0
  %v2368 = vadd.f32 0.0, %v2367
  %v2369 = vpop.f32.mrb[0].mxu0
  %2370 = vmatprep.mubr.bf16.mxu0 0
  %2371 = vmatmul.mubr.bf16.gmra.mrb[0].mxu0 %v2304
  %v2372 = vpop.f32.mrb[0].mxu0
  %v2373 = vadd.f32 0.0, %v2372
  %v2374 = vpop.f32.mrb[0].mxu0
  %v2375 = vpop.f32.mrb[0].mxu0
  %v2376 = vadd.f32 0.0, %v2375
  %v2377 = vpop.f32.mrb[0].mxu0
  %2378 = vdwg.mxu0
  %v2379 = vadd.f32 %v2227, %v2341
  %v2380 = vadd.f32 %v2228, %v2344
  %v2381 = vadd.f32 %v2229, %v2349
  %v2382 = vadd.f32 %v2230, %v2352
  %v2383 = vadd.f32 %v2231, %v2357
  %v2384 = vadd.f32 %v2232, %v2360
  %v2385 = vadd.f32 %v2233, %v2365
  %v2386 = vadd.f32 %v2234, %v2368
  %v2387 = vadd.f32 %v2235, %v2373
  %v2388 = vadd.f32 %v2236, %v2376
  %v2389 = vld [vmem:[%s2] sm:$0xff]
  %v2390 = vld [vmem:[%s2 + $0x8] sm:$0xff]
  %v2391 = vld [vmem:[%s2 + $0x10] sm:$0xff]
  %v2392 = vld [vmem:[%s2 + $0x18] sm:$0xff]
  %v2393 = vld [vmem:[%s2 + $0x20] sm:$0xff]
  %v2394 = vld [vmem:[%s2 + $0x28] sm:$0xff]
  %v2395 = vld [vmem:[%s2 + $0x30] sm:$0xff]
  %v2396 = vld [vmem:[%s2 + $0x38] sm:$0xff]
  %v2397 = vld [vmem:[%s2 + $0x40] sm:$0xff]
  %v2398 = vld [vmem:[%s2 + $0x48] sm:$0xff]
  %2400 = vset.pattern.permute.xlu0 0
  %2401 = vperm.xlu0 %2400, %v2389
  %v2402 = vpop.permute.xlu0 %2401
  %2405 = vset.pattern.permute.xlu0 0
  %2406 = vperm.xlu0 %2405, %v2390
  %v2407 = vpop.permute.xlu0 %2406
  %2410 = vset.pattern.permute.xlu0 0
  %2411 = vperm.xlu0 %2410, %v2391
  %v2412 = vpop.permute.xlu0 %2411
  %2415 = vset.pattern.permute.xlu0 0
  %2416 = vperm.xlu0 %2415, %v2392
  %v2417 = vpop.permute.xlu0 %2416
  %2420 = vset.pattern.permute.xlu0 0
  %2421 = vperm.xlu0 %2420, %v2393
  %v2422 = vpop.permute.xlu0 %2421
  %2425 = vset.pattern.permute.xlu0 0
  %2426 = vperm.xlu0 %2425, %v2394
  %v2427 = vpop.permute.xlu0 %2426
  %2430 = vset.pattern.permute.xlu0 0
  %2431 = vperm.xlu0 %2430, %v2395
  %v2432 = vpop.permute.xlu0 %2431
  %2435 = vset.pattern.permute.xlu0 0
  %2436 = vperm.xlu0 %2435, %v2396
  %v2437 = vpop.permute.xlu0 %2436
  %2440 = vset.pattern.permute.xlu0 0
  %2441 = vperm.xlu0 %2440, %v2397
  %v2442 = vpop.permute.xlu0 %2441
  %2445 = vset.pattern.permute.xlu0 0
  %2446 = vperm.xlu0 %2445, %v2398
  %v2447 = vpop.permute.xlu0 %2446
  %v2449 = vmul.f32 %v2379, %v2402
  %v2450 = vmul.f32 %v2380, %v2407
  %v2451 = vmul.f32 %v2381, %v2412
  %v2452 = vmul.f32 %v2382, %v2417
  %v2453 = vmul.f32 %v2383, %v2422
  %v2454 = vmul.f32 %v2384, %v2427
  %v2455 = vmul.f32 %v2385, %v2432
  %v2456 = vmul.f32 %v2386, %v2437
  %v2457 = vmul.f32 %v2387, %v2442
  %v2458 = vmul.f32 %v2388, %v2447
  %v2459 = vadd.f32 %v2449, %v2450
  %v2460 = vadd.f32 %v2459, %v2451
  %v2461 = vadd.f32 %v2460, %v2452
  %v2462 = vadd.f32 %v2461, %v2453
  %v2463 = vadd.f32 %v2462, %v2454
  %v2464 = vadd.f32 %v2463, %v2455
  %v2465 = vadd.f32 %v2464, %v2456
  %v2466 = vadd.f32 %v2465, %v2457
  %v2467 = vadd.f32 %v2466, %v2458
  %v2468 = vrot.slane %v2467, 4
  %v2469 = vadd.f32 %v2467, %v2468
  %v2470 = vrot.slane %v2469, 2
  %v2471 = vadd.f32 %v2469, %v2470
  %v2472 = vrot.slane %v2471, 1
  %v2473 = vadd.f32 %v2471, %v2472
  %v2474 = vmul.f32 %v2473, 0.055555556
  %v2475 = vsub.f32 %v2379, %v2474
  %v2476 = vsub.f32 %v2380, %v2474
  %v2477 = vsub.f32 %v2381, %v2474
  %v2478 = vsub.f32 %v2382, %v2474
  %v2479 = vsub.f32 %v2383, %v2474
  %v2480 = vsub.f32 %v2384, %v2474
  %v2481 = vsub.f32 %v2385, %v2474
  %v2482 = vsub.f32 %v2386, %v2474
  %v2483 = vsub.f32 %v2387, %v2474
  %v2484 = vsub.f32 %v2388, %v2474
  %v2485 = vmul.f32 %v2475, %v2475
  %v2486 = vmul.f32 %v2476, %v2476
  %v2487 = vmul.f32 %v2477, %v2477
  %v2488 = vmul.f32 %v2478, %v2478
  %v2489 = vmul.f32 %v2479, %v2479
  %v2490 = vmul.f32 %v2480, %v2480
  %v2491 = vmul.f32 %v2481, %v2481
  %v2492 = vmul.f32 %v2482, %v2482
  %v2493 = vmul.f32 %v2483, %v2483
  %v2494 = vmul.f32 %v2484, %v2484
  %v2495 = vmul.f32 %v2485, %v2402
  %v2496 = vmul.f32 %v2486, %v2407
  %v2497 = vmul.f32 %v2487, %v2412
  %v2498 = vmul.f32 %v2488, %v2417
  %v2499 = vmul.f32 %v2489, %v2422
  %v2500 = vmul.f32 %v2490, %v2427
  %v2501 = vmul.f32 %v2491, %v2432
  %v2502 = vmul.f32 %v2492, %v2437
  %v2503 = vmul.f32 %v2493, %v2442
  %v2504 = vmul.f32 %v2494, %v2447
  %v2505 = vadd.f32 %v2495, %v2496
  %v2506 = vadd.f32 %v2505, %v2497
  %v2507 = vadd.f32 %v2506, %v2498
  %v2508 = vadd.f32 %v2507, %v2499
  %v2509 = vadd.f32 %v2508, %v2500
  %v2510 = vadd.f32 %v2509, %v2501
  %v2511 = vadd.f32 %v2510, %v2502
  %v2512 = vadd.f32 %v2511, %v2503
  %v2513 = vadd.f32 %v2512, %v2504
  %v2514 = vrot.slane %v2513, 4
  %v2515 = vadd.f32 %v2513, %v2514
  %v2516 = vrot.slane %v2515, 2
  %v2517 = vadd.f32 %v2515, %v2516
  %v2518 = vrot.slane %v2517, 1
  %v2519 = vadd.f32 %v2517, %v2518
  %v2520 = vmul.f32 %v2519, 0.055555556
  %v2521 = vld [vmem:[%s3] sm:$0x1]
  %v2522 = vadd.f32 %v2520, 1e-05
  %v2523 = vrsqrt.pop %v2522
  %v2524 = vmul.f32 %v2521, %v2523
  %v2526 = vlaneseq
  %v2527 = vshrl.u32 %v2526, 7
  %v2528 = vsub.s32 0, %v2527
  %v2529 = vrot.slane %v2524, %v2528
  %v2531 = vmul.f32 %v2475, %v2529
  %v2532 = vmul.f32 %v2476, %v2529
  %v2533 = vmul.f32 %v2477, %v2529
  %v2534 = vmul.f32 %v2478, %v2529
  %v2535 = vmul.f32 %v2479, %v2529
  %v2536 = vmul.f32 %v2480, %v2529
  %v2537 = vmul.f32 %v2481, %v2529
  %v2538 = vmul.f32 %v2482, %v2529
  %v2539 = vmul.f32 %v2483, %v2529
  %v2540 = vmul.f32 %v2484, %v2529
  %v2541 = vld [vmem:[%s4] sm:$0x1]
  %v2543 = vlaneseq
  %v2544 = vshrl.u32 %v2543, 7
  %v2545 = vsub.s32 0, %v2544
  %v2546 = vrot.slane %v2541, %v2545
  %v2548 = vadd.f32 %v2531, %v2546
  %v2549 = vadd.f32 %v2532, %v2546
  %v2550 = vadd.f32 %v2533, %v2546
  %v2551 = vadd.f32 %v2534, %v2546
  %v2552 = vadd.f32 %v2535, %v2546
  %v2553 = vadd.f32 %v2536, %v2546
  %v2554 = vadd.f32 %v2537, %v2546
  %v2555 = vadd.f32 %v2538, %v2546
  %v2556 = vadd.f32 %v2539, %v2546
  %v2557 = vadd.f32 %v2540, %v2546
  %vm2558 = vcmp.ge.f32.partialorder %v2548, 0.0
  %vm2559 = vcmp.ge.f32.partialorder %v2549, 0.0
  %vm2560 = vcmp.ge.f32.partialorder %v2550, 0.0
  %vm2561 = vcmp.ge.f32.partialorder %v2551, 0.0
  %vm2562 = vcmp.ge.f32.partialorder %v2552, 0.0
  %vm2563 = vcmp.ge.f32.partialorder %v2553, 0.0
  %vm2564 = vcmp.ge.f32.partialorder %v2554, 0.0
  %vm2565 = vcmp.ge.f32.partialorder %v2555, 0.0
  %vm2566 = vcmp.ge.f32.partialorder %v2556, 0.0
  %vm2567 = vcmp.ge.f32.partialorder %v2557, 0.0
  %v2568 = vmul.f32 %v2548, 0.2
  %v2569 = vmul.f32 %v2549, 0.2
  %v2570 = vmul.f32 %v2550, 0.2
  %v2571 = vmul.f32 %v2551, 0.2
  %v2572 = vmul.f32 %v2552, 0.2
  %v2573 = vmul.f32 %v2553, 0.2
  %v2574 = vmul.f32 %v2554, 0.2
  %v2575 = vmul.f32 %v2555, 0.2
  %v2576 = vmul.f32 %v2556, 0.2
  %v2577 = vmul.f32 %v2557, 0.2
  %v2578 = vsel %vm2558, %v2548, %v2568
  %v2579 = vsel %vm2559, %v2549, %v2569
  %v2580 = vsel %vm2560, %v2550, %v2570
  %v2581 = vsel %vm2561, %v2551, %v2571
  %v2582 = vsel %vm2562, %v2552, %v2572
  %v2583 = vsel %vm2563, %v2553, %v2573
  %v2584 = vsel %vm2564, %v2554, %v2574
  %v2585 = vsel %vm2565, %v2555, %v2575
  %v2586 = vsel %vm2566, %v2556, %v2576
  %v2587 = vsel %vm2567, %v2557, %v2577
  %v2588 = vpack.c.bf16 %v2579, %v2578
  %v2589 = vpack.c.bf16 %v2581, %v2580
  %v2590 = vpack.c.bf16 %v2583, %v2582
  %v2591 = vpack.c.bf16 %v2585, %v2584
  %v2592 = vpack.c.bf16 %v2587, %v2586
  %v2598 = vunpack.c.l.b16 %v2588
  %v2599 = vunpack.c.h.b16 %v2588
  %v2600 = vunpack.c.l.b16 %v2589
  %v2601 = vunpack.c.h.b16 %v2589
  %v2602 = vunpack.c.l.b16 %v2590
  %v2603 = vunpack.c.h.b16 %v2590
  %v2604 = vunpack.c.l.b16 %v2591
  %v2605 = vunpack.c.h.b16 %v2591
  %v2606 = vunpack.c.l.b16 %v2592
  %v2607 = vunpack.c.h.b16 %v2592
  %v2608 = vpack.c.b16 %v2598, %v2598
  %v2609 = vpack.c.b16 %v2599, %v2599
  %v2610 = vpack.c.b16 %v2600, %v2600
  %v2611 = vpack.c.b16 %v2601, %v2601
  %v2612 = vpack.c.b16 %v2602, %v2602
  %v2613 = vpack.c.b16 %v2603, %v2603
  %v2614 = vpack.c.b16 %v2604, %v2604
  %v2615 = vpack.c.b16 %v2605, %v2605
  %v2616 = vpack.c.b16 %v2606, %v2606
  %v2617 = vpack.c.b16 %v2607, %v2607
  %2628 = vst [vmem:[%s5] sm:$0xf] %v2608
  %2629 = vst [vmem:[%s5 + $0x4] sm:$0xf] %v2609
  %2630 = vst [vmem:[%s5 + $0x8] sm:$0xf] %v2610
  %2631 = vst [vmem:[%s5 + $0xc] sm:$0xf] %v2611
  %2632 = vst [vmem:[%s5 + $0x10] sm:$0xf] %v2612
  %2633 = vst [vmem:[%s5 + $0x14] sm:$0xf] %v2613
  %2634 = vst [vmem:[%s5 + $0x18] sm:$0xf] %v2614
  %2635 = vst [vmem:[%s5 + $0x1c] sm:$0xf] %v2615
  %2636 = vst [vmem:[%s5 + $0x20] sm:$0xf] %v2616
  %2637 = vst [vmem:[%s5 + $0x24] sm:$0xf] %v2617
  // Predicated region
  $region22: #{forward.8} parent=0 // pred_check
    _
  $region23: #{forward.8} parent=0 // pred_check_branch
    %2639 = sbr.rel (0) target = $region25
  $region24: #{forward.8} parent=0 // pred_region
    _
  $region25: #{forward.8} parent=0 // pred_fallthru
    _
  // Predicated region
  $region26: #{forward.8} parent=0 // pred_check
    _
  $region27: #{forward.8} parent=0 // pred_check_branch
    %2641 = sbr.rel (0) target = $region29
  $region28: #{forward.8} parent=0 // pred_region
    _
  $region29: #{forward.8} parent=0 // pred_fallthru
    _

// kernel: forward.9
$region0: #{forward.9}
  #allocation0 [shape = 'u32[]', space=smem, size = 0x4, offset = 0x4, fixed_abs, tag = 'smem constant byte address 0x4 - core index']
  #allocation1 [shape = 'u32[144,128]{1,0:T(1,128)}', space=vmem, size = 0x12000, scoped, tag = 'internal scratch']
  %s0 = inlined_call_operand.vmem [shape: bf16[88,64], index: 0, kind: input, shape index: {}]
  %s1 = inlined_call_operand.vmem [shape: bf16[16,64,128], index: 1, kind: input, shape index: {}]
  %s2 = inlined_call_operand.vmem [shape: f32[1,128], index: 2, kind: input, shape index: {}]
  %s3 = inlined_call_operand.vmem [shape: f32[64,128], index: 3, kind: output, shape index: {}]
  %s4 = sld [smem:[#allocation0]]
  $region22: #{forward.9} parent=0
    _
  %s6 = ssub.s32 1, %s4
  %s7 = scalar_select 0, %s6, %s4
  // Predicated region
  $region2: #{forward.9} parent=0 // pred_check
    _
  $region3: #{forward.9} parent=0 // pred_check_branch
    %9 = sbr.rel (0) target = $region5
  $region4: #{forward.9} parent=0 // pred_region
    _
  $region5: #{forward.9} parent=0 // pred_fallthru
    _
  // Predicated region
  $region6: #{forward.9} parent=0 // pred_check
    _
  $region7: #{forward.9} parent=0 // pred_check_branch
    %11 = sbr.rel (0) target = $region9
  $region8: #{forward.9} parent=0 // pred_region
    _
  $region9: #{forward.9} parent=0 // pred_fallthru
    _
  // Predicated region
  $region10: #{forward.9} parent=0 // pred_check
    _
  $region11: #{forward.9} parent=0 // pred_check_branch
    %13 = sbr.rel (0) target = $region13
  $region12: #{forward.9} parent=0 // pred_region
    _
  $region13: #{forward.9} parent=0 // pred_fallthru
    _
  %v15 = vld [vmem:[%s0] sm:$0xf]
  %v16 = vld [vmem:[%s0 + $0x4] sm:$0xf]
  %v17 = vld [vmem:[%s0 + $0x8] sm:$0xf]
  %v18 = vld [vmem:[%s0 + $0xc] sm:$0xf]
  %v19 = vld [vmem:[%s0 + $0x10] sm:$0xf]
  %v20 = vld [vmem:[%s0 + $0x14] sm:$0xf]
  %v21 = vld [vmem:[%s0 + $0x18] sm:$0xf]
  %v22 = vld [vmem:[%s0 + $0x1c] sm:$0xf]
  %v23 = vld [vmem:[%s1] sm:$0xf]
  %v24 = vld [vmem:[%s1 + $0x4] sm:$0xf]
  %v25 = vld [vmem:[%s1 + $0x8] sm:$0xf]
  %v26 = vld [vmem:[%s1 + $0xc] sm:$0xf]
  %v27 = vld [vmem:[%s1 + $0x10] sm:$0xf]
  %v28 = vld [vmem:[%s1 + $0x14] sm:$0xf]
  %v29 = vld [vmem:[%s1 + $0x18] sm:$0xf]
  %v30 = vld [vmem:[%s1 + $0x1c] sm:$0xf]
  %v31 = vld [vmem:[%s0 + $0x20] sm:$0x1]
  %s32 = scalar_lea.vmem %s1, 32
  %v33 = vld [vmem:[%s32] sm:$0xf]
  %v34 = vld [vmem:[%s32 + $0x4] sm:$0xf]
  %v35 = vld [vmem:[%s32 + $0x8] sm:$0xf]
  %v36 = vld [vmem:[%s32 + $0xc] sm:$0xf]
  %v37 = vld [vmem:[%s32 + $0x10] sm:$0xf]
  %v38 = vld [vmem:[%s32 + $0x14] sm:$0xf]
  %v39 = vld [vmem:[%s32 + $0x18] sm:$0xf]
  %v40 = vld [vmem:[%s32 + $0x1c] sm:$0xf]
  %v50 = vunpack.c.l.b16 %v15
  %v51 = vunpack.c.l.b16 %v16
  %v52 = vunpack.c.l.b16 %v17
  %v53 = vunpack.c.l.b16 %v18
  %v54 = vunpack.c.l.b16 %v19
  %v55 = vunpack.c.l.b16 %v20
  %v56 = vunpack.c.l.b16 %v21
  %v57 = vunpack.c.l.b16 %v22
  %v58 = vunpack.c.l.b16 %v31
  %v59 = vpack.c.b16 %v51, %v50
  %v60 = vpack.c.b16 %v53, %v52
  %v61 = vpack.c.b16 %v55, %v54
  %v62 = vpack.c.b16 %v57, %v56
  %v63 = vpack.c.b16 %v58, %v58
  %vm64 = vsmask.f32 7424
  %v66 = vshrl.u32 %v59, 16
  %v68 = vshll.u32 %v59, 16
  %v70 = vrot.slane %v68, 1
  %v71 = vor.u32 %v66, %v70
  %v73 = vshll.u32 %v60, 16
  %v75 = vrot.slane %v73, 1
  %v76 = vsel %vm64, %v71, %v75
  %v77 = vshrl.u32 %v60, 16
  %v79 = vor.u32 %v77, %v75
  %v81 = vshll.u32 %v61, 16
  %v83 = vrot.slane %v81, 1
  %v84 = vsel %vm64, %v79, %v83
  %v85 = vshrl.u32 %v61, 16
  %v87 = vor.u32 %v85, %v83
  %v89 = vshll.u32 %v62, 16
  %v91 = vrot.slane %v89, 1
  %v92 = vsel %vm64, %v87, %v91
  %v93 = vshrl.u32 %v62, 16
  %v95 = vor.u32 %v93, %v91
  %v97 = vshll.u32 %v63, 16
  %v99 = vrot.slane %v97, 1
  %v100 = vsel %vm64, %v95, %v99
  %v109 = vunpack.c.l.b16 %v33
  %v110 = vunpack.c.l.b16 %v34
  %v111 = vunpack.c.l.b16 %v35
  %v112 = vunpack.c.l.b16 %v36
  %v113 = vunpack.c.l.b16 %v37
  %v114 = vunpack.c.l.b16 %v38
  %v115 = vunpack.c.l.b16 %v39
  %v116 = vunpack.c.l.b16 %v40
  %v117 = vpack.c.b16 %v110, %v109
  %v118 = vpack.c.b16 %v112, %v111
  %v119 = vpack.c.b16 %v114, %v113
  %v120 = vpack.c.b16 %v116, %v115
  %vm125 = vcmask 523264
  %v127 = vsel %vm125, %v76, 0
  %v130 = vsel %vm125, %v84, 0
  %v133 = vsel %vm125, %v92, 0
  %v136 = vsel %vm125, %v100, 0
  %138 = vmatprep.subr.bf16.mxu0 0
  %139 = vmatpush1.bf16.msra.mxu0 %v117
  %140 = vmatprep.subr.bf16.mxu0 0
  %141 = vmatpush1.bf16.msra.mxu0 %v118
  %142 = vmatprep.subr.bf16.mxu0 0
  %143 = vmatpush1.bf16.msra.mxu0 %v119
  %144 = vmatprep.subr.bf16.mxu0 0
  %145 = vmatpush1.bf16.msra.mxu0 %v120
  %146 = vmatprep.subr.bf16.mxu0 0
  %147 = vmatpush1.bf16.msra.mxu0 0
  %148 = vmatprep.subr.bf16.mxu0 0
  %149 = vmatpush1.bf16.msra.mxu0 0
  %150 = vmatprep.subr.bf16.mxu0 0
  %151 = vmatpush1.bf16.msra.mxu0 0
  %152 = vmatprep.subr.bf16.mxu0 0
  %153 = vmatpush1.bf16.msra.mxu0 0
  %154 = vmatprep.subr.bf16.mxu0 0
  %155 = vmatpush1.bf16.msra.mxu0 0
  %156 = vmatprep.subr.bf16.mxu0 0
  %157 = vmatpush1.bf16.msra.mxu0 0
  %158 = vmatprep.subr.bf16.mxu0 0
  %159 = vmatpush1.bf16.msra.mxu0 0
  %160 = vmatprep.subr.bf16.mxu0 0
  %161 = vmatpush1.bf16.msra.mxu0 0
  %162 = vmatprep.subr.bf16.mxu0 0
  %163 = vmatpush1.bf16.msra.mxu0 0
  %164 = vmatprep.subr.bf16.mxu0 0
  %165 = vmatpush1.bf16.msra.mxu0 0
  %166 = vmatprep.subr.bf16.mxu0 0
  %167 = vmatpush1.bf16.msra.mxu0 0
  %168 = vmatprep.subr.bf16.mxu0 0
  %169 = vmatpush1.bf16.msra.mxu0 0
  %170 = vmatprep.mubr.bf16.mxu0 0
  %171 = vmatmul.mubr.bf16.gmra.mrb[0].mxu0 %v127
  %v172 = vpop.f32.mrb[0].mxu0
  %v173 = vadd.f32 0.0, %v172
  %v174 = vpop.f32.mrb[0].mxu0
  %v175 = vpop.f32.mrb[0].mxu0
  %v176 = vadd.f32 0.0, %v175
  %v177 = vpop.f32.mrb[0].mxu0
  %178 = vmatprep.mubr.bf16.mxu0 0
  %179 = vmatmul.mubr.bf16.gmra.mrb[0].mxu0 %v130
  %v180 = vpop.f32.mrb[0].mxu0
  %v181 = vadd.f32 0.0, %v180
  %v182 = vpop.f32.mrb[0].mxu0
  %v183 = vpop.f32.mrb[0].mxu0
  %v184 = vadd.f32 0.0, %v183
  %v185 = vpop.f32.mrb[0].mxu0
  %186 = vmatprep.mubr.bf16.mxu0 0
  %187 = vmatmul.mubr.bf16.gmra.mrb[0].mxu0 %v133
  %v188 = vpop.f32.mrb[0].mxu0
  %v189 = vadd.f32 0.0, %v188
  %v190 = vpop.f32.mrb[0].mxu0
  %v191 = vpop.f32.mrb[0].mxu0
  %v192 = vadd.f32 0.0, %v191
  %v193 = vpop.f32.mrb[0].mxu0
  %194 = vmatprep.mubr.bf16.mxu0 0
  %195 = vmatmul.mubr.bf16.gmra.mrb[0].mxu0 %v136
  %v196 = vpop.f32.mrb[0].mxu0
  %v197 = vadd.f32 0.0, %v196
  %v198 = vpop.f32.mrb[0].mxu0
  %v199 = vpop.f32.mrb[0].mxu0
  %v200 = vadd.f32 0.0, %v199
  %v201 = vpop.f32.mrb[0].mxu0
  %202 = vdwg.mxu0
  %v211 = vunpack.c.l.b16 %v23
  %v212 = vunpack.c.l.b16 %v24
  %v213 = vunpack.c.l.b16 %v25
  %v214 = vunpack.c.l.b16 %v26
  %v215 = vunpack.c.l.b16 %v27
  %v216 = vunpack.c.l.b16 %v28
  %v217 = vunpack.c.l.b16 %v29
  %v218 = vunpack.c.l.b16 %v30
  %v219 = vpack.c.b16 %v212, %v211
  %v220 = vpack.c.b16 %v214, %v213
  %v221 = vpack.c.b16 %v216, %v215
  %v222 = vpack.c.b16 %v218, %v217
  %v227 = vsel %vm125, %v59, 0
  %v229 = vsel %vm125, %v60, 0
  %v231 = vsel %vm125, %v61, 0
  %v233 = vsel %vm125, %v62, 0
  %235 = vmatprep.subr.bf16.mxu0 0
  %236 = vmatpush1.bf16.msra.mxu0 %v219
  %237 = vmatprep.subr.bf16.mxu0 0
  %238 = vmatpush1.bf16.msra.mxu0 %v220
  %239 = vmatprep.subr.bf16.mxu0 0
  %240 = vmatpush1.bf16.msra.mxu0 %v221
  %241 = vmatprep.subr.bf16.mxu0 0
  %242 = vmatpush1.bf16.msra.mxu0 %v222
  %243 = vmatprep.subr.bf16.mxu0 0
  %244 = vmatpush1.bf16.msra.mxu0 0
  %245 = vmatprep.subr.bf16.mxu0 0
  %246 = vmatpush1.bf16.msra.mxu0 0
  %247 = vmatprep.subr.bf16.mxu0 0
  %248 = vmatpush1.bf16.msra.mxu0 0
  %249 = vmatprep.subr.bf16.mxu0 0
  %250 = vmatpush1.bf16.msra.mxu0 0
  %251 = vmatprep.subr.bf16.mxu0 0
  %252 = vmatpush1.bf16.msra.mxu0 0
  %253 = vmatprep.subr.bf16.mxu0 0
  %254 = vmatpush1.bf16.msra.mxu0 0
  %255 = vmatprep.subr.bf16.mxu0 0
  %256 = vmatpush1.bf16.msra.mxu0 0
  %257 = vmatprep.subr.bf16.mxu0 0
  %258 = vmatpush1.bf16.msra.mxu0 0
  %259 = vmatprep.subr.bf16.mxu0 0
  %260 = vmatpush1.bf16.msra.mxu0 0
  %261 = vmatprep.subr.bf16.mxu0 0
  %262 = vmatpush1.bf16.msra.mxu0 0
  %263 = vmatprep.subr.bf16.mxu0 0
  %264 = vmatpush1.bf16.msra.mxu0 0
  %265 = vmatprep.subr.bf16.mxu0 0
  %266 = vmatpush1.bf16.msra.mxu0 0
  %267 = vmatprep.mubr.bf16.mxu0 0
  %268 = vmatmul.mubr.bf16.gmra.mrb[0].mxu0 %v227
  %v269 = vpop.f32.mrb[0].mxu0
  %v270 = vadd.f32 %v173, %v269
  %v271 = vpop.f32.mrb[0].mxu0
  %v272 = vpop.f32.mrb[0].mxu0
  %v273 = vadd.f32 %v176, %v272
  %v274 = vpop.f32.mrb[0].mxu0
  %275 = vmatprep.mubr.bf16.mxu0 0
  %276 = vmatmul.mubr.bf16.gmra.mrb[0].mxu0 %v229
  %v277 = vpop.f32.mrb[0].mxu0
  %v278 = vadd.f32 %v181, %v277
  %v279 = vpop.f32.mrb[0].mxu0
  %v280 = vpop.f32.mrb[0].mxu0
  %v281 = vadd.f32 %v184, %v280
  %v282 = vpop.f32.mrb[0].mxu0
  %283 = vmatprep.mubr.bf16.mxu0 0
  %284 = vmatmul.mubr.bf16.gmra.mrb[0].mxu0 %v231
  %v285 = vpop.f32.mrb[0].mxu0
  %v286 = vadd.f32 %v189, %v285
  %v287 = vpop.f32.mrb[0].mxu0
  %v288 = vpop.f32.mrb[0].mxu0
  %v289 = vadd.f32 %v192, %v288
  %v290 = vpop.f32.mrb[0].mxu0
  %291 = vmatprep.mubr.bf16.mxu0 0
  %292 = vmatmul.mubr.bf16.gmra.mrb[0].mxu0 %v233
  %v293 = vpop.f32.mrb[0].mxu0
  %v294 = vadd.f32 %v197, %v293
  %v295 = vpop.f32.mrb[0].mxu0
  %v296 = vpop.f32.mrb[0].mxu0
  %v297 = vadd.f32 %v200, %v296
  %v298 = vpop.f32.mrb[0].mxu0
  %299 = vdwg.mxu0
  %v300 = vld [vmem:[%s0] sm:$0xe]
  %s301 = scalar_lea.vmem %s1, 64
  %v302 = vld [vmem:[%s301] sm:$0xf]
  %v303 = vld [vmem:[%s301 + $0x4] sm:$0xf]
  %v304 = vld [vmem:[%s301 + $0x8] sm:$0xf]
  %v305 = vld [vmem:[%s301 + $0xc] sm:$0xf]
  %v306 = vld [vmem:[%s301 + $0x10] sm:$0xf]
  %v307 = vld [vmem:[%s301 + $0x14] sm:$0xf]
  %v308 = vld [vmem:[%s301 + $0x18] sm:$0xf]
  %v309 = vld [vmem:[%s301 + $0x1c] sm:$0xf]
  %v311 = vunpack.c.l.b16 %v300
  %v312 = vpack.c.b16 %v51, %v311
  %vm313 = vcmask 1046528
  %v314 = vrot.slane %v312, 1
  %v315 = vrot.slane %v60, 1
  %v316 = vsel %vm313, %v314, %v315
  %v317 = vrot.slane %v61, 1
  %v318 = vsel %vm313, %v315, %v317
  %v319 = vrot.slane %v62, 1
  %v320 = vsel %vm313, %v317, %v319
  %v321 = vrot.slane %v63, 1
  %v322 = vsel %vm313, %v319, %v321
  %v331 = vunpack.c.l.b16 %v302
  %v332 = vunpack.c.l.b16 %v303
  %v333 = vunpack.c.l.b16 %v304
  %v334 = vunpack.c.l.b16 %v305
  %v335 = vunpack.c.l.b16 %v306
  %v336 = vunpack.c.l.b16 %v307
  %v337 = vunpack.c.l.b16 %v308
  %v338 = vunpack.c.l.b16 %v309
  %v339 = vpack.c.b16 %v332, %v331
  %v340 = vpack.c.b16 %v334, %v333
  %v341 = vpack.c.b16 %v336, %v335
  %v342 = vpack.c.b16 %v338, %v337
  %v348 = vsel %vm125, %v316, 0
  %v351 = vsel %vm125, %v318, 0
  %v354 = vsel %vm125, %v320, 0
  %v357 = vsel %vm125, %v322, 0
  %359 = vmatprep.subr.bf16.mxu0 0
  %360 = vmatpush1.bf16.msra.mxu0 %v339
  %361 = vmatprep.subr.bf16.mxu0 0
  %362 = vmatpush1.bf16.msra.mxu0 %v340
  %363 = vmatprep.subr.bf16.mxu0 0
  %364 = vmatpush1.bf16.msra.mxu0 %v341
  %365 = vmatprep.subr.bf16.mxu0 0
  %366 = vmatpush1.bf16.msra.mxu0 %v342
  %367 = vmatprep.subr.bf16.mxu0 0
  %368 = vmatpush1.bf16.msra.mxu0 0
  %369 = vmatprep.subr.bf16.mxu0 0
  %370 = vmatpush1.bf16.msra.mxu0 0
  %371 = vmatprep.subr.bf16.mxu0 0
  %372 = vmatpush1.bf16.msra.mxu0 0
  %373 = vmatprep.subr.bf16.mxu0 0
  %374 = vmatpush1.bf16.msra.mxu0 0
  %375 = vmatprep.subr.bf16.mxu0 0
  %376 = vmatpush1.bf16.msra.mxu0 0
  %377 = vmatprep.subr.bf16.mxu0 0
  %378 = vmatpush1.bf16.msra.mxu0 0
  %379 = vmatprep.subr.bf16.mxu0 0
  %380 = vmatpush1.bf16.msra.mxu0 0
  %381 = vmatprep.subr.bf16.mxu0 0
  %382 = vmatpush1.bf16.msra.mxu0 0
  %383 = vmatprep.subr.bf16.mxu0 0
  %384 = vmatpush1.bf16.msra.mxu0 0
  %385 = vmatprep.subr.bf16.mxu0 0
  %386 = vmatpush1.bf16.msra.mxu0 0
  %387 = vmatprep.subr.bf16.mxu0 0
  %388 = vmatpush1.bf16.msra.mxu0 0
  %389 = vmatprep.subr.bf16.mxu0 0
  %390 = vmatpush1.bf16.msra.mxu0 0
  %391 = vmatprep.mubr.bf16.mxu0 0
  %392 = vmatmul.mubr.bf16.gmra.mrb[0].mxu0 %v348
  %v393 = vpop.f32.mrb[0].mxu0
  %v394 = vadd.f32 0.0, %v393
  %v395 = vpop.f32.mrb[0].mxu0
  %v396 = vpop.f32.mrb[0].mxu0
  %v397 = vadd.f32 0.0, %v396
  %v398 = vpop.f32.mrb[0].mxu0
  %399 = vmatprep.mubr.bf16.mxu0 0
  %400 = vmatmul.mubr.bf16.gmra.mrb[0].mxu0 %v351
  %v401 = vpop.f32.mrb[0].mxu0
  %v402 = vadd.f32 0.0, %v401
  %v403 = vpop.f32.mrb[0].mxu0
  %v404 = vpop.f32.mrb[0].mxu0
  %v405 = vadd.f32 0.0, %v404
  %v406 = vpop.f32.mrb[0].mxu0
  %407 = vmatprep.mubr.bf16.mxu0 0
  %408 = vmatmul.mubr.bf16.gmra.mrb[0].mxu0 %v354
  %v409 = vpop.f32.mrb[0].mxu0
  %v410 = vadd.f32 0.0, %v409
  %v411 = vpop.f32.mrb[0].mxu0
  %v412 = vpop.f32.mrb[0].mxu0
  %v413 = vadd.f32 0.0, %v412
  %v414 = vpop.f32.mrb[0].mxu0
  %415 = vmatprep.mubr.bf16.mxu0 0
  %416 = vmatmul.mubr.bf16.gmra.mrb[0].mxu0 %v357
  %v417 = vpop.f32.mrb[0].mxu0
  %v418 = vadd.f32 0.0, %v417
  %v419 = vpop.f32.mrb[0].mxu0
  %v420 = vpop.f32.mrb[0].mxu0
  %v421 = vadd.f32 0.0, %v420
  %v422 = vpop.f32.mrb[0].mxu0
  %423 = vdwg.mxu0
  %v424 = vadd.f32 %v270, %v394
  %v425 = vadd.f32 %v273, %v397
  %v426 = vadd.f32 %v278, %v402
  %v427 = vadd.f32 %v281, %v405
  %v428 = vadd.f32 %v286, %v410
  %v429 = vadd.f32 %v289, %v413
  %v430 = vadd.f32 %v294, %v418
  %v431 = vadd.f32 %v297, %v421
  %v432 = vld [vmem:[%s0 + $0x20] sm:$0x3]
  %s433 = scalar_lea.vmem %s1, 96
  %v434 = vld [vmem:[%s433] sm:$0xf]
  %v435 = vld [vmem:[%s433 + $0x4] sm:$0xf]
  %v436 = vld [vmem:[%s433 + $0x8] sm:$0xf]
  %v437 = vld [vmem:[%s433 + $0xc] sm:$0xf]
  %v438 = vld [vmem:[%s433 + $0x10] sm:$0xf]
  %v439 = vld [vmem:[%s433 + $0x14] sm:$0xf]
  %v440 = vld [vmem:[%s433 + $0x18] sm:$0xf]
  %v441 = vld [vmem:[%s433 + $0x1c] sm:$0xf]
  %v443 = vunpack.c.l.b16 %v432
  %v444 = vpack.c.b16 %v443, %v443
  %vm445 = vsmask.f32 6400
  %v447 = vshrl.u32 %v312, 16
  %v449 = vrot.slane %v447, 1
  %v450 = vshll.u32 %v312, 16
  %v452 = vrot.slane %v450, 2
  %v453 = vor.u32 %v449, %v452
  %v454 = vrot.slane %v77, 1
  %v455 = vrot.slane %v73, 2
  %v456 = vor.u32 %v454, %v455
  %v457 = vsel %vm445, %v453, %v456
  %v458 = vrot.slane %v85, 1
  %v459 = vrot.slane %v81, 2
  %v460 = vor.u32 %v458, %v459
  %v461 = vsel %vm445, %v456, %v460
  %v462 = vrot.slane %v93, 1
  %v463 = vrot.slane %v89, 2
  %v464 = vor.u32 %v462, %v463
  %v465 = vsel %vm445, %v460, %v464
  %v467 = vshrl.u32 %v444, 16
  %v469 = vrot.slane %v467, 1
  %v470 = vshll.u32 %v444, 16
  %v472 = vrot.slane %v470, 2
  %v473 = vor.u32 %v469, %v472
  %v474 = vsel %vm445, %v464, %v473
  %v483 = vunpack.c.l.b16 %v434
  %v484 = vunpack.c.l.b16 %v435
  %v485 = vunpack.c.l.b16 %v436
  %v486 = vunpack.c.l.b16 %v437
  %v487 = vunpack.c.l.b16 %v438
  %v488 = vunpack.c.l.b16 %v439
  %v489 = vunpack.c.l.b16 %v440
  %v490 = vunpack.c.l.b16 %v441
  %v491 = vpack.c.b16 %v484, %v483
  %v492 = vpack.c.b16 %v486, %v485
  %v493 = vpack.c.b16 %v488, %v487
  %v494 = vpack.c.b16 %v490, %v489
  %v500 = vsel %vm125, %v457, 0
  %v503 = vsel %vm125, %v461, 0
  %v506 = vsel %vm125, %v465, 0
  %v509 = vsel %vm125, %v474, 0
  %511 = vmatprep.subr.bf16.mxu0 0
  %512 = vmatpush1.bf16.msra.mxu0 %v491
  %513 = vmatprep.subr.bf16.mxu0 0
  %514 = vmatpush1.bf16.msra.mxu0 %v492
  %515 = vmatprep.subr.bf16.mxu0 0
  %516 = vmatpush1.bf16.msra.mxu0 %v493
  %517 = vmatprep.subr.bf16.mxu0 0
  %518 = vmatpush1.bf16.msra.mxu0 %v494
  %519 = vmatprep.subr.bf16.mxu0 0
  %520 = vmatpush1.bf16.msra.mxu0 0
  %521 = vmatprep.subr.bf16.mxu0 0
  %522 = vmatpush1.bf16.msra.mxu0 0
  %523 = vmatprep.subr.bf16.mxu0 0
  %524 = vmatpush1.bf16.msra.mxu0 0
  %525 = vmatprep.subr.bf16.mxu0 0
  %526 = vmatpush1.bf16.msra.mxu0 0
  %527 = vmatprep.subr.bf16.mxu0 0
  %528 = vmatpush1.bf16.msra.mxu0 0
  %529 = vmatprep.subr.bf16.mxu0 0
  %530 = vmatpush1.bf16.msra.mxu0 0
  %531 = vmatprep.subr.bf16.mxu0 0
  %532 = vmatpush1.bf16.msra.mxu0 0
  %533 = vmatprep.subr.bf16.mxu0 0
  %534 = vmatpush1.bf16.msra.mxu0 0
  %535 = vmatprep.subr.bf16.mxu0 0
  %536 = vmatpush1.bf16.msra.mxu0 0
  %537 = vmatprep.subr.bf16.mxu0 0
  %538 = vmatpush1.bf16.msra.mxu0 0
  %539 = vmatprep.subr.bf16.mxu0 0
  %540 = vmatpush1.bf16.msra.mxu0 0
  %541 = vmatprep.subr.bf16.mxu0 0
  %542 = vmatpush1.bf16.msra.mxu0 0
  %543 = vmatprep.mubr.bf16.mxu0 0
  %544 = vmatmul.mubr.bf16.gmra.mrb[0].mxu0 %v500
  %v545 = vpop.f32.mrb[0].mxu0
  %v546 = vadd.f32 0.0, %v545
  %v547 = vpop.f32.mrb[0].mxu0
  %v548 = vpop.f32.mrb[0].mxu0
  %v549 = vadd.f32 0.0, %v548
  %v550 = vpop.f32.mrb[0].mxu0
  %551 = vmatprep.mubr.bf16.mxu0 0
  %552 = vmatmul.mubr.bf16.gmra.mrb[0].mxu0 %v503
  %v553 = vpop.f32.mrb[0].mxu0
  %v554 = vadd.f32 0.0, %v553
  %v555 = vpop.f32.mrb[0].mxu0
  %v556 = vpop.f32.mrb[0].mxu0
  %v557 = vadd.f32 0.0, %v556
  %v558 = vpop.f32.mrb[0].mxu0
  %559 = vmatprep.mubr.bf16.mxu0 0
  %560 = vmatmul.mubr.bf16.gmra.mrb[0].mxu0 %v506
  %v561 = vpop.f32.mrb[0].mxu0
  %v562 = vadd.f32 0.0, %v561
  %v563 = vpop.f32.mrb[0].mxu0
  %v564 = vpop.f32.mrb[0].mxu0
  %v565 = vadd.f32 0.0, %v564
  %v566 = vpop.f32.mrb[0].mxu0
  %567 = vmatprep.mubr.bf16.mxu0 0
  %568 = vmatmul.mubr.bf16.gmra.mrb[0].mxu0 %v509
  %v569 = vpop.f32.mrb[0].mxu0
  %v570 = vadd.f32 0.0, %v569
  %v571 = vpop.f32.mrb[0].mxu0
  %v572 = vpop.f32.mrb[0].mxu0
  %v573 = vadd.f32 0.0, %v572
  %v574 = vpop.f32.mrb[0].mxu0
  %575 = vdwg.mxu0
  %v576 = vadd.f32 %v424, %v546
  %v577 = vadd.f32 %v425, %v549
  %v578 = vadd.f32 %v426, %v554
  %v579 = vadd.f32 %v427, %v557
  %v580 = vadd.f32 %v428, %v562
  %v581 = vadd.f32 %v429, %v565
  %v582 = vadd.f32 %v430, %v570
  %v583 = vadd.f32 %v431, %v573
  %v584 = vld [vmem:[%s0] sm:$0xc]
  %v585 = vld [vmem:[%s0 + $0x20] sm:$0x7]
  %s586 = scalar_lea.vmem %s1, 128
  %v587 = vld [vmem:[%s586] sm:$0xf]
  %v588 = vld [vmem:[%s586 + $0x4] sm:$0xf]
  %v589 = vld [vmem:[%s586 + $0x8] sm:$0xf]
  %v590 = vld [vmem:[%s586 + $0xc] sm:$0xf]
  %v591 = vld [vmem:[%s586 + $0x10] sm:$0xf]
  %v592 = vld [vmem:[%s586 + $0x14] sm:$0xf]
  %v593 = vld [vmem:[%s586 + $0x18] sm:$0xf]
  %v594 = vld [vmem:[%s586 + $0x1c] sm:$0xf]
  %v597 = vunpack.c.l.b16 %v584
  %v598 = vunpack.c.l.b16 %v585
  %v599 = vpack.c.b16 %v51, %v597
  %v600 = vpack.c.b16 %v598, %v598
  %vm601 = vsmask.f32 5376
  %v603 = vshrl.u32 %v599, 16
  %v605 = vrot.slane %v603, 2
  %v606 = vshll.u32 %v599, 16
  %v608 = vrot.slane %v606, 3
  %v609 = vor.u32 %v605, %v608
  %v610 = vrot.slane %v77, 2
  %v611 = vrot.slane %v73, 3
  %v612 = vor.u32 %v610, %v611
  %v613 = vsel %vm601, %v609, %v612
  %v614 = vrot.slane %v85, 2
  %v615 = vrot.slane %v81, 3
  %v616 = vor.u32 %v614, %v615
  %v617 = vsel %vm601, %v612, %v616
  %v618 = vrot.slane %v93, 2
  %v619 = vrot.slane %v89, 3
  %v620 = vor.u32 %v618, %v619
  %v621 = vsel %vm601, %v616, %v620
  %v623 = vshrl.u32 %v600, 16
  %v625 = vrot.slane %v623, 2
  %v626 = vshll.u32 %v600, 16
  %v628 = vrot.slane %v626, 3
  %v629 = vor.u32 %v625, %v628
  %v630 = vsel %vm601, %v620, %v629
  %v639 = vunpack.c.l.b16 %v587
  %v640 = vunpack.c.l.b16 %v588
  %v641 = vunpack.c.l.b16 %v589
  %v642 = vunpack.c.l.b16 %v590
  %v643 = vunpack.c.l.b16 %v591
  %v644 = vunpack.c.l.b16 %v592
  %v645 = vunpack.c.l.b16 %v593
  %v646 = vunpack.c.l.b16 %v594
  %v647 = vpack.c.b16 %v640, %v639
  %v648 = vpack.c.b16 %v642, %v641
  %v649 = vpack.c.b16 %v644, %v643
  %v650 = vpack.c.b16 %v646, %v645
  %v656 = vsel %vm125, %v613, 0
  %v659 = vsel %vm125, %v617, 0
  %v662 = vsel %vm125, %v621, 0
  %v665 = vsel %vm125, %v630, 0
  %667 = vmatprep.subr.bf16.mxu0 0
  %668 = vmatpush1.bf16.msra.mxu0 %v647
  %669 = vmatprep.subr.bf16.mxu0 0
  %670 = vmatpush1.bf16.msra.mxu0 %v648
  %671 = vmatprep.subr.bf16.mxu0 0
  %672 = vmatpush1.bf16.msra.mxu0 %v649
  %673 = vmatprep.subr.bf16.mxu0 0
  %674 = vmatpush1.bf16.msra.mxu0 %v650
  %675 = vmatprep.subr.bf16.mxu0 0
  %676 = vmatpush1.bf16.msra.mxu0 0
  %677 = vmatprep.subr.bf16.mxu0 0
  %678 = vmatpush1.bf16.msra.mxu0 0
  %679 = vmatprep.subr.bf16.mxu0 0
  %680 = vmatpush1.bf16.msra.mxu0 0
  %681 = vmatprep.subr.bf16.mxu0 0
  %682 = vmatpush1.bf16.msra.mxu0 0
  %683 = vmatprep.subr.bf16.mxu0 0
  %684 = vmatpush1.bf16.msra.mxu0 0
  %685 = vmatprep.subr.bf16.mxu0 0
  %686 = vmatpush1.bf16.msra.mxu0 0
  %687 = vmatprep.subr.bf16.mxu0 0
  %688 = vmatpush1.bf16.msra.mxu0 0
  %689 = vmatprep.subr.bf16.mxu0 0
  %690 = vmatpush1.bf16.msra.mxu0 0
  %691 = vmatprep.subr.bf16.mxu0 0
  %692 = vmatpush1.bf16.msra.mxu0 0
  %693 = vmatprep.subr.bf16.mxu0 0
  %694 = vmatpush1.bf16.msra.mxu0 0
  %695 = vmatprep.subr.bf16.mxu0 0
  %696 = vmatpush1.bf16.msra.mxu0 0
  %697 = vmatprep.subr.bf16.mxu0 0
  %698 = vmatpush1.bf16.msra.mxu0 0
  %699 = vmatprep.mubr.bf16.mxu0 0
  %700 = vmatmul.mubr.bf16.gmra.mrb[0].mxu0 %v656
  %v701 = vpop.f32.mrb[0].mxu0
  %v702 = vadd.f32 0.0, %v701
  %v703 = vpop.f32.mrb[0].mxu0
  %v704 = vpop.f32.mrb[0].mxu0
  %v705 = vadd.f32 0.0, %v704
  %v706 = vpop.f32.mrb[0].mxu0
  %707 = vmatprep.mubr.bf16.mxu0 0
  %708 = vmatmul.mubr.bf16.gmra.mrb[0].mxu0 %v659
  %v709 = vpop.f32.mrb[0].mxu0
  %v710 = vadd.f32 0.0, %v709
  %v711 = vpop.f32.mrb[0].mxu0
  %v712 = vpop.f32.mrb[0].mxu0
  %v713 = vadd.f32 0.0, %v712
  %v714 = vpop.f32.mrb[0].mxu0
  %715 = vmatprep.mubr.bf16.mxu0 0
  %716 = vmatmul.mubr.bf16.gmra.mrb[0].mxu0 %v662
  %v717 = vpop.f32.mrb[0].mxu0
  %v718 = vadd.f32 0.0, %v717
  %v719 = vpop.f32.mrb[0].mxu0
  %v720 = vpop.f32.mrb[0].mxu0
  %v721 = vadd.f32 0.0, %v720
  %v722 = vpop.f32.mrb[0].mxu0
  %723 = vmatprep.mubr.bf16.mxu0 0
  %724 = vmatmul.mubr.bf16.gmra.mrb[0].mxu0 %v665
  %v725 = vpop.f32.mrb[0].mxu0
  %v726 = vadd.f32 0.0, %v725
  %v727 = vpop.f32.mrb[0].mxu0
  %v728 = vpop.f32.mrb[0].mxu0
  %v729 = vadd.f32 0.0, %v728
  %v730 = vpop.f32.mrb[0].mxu0
  %731 = vdwg.mxu0
  %v732 = vadd.f32 %v576, %v702
  %v733 = vadd.f32 %v577, %v705
  %v734 = vadd.f32 %v578, %v710
  %v735 = vadd.f32 %v579, %v713
  %v736 = vadd.f32 %v580, %v718
  %v737 = vadd.f32 %v581, %v721
  %v738 = vadd.f32 %v582, %v726
  %v739 = vadd.f32 %v583, %v729
  %v740 = vld [vmem:[%s0] sm:$0x8]
  %s741 = scalar_lea.vmem %s1, 160
  %v742 = vld [vmem:[%s741] sm:$0xf]
  %v743 = vld [vmem:[%s741 + $0x4] sm:$0xf]
  %v744 = vld [vmem:[%s741 + $0x8] sm:$0xf]
  %v745 = vld [vmem:[%s741 + $0xc] sm:$0xf]
  %v746 = vld [vmem:[%s741 + $0x10] sm:$0xf]
  %v747 = vld [vmem:[%s741 + $0x14] sm:$0xf]
  %v748 = vld [vmem:[%s741 + $0x18] sm:$0xf]
  %v749 = vld [vmem:[%s741 + $0x1c] sm:$0xf]
  %v751 = vunpack.c.l.b16 %v740
  %v752 = vpack.c.b16 %v51, %v751
  %vm753 = vcmask 1044480
  %v754 = vrot.slane %v752, 3
  %v755 = vrot.slane %v60, 3
  %v756 = vsel %vm753, %v754, %v755
  %v757 = vrot.slane %v61, 3
  %v758 = vsel %vm753, %v755, %v757
  %v759 = vrot.slane %v62, 3
  %v760 = vsel %vm753, %v757, %v759
  %v761 = vrot.slane %v600, 3
  %v762 = vsel %vm753, %v759, %v761
  %v771 = vunpack.c.l.b16 %v742
  %v772 = vunpack.c.l.b16 %v743
  %v773 = vunpack.c.l.b16 %v744
  %v774 = vunpack.c.l.b16 %v745
  %v775 = vunpack.c.l.b16 %v746
  %v776 = vunpack.c.l.b16 %v747
  %v777 = vunpack.c.l.b16 %v748
  %v778 = vunpack.c.l.b16 %v749
  %v779 = vpack.c.b16 %v772, %v771
  %v780 = vpack.c.b16 %v774, %v773
  %v781 = vpack.c.b16 %v776, %v775
  %v782 = vpack.c.b16 %v778, %v777
  %v788 = vsel %vm125, %v756, 0
  %v791 = vsel %vm125, %v758, 0
  %v794 = vsel %vm125, %v760, 0
  %v797 = vsel %vm125, %v762, 0
  %799 = vmatprep.subr.bf16.mxu0 0
  %800 = vmatpush1.bf16.msra.mxu0 %v779
  %801 = vmatprep.subr.bf16.mxu0 0
  %802 = vmatpush1.bf16.msra.mxu0 %v780
  %803 = vmatprep.subr.bf16.mxu0 0
  %804 = vmatpush1.bf16.msra.mxu0 %v781
  %805 = vmatprep.subr.bf16.mxu0 0
  %806 = vmatpush1.bf16.msra.mxu0 %v782
  %807 = vmatprep.subr.bf16.mxu0 0
  %808 = vmatpush1.bf16.msra.mxu0 0
  %809 = vmatprep.subr.bf16.mxu0 0
  %810 = vmatpush1.bf16.msra.mxu0 0
  %811 = vmatprep.subr.bf16.mxu0 0
  %812 = vmatpush1.bf16.msra.mxu0 0
  %813 = vmatprep.subr.bf16.mxu0 0
  %814 = vmatpush1.bf16.msra.mxu0 0
  %815 = vmatprep.subr.bf16.mxu0 0
  %816 = vmatpush1.bf16.msra.mxu0 0
  %817 = vmatprep.subr.bf16.mxu0 0
  %818 = vmatpush1.bf16.msra.mxu0 0
  %819 = vmatprep.subr.bf16.mxu0 0
  %820 = vmatpush1.bf16.msra.mxu0 0
  %821 = vmatprep.subr.bf16.mxu0 0
  %822 = vmatpush1.bf16.msra.mxu0 0
  %823 = vmatprep.subr.bf16.mxu0 0
  %824 = vmatpush1.bf16.msra.mxu0 0
  %825 = vmatprep.subr.bf16.mxu0 0
  %826 = vmatpush1.bf16.msra.mxu0 0
  %827 = vmatprep.subr.bf16.mxu0 0
  %828 = vmatpush1.bf16.msra.mxu0 0
  %829 = vmatprep.subr.bf16.mxu0 0
  %830 = vmatpush1.bf16.msra.mxu0 0
  %831 = vmatprep.mubr.bf16.mxu0 0
  %832 = vmatmul.mubr.bf16.gmra.mrb[0].mxu0 %v788
  %v833 = vpop.f32.mrb[0].mxu0
  %v834 = vadd.f32 0.0, %v833
  %v835 = vpop.f32.mrb[0].mxu0
  %v836 = vpop.f32.mrb[0].mxu0
  %v837 = vadd.f32 0.0, %v836
  %v838 = vpop.f32.mrb[0].mxu0
  %839 = vmatprep.mubr.bf16.mxu0 0
  %840 = vmatmul.mubr.bf16.gmra.mrb[0].mxu0 %v791
  %v841 = vpop.f32.mrb[0].mxu0
  %v842 = vadd.f32 0.0, %v841
  %v843 = vpop.f32.mrb[0].mxu0
  %v844 = vpop.f32.mrb[0].mxu0
  %v845 = vadd.f32 0.0, %v844
  %v846 = vpop.f32.mrb[0].mxu0
  %847 = vmatprep.mubr.bf16.mxu0 0
  %848 = vmatmul.mubr.bf16.gmra.mrb[0].mxu0 %v794
  %v849 = vpop.f32.mrb[0].mxu0
  %v850 = vadd.f32 0.0, %v849
  %v851 = vpop.f32.mrb[0].mxu0
  %v852 = vpop.f32.mrb[0].mxu0
  %v853 = vadd.f32 0.0, %v852
  %v854 = vpop.f32.mrb[0].mxu0
  %855 = vmatprep.mubr.bf16.mxu0 0
  %856 = vmatmul.mubr.bf16.gmra.mrb[0].mxu0 %v797
  %v857 = vpop.f32.mrb[0].mxu0
  %v858 = vadd.f32 0.0, %v857
  %v859 = vpop.f32.mrb[0].mxu0
  %v860 = vpop.f32.mrb[0].mxu0
  %v861 = vadd.f32 0.0, %v860
  %v862 = vpop.f32.mrb[0].mxu0
  %863 = vdwg.mxu0
  %v864 = vadd.f32 %v732, %v834
  %v865 = vadd.f32 %v733, %v837
  %v866 = vadd.f32 %v734, %v842
  %v867 = vadd.f32 %v735, %v845
  %v868 = vadd.f32 %v736, %v850
  %v869 = vadd.f32 %v737, %v853
  %v870 = vadd.f32 %v738, %v858
  %v871 = vadd.f32 %v739, %v861
  %v872 = vld [vmem:[%s0 + $0x20] sm:$0xf]
  %s873 = scalar_lea.vmem %s1, 192
  %v874 = vld [vmem:[%s873] sm:$0xf]
  %v875 = vld [vmem:[%s873 + $0x4] sm:$0xf]
  %v876 = vld [vmem:[%s873 + $0x8] sm:$0xf]
  %v877 = vld [vmem:[%s873 + $0xc] sm:$0xf]
  %v878 = vld [vmem:[%s873 + $0x10] sm:$0xf]
  %v879 = vld [vmem:[%s873 + $0x14] sm:$0xf]
  %v880 = vld [vmem:[%s873 + $0x18] sm:$0xf]
  %v881 = vld [vmem:[%s873 + $0x1c] sm:$0xf]
  %v883 = vunpack.c.l.b16 %v872
  %v884 = vpack.c.b16 %v883, %v883
  %vm885 = vsmask.f32 4352
  %v887 = vshrl.u32 %v752, 16
  %v889 = vrot.slane %v887, 3
  %v890 = vshll.u32 %v752, 16
  %v892 = vrot.slane %v890, 4
  %v893 = vor.u32 %v889, %v892
  %v894 = vrot.slane %v77, 3
  %v895 = vrot.slane %v73, 4
  %v896 = vor.u32 %v894, %v895
  %v897 = vsel %vm885, %v893, %v896
  %v898 = vrot.slane %v85, 3
  %v899 = vrot.slane %v81, 4
  %v900 = vor.u32 %v898, %v899
  %v901 = vsel %vm885, %v896, %v900
  %v902 = vrot.slane %v93, 3
  %v903 = vrot.slane %v89, 4
  %v904 = vor.u32 %v902, %v903
  %v905 = vsel %vm885, %v900, %v904
  %v907 = vshrl.u32 %v884, 16
  %v909 = vrot.slane %v907, 3
  %v910 = vshll.u32 %v884, 16
  %v912 = vrot.slane %v910, 4
  %v913 = vor.u32 %v909, %v912
  %v914 = vsel %vm885, %v904, %v913
  %v923 = vunpack.c.l.b16 %v874
  %v924 = vunpack.c.l.b16 %v875
  %v925 = vunpack.c.l.b16 %v876
  %v926 = vunpack.c.l.b16 %v877
  %v927 = vunpack.c.l.b16 %v878
  %v928 = vunpack.c.l.b16 %v879
  %v929 = vunpack.c.l.b16 %v880
  %v930 = vunpack.c.l.b16 %v881
  %v931 = vpack.c.b16 %v924, %v923
  %v932 = vpack.c.b16 %v926, %v925
  %v933 = vpack.c.b16 %v928, %v927
  %v934 = vpack.c.b16 %v930, %v929
  %v940 = vsel %vm125, %v897, 0
  %v943 = vsel %vm125, %v901, 0
  %v946 = vsel %vm125, %v905, 0
  %v949 = vsel %vm125, %v914, 0
  %951 = vmatprep.subr.bf16.mxu0 0
  %952 = vmatpush1.bf16.msra.mxu0 %v931
  %953 = vmatprep.subr.bf16.mxu0 0
  %954 = vmatpush1.bf16.msra.mxu0 %v932
  %955 = vmatprep.subr.bf16.mxu0 0
  %956 = vmatpush1.bf16.msra.mxu0 %v933
  %957 = vmatprep.subr.bf16.mxu0 0
  %958 = vmatpush1.bf16.msra.mxu0 %v934
  %959 = vmatprep.subr.bf16.mxu0 0
  %960 = vmatpush1.bf16.msra.mxu0 0
  %961 = vmatprep.subr.bf16.mxu0 0
  %962 = vmatpush1.bf16.msra.mxu0 0
  %963 = vmatprep.subr.bf16.mxu0 0
  %964 = vmatpush1.bf16.msra.mxu0 0
  %965 = vmatprep.subr.bf16.mxu0 0
  %966 = vmatpush1.bf16.msra.mxu0 0
  %967 = vmatprep.subr.bf16.mxu0 0
  %968 = vmatpush1.bf16.msra.mxu0 0
  %969 = vmatprep.subr.bf16.mxu0 0
  %970 = vmatpush1.bf16.msra.mxu0 0
  %971 = vmatprep.subr.bf16.mxu0 0
  %972 = vmatpush1.bf16.msra.mxu0 0
  %973 = vmatprep.subr.bf16.mxu0 0
  %974 = vmatpush1.bf16.msra.mxu0 0
  %975 = vmatprep.subr.bf16.mxu0 0
  %976 = vmatpush1.bf16.msra.mxu0 0
  %977 = vmatprep.subr.bf16.mxu0 0
  %978 = vmatpush1.bf16.msra.mxu0 0
  %979 = vmatprep.subr.bf16.mxu0 0
  %980 = vmatpush1.bf16.msra.mxu0 0
  %981 = vmatprep.subr.bf16.mxu0 0
  %982 = vmatpush1.bf16.msra.mxu0 0
  %983 = vmatprep.mubr.bf16.mxu0 0
  %984 = vmatmul.mubr.bf16.gmra.mrb[0].mxu0 %v940
  %v985 = vpop.f32.mrb[0].mxu0
  %v986 = vadd.f32 0.0, %v985
  %v987 = vpop.f32.mrb[0].mxu0
  %v988 = vpop.f32.mrb[0].mxu0
  %v989 = vadd.f32 0.0, %v988
  %v990 = vpop.f32.mrb[0].mxu0
  %991 = vmatprep.mubr.bf16.mxu0 0
  %992 = vmatmul.mubr.bf16.gmra.mrb[0].mxu0 %v943
  %v993 = vpop.f32.mrb[0].mxu0
  %v994 = vadd.f32 0.0, %v993
  %v995 = vpop.f32.mrb[0].mxu0
  %v996 = vpop.f32.mrb[0].mxu0
  %v997 = vadd.f32 0.0, %v996
  %v998 = vpop.f32.mrb[0].mxu0
  %999 = vmatprep.mubr.bf16.mxu0 0
  %1000 = vmatmul.mubr.bf16.gmra.mrb[0].mxu0 %v946
  %v1001 = vpop.f32.mrb[0].mxu0
  %v1002 = vadd.f32 0.0, %v1001
  %v1003 = vpop.f32.mrb[0].mxu0
  %v1004 = vpop.f32.mrb[0].mxu0
  %v1005 = vadd.f32 0.0, %v1004
  %v1006 = vpop.f32.mrb[0].mxu0
  %1007 = vmatprep.mubr.bf16.mxu0 0
  %1008 = vmatmul.mubr.bf16.gmra.mrb[0].mxu0 %v949
  %v1009 = vpop.f32.mrb[0].mxu0
  %v1010 = vadd.f32 0.0, %v1009
  %v1011 = vpop.f32.mrb[0].mxu0
  %v1012 = vpop.f32.mrb[0].mxu0
  %v1013 = vadd.f32 0.0, %v1012
  %v1014 = vpop.f32.mrb[0].mxu0
  %1015 = vdwg.mxu0
  %v1016 = vadd.f32 %v864, %v986
  %v1017 = vadd.f32 %v865, %v989
  %v1018 = vadd.f32 %v866, %v994
  %v1019 = vadd.f32 %v867, %v997
  %v1020 = vadd.f32 %v868, %v1002
  %v1021 = vadd.f32 %v869, %v1005
  %v1022 = vadd.f32 %v870, %v1010
  %v1023 = vadd.f32 %v871, %v1013
  %s1024 = scalar_lea.vmem %s1, 224
  %v1025 = vld [vmem:[%s1024] sm:$0xf]
  %v1026 = vld [vmem:[%s1024 + $0x4] sm:$0xf]
  %v1027 = vld [vmem:[%s1024 + $0x8] sm:$0xf]
  %v1028 = vld [vmem:[%s1024 + $0xc] sm:$0xf]
  %v1029 = vld [vmem:[%s1024 + $0x10] sm:$0xf]
  %v1030 = vld [vmem:[%s1024 + $0x14] sm:$0xf]
  %v1031 = vld [vmem:[%s1024 + $0x18] sm:$0xf]
  %v1032 = vld [vmem:[%s1024 + $0x1c] sm:$0xf]
  %v1033 = vpack.c.b16 %v52, %v51
  %v1034 = vpack.c.b16 %v54, %v53
  %v1035 = vpack.c.b16 %v56, %v55
  %v1036 = vpack.c.b16 %v883, %v57
  %v1045 = vunpack.c.l.b16 %v1025
  %v1046 = vunpack.c.l.b16 %v1026
  %v1047 = vunpack.c.l.b16 %v1027
  %v1048 = vunpack.c.l.b16 %v1028
  %v1049 = vunpack.c.l.b16 %v1029
  %v1050 = vunpack.c.l.b16 %v1030
  %v1051 = vunpack.c.l.b16 %v1031
  %v1052 = vunpack.c.l.b16 %v1032
  %v1053 = vpack.c.b16 %v1046, %v1045
  %v1054 = vpack.c.b16 %v1048, %v1047
  %v1055 = vpack.c.b16 %v1050, %v1049
  %v1056 = vpack.c.b16 %v1052, %v1051
  %v1062 = vsel %vm125, %v1033, 0
  %v1065 = vsel %vm125, %v1034, 0
  %v1068 = vsel %vm125, %v1035, 0
  %v1071 = vsel %vm125, %v1036, 0
  %1073 = vmatprep.subr.bf16.mxu0 0
  %1074 = vmatpush1.bf16.msra.mxu0 %v1053
  %1075 = vmatprep.subr.bf16.mxu0 0
  %1076 = vmatpush1.bf16.msra.mxu0 %v1054
  %1077 = vmatprep.subr.bf16.mxu0 0
  %1078 = vmatpush1.bf16.msra.mxu0 %v1055
  %1079 = vmatprep.subr.bf16.mxu0 0
  %1080 = vmatpush1.bf16.msra.mxu0 %v1056
  %1081 = vmatprep.subr.bf16.mxu0 0
  %1082 = vmatpush1.bf16.msra.mxu0 0
  %1083 = vmatprep.subr.bf16.mxu0 0
  %1084 = vmatpush1.bf16.msra.mxu0 0
  %1085 = vmatprep.subr.bf16.mxu0 0
  %1086 = vmatpush1.bf16.msra.mxu0 0
  %1087 = vmatprep.subr.bf16.mxu0 0
  %1088 = vmatpush1.bf16.msra.mxu0 0
  %1089 = vmatprep.subr.bf16.mxu0 0
  %1090 = vmatpush1.bf16.msra.mxu0 0
  %1091 = vmatprep.subr.bf16.mxu0 0
  %1092 = vmatpush1.bf16.msra.mxu0 0
  %1093 = vmatprep.subr.bf16.mxu0 0
  %1094 = vmatpush1.bf16.msra.mxu0 0
  %1095 = vmatprep.subr.bf16.mxu0 0
  %1096 = vmatpush1.bf16.msra.mxu0 0
  %1097 = vmatprep.subr.bf16.mxu0 0
  %1098 = vmatpush1.bf16.msra.mxu0 0
  %1099 = vmatprep.subr.bf16.mxu0 0
  %1100 = vmatpush1.bf16.msra.mxu0 0
  %1101 = vmatprep.subr.bf16.mxu0 0
  %1102 = vmatpush1.bf16.msra.mxu0 0
  %1103 = vmatprep.subr.bf16.mxu0 0
  %1104 = vmatpush1.bf16.msra.mxu0 0
  %1105 = vmatprep.mubr.bf16.mxu0 0
  %1106 = vmatmul.mubr.bf16.gmra.mrb[0].mxu0 %v1062
  %v1107 = vpop.f32.mrb[0].mxu0
  %v1108 = vadd.f32 0.0, %v1107
  %v1109 = vpop.f32.mrb[0].mxu0
  %v1110 = vpop.f32.mrb[0].mxu0
  %v1111 = vadd.f32 0.0, %v1110
  %v1112 = vpop.f32.mrb[0].mxu0
  %1113 = vmatprep.mubr.bf16.mxu0 0
  %1114 = vmatmul.mubr.bf16.gmra.mrb[0].mxu0 %v1065
  %v1115 = vpop.f32.mrb[0].mxu0
  %v1116 = vadd.f32 0.0, %v1115
  %v1117 = vpop.f32.mrb[0].mxu0
  %v1118 = vpop.f32.mrb[0].mxu0
  %v1119 = vadd.f32 0.0, %v1118
  %v1120 = vpop.f32.mrb[0].mxu0
  %1121 = vmatprep.mubr.bf16.mxu0 0
  %1122 = vmatmul.mubr.bf16.gmra.mrb[0].mxu0 %v1068
  %v1123 = vpop.f32.mrb[0].mxu0
  %v1124 = vadd.f32 0.0, %v1123
  %v1125 = vpop.f32.mrb[0].mxu0
  %v1126 = vpop.f32.mrb[0].mxu0
  %v1127 = vadd.f32 0.0, %v1126
  %v1128 = vpop.f32.mrb[0].mxu0
  %1129 = vmatprep.mubr.bf16.mxu0 0
  %1130 = vmatmul.mubr.bf16.gmra.mrb[0].mxu0 %v1071
  %v1131 = vpop.f32.mrb[0].mxu0
  %v1132 = vadd.f32 0.0, %v1131
  %v1133 = vpop.f32.mrb[0].mxu0
  %v1134 = vpop.f32.mrb[0].mxu0
  %v1135 = vadd.f32 0.0, %v1134
  %v1136 = vpop.f32.mrb[0].mxu0
  %1137 = vdwg.mxu0
  %v1138 = vadd.f32 %v1016, %v1108
  %v1139 = vadd.f32 %v1017, %v1111
  %v1140 = vadd.f32 %v1018, %v1116
  %v1141 = vadd.f32 %v1019, %v1119
  %v1142 = vadd.f32 %v1020, %v1124
  %v1143 = vadd.f32 %v1021, %v1127
  %v1144 = vadd.f32 %v1022, %v1132
  %v1145 = vadd.f32 %v1023, %v1135
  %v1146 = vld [vmem:[%s0 + $0x4] sm:$0xe]
  %v1147 = vld [vmem:[%s0 + $0x8] sm:$0xf]
  %v1148 = vld [vmem:[%s0 + $0xc] sm:$0xf]
  %v1149 = vld [vmem:[%s0 + $0x10] sm:$0xf]
  %v1150 = vld [vmem:[%s0 + $0x14] sm:$0xf]
  %v1151 = vld [vmem:[%s0 + $0x18] sm:$0xf]
  %v1152 = vld [vmem:[%s0 + $0x1c] sm:$0xf]
  %v1153 = vld [vmem:[%s0 + $0x20] sm:$0xf]
  %v1154 = vld [vmem:[%s0 + $0x24] sm:$0x1]
  %s1155 = scalar_lea.vmem %s1, 256
  %v1156 = vld [vmem:[%s1155] sm:$0xf]
  %v1157 = vld [vmem:[%s1155 + $0x4] sm:$0xf]
  %v1158 = vld [vmem:[%s1155 + $0x8] sm:$0xf]
  %v1159 = vld [vmem:[%s1155 + $0xc] sm:$0xf]
  %v1160 = vld [vmem:[%s1155 + $0x10] sm:$0xf]
  %v1161 = vld [vmem:[%s1155 + $0x14] sm:$0xf]
  %v1162 = vld [vmem:[%s1155 + $0x18] sm:$0xf]
  %v1163 = vld [vmem:[%s1155 + $0x1c] sm:$0xf]
  %v1173 = vunpack.c.l.b16 %v1146
  %v1174 = vunpack.c.l.b16 %v1147
  %v1175 = vunpack.c.l.b16 %v1148
  %v1176 = vunpack.c.l.b16 %v1149
  %v1177 = vunpack.c.l.b16 %v1150
  %v1178 = vunpack.c.l.b16 %v1151
  %v1179 = vunpack.c.l.b16 %v1152
  %v1180 = vunpack.c.l.b16 %v1153
  %v1181 = vunpack.c.l.b16 %v1154
  %v1182 = vpack.c.b16 %v1174, %v1173
  %v1183 = vpack.c.b16 %v1176, %v1175
  %v1184 = vpack.c.b16 %v1178, %v1177
  %v1185 = vpack.c.b16 %v1180, %v1179
  %v1186 = vpack.c.b16 %v1181, %v1181
  %v1187 = vrot.slane %v1182, 1
  %v1188 = vrot.slane %v1183, 1
  %v1189 = vsel %vm313, %v1187, %v1188
  %v1190 = vrot.slane %v1184, 1
  %v1191 = vsel %vm313, %v1188, %v1190
  %v1192 = vrot.slane %v1185, 1
  %v1193 = vsel %vm313, %v1190, %v1192
  %v1194 = vrot.slane %v1186, 1
  %v1195 = vsel %vm313, %v1192, %v1194
  %v1204 = vunpack.c.l.b16 %v1156
  %v1205 = vunpack.c.l.b16 %v1157
  %v1206 = vunpack.c.l.b16 %v1158
  %v1207 = vunpack.c.l.b16 %v1159
  %v1208 = vunpack.c.l.b16 %v1160
  %v1209 = vunpack.c.l.b16 %v1161
  %v1210 = vunpack.c.l.b16 %v1162
  %v1211 = vunpack.c.l.b16 %v1163
  %v1212 = vpack.c.b16 %v1205, %v1204
  %v1213 = vpack.c.b16 %v1207, %v1206
  %v1214 = vpack.c.b16 %v1209, %v1208
  %v1215 = vpack.c.b16 %v1211, %v1210
  %v1221 = vsel %vm125, %v1189, 0
  %v1224 = vsel %vm125, %v1191, 0
  %v1227 = vsel %vm125, %v1193, 0
  %v1230 = vsel %vm125, %v1195, 0
  %1232 = vmatprep.subr.bf16.mxu0 0
  %1233 = vmatpush1.bf16.msra.mxu0 %v1212
  %1234 = vmatprep.subr.bf16.mxu0 0
  %1235 = vmatpush1.bf16.msra.mxu0 %v1213
  %1236 = vmatprep.subr.bf16.mxu0 0
  %1237 = vmatpush1.bf16.msra.mxu0 %v1214
  %1238 = vmatprep.subr.bf16.mxu0 0
  %1239 = vmatpush1.bf16.msra.mxu0 %v1215
  %1240 = vmatprep.subr.bf16.mxu0 0
  %1241 = vmatpush1.bf16.msra.mxu0 0
  %1242 = vmatprep.subr.bf16.mxu0 0
  %1243 = vmatpush1.bf16.msra.mxu0 0
  %1244 = vmatprep.subr.bf16.mxu0 0
  %1245 = vmatpush1.bf16.msra.mxu0 0
  %1246 = vmatprep.subr.bf16.mxu0 0
  %1247 = vmatpush1.bf16.msra.mxu0 0
  %1248 = vmatprep.subr.bf16.mxu0 0
  %1249 = vmatpush1.bf16.msra.mxu0 0
  %1250 = vmatprep.subr.bf16.mxu0 0
  %1251 = vmatpush1.bf16.msra.mxu0 0
  %1252 = vmatprep.subr.bf16.mxu0 0
  %1253 = vmatpush1.bf16.msra.mxu0 0
  %1254 = vmatprep.subr.bf16.mxu0 0
  %1255 = vmatpush1.bf16.msra.mxu0 0
  %1256 = vmatprep.subr.bf16.mxu0 0
  %1257 = vmatpush1.bf16.msra.mxu0 0
  %1258 = vmatprep.subr.bf16.mxu0 0
  %1259 = vmatpush1.bf16.msra.mxu0 0
  %1260 = vmatprep.subr.bf16.mxu0 0
  %1261 = vmatpush1.bf16.msra.mxu0 0
  %1262 = vmatprep.subr.bf16.mxu0 0
  %1263 = vmatpush1.bf16.msra.mxu0 0
  %1264 = vmatprep.mubr.bf16.mxu0 0
  %1265 = vmatmul.mubr.bf16.gmra.mrb[0].mxu0 %v1221
  %v1266 = vpop.f32.mrb[0].mxu0
  %v1267 = vadd.f32 0.0, %v1266
  %v1268 = vpop.f32.mrb[0].mxu0
  %v1269 = vpop.f32.mrb[0].mxu0
  %v1270 = vadd.f32 0.0, %v1269
  %v1271 = vpop.f32.mrb[0].mxu0
  %1272 = vmatprep.mubr.bf16.mxu0 0
  %1273 = vmatmul.mubr.bf16.gmra.mrb[0].mxu0 %v1224
  %v1274 = vpop.f32.mrb[0].mxu0
  %v1275 = vadd.f32 0.0, %v1274
  %v1276 = vpop.f32.mrb[0].mxu0
  %v1277 = vpop.f32.mrb[0].mxu0
  %v1278 = vadd.f32 0.0, %v1277
  %v1279 = vpop.f32.mrb[0].mxu0
  %1280 = vmatprep.mubr.bf16.mxu0 0
  %1281 = vmatmul.mubr.bf16.gmra.mrb[0].mxu0 %v1227
  %v1282 = vpop.f32.mrb[0].mxu0
  %v1283 = vadd.f32 0.0, %v1282
  %v1284 = vpop.f32.mrb[0].mxu0
  %v1285 = vpop.f32.mrb[0].mxu0
  %v1286 = vadd.f32 0.0, %v1285
  %v1287 = vpop.f32.mrb[0].mxu0
  %1288 = vmatprep.mubr.bf16.mxu0 0
  %1289 = vmatmul.mubr.bf16.gmra.mrb[0].mxu0 %v1230
  %v1290 = vpop.f32.mrb[0].mxu0
  %v1291 = vadd.f32 0.0, %v1290
  %v1292 = vpop.f32.mrb[0].mxu0
  %v1293 = vpop.f32.mrb[0].mxu0
  %v1294 = vadd.f32 0.0, %v1293
  %v1295 = vpop.f32.mrb[0].mxu0
  %1296 = vdwg.mxu0
  %v1297 = vadd.f32 %v1138, %v1267
  %v1298 = vadd.f32 %v1139, %v1270
  %v1299 = vadd.f32 %v1140, %v1275
  %v1300 = vadd.f32 %v1141, %v1278
  %v1301 = vadd.f32 %v1142, %v1283
  %v1302 = vadd.f32 %v1143, %v1286
  %v1303 = vadd.f32 %v1144, %v1291
  %v1304 = vadd.f32 %v1145, %v1294
  %v1305 = vld [vmem:[%s0 + $0x24] sm:$0x3]
  %s1306 = scalar_lea.vmem %s1, 288
  %v1307 = vld [vmem:[%s1306] sm:$0xf]
  %v1308 = vld [vmem:[%s1306 + $0x4] sm:$0xf]
  %v1309 = vld [vmem:[%s1306 + $0x8] sm:$0xf]
  %v1310 = vld [vmem:[%s1306 + $0xc] sm:$0xf]
  %v1311 = vld [vmem:[%s1306 + $0x10] sm:$0xf]
  %v1312 = vld [vmem:[%s1306 + $0x14] sm:$0xf]
  %v1313 = vld [vmem:[%s1306 + $0x18] sm:$0xf]
  %v1314 = vld [vmem:[%s1306 + $0x1c] sm:$0xf]
  %v1316 = vunpack.c.l.b16 %v1305
  %v1317 = vpack.c.b16 %v1316, %v1316
  %v1319 = vshrl.u32 %v1182, 16
  %v1321 = vrot.slane %v1319, 1
  %v1322 = vshll.u32 %v1182, 16
  %v1324 = vrot.slane %v1322, 2
  %v1325 = vor.u32 %v1321, %v1324
  %v1327 = vshrl.u32 %v1183, 16
  %v1329 = vrot.slane %v1327, 1
  %v1330 = vshll.u32 %v1183, 16
  %v1332 = vrot.slane %v1330, 2
  %v1333 = vor.u32 %v1329, %v1332
  %v1334 = vsel %vm445, %v1325, %v1333
  %v1336 = vshrl.u32 %v1184, 16
  %v1338 = vrot.slane %v1336, 1
  %v1339 = vshll.u32 %v1184, 16
  %v1341 = vrot.slane %v1339, 2
  %v1342 = vor.u32 %v1338, %v1341
  %v1343 = vsel %vm445, %v1333, %v1342
  %v1345 = vshrl.u32 %v1185, 16
  %v1347 = vrot.slane %v1345, 1
  %v1348 = vshll.u32 %v1185, 16
  %v1350 = vrot.slane %v1348, 2
  %v1351 = vor.u32 %v1347, %v1350
  %v1352 = vsel %vm445, %v1342, %v1351
  %v1354 = vshrl.u32 %v1317, 16
  %v1356 = vrot.slane %v1354, 1
  %v1357 = vshll.u32 %v1317, 16
  %v1359 = vrot.slane %v1357, 2
  %v1360 = vor.u32 %v1356, %v1359
  %v1361 = vsel %vm445, %v1351, %v1360
  %v1370 = vunpack.c.l.b16 %v1307
  %v1371 = vunpack.c.l.b16 %v1308
  %v1372 = vunpack.c.l.b16 %v1309
  %v1373 = vunpack.c.l.b16 %v1310
  %v1374 = vunpack.c.l.b16 %v1311
  %v1375 = vunpack.c.l.b16 %v1312
  %v1376 = vunpack.c.l.b16 %v1313
  %v1377 = vunpack.c.l.b16 %v1314
  %v1378 = vpack.c.b16 %v1371, %v1370
  %v1379 = vpack.c.b16 %v1373, %v1372
  %v1380 = vpack.c.b16 %v1375, %v1374
  %v1381 = vpack.c.b16 %v1377, %v1376
  %v1387 = vsel %vm125, %v1334, 0
  %v1390 = vsel %vm125, %v1343, 0
  %v1393 = vsel %vm125, %v1352, 0
  %v1396 = vsel %vm125, %v1361, 0
  %1398 = vmatprep.subr.bf16.mxu0 0
  %1399 = vmatpush1.bf16.msra.mxu0 %v1378
  %1400 = vmatprep.subr.bf16.mxu0 0
  %1401 = vmatpush1.bf16.msra.mxu0 %v1379
  %1402 = vmatprep.subr.bf16.mxu0 0
  %1403 = vmatpush1.bf16.msra.mxu0 %v1380
  %1404 = vmatprep.subr.bf16.mxu0 0
  %1405 = vmatpush1.bf16.msra.mxu0 %v1381
  %1406 = vmatprep.subr.bf16.mxu0 0
  %1407 = vmatpush1.bf16.msra.mxu0 0
  %1408 = vmatprep.subr.bf16.mxu0 0
  %1409 = vmatpush1.bf16.msra.mxu0 0
  %1410 = vmatprep.subr.bf16.mxu0 0
  %1411 = vmatpush1.bf16.msra.mxu0 0
  %1412 = vmatprep.subr.bf16.mxu0 0
  %1413 = vmatpush1.bf16.msra.mxu0 0
  %1414 = vmatprep.subr.bf16.mxu0 0
  %1415 = vmatpush1.bf16.msra.mxu0 0
  %1416 = vmatprep.subr.bf16.mxu0 0
  %1417 = vmatpush1.bf16.msra.mxu0 0
  %1418 = vmatprep.subr.bf16.mxu0 0
  %1419 = vmatpush1.bf16.msra.mxu0 0
  %1420 = vmatprep.subr.bf16.mxu0 0
  %1421 = vmatpush1.bf16.msra.mxu0 0
  %1422 = vmatprep.subr.bf16.mxu0 0
  %1423 = vmatpush1.bf16.msra.mxu0 0
  %1424 = vmatprep.subr.bf16.mxu0 0
  %1425 = vmatpush1.bf16.msra.mxu0 0
  %1426 = vmatprep.subr.bf16.mxu0 0
  %1427 = vmatpush1.bf16.msra.mxu0 0
  %1428 = vmatprep.subr.bf16.mxu0 0
  %1429 = vmatpush1.bf16.msra.mxu0 0
  %1430 = vmatprep.mubr.bf16.mxu0 0
  %1431 = vmatmul.mubr.bf16.gmra.mrb[0].mxu0 %v1387
  %v1432 = vpop.f32.mrb[0].mxu0
  %v1433 = vadd.f32 0.0, %v1432
  %v1434 = vpop.f32.mrb[0].mxu0
  %v1435 = vpop.f32.mrb[0].mxu0
  %v1436 = vadd.f32 0.0, %v1435
  %v1437 = vpop.f32.mrb[0].mxu0
  %1438 = vmatprep.mubr.bf16.mxu0 0
  %1439 = vmatmul.mubr.bf16.gmra.mrb[0].mxu0 %v1390
  %v1440 = vpop.f32.mrb[0].mxu0
  %v1441 = vadd.f32 0.0, %v1440
  %v1442 = vpop.f32.mrb[0].mxu0
  %v1443 = vpop.f32.mrb[0].mxu0
  %v1444 = vadd.f32 0.0, %v1443
  %v1445 = vpop.f32.mrb[0].mxu0
  %1446 = vmatprep.mubr.bf16.mxu0 0
  %1447 = vmatmul.mubr.bf16.gmra.mrb[0].mxu0 %v1393
  %v1448 = vpop.f32.mrb[0].mxu0
  %v1449 = vadd.f32 0.0, %v1448
  %v1450 = vpop.f32.mrb[0].mxu0
  %v1451 = vpop.f32.mrb[0].mxu0
  %v1452 = vadd.f32 0.0, %v1451
  %v1453 = vpop.f32.mrb[0].mxu0
  %1454 = vmatprep.mubr.bf16.mxu0 0
  %1455 = vmatmul.mubr.bf16.gmra.mrb[0].mxu0 %v1396
  %v1456 = vpop.f32.mrb[0].mxu0
  %v1457 = vadd.f32 0.0, %v1456
  %v1458 = vpop.f32.mrb[0].mxu0
  %v1459 = vpop.f32.mrb[0].mxu0
  %v1460 = vadd.f32 0.0, %v1459
  %v1461 = vpop.f32.mrb[0].mxu0
  %1462 = vdwg.mxu0
  %v1463 = vadd.f32 %v1297, %v1433
  %v1464 = vadd.f32 %v1298, %v1436
  %v1465 = vadd.f32 %v1299, %v1441
  %v1466 = vadd.f32 %v1300, %v1444
  %v1467 = vadd.f32 %v1301, %v1449
  %v1468 = vadd.f32 %v1302, %v1452
  %v1469 = vadd.f32 %v1303, %v1457
  %v1470 = vadd.f32 %v1304, %v1460
  %v1471 = vld [vmem:[%s0 + $0x4] sm:$0xc]
  %s1472 = scalar_lea.vmem %s1, 320
  %v1473 = vld [vmem:[%s1472] sm:$0xf]
  %v1474 = vld [vmem:[%s1472 + $0x4] sm:$0xf]
  %v1475 = vld [vmem:[%s1472 + $0x8] sm:$0xf]
  %v1476 = vld [vmem:[%s1472 + $0xc] sm:$0xf]
  %v1477 = vld [vmem:[%s1472 + $0x10] sm:$0xf]
  %v1478 = vld [vmem:[%s1472 + $0x14] sm:$0xf]
  %v1479 = vld [vmem:[%s1472 + $0x18] sm:$0xf]
  %v1480 = vld [vmem:[%s1472 + $0x1c] sm:$0xf]
  %v1482 = vunpack.c.l.b16 %v1471
  %v1483 = vpack.c.b16 %v1174, %v1482
  %vm1484 = vcmask 1045504
  %v1485 = vrot.slane %v1483, 2
  %v1486 = vrot.slane %v1183, 2
  %v1487 = vsel %vm1484, %v1485, %v1486
  %v1488 = vrot.slane %v1184, 2
  %v1489 = vsel %vm1484, %v1486, %v1488
  %v1490 = vrot.slane %v1185, 2
  %v1491 = vsel %vm1484, %v1488, %v1490
  %v1492 = vrot.slane %v1317, 2
  %v1493 = vsel %vm1484, %v1490, %v1492
  %v1502 = vunpack.c.l.b16 %v1473
  %v1503 = vunpack.c.l.b16 %v1474
  %v1504 = vunpack.c.l.b16 %v1475
  %v1505 = vunpack.c.l.b16 %v1476
  %v1506 = vunpack.c.l.b16 %v1477
  %v1507 = vunpack.c.l.b16 %v1478
  %v1508 = vunpack.c.l.b16 %v1479
  %v1509 = vunpack.c.l.b16 %v1480
  %v1510 = vpack.c.b16 %v1503, %v1502
  %v1511 = vpack.c.b16 %v1505, %v1504
  %v1512 = vpack.c.b16 %v1507, %v1506
  %v1513 = vpack.c.b16 %v1509, %v1508
  %v1519 = vsel %vm125, %v1487, 0
  %v1522 = vsel %vm125, %v1489, 0
  %v1525 = vsel %vm125, %v1491, 0
  %v1528 = vsel %vm125, %v1493, 0
  %1530 = vmatprep.subr.bf16.mxu0 0
  %1531 = vmatpush1.bf16.msra.mxu0 %v1510
  %1532 = vmatprep.subr.bf16.mxu0 0
  %1533 = vmatpush1.bf16.msra.mxu0 %v1511
  %1534 = vmatprep.subr.bf16.mxu0 0
  %1535 = vmatpush1.bf16.msra.mxu0 %v1512
  %1536 = vmatprep.subr.bf16.mxu0 0
  %1537 = vmatpush1.bf16.msra.mxu0 %v1513
  %1538 = vmatprep.subr.bf16.mxu0 0
  %1539 = vmatpush1.bf16.msra.mxu0 0
  %1540 = vmatprep.subr.bf16.mxu0 0
  %1541 = vmatpush1.bf16.msra.mxu0 0
  %1542 = vmatprep.subr.bf16.mxu0 0
  %1543 = vmatpush1.bf16.msra.mxu0 0
  %1544 = vmatprep.subr.bf16.mxu0 0
  %1545 = vmatpush1.bf16.msra.mxu0 0
  %1546 = vmatprep.subr.bf16.mxu0 0
  %1547 = vmatpush1.bf16.msra.mxu0 0
  %1548 = vmatprep.subr.bf16.mxu0 0
  %1549 = vmatpush1.bf16.msra.mxu0 0
  %1550 = vmatprep.subr.bf16.mxu0 0
  %1551 = vmatpush1.bf16.msra.mxu0 0
  %1552 = vmatprep.subr.bf16.mxu0 0
  %1553 = vmatpush1.bf16.msra.mxu0 0
  %1554 = vmatprep.subr.bf16.mxu0 0
  %1555 = vmatpush1.bf16.msra.mxu0 0
  %1556 = vmatprep.subr.bf16.mxu0 0
  %1557 = vmatpush1.bf16.msra.mxu0 0
  %1558 = vmatprep.subr.bf16.mxu0 0
  %1559 = vmatpush1.bf16.msra.mxu0 0
  %1560 = vmatprep.subr.bf16.mxu0 0
  %1561 = vmatpush1.bf16.msra.mxu0 0
  %1562 = vmatprep.mubr.bf16.mxu0 0
  %1563 = vmatmul.mubr.bf16.gmra.mrb[0].mxu0 %v1519
  %v1564 = vpop.f32.mrb[0].mxu0
  %v1565 = vadd.f32 0.0, %v1564
  %v1566 = vpop.f32.mrb[0].mxu0
  %v1567 = vpop.f32.mrb[0].mxu0
  %v1568 = vadd.f32 0.0, %v1567
  %v1569 = vpop.f32.mrb[0].mxu0
  %1570 = vmatprep.mubr.bf16.mxu0 0
  %1571 = vmatmul.mubr.bf16.gmra.mrb[0].mxu0 %v1522
  %v1572 = vpop.f32.mrb[0].mxu0
  %v1573 = vadd.f32 0.0, %v1572
  %v1574 = vpop.f32.mrb[0].mxu0
  %v1575 = vpop.f32.mrb[0].mxu0
  %v1576 = vadd.f32 0.0, %v1575
  %v1577 = vpop.f32.mrb[0].mxu0
  %1578 = vmatprep.mubr.bf16.mxu0 0
  %1579 = vmatmul.mubr.bf16.gmra.mrb[0].mxu0 %v1525
  %v1580 = vpop.f32.mrb[0].mxu0
  %v1581 = vadd.f32 0.0, %v1580
  %v1582 = vpop.f32.mrb[0].mxu0
  %v1583 = vpop.f32.mrb[0].mxu0
  %v1584 = vadd.f32 0.0, %v1583
  %v1585 = vpop.f32.mrb[0].mxu0
  %1586 = vmatprep.mubr.bf16.mxu0 0
  %1587 = vmatmul.mubr.bf16.gmra.mrb[0].mxu0 %v1528
  %v1588 = vpop.f32.mrb[0].mxu0
  %v1589 = vadd.f32 0.0, %v1588
  %v1590 = vpop.f32.mrb[0].mxu0
  %v1591 = vpop.f32.mrb[0].mxu0
  %v1592 = vadd.f32 0.0, %v1591
  %v1593 = vpop.f32.mrb[0].mxu0
  %1594 = vdwg.mxu0
  %v1595 = vadd.f32 %v1463, %v1565
  %v1596 = vadd.f32 %v1464, %v1568
  %v1597 = vadd.f32 %v1465, %v1573
  %v1598 = vadd.f32 %v1466, %v1576
  %v1599 = vadd.f32 %v1467, %v1581
  %v1600 = vadd.f32 %v1468, %v1584
  %v1601 = vadd.f32 %v1469, %v1589
  %v1602 = vadd.f32 %v1470, %v1592
  %v1603 = vld [vmem:[%s0 + $0x24] sm:$0x7]
  %s1604 = scalar_lea.vmem %s1, 352
  %v1605 = vld [vmem:[%s1604] sm:$0xf]
  %v1606 = vld [vmem:[%s1604 + $0x4] sm:$0xf]
  %v1607 = vld [vmem:[%s1604 + $0x8] sm:$0xf]
  %v1608 = vld [vmem:[%s1604 + $0xc] sm:$0xf]
  %v1609 = vld [vmem:[%s1604 + $0x10] sm:$0xf]
  %v1610 = vld [vmem:[%s1604 + $0x14] sm:$0xf]
  %v1611 = vld [vmem:[%s1604 + $0x18] sm:$0xf]
  %v1612 = vld [vmem:[%s1604 + $0x1c] sm:$0xf]
  %v1614 = vunpack.c.l.b16 %v1603
  %v1615 = vpack.c.b16 %v1614, %v1614
  %v1617 = vshrl.u32 %v1483, 16
  %v1619 = vrot.slane %v1617, 2
  %v1620 = vshll.u32 %v1483, 16
  %v1622 = vrot.slane %v1620, 3
  %v1623 = vor.u32 %v1619, %v1622
  %v1624 = vrot.slane %v1327, 2
  %v1625 = vrot.slane %v1330, 3
  %v1626 = vor.u32 %v1624, %v1625
  %v1627 = vsel %vm601, %v1623, %v1626
  %v1628 = vrot.slane %v1336, 2
  %v1629 = vrot.slane %v1339, 3
  %v1630 = vor.u32 %v1628, %v1629
  %v1631 = vsel %vm601, %v1626, %v1630
  %v1632 = vrot.slane %v1345, 2
  %v1633 = vrot.slane %v1348, 3
  %v1634 = vor.u32 %v1632, %v1633
  %v1635 = vsel %vm601, %v1630, %v1634
  %v1637 = vshrl.u32 %v1615, 16
  %v1639 = vrot.slane %v1637, 2
  %v1640 = vshll.u32 %v1615, 16
  %v1642 = vrot.slane %v1640, 3
  %v1643 = vor.u32 %v1639, %v1642
  %v1644 = vsel %vm601, %v1634, %v1643
  %v1653 = vunpack.c.l.b16 %v1605
  %v1654 = vunpack.c.l.b16 %v1606
  %v1655 = vunpack.c.l.b16 %v1607
  %v1656 = vunpack.c.l.b16 %v1608
  %v1657 = vunpack.c.l.b16 %v1609
  %v1658 = vunpack.c.l.b16 %v1610
  %v1659 = vunpack.c.l.b16 %v1611
  %v1660 = vunpack.c.l.b16 %v1612
  %v1661 = vpack.c.b16 %v1654, %v1653
  %v1662 = vpack.c.b16 %v1656, %v1655
  %v1663 = vpack.c.b16 %v1658, %v1657
  %v1664 = vpack.c.b16 %v1660, %v1659
  %v1670 = vsel %vm125, %v1627, 0
  %v1673 = vsel %vm125, %v1631, 0
  %v1676 = vsel %vm125, %v1635, 0
  %v1679 = vsel %vm125, %v1644, 0
  %1681 = vmatprep.subr.bf16.mxu0 0
  %1682 = vmatpush1.bf16.msra.mxu0 %v1661
  %1683 = vmatprep.subr.bf16.mxu0 0
  %1684 = vmatpush1.bf16.msra.mxu0 %v1662
  %1685 = vmatprep.subr.bf16.mxu0 0
  %1686 = vmatpush1.bf16.msra.mxu0 %v1663
  %1687 = vmatprep.subr.bf16.mxu0 0
  %1688 = vmatpush1.bf16.msra.mxu0 %v1664
  %1689 = vmatprep.subr.bf16.mxu0 0
  %1690 = vmatpush1.bf16.msra.mxu0 0
  %1691 = vmatprep.subr.bf16.mxu0 0
  %1692 = vmatpush1.bf16.msra.mxu0 0
  %1693 = vmatprep.subr.bf16.mxu0 0
  %1694 = vmatpush1.bf16.msra.mxu0 0
  %1695 = vmatprep.subr.bf16.mxu0 0
  %1696 = vmatpush1.bf16.msra.mxu0 0
  %1697 = vmatprep.subr.bf16.mxu0 0
  %1698 = vmatpush1.bf16.msra.mxu0 0
  %1699 = vmatprep.subr.bf16.mxu0 0
  %1700 = vmatpush1.bf16.msra.mxu0 0
  %1701 = vmatprep.subr.bf16.mxu0 0
  %1702 = vmatpush1.bf16.msra.mxu0 0
  %1703 = vmatprep.subr.bf16.mxu0 0
  %1704 = vmatpush1.bf16.msra.mxu0 0
  %1705 = vmatprep.subr.bf16.mxu0 0
  %1706 = vmatpush1.bf16.msra.mxu0 0
  %1707 = vmatprep.subr.bf16.mxu0 0
  %1708 = vmatpush1.bf16.msra.mxu0 0
  %1709 = vmatprep.subr.bf16.mxu0 0
  %1710 = vmatpush1.bf16.msra.mxu0 0
  %1711 = vmatprep.subr.bf16.mxu0 0
  %1712 = vmatpush1.bf16.msra.mxu0 0
  %1713 = vmatprep.mubr.bf16.mxu0 0
  %1714 = vmatmul.mubr.bf16.gmra.mrb[0].mxu0 %v1670
  %v1715 = vpop.f32.mrb[0].mxu0
  %v1716 = vadd.f32 0.0, %v1715
  %v1717 = vpop.f32.mrb[0].mxu0
  %v1718 = vpop.f32.mrb[0].mxu0
  %v1719 = vadd.f32 0.0, %v1718
  %v1720 = vpop.f32.mrb[0].mxu0
  %1721 = vmatprep.mubr.bf16.mxu0 0
  %1722 = vmatmul.mubr.bf16.gmra.mrb[0].mxu0 %v1673
  %v1723 = vpop.f32.mrb[0].mxu0
  %v1724 = vadd.f32 0.0, %v1723
  %v1725 = vpop.f32.mrb[0].mxu0
  %v1726 = vpop.f32.mrb[0].mxu0
  %v1727 = vadd.f32 0.0, %v1726
  %v1728 = vpop.f32.mrb[0].mxu0
  %1729 = vmatprep.mubr.bf16.mxu0 0
  %1730 = vmatmul.mubr.bf16.gmra.mrb[0].mxu0 %v1676
  %v1731 = vpop.f32.mrb[0].mxu0
  %v1732 = vadd.f32 0.0, %v1731
  %v1733 = vpop.f32.mrb[0].mxu0
  %v1734 = vpop.f32.mrb[0].mxu0
  %v1735 = vadd.f32 0.0, %v1734
  %v1736 = vpop.f32.mrb[0].mxu0
  %1737 = vmatprep.mubr.bf16.mxu0 0
  %1738 = vmatmul.mubr.bf16.gmra.mrb[0].mxu0 %v1679
  %v1739 = vpop.f32.mrb[0].mxu0
  %v1740 = vadd.f32 0.0, %v1739
  %v1741 = vpop.f32.mrb[0].mxu0
  %v1742 = vpop.f32.mrb[0].mxu0
  %v1743 = vadd.f32 0.0, %v1742
  %v1744 = vpop.f32.mrb[0].mxu0
  %1745 = vdwg.mxu0
  %v1746 = vadd.f32 %v1595, %v1716
  %v1747 = vadd.f32 %v1596, %v1719
  %v1748 = vadd.f32 %v1597, %v1724
  %v1749 = vadd.f32 %v1598, %v1727
  %v1750 = vadd.f32 %v1599, %v1732
  %v1751 = vadd.f32 %v1600, %v1735
  %v1752 = vadd.f32 %v1601, %v1740
  %v1753 = vadd.f32 %v1602, %v1743
  %v1754 = vld [vmem:[%s0 + $0x4] sm:$0x8]
  %v1755 = vld [vmem:[%s0 + $0x24] sm:$0xf]
  %s1756 = scalar_lea.vmem %s1, 384
  %v1757 = vld [vmem:[%s1756] sm:$0xf]
  %v1758 = vld [vmem:[%s1756 + $0x4] sm:$0xf]
  %v1759 = vld [vmem:[%s1756 + $0x8] sm:$0xf]
  %v1760 = vld [vmem:[%s1756 + $0xc] sm:$0xf]
  %v1761 = vld [vmem:[%s1756 + $0x10] sm:$0xf]
  %v1762 = vld [vmem:[%s1756 + $0x14] sm:$0xf]
  %v1763 = vld [vmem:[%s1756 + $0x18] sm:$0xf]
  %v1764 = vld [vmem:[%s1756 + $0x1c] sm:$0xf]
  %v1767 = vunpack.c.l.b16 %v1754
  %v1768 = vunpack.c.l.b16 %v1755
  %v1769 = vpack.c.b16 %v1174, %v1767
  %v1770 = vpack.c.b16 %v1768, %v1768
  %v1772 = vshrl.u32 %v1769, 16
  %v1774 = vrot.slane %v1772, 3
  %v1775 = vshll.u32 %v1769, 16
  %v1777 = vrot.slane %v1775, 4
  %v1778 = vor.u32 %v1774, %v1777
  %v1779 = vrot.slane %v1327, 3
  %v1780 = vrot.slane %v1330, 4
  %v1781 = vor.u32 %v1779, %v1780
  %v1782 = vsel %vm885, %v1778, %v1781
  %v1783 = vrot.slane %v1336, 3
  %v1784 = vrot.slane %v1339, 4
  %v1785 = vor.u32 %v1783, %v1784
  %v1786 = vsel %vm885, %v1781, %v1785
  %v1787 = vrot.slane %v1345, 3
  %v1788 = vrot.slane %v1348, 4
  %v1789 = vor.u32 %v1787, %v1788
  %v1790 = vsel %vm885, %v1785, %v1789
  %v1792 = vshrl.u32 %v1770, 16
  %v1794 = vrot.slane %v1792, 3
  %v1795 = vshll.u32 %v1770, 16
  %v1797 = vrot.slane %v1795, 4
  %v1798 = vor.u32 %v1794, %v1797
  %v1799 = vsel %vm885, %v1789, %v1798
  %v1808 = vunpack.c.l.b16 %v1757
  %v1809 = vunpack.c.l.b16 %v1758
  %v1810 = vunpack.c.l.b16 %v1759
  %v1811 = vunpack.c.l.b16 %v1760
  %v1812 = vunpack.c.l.b16 %v1761
  %v1813 = vunpack.c.l.b16 %v1762
  %v1814 = vunpack.c.l.b16 %v1763
  %v1815 = vunpack.c.l.b16 %v1764
  %v1816 = vpack.c.b16 %v1809, %v1808
  %v1817 = vpack.c.b16 %v1811, %v1810
  %v1818 = vpack.c.b16 %v1813, %v1812
  %v1819 = vpack.c.b16 %v1815, %v1814
  %v1825 = vsel %vm125, %v1782, 0
  %v1828 = vsel %vm125, %v1786, 0
  %v1831 = vsel %vm125, %v1790, 0
  %v1834 = vsel %vm125, %v1799, 0
  %1836 = vmatprep.subr.bf16.mxu0 0
  %1837 = vmatpush1.bf16.msra.mxu0 %v1816
  %1838 = vmatprep.subr.bf16.mxu0 0
  %1839 = vmatpush1.bf16.msra.mxu0 %v1817
  %1840 = vmatprep.subr.bf16.mxu0 0
  %1841 = vmatpush1.bf16.msra.mxu0 %v1818
  %1842 = vmatprep.subr.bf16.mxu0 0
  %1843 = vmatpush1.bf16.msra.mxu0 %v1819
  %1844 = vmatprep.subr.bf16.mxu0 0
  %1845 = vmatpush1.bf16.msra.mxu0 0
  %1846 = vmatprep.subr.bf16.mxu0 0
  %1847 = vmatpush1.bf16.msra.mxu0 0
  %1848 = vmatprep.subr.bf16.mxu0 0
  %1849 = vmatpush1.bf16.msra.mxu0 0
  %1850 = vmatprep.subr.bf16.mxu0 0
  %1851 = vmatpush1.bf16.msra.mxu0 0
  %1852 = vmatprep.subr.bf16.mxu0 0
  %1853 = vmatpush1.bf16.msra.mxu0 0
  %1854 = vmatprep.subr.bf16.mxu0 0
  %1855 = vmatpush1.bf16.msra.mxu0 0
  %1856 = vmatprep.subr.bf16.mxu0 0
  %1857 = vmatpush1.bf16.msra.mxu0 0
  %1858 = vmatprep.subr.bf16.mxu0 0
  %1859 = vmatpush1.bf16.msra.mxu0 0
  %1860 = vmatprep.subr.bf16.mxu0 0
  %1861 = vmatpush1.bf16.msra.mxu0 0
  %1862 = vmatprep.subr.bf16.mxu0 0
  %1863 = vmatpush1.bf16.msra.mxu0 0
  %1864 = vmatprep.subr.bf16.mxu0 0
  %1865 = vmatpush1.bf16.msra.mxu0 0
  %1866 = vmatprep.subr.bf16.mxu0 0
  %1867 = vmatpush1.bf16.msra.mxu0 0
  %1868 = vmatprep.mubr.bf16.mxu0 0
  %1869 = vmatmul.mubr.bf16.gmra.mrb[0].mxu0 %v1825
  %v1870 = vpop.f32.mrb[0].mxu0
  %v1871 = vadd.f32 0.0, %v1870
  %v1872 = vpop.f32.mrb[0].mxu0
  %v1873 = vpop.f32.mrb[0].mxu0
  %v1874 = vadd.f32 0.0, %v1873
  %v1875 = vpop.f32.mrb[0].mxu0
  %1876 = vmatprep.mubr.bf16.mxu0 0
  %1877 = vmatmul.mubr.bf16.gmra.mrb[0].mxu0 %v1828
  %v1878 = vpop.f32.mrb[0].mxu0
  %v1879 = vadd.f32 0.0, %v1878
  %v1880 = vpop.f32.mrb[0].mxu0
  %v1881 = vpop.f32.mrb[0].mxu0
  %v1882 = vadd.f32 0.0, %v1881
  %v1883 = vpop.f32.mrb[0].mxu0
  %1884 = vmatprep.mubr.bf16.mxu0 0
  %1885 = vmatmul.mubr.bf16.gmra.mrb[0].mxu0 %v1831
  %v1886 = vpop.f32.mrb[0].mxu0
  %v1887 = vadd.f32 0.0, %v1886
  %v1888 = vpop.f32.mrb[0].mxu0
  %v1889 = vpop.f32.mrb[0].mxu0
  %v1890 = vadd.f32 0.0, %v1889
  %v1891 = vpop.f32.mrb[0].mxu0
  %1892 = vmatprep.mubr.bf16.mxu0 0
  %1893 = vmatmul.mubr.bf16.gmra.mrb[0].mxu0 %v1834
  %v1894 = vpop.f32.mrb[0].mxu0
  %v1895 = vadd.f32 0.0, %v1894
  %v1896 = vpop.f32.mrb[0].mxu0
  %v1897 = vpop.f32.mrb[0].mxu0
  %v1898 = vadd.f32 0.0, %v1897
  %v1899 = vpop.f32.mrb[0].mxu0
  %1900 = vdwg.mxu0
  %v1901 = vadd.f32 %v1746, %v1871
  %v1902 = vadd.f32 %v1747, %v1874
  %v1903 = vadd.f32 %v1748, %v1879
  %v1904 = vadd.f32 %v1749, %v1882
  %v1905 = vadd.f32 %v1750, %v1887
  %v1906 = vadd.f32 %v1751, %v1890
  %v1907 = vadd.f32 %v1752, %v1895
  %v1908 = vadd.f32 %v1753, %v1898
  %s1909 = scalar_lea.vmem %s1, 416
  %v1910 = vld [vmem:[%s1909] sm:$0xf]
  %v1911 = vld [vmem:[%s1909 + $0x4] sm:$0xf]
  %v1912 = vld [vmem:[%s1909 + $0x8] sm:$0xf]
  %v1913 = vld [vmem:[%s1909 + $0xc] sm:$0xf]
  %v1914 = vld [vmem:[%s1909 + $0x10] sm:$0xf]
  %v1915 = vld [vmem:[%s1909 + $0x14] sm:$0xf]
  %v1916 = vld [vmem:[%s1909 + $0x18] sm:$0xf]
  %v1917 = vld [vmem:[%s1909 + $0x1c] sm:$0xf]
  %v1918 = vpack.c.b16 %v1175, %v1174
  %v1919 = vpack.c.b16 %v1177, %v1176
  %v1920 = vpack.c.b16 %v1179, %v1178
  %v1921 = vpack.c.b16 %v1768, %v1180
  %v1930 = vunpack.c.l.b16 %v1910
  %v1931 = vunpack.c.l.b16 %v1911
  %v1932 = vunpack.c.l.b16 %v1912
  %v1933 = vunpack.c.l.b16 %v1913
  %v1934 = vunpack.c.l.b16 %v1914
  %v1935 = vunpack.c.l.b16 %v1915
  %v1936 = vunpack.c.l.b16 %v1916
  %v1937 = vunpack.c.l.b16 %v1917
  %v1938 = vpack.c.b16 %v1931, %v1930
  %v1939 = vpack.c.b16 %v1933, %v1932
  %v1940 = vpack.c.b16 %v1935, %v1934
  %v1941 = vpack.c.b16 %v1937, %v1936
  %v1947 = vsel %vm125, %v1918, 0
  %v1950 = vsel %vm125, %v1919, 0
  %v1953 = vsel %vm125, %v1920, 0
  %v1956 = vsel %vm125, %v1921, 0
  %1958 = vmatprep.subr.bf16.mxu0 0
  %1959 = vmatpush1.bf16.msra.mxu0 %v1938
  %1960 = vmatprep.subr.bf16.mxu0 0
  %1961 = vmatpush1.bf16.msra.mxu0 %v1939
  %1962 = vmatprep.subr.bf16.mxu0 0
  %1963 = vmatpush1.bf16.msra.mxu0 %v1940
  %1964 = vmatprep.subr.bf16.mxu0 0
  %1965 = vmatpush1.bf16.msra.mxu0 %v1941
  %1966 = vmatprep.subr.bf16.mxu0 0
  %1967 = vmatpush1.bf16.msra.mxu0 0
  %1968 = vmatprep.subr.bf16.mxu0 0
  %1969 = vmatpush1.bf16.msra.mxu0 0
  %1970 = vmatprep.subr.bf16.mxu0 0
  %1971 = vmatpush1.bf16.msra.mxu0 0
  %1972 = vmatprep.subr.bf16.mxu0 0
  %1973 = vmatpush1.bf16.msra.mxu0 0
  %1974 = vmatprep.subr.bf16.mxu0 0
  %1975 = vmatpush1.bf16.msra.mxu0 0
  %1976 = vmatprep.subr.bf16.mxu0 0
  %1977 = vmatpush1.bf16.msra.mxu0 0
  %1978 = vmatprep.subr.bf16.mxu0 0
  %1979 = vmatpush1.bf16.msra.mxu0 0
  %1980 = vmatprep.subr.bf16.mxu0 0
  %1981 = vmatpush1.bf16.msra.mxu0 0
  %1982 = vmatprep.subr.bf16.mxu0 0
  %1983 = vmatpush1.bf16.msra.mxu0 0
  %1984 = vmatprep.subr.bf16.mxu0 0
  %1985 = vmatpush1.bf16.msra.mxu0 0
  %1986 = vmatprep.subr.bf16.mxu0 0
  %1987 = vmatpush1.bf16.msra.mxu0 0
  %1988 = vmatprep.subr.bf16.mxu0 0
  %1989 = vmatpush1.bf16.msra.mxu0 0
  %1990 = vmatprep.mubr.bf16.mxu0 0
  %1991 = vmatmul.mubr.bf16.gmra.mrb[0].mxu0 %v1947
  %v1992 = vpop.f32.mrb[0].mxu0
  %v1993 = vadd.f32 0.0, %v1992
  %v1994 = vpop.f32.mrb[0].mxu0
  %v1995 = vpop.f32.mrb[0].mxu0
  %v1996 = vadd.f32 0.0, %v1995
  %v1997 = vpop.f32.mrb[0].mxu0
  %1998 = vmatprep.mubr.bf16.mxu0 0
  %1999 = vmatmul.mubr.bf16.gmra.mrb[0].mxu0 %v1950
  %v2000 = vpop.f32.mrb[0].mxu0
  %v2001 = vadd.f32 0.0, %v2000
  %v2002 = vpop.f32.mrb[0].mxu0
  %v2003 = vpop.f32.mrb[0].mxu0
  %v2004 = vadd.f32 0.0, %v2003
  %v2005 = vpop.f32.mrb[0].mxu0
  %2006 = vmatprep.mubr.bf16.mxu0 0
  %2007 = vmatmul.mubr.bf16.gmra.mrb[0].mxu0 %v1953
  %v2008 = vpop.f32.mrb[0].mxu0
  %v2009 = vadd.f32 0.0, %v2008
  %v2010 = vpop.f32.mrb[0].mxu0
  %v2011 = vpop.f32.mrb[0].mxu0
  %v2012 = vadd.f32 0.0, %v2011
  %v2013 = vpop.f32.mrb[0].mxu0
  %2014 = vmatprep.mubr.bf16.mxu0 0
  %2015 = vmatmul.mubr.bf16.gmra.mrb[0].mxu0 %v1956
  %v2016 = vpop.f32.mrb[0].mxu0
  %v2017 = vadd.f32 0.0, %v2016
  %v2018 = vpop.f32.mrb[0].mxu0
  %v2019 = vpop.f32.mrb[0].mxu0
  %v2020 = vadd.f32 0.0, %v2019
  %v2021 = vpop.f32.mrb[0].mxu0
  %2022 = vdwg.mxu0
  %v2023 = vadd.f32 %v1901, %v1993
  %v2024 = vadd.f32 %v1902, %v1996
  %v2025 = vadd.f32 %v1903, %v2001
  %v2026 = vadd.f32 %v1904, %v2004
  %v2027 = vadd.f32 %v1905, %v2009
  %v2028 = vadd.f32 %v1906, %v2012
  %v2029 = vadd.f32 %v1907, %v2017
  %v2030 = vadd.f32 %v1908, %v2020
  %v2031 = vld [vmem:[%s0 + $0x8] sm:$0xf]
  %v2032 = vld [vmem:[%s0 + $0xc] sm:$0xf]
  %v2033 = vld [vmem:[%s0 + $0x10] sm:$0xf]
  %v2034 = vld [vmem:[%s0 + $0x14] sm:$0xf]
  %v2035 = vld [vmem:[%s0 + $0x18] sm:$0xf]
  %v2036 = vld [vmem:[%s0 + $0x1c] sm:$0xf]
  %v2037 = vld [vmem:[%s0 + $0x20] sm:$0xf]
  %v2038 = vld [vmem:[%s0 + $0x24] sm:$0xf]
  %v2039 = vld [vmem:[%s0 + $0x28] sm:$0x1]
  %s2040 = scalar_lea.vmem %s1, 448
  %v2041 = vld [vmem:[%s2040] sm:$0xf]
  %v2042 = vld [vmem:[%s2040 + $0x4] sm:$0xf]
  %v2043 = vld [vmem:[%s2040 + $0x8] sm:$0xf]
  %v2044 = vld [vmem:[%s2040 + $0xc] sm:$0xf]
  %v2045 = vld [vmem:[%s2040 + $0x10] sm:$0xf]
  %v2046 = vld [vmem:[%s2040 + $0x14] sm:$0xf]
  %v2047 = vld [vmem:[%s2040 + $0x18] sm:$0xf]
  %v2048 = vld [vmem:[%s2040 + $0x1c] sm:$0xf]
  %v2058 = vunpack.c.l.b16 %v2031
  %v2059 = vunpack.c.l.b16 %v2032
  %v2060 = vunpack.c.l.b16 %v2033
  %v2061 = vunpack.c.l.b16 %v2034
  %v2062 = vunpack.c.l.b16 %v2035
  %v2063 = vunpack.c.l.b16 %v2036
  %v2064 = vunpack.c.l.b16 %v2037
  %v2065 = vunpack.c.l.b16 %v2038
  %v2066 = vunpack.c.l.b16 %v2039
  %v2067 = vpack.c.b16 %v2059, %v2058
  %v2068 = vpack.c.b16 %v2061, %v2060
  %v2069 = vpack.c.b16 %v2063, %v2062
  %v2070 = vpack.c.b16 %v2065, %v2064
  %v2071 = vpack.c.b16 %v2066, %v2066
  %v2073 = vshrl.u32 %v2067, 16
  %v2075 = vshll.u32 %v2067, 16
  %v2077 = vrot.slane %v2075, 1
  %v2078 = vor.u32 %v2073, %v2077
  %v2080 = vshll.u32 %v2068, 16
  %v2082 = vrot.slane %v2080, 1
  %v2083 = vsel %vm64, %v2078, %v2082
  %v2084 = vshrl.u32 %v2068, 16
  %v2086 = vor.u32 %v2084, %v2082
  %v2088 = vshll.u32 %v2069, 16
  %v2090 = vrot.slane %v2088, 1
  %v2091 = vsel %vm64, %v2086, %v2090
  %v2092 = vshrl.u32 %v2069, 16
  %v2094 = vor.u32 %v2092, %v2090
  %v2096 = vshll.u32 %v2070, 16
  %v2098 = vrot.slane %v2096, 1
  %v2099 = vsel %vm64, %v2094, %v2098
  %v2100 = vshrl.u32 %v2070, 16
  %v2102 = vor.u32 %v2100, %v2098
  %v2104 = vshll.u32 %v2071, 16
  %v2106 = vrot.slane %v2104, 1
  %v2107 = vsel %vm64, %v2102, %v2106
  %v2116 = vunpack.c.l.b16 %v2041
  %v2117 = vunpack.c.l.b16 %v2042
  %v2118 = vunpack.c.l.b16 %v2043
  %v2119 = vunpack.c.l.b16 %v2044
  %v2120 = vunpack.c.l.b16 %v2045
  %v2121 = vunpack.c.l.b16 %v2046
  %v2122 = vunpack.c.l.b16 %v2047
  %v2123 = vunpack.c.l.b16 %v2048
  %v2124 = vpack.c.b16 %v2117, %v2116
  %v2125 = vpack.c.b16 %v2119, %v2118
  %v2126 = vpack.c.b16 %v2121, %v2120
  %v2127 = vpack.c.b16 %v2123, %v2122
  %v2133 = vsel %vm125, %v2083, 0
  %v2136 = vsel %vm125, %v2091, 0
  %v2139 = vsel %vm125, %v2099, 0
  %v2142 = vsel %vm125, %v2107, 0
  %2144 = vmatprep.subr.bf16.mxu0 0
  %2145 = vmatpush1.bf16.msra.mxu0 %v2124
  %2146 = vmatprep.subr.bf16.mxu0 0
  %2147 = vmatpush1.bf16.msra.mxu0 %v2125
  %2148 = vmatprep.subr.bf16.mxu0 0
  %2149 = vmatpush1.bf16.msra.mxu0 %v2126
  %2150 = vmatprep.subr.bf16.mxu0 0
  %2151 = vmatpush1.bf16.msra.mxu0 %v2127
  %2152 = vmatprep.subr.bf16.mxu0 0
  %2153 = vmatpush1.bf16.msra.mxu0 0
  %2154 = vmatprep.subr.bf16.mxu0 0
  %2155 = vmatpush1.bf16.msra.mxu0 0
  %2156 = vmatprep.subr.bf16.mxu0 0
  %2157 = vmatpush1.bf16.msra.mxu0 0
  %2158 = vmatprep.subr.bf16.mxu0 0
  %2159 = vmatpush1.bf16.msra.mxu0 0
  %2160 = vmatprep.subr.bf16.mxu0 0
  %2161 = vmatpush1.bf16.msra.mxu0 0
  %2162 = vmatprep.subr.bf16.mxu0 0
  %2163 = vmatpush1.bf16.msra.mxu0 0
  %2164 = vmatprep.subr.bf16.mxu0 0
  %2165 = vmatpush1.bf16.msra.mxu0 0
  %2166 = vmatprep.subr.bf16.mxu0 0
  %2167 = vmatpush1.bf16.msra.mxu0 0
  %2168 = vmatprep.subr.bf16.mxu0 0
  %2169 = vmatpush1.bf16.msra.mxu0 0
  %2170 = vmatprep.subr.bf16.mxu0 0
  %2171 = vmatpush1.bf16.msra.mxu0 0
  %2172 = vmatprep.subr.bf16.mxu0 0
  %2173 = vmatpush1.bf16.msra.mxu0 0
  %2174 = vmatprep.subr.bf16.mxu0 0
  %2175 = vmatpush1.bf16.msra.mxu0 0
  %2176 = vmatprep.mubr.bf16.mxu0 0
  %2177 = vmatmul.mubr.bf16.gmra.mrb[0].mxu0 %v2133
  %v2178 = vpop.f32.mrb[0].mxu0
  %v2179 = vadd.f32 0.0, %v2178
  %v2180 = vpop.f32.mrb[0].mxu0
  %v2181 = vpop.f32.mrb[0].mxu0
  %v2182 = vadd.f32 0.0, %v2181
  %v2183 = vpop.f32.mrb[0].mxu0
  %2184 = vmatprep.mubr.bf16.mxu0 0
  %2185 = vmatmul.mubr.bf16.gmra.mrb[0].mxu0 %v2136
  %v2186 = vpop.f32.mrb[0].mxu0
  %v2187 = vadd.f32 0.0, %v2186
  %v2188 = vpop.f32.mrb[0].mxu0
  %v2189 = vpop.f32.mrb[0].mxu0
  %v2190 = vadd.f32 0.0, %v2189
  %v2191 = vpop.f32.mrb[0].mxu0
  %2192 = vmatprep.mubr.bf16.mxu0 0
  %2193 = vmatmul.mubr.bf16.gmra.mrb[0].mxu0 %v2139
  %v2194 = vpop.f32.mrb[0].mxu0
  %v2195 = vadd.f32 0.0, %v2194
  %v2196 = vpop.f32.mrb[0].mxu0
  %v2197 = vpop.f32.mrb[0].mxu0
  %v2198 = vadd.f32 0.0, %v2197
  %v2199 = vpop.f32.mrb[0].mxu0
  %2200 = vmatprep.mubr.bf16.mxu0 0
  %2201 = vmatmul.mubr.bf16.gmra.mrb[0].mxu0 %v2142
  %v2202 = vpop.f32.mrb[0].mxu0
  %v2203 = vadd.f32 0.0, %v2202
  %v2204 = vpop.f32.mrb[0].mxu0
  %v2205 = vpop.f32.mrb[0].mxu0
  %v2206 = vadd.f32 0.0, %v2205
  %v2207 = vpop.f32.mrb[0].mxu0
  %2208 = vdwg.mxu0
  %v2209 = vadd.f32 %v2023, %v2179
  %v2210 = vadd.f32 %v2024, %v2182
  %v2211 = vadd.f32 %v2025, %v2187
  %v2212 = vadd.f32 %v2026, %v2190
  %v2213 = vadd.f32 %v2027, %v2195
  %v2214 = vadd.f32 %v2028, %v2198
  %v2215 = vadd.f32 %v2029, %v2203
  %v2216 = vadd.f32 %v2030, %v2206
  %v2217 = vld [vmem:[%s0 + $0x8] sm:$0xe]
  %s2218 = scalar_lea.vmem %s1, 480
  %v2219 = vld [vmem:[%s2218] sm:$0xf]
  %v2220 = vld [vmem:[%s2218 + $0x4] sm:$0xf]
  %v2221 = vld [vmem:[%s2218 + $0x8] sm:$0xf]
  %v2222 = vld [vmem:[%s2218 + $0xc] sm:$0xf]
  %v2223 = vld [vmem:[%s2218 + $0x10] sm:$0xf]
  %v2224 = vld [vmem:[%s2218 + $0x14] sm:$0xf]
  %v2225 = vld [vmem:[%s2218 + $0x18] sm:$0xf]
  %v2226 = vld [vmem:[%s2218 + $0x1c] sm:$0xf]
  %v2228 = vunpack.c.l.b16 %v2217
  %v2229 = vpack.c.b16 %v2059, %v2228
  %v2230 = vrot.slane %v2229, 1
  %v2231 = vrot.slane %v2068, 1
  %v2232 = vsel %vm313, %v2230, %v2231
  %v2233 = vrot.slane %v2069, 1
  %v2234 = vsel %vm313, %v2231, %v2233
  %v2235 = vrot.slane %v2070, 1
  %v2236 = vsel %vm313, %v2233, %v2235
  %v2237 = vrot.slane %v2071, 1
  %v2238 = vsel %vm313, %v2235, %v2237
  %v2247 = vunpack.c.l.b16 %v2219
  %v2248 = vunpack.c.l.b16 %v2220
  %v2249 = vunpack.c.l.b16 %v2221
  %v2250 = vunpack.c.l.b16 %v2222
  %v2251 = vunpack.c.l.b16 %v2223
  %v2252 = vunpack.c.l.b16 %v2224
  %v2253 = vunpack.c.l.b16 %v2225
  %v2254 = vunpack.c.l.b16 %v2226
  %v2255 = vpack.c.b16 %v2248, %v2247
  %v2256 = vpack.c.b16 %v2250, %v2249
  %v2257 = vpack.c.b16 %v2252, %v2251
  %v2258 = vpack.c.b16 %v2254, %v2253
  %v2264 = vsel %vm125, %v2232, 0
  %v2267 = vsel %vm125, %v2234, 0
  %v2270 = vsel %vm125, %v2236, 0
  %v2273 = vsel %vm125, %v2238, 0
  %2275 = vmatprep.subr.bf16.mxu0 0
  %2276 = vmatpush1.bf16.msra.mxu0 %v2255
  %2277 = vmatprep.subr.bf16.mxu0 0
  %2278 = vmatpush1.bf16.msra.mxu0 %v2256
  %2279 = vmatprep.subr.bf16.mxu0 0
  %2280 = vmatpush1.bf16.msra.mxu0 %v2257
  %2281 = vmatprep.subr.bf16.mxu0 0
  %2282 = vmatpush1.bf16.msra.mxu0 %v2258
  %2283 = vmatprep.subr.bf16.mxu0 0
  %2284 = vmatpush1.bf16.msra.mxu0 0
  %2285 = vmatprep.subr.bf16.mxu0 0
  %2286 = vmatpush1.bf16.msra.mxu0 0
  %2287 = vmatprep.subr.bf16.mxu0 0
  %2288 = vmatpush1.bf16.msra.mxu0 0
  %2289 = vmatprep.subr.bf16.mxu0 0
  %2290 = vmatpush1.bf16.msra.mxu0 0
  %2291 = vmatprep.subr.bf16.mxu0 0
  %2292 = vmatpush1.bf16.msra.mxu0 0
  %2293 = vmatprep.subr.bf16.mxu0 0
  %2294 = vmatpush1.bf16.msra.mxu0 0
  %2295 = vmatprep.subr.bf16.mxu0 0
  %2296 = vmatpush1.bf16.msra.mxu0 0
  %2297 = vmatprep.subr.bf16.mxu0 0
  %2298 = vmatpush1.bf16.msra.mxu0 0
  %2299 = vmatprep.subr.bf16.mxu0 0
  %2300 = vmatpush1.bf16.msra.mxu0 0
  %2301 = vmatprep.subr.bf16.mxu0 0
  %2302 = vmatpush1.bf16.msra.mxu0 0
  %2303 = vmatprep.subr.bf16.mxu0 0
  %2304 = vmatpush1.bf16.msra.mxu0 0
  %2305 = vmatprep.subr.bf16.mxu0 0
  %2306 = vmatpush1.bf16.msra.mxu0 0
  %2307 = vmatprep.mubr.bf16.mxu0 0
  %2308 = vmatmul.mubr.bf16.gmra.mrb[0].mxu0 %v2264
  %v2309 = vpop.f32.mrb[0].mxu0
  %v2310 = vadd.f32 0.0, %v2309
  %v2311 = vpop.f32.mrb[0].mxu0
  %v2312 = vpop.f32.mrb[0].mxu0
  %v2313 = vadd.f32 0.0, %v2312
  %v2314 = vpop.f32.mrb[0].mxu0
  %2315 = vmatprep.mubr.bf16.mxu0 0
  %2316 = vmatmul.mubr.bf16.gmra.mrb[0].mxu0 %v2267
  %v2317 = vpop.f32.mrb[0].mxu0
  %v2318 = vadd.f32 0.0, %v2317
  %v2319 = vpop.f32.mrb[0].mxu0
  %v2320 = vpop.f32.mrb[0].mxu0
  %v2321 = vadd.f32 0.0, %v2320
  %v2322 = vpop.f32.mrb[0].mxu0
  %2323 = vmatprep.mubr.bf16.mxu0 0
  %2324 = vmatmul.mubr.bf16.gmra.mrb[0].mxu0 %v2270
  %v2325 = vpop.f32.mrb[0].mxu0
  %v2326 = vadd.f32 0.0, %v2325
  %v2327 = vpop.f32.mrb[0].mxu0
  %v2328 = vpop.f32.mrb[0].mxu0
  %v2329 = vadd.f32 0.0, %v2328
  %v2330 = vpop.f32.mrb[0].mxu0
  %2331 = vmatprep.mubr.bf16.mxu0 0
  %2332 = vmatmul.mubr.bf16.gmra.mrb[0].mxu0 %v2273
  %v2333 = vpop.f32.mrb[0].mxu0
  %v2334 = vadd.f32 0.0, %v2333
  %v2335 = vpop.f32.mrb[0].mxu0
  %v2336 = vpop.f32.mrb[0].mxu0
  %v2337 = vadd.f32 0.0, %v2336
  %v2338 = vpop.f32.mrb[0].mxu0
  %2339 = vdwg.mxu0
  %v2340 = vadd.f32 %v2209, %v2310
  %v2341 = vadd.f32 %v2210, %v2313
  %v2342 = vadd.f32 %v2211, %v2318
  %v2343 = vadd.f32 %v2212, %v2321
  %v2344 = vadd.f32 %v2213, %v2326
  %v2345 = vadd.f32 %v2214, %v2329
  %v2346 = vadd.f32 %v2215, %v2334
  %v2347 = vadd.f32 %v2216, %v2337
  %v2348 = vld [vmem:[%s2] sm:$0x1]
  %v2350 = vlaneseq
  %v2351 = vshrl.u32 %v2350, 7
  %v2352 = vsub.s32 0, %v2351
  %v2353 = vrot.slane %v2348, %v2352
  %v2355 = vadd.f32 %v2340, %v2353
  %v2356 = vadd.f32 %v2341, %v2353
  %v2357 = vadd.f32 %v2342, %v2353
  %v2358 = vadd.f32 %v2343, %v2353
  %v2359 = vadd.f32 %v2344, %v2353
  %v2360 = vadd.f32 %v2345, %v2353
  %v2361 = vadd.f32 %v2346, %v2353
  %v2362 = vadd.f32 %v2347, %v2353
  %v2363 = vand.u32 2147483647, %v2355
  %v2364 = vand.u32 2147483647, %v2356
  %v2365 = vand.u32 2147483647, %v2357
  %v2366 = vand.u32 2147483647, %v2358
  %v2367 = vand.u32 2147483647, %v2359
  %v2368 = vand.u32 2147483647, %v2360
  %v2369 = vand.u32 2147483647, %v2361
  %v2370 = vand.u32 2147483647, %v2362
  %v2371 = vsub.f32 0.0, %v2363
  %v2372 = vsub.f32 0.0, %v2364
  %v2373 = vsub.f32 0.0, %v2365
  %v2374 = vsub.f32 0.0, %v2366
  %v2375 = vsub.f32 0.0, %v2367
  %v2376 = vsub.f32 0.0, %v2368
  %v2377 = vsub.f32 0.0, %v2369
  %v2378 = vsub.f32 0.0, %v2370
  %v2379 = vmul.f32 %v2371, 1.442695
  %v2380 = vpow.pop %v2379
  %v2381 = vmul.f32 %v2372, 1.442695
  %v2382 = vpow.pop %v2381
  %v2383 = vmul.f32 %v2373, 1.442695
  %v2384 = vpow.pop %v2383
  %v2385 = vmul.f32 %v2374, 1.442695
  %v2386 = vpow.pop %v2385
  %v2387 = vmul.f32 %v2375, 1.442695
  %v2388 = vpow.pop %v2387
  %v2389 = vmul.f32 %v2376, 1.442695
  %v2390 = vpow.pop %v2389
  %v2391 = vmul.f32 %v2377, 1.442695
  %v2392 = vpow.pop %v2391
  %v2393 = vmul.f32 %v2378, 1.442695
  %v2394 = vpow.pop %v2393
  %vm2395 = vcmp.ge.f32.partialorder %v2355, 0.0
  %vm2396 = vcmp.ge.f32.partialorder %v2356, 0.0
  %vm2397 = vcmp.ge.f32.partialorder %v2357, 0.0
  %vm2398 = vcmp.ge.f32.partialorder %v2358, 0.0
  %vm2399 = vcmp.ge.f32.partialorder %v2359, 0.0
  %vm2400 = vcmp.ge.f32.partialorder %v2360, 0.0
  %vm2401 = vcmp.ge.f32.partialorder %v2361, 0.0
  %vm2402 = vcmp.ge.f32.partialorder %v2362, 0.0
  %v2403 = vadd.f32 %v2380, 1.0
  %v2404 = vadd.f32 %v2382, 1.0
  %v2405 = vadd.f32 %v2384, 1.0
  %v2406 = vadd.f32 %v2386, 1.0
  %v2407 = vadd.f32 %v2388, 1.0
  %v2408 = vadd.f32 %v2390, 1.0
  %v2409 = vadd.f32 %v2392, 1.0
  %v2410 = vadd.f32 %v2394, 1.0
  %v2411 = vrcp.pop %v2403
  %v2412 = vmul.f32 1.0, %v2411
  %v2413 = vrcp.pop %v2404
  %v2414 = vmul.f32 1.0, %v2413
  %v2415 = vrcp.pop %v2405
  %v2416 = vmul.f32 1.0, %v2415
  %v2417 = vrcp.pop %v2406
  %v2418 = vmul.f32 1.0, %v2417
  %v2419 = vrcp.pop %v2407
  %v2420 = vmul.f32 1.0, %v2419
  %v2421 = vrcp.pop %v2408
  %v2422 = vmul.f32 1.0, %v2421
  %v2423 = vrcp.pop %v2409
  %v2424 = vmul.f32 1.0, %v2423
  %v2425 = vrcp.pop %v2410
  %v2426 = vmul.f32 1.0, %v2425
  %v2427 = vmul.f32 %v2380, %v2411
  %v2428 = vmul.f32 %v2382, %v2413
  %v2429 = vmul.f32 %v2384, %v2415
  %v2430 = vmul.f32 %v2386, %v2417
  %v2431 = vmul.f32 %v2388, %v2419
  %v2432 = vmul.f32 %v2390, %v2421
  %v2433 = vmul.f32 %v2392, %v2423
  %v2434 = vmul.f32 %v2394, %v2425
  %v2435 = vsel %vm2395, %v2412, %v2427
  %v2436 = vsel %vm2396, %v2414, %v2428
  %v2437 = vsel %vm2397, %v2416, %v2429
  %v2438 = vsel %vm2398, %v2418, %v2430
  %v2439 = vsel %vm2399, %v2420, %v2431
  %v2440 = vsel %vm2400, %v2422, %v2432
  %v2441 = vsel %vm2401, %v2424, %v2433
  %v2442 = vsel %vm2402, %v2426, %v2434
  %2443 = vst [vmem:[%s3] sm:$0xff] %v2435
  %2444 = vst [vmem:[%s3 + $0x8] sm:$0xff] %v2436
  %2445 = vst [vmem:[%s3 + $0x10] sm:$0xff] %v2437
  %2446 = vst [vmem:[%s3 + $0x18] sm:$0xff] %v2438
  %2447 = vst [vmem:[%s3 + $0x20] sm:$0xff] %v2439
  %2448 = vst [vmem:[%s3 + $0x28] sm:$0xff] %v2440
  %2449 = vst [vmem:[%s3 + $0x30] sm:$0xff] %v2441
  %2450 = vst [vmem:[%s3 + $0x38] sm:$0xff] %v2442
  // Predicated region
  $region14: #{forward.9} parent=0 // pred_check
    _
  $region15: #{forward.9} parent=0 // pred_check_branch
    %2452 = sbr.rel (0) target = $region17
  $region16: #{forward.9} parent=0 // pred_region
    _
  $region17: #{forward.9} parent=0 // pred_fallthru
    _
  // Predicated region
  $region18: #{forward.9} parent=0 // pred_check
    _
  $region19: #{forward.9} parent=0 // pred_check_branch
    %2454 = sbr.rel (0) target = $region21
  $region20: #{forward.9} parent=0 // pred_region
    _
  $region21: #{forward.9} parent=0 // pred_fallthru
    _

</llo_original>
